<compile_context>
chip_gen: v6e
topology: v6e:2x2x1
jax: 0.10.0
libtpu: 0.0.40
codegen_flags: <defaults>
</compile_context>

<pallas_src>
import functools
import math
from typing import NamedTuple

import jax
import jax.numpy as jnp
from jax import lax
from jax.experimental import pallas as pl
from jax.experimental.pallas import tpu as pltpu

BN_EPS = 1e-5   # PyTorch BatchNorm2d default
LANE = 128
TR_MAX = 512    # max row (token) tile; sweep 512-1024 on v6e if compute-bound


def _round_up(x, m):
    return (x + m - 1) // m * m


def _cdiv(a, b):
    return -(-a // b)


def _vmem_limit(block_bytes):
    """Generation-aware scoped-VMEM request: footprint + headroom, >= 32 MiB default,
    capped at 70% of the physical VMEM of the chip we are compiling for."""
    try:
        cap = int(pltpu.get_tpu_info().vmem_capacity_bytes)
    except Exception:  # pragma: no cover - conservative fallback (v7x-sized)
        cap = 64 * 2 ** 20
    want = max(32 * 2 ** 20, int(block_bytes) + 4 * 2 ** 20)
    return int(min(want, int(cap * 0.7)))


# --------------------------------------------------------------------------------------
# Static plan (all Python ints; hashable -> usable as a jit static arg)
# --------------------------------------------------------------------------------------
class Plan(NamedTuple):
    B: int; H: int; W: int; n: int
    c1: int; cm: int; c2h: int; c2: int
    c1_p: int; cm_p: int; c2h_p: int; c2_p: int
    wp: int; n_grid: int; halo: int; tr: int; nt: int; n_rows: int
    add: bool


def make_plan(x_shape, params, *, n=6, shortcut=False, tr_max=TR_MAX):
    B, c1, H, W = x_shape
    cm = params["m"][0][0].shape[0]
    c2h = params["sc"][0].shape[0]
    c2 = params["ec"][0].shape[0]

    wp = _round_up(W + 2, 8)              # padded-grid row width (8-aligned -> aligned kh taps)
    n_grid = (H + 2) * wp                 # padded-grid tokens per image
    halo = _round_up(wp + 1, 8)           # max |tap shift|, rounded to sublane multiple

    nt0 = max(1, _cdiv(n_grid, tr_max))
    tr = max(_round_up(_cdiv(n_grid, nt0), 8), halo)   # balanced row tile, >= halo
    nt = _cdiv(n_grid, tr)
    n_rows = (nt + 2) * tr                # [tr front guard | nt*tr covered grid | tr back pad]
    assert tr >= halo and nt * tr >= n_grid

    return Plan(B=B, H=H, W=W, n=n, c1=c1, cm=cm, c2h=c2h, c2=c2,
                c1_p=_round_up(c1, LANE), cm_p=_round_up(cm, LANE),
                c2h_p=_round_up(c2h, LANE), c2_p=_round_up(c2, LANE),
                wp=wp, n_grid=n_grid, halo=halo, tr=tr, nt=nt, n_rows=n_rows,
                add=bool(shortcut) and (c1 == c2))


# --------------------------------------------------------------------------------------
# Kernels
# --------------------------------------------------------------------------------------
def _make_conv3x3_kernel(plan):
    """Token-tiled 3x3 / stride-1 / pad-1 conv (+ folded-BN bias + ReLU).

    Grid (B, nt).  Per step the kernel manually DMAs input rows
    [(t+1)*TR - HALO, (t+2)*TR + HALO) into a double buffer, computes the tile's TR output
    rows as 9 shifted (TR, Cin) x (Cin, Cm) MXU dots, applies bias/ReLU, and zeroes the
    spatial-padding ring via a resident mask so the output feeds the next conv directly.

      x_hbm : (B, n_rows, Cin_p) bf16   (pl.ANY; manual DMA)
      w_ref : (9, Cin_p, Cm_p)   bf16   resident tap matrices (kh*3+kw)
      b_ref : (1, Cm_p)          f32    folded BN bias
      m_ref : (TR, 1)            f32    interior mask for this tile's output rows
      o_ref : (1, TR, Cm_p)      bf16   output rows [(t+1)*TR, (t+2)*TR)
    """
    TR, HALO, wp = plan.tr, plan.halo, plan.wp
    RL = TR + 2 * HALO                                    # rows read per tile

    def kernel(x_hbm, w_ref, b_ref, m_ref, o_ref, xbuf, sem):
        b = pl.program_id(0)
        t = pl.program_id(1)
        nt = pl.num_programs(1)
        slot = lax.rem(t, 2)

        def issue(tt, sl):
            start = pl.multiple_of((tt + 1) * TR - HALO, 8)
            pltpu.make_async_copy(
                x_hbm.at[b, pl.ds(start, RL), :], xbuf.at[sl], sem.at[sl]).start()

        @pl.when(t == 0)                                  # prime the pipeline per image
        def _():
            issue(t, slot)

        pltpu.make_async_copy(                             # wait for this tile's rows
            x_hbm.at[b, pl.ds(0, RL), :], xbuf.at[slot], sem.at[slot]).wait()

        @pl.when(t + 1 < nt)                               # prefetch next tile of this image
        def _():
            issue(t + 1, 1 - slot)

        cur = xbuf.at[slot]
        acc = jnp.zeros((TR, o_ref.shape[-1]), jnp.float32)
        for kh in range(3):
            for kw in range(3):
                off = (kh - 1) * wp + (kw - 1)             # static tap offset
                tap = cur[pl.ds(HALO + off, TR), :]        # (TR, Cin_p) bf16
                acc = acc + jnp.dot(tap, w_ref[kh * 3 + kw],
                                    preferred_element_type=jnp.float32)
        y = jnp.maximum(acc + b_ref[...], 0.0)             # bias + ReLU (f32)
        y = jnp.where(m_ref[...] > 0.0, y, 0.0)            # zero ring / pad tokens
        o_ref[0] = y.astype(o_ref.dtype)

    return kernel


def _make_sc_ec_kernel(n, add):
    """Fused squeeze/excite 1x1 convs: out = ReLU(BN(W_ec @ ReLU(BN(W_sc @ concat)))) (+x).

    refs = (x, y_1..y_n, w_sc, b_sc, w_ec, b_ec, out); activation blocks are (1, TR, C).
    The channel concat is folded into 1+n accumulating dots against static row-slices of
    the resident sc weight, so neither the concat nor the sc intermediate touches HBM.
    """
    def kernel(*refs):
        x_ref = refs[0]
        y_refs = refs[1:1 + n]
        w_sc_ref, b_sc_ref, w_ec_ref, b_ec_ref, o_ref = refs[1 + n:]
        c1_p = x_ref.shape[-1]
        cm_p = y_refs[0].shape[-1]

        xv = x_ref[0]                                               # (TR, c1_p) bf16
        acc = jnp.dot(xv, w_sc_ref[:c1_p, :], preferred_element_type=jnp.float32)
        for i in range(n):
            lo = c1_p + i * cm_p                                    # lane-aligned row slice
            acc = acc + jnp.dot(y_refs[i][0], w_sc_ref[lo:lo + cm_p, :],
                                preferred_element_type=jnp.float32)
        z = jnp.maximum(acc + b_sc_ref[...], 0.0).astype(w_ec_ref.dtype)   # sc epilogue
        out = jnp.dot(z, w_ec_ref[...], preferred_element_type=jnp.float32)
        out = jnp.maximum(out + b_ec_ref[...], 0.0)                        # ec epilogue
        if add:                                                            # shortcut (c1 == c2)
            out = out + xv.astype(jnp.float32)
        o_ref[0] = out.astype(o_ref.dtype)

    return kernel


# --------------------------------------------------------------------------------------
# Weight folding / packing (done ONCE at model-load time, outside the jitted forward)
# --------------------------------------------------------------------------------------
def _fold_bn(w, gamma, beta, mean, var):
    """Fold eval-mode BatchNorm into a bias-free conv.  w: (Cout, Cin, kh, kw)."""
    scale = gamma / jnp.sqrt(var + BN_EPS)
    return w * scale[:, None, None, None], beta - mean * scale


def _pack_conv3x3(w, b, cin_p, cm_p):
    """(Cm, Cin, 3, 3) -> (9, cin_p, cm_p) bf16 tap matrices + (1, cm_p) f32 bias."""
    cm, cin = w.shape[0], w.shape[1]
    wt = jnp.transpose(w, (2, 3, 1, 0)).reshape(9, cin, cm)
    wt = jnp.pad(wt, ((0, 0), (0, cin_p - cin), (0, cm_p - cm)))
    br = jnp.pad(b, (0, cm_p - cm)).reshape(1, cm_p)
    return wt.astype(jnp.bfloat16), br.astype(jnp.float32)


def _pack_sc(w, b, c1, cm, n, c1_p, cm_p, c2h_p):
    """sc 1x1 weight (C2h, c1+n*cm, 1, 1) -> (c1_p + n*cm_p, c2h_p) bf16, bias (1, c2h_p) f32."""
    c2h = w.shape[0]
    wt = w.reshape(c2h, c1 + n * cm).T
    pieces = [jnp.pad(wt[:c1], ((0, c1_p - c1), (0, 0)))]
    for i in range(n):
        blk = wt[c1 + i * cm:c1 + (i + 1) * cm]
        pieces.append(jnp.pad(blk, ((0, cm_p - cm), (0, 0))))
    wpk = jnp.pad(jnp.concatenate(pieces, axis=0), ((0, 0), (0, c2h_p - c2h)))
    bp = jnp.pad(b, (0, c2h_p - c2h)).reshape(1, c2h_p)
    return wpk.astype(jnp.bfloat16), bp.astype(jnp.float32)


def pack_hgblock_params(params, plan):
    """Fold BN, transpose/pad/cast all weights, build the resident interior mask."""
    packed = {"w9": [], "bconv": []}
    cin_p = plan.c1_p
    for i in range(plan.n):
        wf, bf = _fold_bn(*params["m"][i])
        w9, br = _pack_conv3x3(wf, bf, cin_p, plan.cm_p)
        packed["w9"].append(w9)
        packed["bconv"].append(br)
        cin_p = plan.cm_p

    wf, bf = _fold_bn(*params["sc"])
    packed["w_sc"], packed["b_sc"] = _pack_sc(
        wf, bf, plan.c1, plan.cm, plan.n, plan.c1_p, plan.cm_p, plan.c2h_p)

    wf, bf = _fold_bn(*params["ec"])
    packed["w_ec"] = jnp.pad(wf.reshape(plan.c2, plan.c2h).T,
                             ((0, plan.c2h_p - plan.c2h),
                              (0, plan.c2_p - plan.c2))).astype(jnp.bfloat16)
    packed["b_ec"] = jnp.pad(bf, (0, plan.c2_p - plan.c2)).reshape(1, plan.c2_p
                                                                   ).astype(jnp.float32)

    # interior mask over the full row layout (1 for real HxW pixels, 0 for ring/guard/pad)
    r = jnp.arange(plan.n_rows, dtype=jnp.int32) - plan.tr          # grid-relative row
    gr, gc = r // plan.wp, r % plan.wp
    interior = ((r >= 0) & (r < plan.n_grid)
                & (gr >= 1) & (gr <= plan.H) & (gc >= 1) & (gc <= plan.W))
    packed["mask"] = interior.astype(jnp.float32).reshape(plan.n_rows, 1)
    return packed


# --------------------------------------------------------------------------------------
# pallas_call wrappers
# --------------------------------------------------------------------------------------
def _conv3x3_call(plan, cin_p, y_tok, w9, brow, mask):
    B, TR, nt, n_rows, cm_p = plan.B, plan.tr, plan.nt, plan.n_rows, plan.cm_p
    RL = TR + 2 * plan.halo
    flops = 2 * B * nt * TR * 9 * cin_p * cm_p
    bytes_acc = (B * nt * (RL * cin_p + TR * cm_p) + 9 * cin_p * cm_p) * 2 + nt * TR * 4
    blk = ((2 * RL * cin_p + 2 * TR * cm_p + 2 * 9 * cin_p * cm_p) * 2
           + TR * cm_p * 4 + 2 * TR * 4 + 2 * cm_p * 4)

    return pl.pallas_call(
        _make_conv3x3_kernel(plan),
        out_shape=jax.ShapeDtypeStruct((B, n_rows, cm_p), jnp.bfloat16),
        grid_spec=pltpu.PrefetchScalarGridSpec(
            num_scalar_prefetch=0,
            grid=(B, nt),
            in_specs=[
                pl.BlockSpec(memory_space=pl.ANY),                        # tokens (HBM, manual DMA)
                pl.BlockSpec((9, cin_p, cm_p), lambda b, t: (0, 0, 0)),   # resident taps
                pl.BlockSpec((1, cm_p), lambda b, t: (0, 0)),             # resident bias
                pl.BlockSpec((TR, 1), lambda b, t: (t + 1, 0)),           # interior mask tile
            ],
            out_specs=pl.BlockSpec((1, TR, cm_p), lambda b, t: (b, t + 1, 0)),
            scratch_shapes=[
                pltpu.VMEM((2, RL, cin_p), jnp.bfloat16),                 # input double buffer
                pltpu.SemaphoreType.DMA((2,)),
            ],
        ),
        compiler_params=pltpu.CompilerParams(
            dimension_semantics=("parallel", "arbitrary"),
            vmem_limit_bytes=_vmem_limit(blk),
        ),
        cost_estimate=pl.CostEstimate(flops=flops, transcendentals=0,
                                      bytes_accessed=bytes_acc),
    )(y_tok, w9, brow, mask)


def _sc_ec_call(plan, x_tok, y_toks, w_sc, b_sc, w_ec, b_ec):
    B, TR, nt, n = plan.B, plan.tr, plan.nt, plan.n
    c1_p, cm_p, c2h_p, c2_p = plan.c1_p, plan.cm_p, plan.c2h_p, plan.c2_p
    ksc_p = c1_p + n * cm_p
    flops = 2 * B * nt * TR * (ksc_p * c2h_p + c2h_p * c2_p)
    bytes_acc = (B * nt * TR * (c1_p + n * cm_p + c2_p)
                 + ksc_p * c2h_p + c2h_p * c2_p) * 2
    blk = ((2 * TR * (c1_p + n * cm_p + c2_p)
            + 2 * (ksc_p * c2h_p + c2h_p * c2_p)) * 2 + TR * c2h_p * 4)

    in_specs = [pl.BlockSpec((1, TR, c1_p), lambda b, i: (b, i + 1, 0))]
    in_specs += [pl.BlockSpec((1, TR, cm_p), lambda b, i: (b, i + 1, 0)) for _ in range(n)]
    in_specs += [
        pl.BlockSpec((ksc_p, c2h_p), lambda b, i: (0, 0)),
        pl.BlockSpec((1, c2h_p), lambda b, i: (0, 0)),
        pl.BlockSpec((c2h_p, c2_p), lambda b, i: (0, 0)),
        pl.BlockSpec((1, c2_p), lambda b, i: (0, 0)),
    ]

    return pl.pallas_call(
        _make_sc_ec_kernel(n, plan.add),
        out_shape=jax.ShapeDtypeStruct((B, nt * TR, c2_p), jnp.bfloat16),
        grid_spec=pltpu.PrefetchScalarGridSpec(
            num_scalar_prefetch=0,
            grid=(B, nt),
            in_specs=in_specs,
            out_specs=pl.BlockSpec((1, TR, c2_p), lambda b, i: (b, i, 0)),
        ),
        compiler_params=pltpu.CompilerParams(
            dimension_semantics=("parallel", "parallel"),
            vmem_limit_bytes=_vmem_limit(blk),
        ),
        cost_estimate=pl.CostEstimate(flops=flops, transcendentals=0,
                                      bytes_accessed=bytes_acc),
    )(x_tok, *y_toks, w_sc, b_sc, w_ec, b_ec)


# --------------------------------------------------------------------------------------
# Forward
# --------------------------------------------------------------------------------------
@functools.partial(jax.jit, static_argnames=("plan",))
def hgblock_forward(x, packed, *, plan):
    """x: (B, c1, H, W) f32.  Returns (B, c2, H, W) bf16."""
    B, c1, H, W = x.shape
    TR, nt, n_rows, wp, n_grid = plan.tr, plan.nt, plan.n_rows, plan.wp, plan.n_grid
    c1_p = plan.c1_p

    # pack the input into the flattened, zero-padded token grid (bf16, lane-padded C)
    x_nhwc = jnp.transpose(x, (0, 2, 3, 1))
    x_nhwc = jnp.pad(x_nhwc, ((0, 0), (1, 1), (1, wp - W - 1), (0, c1_p - c1)))
    x_tok = x_nhwc.reshape(B, n_grid, c1_p).astype(jnp.bfloat16)
    x_tok = jnp.pad(x_tok, ((0, 0), (TR, n_rows - TR - n_grid), (0, 0)))

    # n sequential 3x3 conv + BN + ReLU stages (all stay in the token-grid layout)
    y_toks = []
    y_prev, cin_p = x_tok, c1_p
    for i in range(plan.n):
        y_prev = _conv3x3_call(plan, cin_p, y_prev,
                               packed["w9"][i], packed["bconv"][i], packed["mask"])
        y_toks.append(y_prev)
        cin_p = plan.cm_p

    # fused concat + sc + ec (+ optional shortcut), token-tiled
    out_tok = _sc_ec_call(plan, x_tok, y_toks,
                          packed["w_sc"], packed["b_sc"], packed["w_ec"], packed["b_ec"])

    # extract interior tokens / real channels and go back to NCHW
    out = out_tok[:, :n_grid, :].reshape(B, H + 2, wp, plan.c2_p)
    out = out[:, 1:H + 1, 1:W + 1, :plan.c2]
    return jnp.transpose(out, (0, 3, 1, 2))


# --------------------------------------------------------------------------------------
# Pure-JAX f32 reference (mirrors the PyTorch module in eval mode)
# --------------------------------------------------------------------------------------
def _conv_bn_relu_ref(x, w, gamma, beta, mean, var, pad):
    y = lax.conv_general_dilated(
        x, w, window_strides=(1, 1), padding=((pad, pad), (pad, pad)),
        dimension_numbers=("NCHW", "OIHW", "NCHW"))
    scale = (gamma / jnp.sqrt(var + BN_EPS))[None, :, None, None]
    y = (y - mean[None, :, None, None]) * scale + beta[None, :, None, None]
    return jnp.maximum(y, 0.0)


def hgblock_reference(x, params, *, n=6, shortcut=False):
    ys = [x]
    for i in range(n):
        w, g, b, mu, v = params["m"][i]
        ys.append(_conv_bn_relu_ref(ys[-1], w, g, b, mu, v, pad=1))
    cat = jnp.concatenate(ys, axis=1)
    z = _conv_bn_relu_ref(cat, *params["sc"], pad=0)
    z = _conv_bn_relu_ref(z, *params["ec"], pad=0)
    return z + x if (shortcut and x.shape[1] == z.shape[1]) else z


# --------------------------------------------------------------------------------------
if __name__ == "__main__":
    B, c1, cm, c2, H, W = 2, 8, 16, 16, 16, 16
    n = 6
    shortcut = False            # HGBlock default (add path is implemented; needs c1 == c2)
    c2h = c2 // 2

    key = jax.random.PRNGKey(0)
    keys = jax.random.split(key, 2 * n + 5)

    def bn_params(k, c):
        k1, k2, k3, k4 = jax.random.split(k, 4)
        gamma = 1.0 + 0.1 * jax.random.normal(k1, (c,), jnp.float32)
        beta = 0.1 * jax.random.normal(k2, (c,), jnp.float32)
        mean = 0.1 * jax.random.normal(k3, (c,), jnp.float32)
        var = jax.random.uniform(k4, (c,), jnp.float32, 0.5, 1.5)
        return gamma, beta, mean, var

    params = {"m": []}
    cin = c1
    for i in range(n):
        w = jax.random.normal(keys[2 * i], (cm, cin, 3, 3), jnp.float32) / math.sqrt(9 * cin)
        params["m"].append((w,) + bn_params(keys[2 * i + 1], cm))
        cin = cm
    ksc = c1 + n * cm
    w_sc = jax.random.normal(keys[2 * n], (c2h, ksc, 1, 1), jnp.float32) / math.sqrt(ksc)
    params["sc"] = (w_sc,) + bn_params(keys[2 * n + 1], c2h)
    w_ec = jax.random.normal(keys[2 * n + 2], (c2, c2h, 1, 1), jnp.float32) / math.sqrt(c2h)
    params["ec"] = (w_ec,) + bn_params(keys[2 * n + 3], c2)

    x = jax.random.normal(keys[2 * n + 4], (B, c1, H, W), jnp.float32)

    # one-time packing (BN fold, transpose/pad/cast, resident interior mask)
    plan = make_plan(x.shape, params, n=n, shortcut=shortcut)
    packed = pack_hgblock_params(params, plan)

    out = hgblock_forward(x, packed, plan=plan)
    out = jax.block_until_ready(out)

    ref = hgblock_reference(x, params, n=n, shortcut=shortcut)
    assert out.shape == ref.shape == (B, c2, H, W), (out.shape, ref.shape)

    err = float(jnp.max(jnp.abs(out.astype(jnp.float32) - ref)))
    scale = float(jnp.max(jnp.abs(ref)))
    assert err <= 0.05 * scale + 0.05, ("max abs err too large", err, scale)

    print("KERNEL_OK")
</pallas_src>

<mosaic_0001>
module attributes {stable_mosaic.version = 11 : i64} {
  func.func @kernel(%arg0: i32, %arg1: i32, %arg2: memref<1x432x128xbf16, #tpu.memory_space<vmem>>, %arg3: memref<1x432x128xbf16, #tpu.memory_space<vmem>>, %arg4: memref<1x432x128xbf16, #tpu.memory_space<vmem>>, %arg5: memref<1x432x128xbf16, #tpu.memory_space<vmem>>, %arg6: memref<1x432x128xbf16, #tpu.memory_space<vmem>>, %arg7: memref<1x432x128xbf16, #tpu.memory_space<vmem>>, %arg8: memref<1x432x128xbf16, #tpu.memory_space<vmem>>, %arg9: memref<896x128xbf16, #tpu.memory_space<vmem>>, %arg10: memref<1x128xf32, #tpu.memory_space<vmem>>, %arg11: memref<128x128xbf16, #tpu.memory_space<vmem>>, %arg12: memref<1x128xf32, #tpu.memory_space<vmem>>, %arg13: memref<1x432x128xbf16, #tpu.memory_space<vmem>>) attributes {dimension_semantics = [#tpu.dimension_semantics<parallel>, #tpu.dimension_semantics<parallel>], iteration_bounds = array<i64: 2, 1>, scalar_prefetch = 0 : i64, scratch_operands = 0 : i64, tpu.core_type = #tpu.core_type<tc>, window_params = [{transform_indices = @transform_0, window_bounds = array<i64: 1, 432, 128>}, {transform_indices = @transform_1, window_bounds = array<i64: 1, 432, 128>}, {transform_indices = @transform_2, window_bounds = array<i64: 1, 432, 128>}, {transform_indices = @transform_3, window_bounds = array<i64: 1, 432, 128>}, {transform_indices = @transform_4, window_bounds = array<i64: 1, 432, 128>}, {transform_indices = @transform_5, window_bounds = array<i64: 1, 432, 128>}, {transform_indices = @transform_6, window_bounds = array<i64: 1, 432, 128>}, {pipeline_mode = #tpu.pipeline_mode<synchronous>, transform_indices = @transform_7, window_bounds = array<i64: 896, 128>}, {pipeline_mode = #tpu.pipeline_mode<synchronous>, transform_indices = @transform_8, window_bounds = array<i64: 1, 128>}, {pipeline_mode = #tpu.pipeline_mode<synchronous>, transform_indices = @transform_9, window_bounds = array<i64: 128, 128>}, {pipeline_mode = #tpu.pipeline_mode<synchronous>, transform_indices = @transform_10, window_bounds = array<i64: 1, 128>}, {transform_indices = @transform_11, window_bounds = array<i64: 1, 432, 128>}]} {
    %c0 = arith.constant 0 : index
    %c0_0 = arith.constant 0 : index
    %c0_1 = arith.constant 0 : index
    %0 = vector.load %arg2[%c0, %c0_0, %c0_1] : memref<1x432x128xbf16, #tpu.memory_space<vmem>>, vector<1x432x128xbf16>
    %1 = vector.shape_cast %0 : vector<1x432x128xbf16> to vector<432x128xbf16>
    %c0_2 = arith.constant 0 : index
    %c0_3 = arith.constant 0 : index
    %2 = vector.load %arg9[%c0_2, %c0_3] : memref<896x128xbf16, #tpu.memory_space<vmem>>, vector<128x128xbf16>
    %cst = arith.constant dense<0.000000e+00> : vector<432x128xf32>
    %3 = tpu.matmul %1, %2, %cst {dimension_numbers = #tpu.dot_dimension_numbers<[1], [0], [0], [1], [0, 0, 1, 1], [], []>} : vector<432x128xbf16>, vector<128x128xbf16>, vector<432x128xf32> -> vector<432x128xf32>
    %c0_4 = arith.constant 0 : index
    %c0_5 = arith.constant 0 : index
    %c0_6 = arith.constant 0 : index
    %4 = vector.load %arg3[%c0_4, %c0_5, %c0_6] : memref<1x432x128xbf16, #tpu.memory_space<vmem>>, vector<1x432x128xbf16>
    %5 = vector.shape_cast %4 : vector<1x432x128xbf16> to vector<432x128xbf16>
    %c128 = arith.constant 128 : index
    %c0_7 = arith.constant 0 : index
    %6 = vector.load %arg9[%c128, %c0_7] : memref<896x128xbf16, #tpu.memory_space<vmem>>, vector<128x128xbf16>
    %cst_8 = arith.constant dense<0.000000e+00> : vector<432x128xf32>
    %7 = tpu.matmul %5, %6, %cst_8 {dimension_numbers = #tpu.dot_dimension_numbers<[1], [0], [0], [1], [0, 0, 1, 1], [], []>} : vector<432x128xbf16>, vector<128x128xbf16>, vector<432x128xf32> -> vector<432x128xf32>
    %8 = arith.addf %3, %7 : vector<432x128xf32>
    %c0_9 = arith.constant 0 : index
    %c0_10 = arith.constant 0 : index
    %c0_11 = arith.constant 0 : index
    %9 = vector.load %arg4[%c0_9, %c0_10, %c0_11] : memref<1x432x128xbf16, #tpu.memory_space<vmem>>, vector<1x432x128xbf16>
    %10 = vector.shape_cast %9 : vector<1x432x128xbf16> to vector<432x128xbf16>
    %c256 = arith.constant 256 : index
    %c0_12 = arith.constant 0 : index
    %11 = vector.load %arg9[%c256, %c0_12] : memref<896x128xbf16, #tpu.memory_space<vmem>>, vector<128x128xbf16>
    %cst_13 = arith.constant dense<0.000000e+00> : vector<432x128xf32>
    %12 = tpu.matmul %10, %11, %cst_13 {dimension_numbers = #tpu.dot_dimension_numbers<[1], [0], [0], [1], [0, 0, 1, 1], [], []>} : vector<432x128xbf16>, vector<128x128xbf16>, vector<432x128xf32> -> vector<432x128xf32>
    %13 = arith.addf %8, %12 : vector<432x128xf32>
    %c0_14 = arith.constant 0 : index
    %c0_15 = arith.constant 0 : index
    %c0_16 = arith.constant 0 : index
    %14 = vector.load %arg5[%c0_14, %c0_15, %c0_16] : memref<1x432x128xbf16, #tpu.memory_space<vmem>>, vector<1x432x128xbf16>
    %15 = vector.shape_cast %14 : vector<1x432x128xbf16> to vector<432x128xbf16>
    %c384 = arith.constant 384 : index
    %c0_17 = arith.constant 0 : index
    %16 = vector.load %arg9[%c384, %c0_17] : memref<896x128xbf16, #tpu.memory_space<vmem>>, vector<128x128xbf16>
    %cst_18 = arith.constant dense<0.000000e+00> : vector<432x128xf32>
    %17 = tpu.matmul %15, %16, %cst_18 {dimension_numbers = #tpu.dot_dimension_numbers<[1], [0], [0], [1], [0, 0, 1, 1], [], []>} : vector<432x128xbf16>, vector<128x128xbf16>, vector<432x128xf32> -> vector<432x128xf32>
    %18 = arith.addf %13, %17 : vector<432x128xf32>
    %c0_19 = arith.constant 0 : index
    %c0_20 = arith.constant 0 : index
    %c0_21 = arith.constant 0 : index
    %19 = vector.load %arg6[%c0_19, %c0_20, %c0_21] : memref<1x432x128xbf16, #tpu.memory_space<vmem>>, vector<1x432x128xbf16>
    %20 = vector.shape_cast %19 : vector<1x432x128xbf16> to vector<432x128xbf16>
    %c512 = arith.constant 512 : index
    %c0_22 = arith.constant 0 : index
    %21 = vector.load %arg9[%c512, %c0_22] : memref<896x128xbf16, #tpu.memory_space<vmem>>, vector<128x128xbf16>
    %cst_23 = arith.constant dense<0.000000e+00> : vector<432x128xf32>
    %22 = tpu.matmul %20, %21, %cst_23 {dimension_numbers = #tpu.dot_dimension_numbers<[1], [0], [0], [1], [0, 0, 1, 1], [], []>} : vector<432x128xbf16>, vector<128x128xbf16>, vector<432x128xf32> -> vector<432x128xf32>
    %23 = arith.addf %18, %22 : vector<432x128xf32>
    %c0_24 = arith.constant 0 : index
    %c0_25 = arith.constant 0 : index
    %c0_26 = arith.constant 0 : index
    %24 = vector.load %arg7[%c0_24, %c0_25, %c0_26] : memref<1x432x128xbf16, #tpu.memory_space<vmem>>, vector<1x432x128xbf16>
    %25 = vector.shape_cast %24 : vector<1x432x128xbf16> to vector<432x128xbf16>
    %c640 = arith.constant 640 : index
    %c0_27 = arith.constant 0 : index
    %26 = vector.load %arg9[%c640, %c0_27] : memref<896x128xbf16, #tpu.memory_space<vmem>>, vector<128x128xbf16>
    %cst_28 = arith.constant dense<0.000000e+00> : vector<432x128xf32>
    %27 = tpu.matmul %25, %26, %cst_28 {dimension_numbers = #tpu.dot_dimension_numbers<[1], [0], [0], [1], [0, 0, 1, 1], [], []>} : vector<432x128xbf16>, vector<128x128xbf16>, vector<432x128xf32> -> vector<432x128xf32>
    %28 = arith.addf %23, %27 : vector<432x128xf32>
    %c0_29 = arith.constant 0 : index
    %c0_30 = arith.constant 0 : index
    %c0_31 = arith.constant 0 : index
    %29 = vector.load %arg8[%c0_29, %c0_30, %c0_31] : memref<1x432x128xbf16, #tpu.memory_space<vmem>>, vector<1x432x128xbf16>
    %30 = vector.shape_cast %29 : vector<1x432x128xbf16> to vector<432x128xbf16>
    %c768 = arith.constant 768 : index
    %c0_32 = arith.constant 0 : index
    %31 = vector.load %arg9[%c768, %c0_32] : memref<896x128xbf16, #tpu.memory_space<vmem>>, vector<128x128xbf16>
    %cst_33 = arith.constant dense<0.000000e+00> : vector<432x128xf32>
    %32 = tpu.matmul %30, %31, %cst_33 {dimension_numbers = #tpu.dot_dimension_numbers<[1], [0], [0], [1], [0, 0, 1, 1], [], []>} : vector<432x128xbf16>, vector<128x128xbf16>, vector<432x128xf32> -> vector<432x128xf32>
    %33 = arith.addf %28, %32 : vector<432x128xf32>
    %c0_34 = arith.constant 0 : index
    %c0_35 = arith.constant 0 : index
    %34 = vector.load %arg10[%c0_34, %c0_35] : memref<1x128xf32, #tpu.memory_space<vmem>>, vector<1x128xf32>
    %35 = vector.broadcast %34 : vector<1x128xf32> to vector<432x128xf32>
    %36 = arith.addf %33, %35 : vector<432x128xf32>
    %cst_36 = arith.constant 0.000000e+00 : f32
    %37 = vector.broadcast %cst_36 : f32 to vector<432x128xf32>
    %38 = arith.maximumf %36, %37 : vector<432x128xf32>
    %39 = arith.truncf %38 : vector<432x128xf32> to vector<432x128xbf16>
    %c0_37 = arith.constant 0 : index
    %c0_38 = arith.constant 0 : index
    %40 = vector.load %arg11[%c0_37, %c0_38] : memref<128x128xbf16, #tpu.memory_space<vmem>>, vector<128x128xbf16>
    %cst_39 = arith.constant dense<0.000000e+00> : vector<432x128xf32>
    %41 = tpu.matmul %39, %40, %cst_39 {dimension_numbers = #tpu.dot_dimension_numbers<[1], [0], [0], [1], [0, 0, 1, 1], [], []>} : vector<432x128xbf16>, vector<128x128xbf16>, vector<432x128xf32> -> vector<432x128xf32>
    %c0_40 = arith.constant 0 : index
    %c0_41 = arith.constant 0 : index
    %42 = vector.load %arg12[%c0_40, %c0_41] : memref<1x128xf32, #tpu.memory_space<vmem>>, vector<1x128xf32>
    %43 = vector.broadcast %42 : vector<1x128xf32> to vector<432x128xf32>
    %44 = arith.addf %41, %43 : vector<432x128xf32>
    %cst_42 = arith.constant 0.000000e+00 : f32
    %45 = vector.broadcast %cst_42 : f32 to vector<432x128xf32>
    %46 = arith.maximumf %44, %45 : vector<432x128xf32>
    %47 = arith.truncf %46 : vector<432x128xf32> to vector<432x128xbf16>
    %c0_43 = arith.constant 0 : index
    %c0_44 = arith.constant 0 : index
    %c0_45 = arith.constant 0 : index
    %48 = vector.load %arg13[%c0_43, %c0_44, %c0_45] : memref<1x432x128xbf16, #tpu.memory_space<vmem>>, vector<1x432x128xbf16>
    %49 = vector.shape_cast %48 : vector<1x432x128xbf16> to vector<432x128xbf16>
    %50 = vector.shape_cast %47 : vector<432x128xbf16> to vector<1x432x128xbf16>
    tpu.vector_store %arg13[%c0_43, %c0_44, %c0_45], %50 {strides = array<i32>} : memref<1x432x128xbf16, #tpu.memory_space<vmem>>, vector<1x432x128xbf16>,
    return
  }
  func.func @transform_0(%arg0: i32, %arg1: i32) -> (i32, i32, i32) {
    %c1_i32 = arith.constant 1 : i32
    %0 = arith.addi %arg1, %c1_i32 : i32
    %c0_i32 = arith.constant 0 : i32
    %c0_i32_0 = arith.constant 0 : i32
    return %arg0, %0, %c0_i32 : i32, i32, i32
  }
  func.func @transform_1(%arg0: i32, %arg1: i32) -> (i32, i32, i32) {
    %c1_i32 = arith.constant 1 : i32
    %0 = arith.addi %arg1, %c1_i32 : i32
    %c0_i32 = arith.constant 0 : i32
    %c0_i32_0 = arith.constant 0 : i32
    return %arg0, %0, %c0_i32 : i32, i32, i32
  }
  func.func @transform_2(%arg0: i32, %arg1: i32) -> (i32, i32, i32) {
    %c1_i32 = arith.constant 1 : i32
    %0 = arith.addi %arg1, %c1_i32 : i32
    %c0_i32 = arith.constant 0 : i32
    %c0_i32_0 = arith.constant 0 : i32
    return %arg0, %0, %c0_i32 : i32, i32, i32
  }
  func.func @transform_3(%arg0: i32, %arg1: i32) -> (i32, i32, i32) {
    %c1_i32 = arith.constant 1 : i32
    %0 = arith.addi %arg1, %c1_i32 : i32
    %c0_i32 = arith.constant 0 : i32
    %c0_i32_0 = arith.constant 0 : i32
    return %arg0, %0, %c0_i32 : i32, i32, i32
  }
  func.func @transform_4(%arg0: i32, %arg1: i32) -> (i32, i32, i32) {
    %c1_i32 = arith.constant 1 : i32
    %0 = arith.addi %arg1, %c1_i32 : i32
    %c0_i32 = arith.constant 0 : i32
    %c0_i32_0 = arith.constant 0 : i32
    return %arg0, %0, %c0_i32 : i32, i32, i32
  }
  func.func @transform_5(%arg0: i32, %arg1: i32) -> (i32, i32, i32) {
    %c1_i32 = arith.constant 1 : i32
    %0 = arith.addi %arg1, %c1_i32 : i32
    %c0_i32 = arith.constant 0 : i32
    %c0_i32_0 = arith.constant 0 : i32
    return %arg0, %0, %c0_i32 : i32, i32, i32
  }
  func.func @transform_6(%arg0: i32, %arg1: i32) -> (i32, i32, i32) {
    %c1_i32 = arith.constant 1 : i32
    %0 = arith.addi %arg1, %c1_i32 : i32
    %c0_i32 = arith.constant 0 : i32
    %c0_i32_0 = arith.constant 0 : i32
    return %arg0, %0, %c0_i32 : i32, i32, i32
  }
  func.func @transform_7(%arg0: i32, %arg1: i32) -> (i32, i32) {
    %c0_i32 = arith.constant 0 : i32
    %c0_i32_0 = arith.constant 0 : i32
    %c0_i32_1 = arith.constant 0 : i32
    return %c0_i32, %c0_i32_0 : i32, i32
  }
  func.func @transform_8(%arg0: i32, %arg1: i32) -> (i32, i32) {
    %c0_i32 = arith.constant 0 : i32
    %c0_i32_0 = arith.constant 0 : i32
    %c0_i32_1 = arith.constant 0 : i32
    return %c0_i32, %c0_i32_0 : i32, i32
  }
  func.func @transform_9(%arg0: i32, %arg1: i32) -> (i32, i32) {
    %c0_i32 = arith.constant 0 : i32
    %c0_i32_0 = arith.constant 0 : i32
    %c0_i32_1 = arith.constant 0 : i32
    return %c0_i32, %c0_i32_0 : i32, i32
  }
  func.func @transform_10(%arg0: i32, %arg1: i32) -> (i32, i32) {
    %c0_i32 = arith.constant 0 : i32
    %c0_i32_0 = arith.constant 0 : i32
    %c0_i32_1 = arith.constant 0 : i32
    return %c0_i32, %c0_i32_0 : i32, i32
  }
  func.func @transform_11(%arg0: i32, %arg1: i32) -> (i32, i32, i32) {
    %c0_i32 = arith.constant 0 : i32
    %c0_i32_0 = arith.constant 0 : i32
    return %arg0, %arg1, %c0_i32 : i32, i32, i32
  }
}

module attributes {stable_mosaic.version = 11 : i64} {
  func.func @kernel(%arg0: i32, %arg1: i32, %arg2: memref<2x1296x128xbf16, #tpu.memory_space<any>>, %arg3: memref<9x128x128xbf16, #tpu.memory_space<vmem>>, %arg4: memref<1x128xf32, #tpu.memory_space<vmem>>, %arg5: memref<432x1xf32, #tpu.memory_space<vmem>>, %arg6: memref<1x432x128xbf16, #tpu.memory_space<vmem>>, %arg7: memref<2x496x128xbf16, #tpu.memory_space<vmem>>, %arg8: memref<2x!tpu.dma_semaphore, #tpu.memory_space<semaphore_mem>>) attributes {dimension_semantics = [#tpu.dimension_semantics<parallel>, #tpu.dimension_semantics<arbitrary>], iteration_bounds = array<i64: 2, 1>, scalar_prefetch = 0 : i64, scratch_operands = 2 : i64, tpu.core_type = #tpu.core_type<tc>, window_params = [{}, {pipeline_mode = #tpu.pipeline_mode<synchronous>, transform_indices = @transform_1, window_bounds = array<i64: 9, 128, 128>}, {pipeline_mode = #tpu.pipeline_mode<synchronous>, transform_indices = @transform_2, window_bounds = array<i64: 1, 128>}, {transform_indices = @transform_3, window_bounds = array<i64: 432, 1>}, {transform_indices = @transform_4, window_bounds = array<i64: 1, 432, 128>}]} {
    %c2_i32 = arith.constant 2 : i32
    %0 = arith.remsi %arg1, %c2_i32 : i32
    %c0_i32 = arith.constant 0 : i32
    %1 = arith.cmpi eq, %arg1, %c0_i32 : i32
    %2 = arith.extui %1 : i1 to i32
    %c0_i32_0 = arith.constant 0 : i32
    %3 = arith.cmpi ne, %2, %c0_i32_0 : i32
    scf.if %3 {
      %c1_i32_73 = arith.constant 1 : i32
      %94 = arith.addi %arg1, %c1_i32_73 : i32
      %c432_i32 = arith.constant 432 : i32
      %95 = arith.muli %94, %c432_i32 : i32
      %c32_i32 = arith.constant 32 : i32
      %96 = arith.subi %95, %c32_i32 : i32
      %97 = tpu.assume_multiple %96, 8 : i32
      %c0_i32_74 = arith.constant 0 : i32
      %98 = tpu.memref_slice %arg2[%arg0, %97, %c0_i32_74] : memref<2x1296x128xbf16, #tpu.memory_space<any>> -> memref<1x496x128xbf16, #tpu.memory_space<any>>
      %99 = tpu.memref_squeeze %98 : memref<1x496x128xbf16, #tpu.memory_space<any>> -> memref<496x128xbf16, #tpu.memory_space<any>>
      %c0_i32_75 = arith.constant 0 : i32
      %c0_i32_76 = arith.constant 0 : i32
      %100 = tpu.memref_slice %arg7[%0, %c0_i32_75, %c0_i32_76] : memref<2x496x128xbf16, #tpu.memory_space<vmem>> -> memref<1x496x128xbf16, #tpu.memory_space<vmem>>
      %101 = tpu.memref_squeeze %100 : memref<1x496x128xbf16, #tpu.memory_space<vmem>> -> memref<496x128xbf16, #tpu.memory_space<vmem>>
      %102 = tpu.memref_slice %arg8[%0] : memref<2x!tpu.dma_semaphore, #tpu.memory_space<semaphore_mem>> -> memref<1x!tpu.dma_semaphore, #tpu.memory_space<semaphore_mem>>
      %103 = tpu.memref_squeeze %102 : memref<1x!tpu.dma_semaphore, #tpu.memory_space<semaphore_mem>> -> memref<!tpu.dma_semaphore, #tpu.memory_space<semaphore_mem>>
      tpu.enqueue_dma source(%99 : memref<496x128xbf16, #tpu.memory_space<any>>) target(%101 : memref<496x128xbf16, #tpu.memory_space<vmem>>) target_semaphore(%103 : memref<!tpu.dma_semaphore, #tpu.memory_space<semaphore_mem>>)
    } else {
    }
    %c0_i32_1 = arith.constant 0 : i32
    %c0_i32_2 = arith.constant 0 : i32
    %4 = tpu.memref_slice %arg2[%arg0, %c0_i32_1, %c0_i32_2] : memref<2x1296x128xbf16, #tpu.memory_space<any>> -> memref<1x496x128xbf16, #tpu.memory_space<any>>
    %5 = tpu.memref_squeeze %4 : memref<1x496x128xbf16, #tpu.memory_space<any>> -> memref<496x128xbf16, #tpu.memory_space<any>>
    %c0_i32_3 = arith.constant 0 : i32
    %c0_i32_4 = arith.constant 0 : i32
    %6 = tpu.memref_slice %arg7[%0, %c0_i32_3, %c0_i32_4] : memref<2x496x128xbf16, #tpu.memory_space<vmem>> -> memref<1x496x128xbf16, #tpu.memory_space<vmem>>
    %7 = tpu.memref_squeeze %6 : memref<1x496x128xbf16, #tpu.memory_space<vmem>> -> memref<496x128xbf16, #tpu.memory_space<vmem>>
    %8 = tpu.memref_slice %arg8[%0] : memref<2x!tpu.dma_semaphore, #tpu.memory_space<semaphore_mem>> -> memref<1x!tpu.dma_semaphore, #tpu.memory_space<semaphore_mem>>
    %9 = tpu.memref_squeeze %8 : memref<1x!tpu.dma_semaphore, #tpu.memory_space<semaphore_mem>> -> memref<!tpu.dma_semaphore, #tpu.memory_space<semaphore_mem>>
    tpu.wait_dma2 semaphore(%9 : memref<!tpu.dma_semaphore, #tpu.memory_space<semaphore_mem>>) src(%5 : memref<496x128xbf16, #tpu.memory_space<any>>) dst(%7 : memref<496x128xbf16, #tpu.memory_space<vmem>>)
    %c1_i32 = arith.constant 1 : i32
    %10 = arith.addi %arg1, %c1_i32 : i32
    %c1_i32_5 = arith.constant 1 : i32
    %11 = arith.cmpi slt, %10, %c1_i32_5 : i32
    %12 = arith.extui %11 : i1 to i32
    %c0_i32_6 = arith.constant 0 : i32
    %13 = arith.cmpi ne, %12, %c0_i32_6 : i32
    scf.if %13 {
      %c1_i32_73 = arith.constant 1 : i32
      %94 = arith.addi %arg1, %c1_i32_73 : i32
      %c1_i32_74 = arith.constant 1 : i32
      %95 = arith.subi %c1_i32_74, %0 : i32
      %c1_i32_75 = arith.constant 1 : i32
      %96 = arith.addi %94, %c1_i32_75 : i32
      %c432_i32 = arith.constant 432 : i32
      %97 = arith.muli %96, %c432_i32 : i32
      %c32_i32 = arith.constant 32 : i32
      %98 = arith.subi %97, %c32_i32 : i32
      %99 = tpu.assume_multiple %98, 8 : i32
      %c0_i32_76 = arith.constant 0 : i32
      %100 = tpu.memref_slice %arg2[%arg0, %99, %c0_i32_76] : memref<2x1296x128xbf16, #tpu.memory_space<any>> -> memref<1x496x128xbf16, #tpu.memory_space<any>>
      %101 = tpu.memref_squeeze %100 : memref<1x496x128xbf16, #tpu.memory_space<any>> -> memref<496x128xbf16, #tpu.memory_space<any>>
      %c0_i32_77 = arith.constant 0 : i32
      %c0_i32_78 = arith.constant 0 : i32
      %102 = tpu.memref_slice %arg7[%95, %c0_i32_77, %c0_i32_78] : memref<2x496x128xbf16, #tpu.memory_space<vmem>> -> memref<1x496x128xbf16, #tpu.memory_space<vmem>>
      %103 = tpu.memref_squeeze %102 : memref<1x496x128xbf16, #tpu.memory_space<vmem>> -> memref<496x128xbf16, #tpu.memory_space<vmem>>
      %104 = tpu.memref_slice %arg8[%95] : memref<2x!tpu.dma_semaphore, #tpu.memory_space<semaphore_mem>> -> memref<1x!tpu.dma_semaphore, #tpu.memory_space<semaphore_mem>>
      %105 = tpu.memref_squeeze %104 : memref<1x!tpu.dma_semaphore, #tpu.memory_space<semaphore_mem>> -> memref<!tpu.dma_semaphore, #tpu.memory_space<semaphore_mem>>
      tpu.enqueue_dma source(%101 : memref<496x128xbf16, #tpu.memory_space<any>>) target(%103 : memref<496x128xbf16, #tpu.memory_space<vmem>>) target_semaphore(%105 : memref<!tpu.dma_semaphore, #tpu.memory_space<semaphore_mem>>)
    } else {
    }
    %cst = arith.constant 0.000000e+00 : f32
    %14 = vector.broadcast %cst : f32 to vector<432x128xf32>
    %c0_i32_7 = arith.constant 0 : i32
    %c0_i32_8 = arith.constant 0 : i32
    %15 = tpu.memref_slice %arg7[%0, %c0_i32_7, %c0_i32_8] : memref<2x496x128xbf16, #tpu.memory_space<vmem>> -> memref<1x496x128xbf16, #tpu.memory_space<vmem>>
    %16 = tpu.memref_squeeze %15 : memref<1x496x128xbf16, #tpu.memory_space<vmem>> -> memref<496x128xbf16, #tpu.memory_space<vmem>>
    %c7 = arith.constant 7 : index
    %c0 = arith.constant 0 : index
    %17 = vector.load %16[%c7, %c0] : memref<496x128xbf16, #tpu.memory_space<vmem>>, vector<432x128xbf16>
    %c0_9 = arith.constant 0 : index
    %c0_10 = arith.constant 0 : index
    %c0_11 = arith.constant 0 : index
    %18 = vector.load %arg3[%c0_9, %c0_10, %c0_11] : memref<9x128x128xbf16, #tpu.memory_space<vmem>>, vector<1x128x128xbf16>
    %19 = vector.shape_cast %18 : vector<1x128x128xbf16> to vector<128x128xbf16>
    %cst_12 = arith.constant dense<0.000000e+00> : vector<432x128xf32>
    %20 = tpu.matmul %17, %19, %cst_12 {dimension_numbers = #tpu.dot_dimension_numbers<[1], [0], [0], [1], [0, 0, 1, 1], [], []>} : vector<432x128xbf16>, vector<128x128xbf16>, vector<432x128xf32> -> vector<432x128xf32>
    %21 = arith.addf %14, %20 : vector<432x128xf32>
    %c0_i32_13 = arith.constant 0 : i32
    %c0_i32_14 = arith.constant 0 : i32
    %22 = tpu.memref_slice %arg7[%0, %c0_i32_13, %c0_i32_14] : memref<2x496x128xbf16, #tpu.memory_space<vmem>> -> memref<1x496x128xbf16, #tpu.memory_space<vmem>>
    %23 = tpu.memref_squeeze %22 : memref<1x496x128xbf16, #tpu.memory_space<vmem>> -> memref<496x128xbf16, #tpu.memory_space<vmem>>
    %c8 = arith.constant 8 : index
    %c0_15 = arith.constant 0 : index
    %24 = vector.load %23[%c8, %c0_15] : memref<496x128xbf16, #tpu.memory_space<vmem>>, vector<432x128xbf16>
    %c1 = arith.constant 1 : index
    %c0_16 = arith.constant 0 : index
    %c0_17 = arith.constant 0 : index
    %25 = vector.load %arg3[%c1, %c0_16, %c0_17] : memref<9x128x128xbf16, #tpu.memory_space<vmem>>, vector<1x128x128xbf16>
    %26 = vector.shape_cast %25 : vector<1x128x128xbf16> to vector<128x128xbf16>
    %cst_18 = arith.constant dense<0.000000e+00> : vector<432x128xf32>
    %27 = tpu.matmul %24, %26, %cst_18 {dimension_numbers = #tpu.dot_dimension_numbers<[1], [0], [0], [1], [0, 0, 1, 1], [], []>} : vector<432x128xbf16>, vector<128x128xbf16>, vector<432x128xf32> -> vector<432x128xf32>
    %28 = arith.addf %21, %27 : vector<432x128xf32>
    %c0_i32_19 = arith.constant 0 : i32
    %c0_i32_20 = arith.constant 0 : i32
    %29 = tpu.memref_slice %arg7[%0, %c0_i32_19, %c0_i32_20] : memref<2x496x128xbf16, #tpu.memory_space<vmem>> -> memref<1x496x128xbf16, #tpu.memory_space<vmem>>
    %30 = tpu.memref_squeeze %29 : memref<1x496x128xbf16, #tpu.memory_space<vmem>> -> memref<496x128xbf16, #tpu.memory_space<vmem>>
    %c9 = arith.constant 9 : index
    %c0_21 = arith.constant 0 : index
    %31 = vector.load %30[%c9, %c0_21] : memref<496x128xbf16, #tpu.memory_space<vmem>>, vector<432x128xbf16>
    %c2 = arith.constant 2 : index
    %c0_22 = arith.constant 0 : index
    %c0_23 = arith.constant 0 : index
    %32 = vector.load %arg3[%c2, %c0_22, %c0_23] : memref<9x128x128xbf16, #tpu.memory_space<vmem>>, vector<1x128x128xbf16>
    %33 = vector.shape_cast %32 : vector<1x128x128xbf16> to vector<128x128xbf16>
    %cst_24 = arith.constant dense<0.000000e+00> : vector<432x128xf32>
    %34 = tpu.matmul %31, %33, %cst_24 {dimension_numbers = #tpu.dot_dimension_numbers<[1], [0], [0], [1], [0, 0, 1, 1], [], []>} : vector<432x128xbf16>, vector<128x128xbf16>, vector<432x128xf32> -> vector<432x128xf32>
    %35 = arith.addf %28, %34 : vector<432x128xf32>
    %c0_i32_25 = arith.constant 0 : i32
    %c0_i32_26 = arith.constant 0 : i32
    %36 = tpu.memref_slice %arg7[%0, %c0_i32_25, %c0_i32_26] : memref<2x496x128xbf16, #tpu.memory_space<vmem>> -> memref<1x496x128xbf16, #tpu.memory_space<vmem>>
    %37 = tpu.memref_squeeze %36 : memref<1x496x128xbf16, #tpu.memory_space<vmem>> -> memref<496x128xbf16, #tpu.memory_space<vmem>>
    %c31 = arith.constant 31 : index
    %c0_27 = arith.constant 0 : index
    %38 = vector.load %37[%c31, %c0_27] : memref<496x128xbf16, #tpu.memory_space<vmem>>, vector<432x128xbf16>
    %c3 = arith.constant 3 : index
    %c0_28 = arith.constant 0 : index
    %c0_29 = arith.constant 0 : index
    %39 = vector.load %arg3[%c3, %c0_28, %c0_29] : memref<9x128x128xbf16, #tpu.memory_space<vmem>>, vector<1x128x128xbf16>
    %40 = vector.shape_cast %39 : vector<1x128x128xbf16> to vector<128x128xbf16>
    %cst_30 = arith.constant dense<0.000000e+00> : vector<432x128xf32>
    %41 = tpu.matmul %38, %40, %cst_30 {dimension_numbers = #tpu.dot_dimension_numbers<[1], [0], [0], [1], [0, 0, 1, 1], [], []>} : vector<432x128xbf16>, vector<128x128xbf16>, vector<432x128xf32> -> vector<432x128xf32>
    %42 = arith.addf %35, %41 : vector<432x128xf32>
    %c0_i32_31 = arith.constant 0 : i32
    %c0_i32_32 = arith.constant 0 : i32
    %43 = tpu.memref_slice %arg7[%0, %c0_i32_31, %c0_i32_32] : memref<2x496x128xbf16, #tpu.memory_space<vmem>> -> memref<1x496x128xbf16, #tpu.memory_space<vmem>>
    %44 = tpu.memref_squeeze %43 : memref<1x496x128xbf16, #tpu.memory_space<vmem>> -> memref<496x128xbf16, #tpu.memory_space<vmem>>
    %c32 = arith.constant 32 : index
    %c0_33 = arith.constant 0 : index
    %45 = vector.load %44[%c32, %c0_33] : memref<496x128xbf16, #tpu.memory_space<vmem>>, vector<432x128xbf16>
    %c4 = arith.constant 4 : index
    %c0_34 = arith.constant 0 : index
    %c0_35 = arith.constant 0 : index
    %46 = vector.load %arg3[%c4, %c0_34, %c0_35] : memref<9x128x128xbf16, #tpu.memory_space<vmem>>, vector<1x128x128xbf16>
    %47 = vector.shape_cast %46 : vector<1x128x128xbf16> to vector<128x128xbf16>
    %cst_36 = arith.constant dense<0.000000e+00> : vector<432x128xf32>
    %48 = tpu.matmul %45, %47, %cst_36 {dimension_numbers = #tpu.dot_dimension_numbers<[1], [0], [0], [1], [0, 0, 1, 1], [], []>} : vector<432x128xbf16>, vector<128x128xbf16>, vector<432x128xf32> -> vector<432x128xf32>
    %49 = arith.addf %42, %48 : vector<432x128xf32>
    %c0_i32_37 = arith.constant 0 : i32
    %c0_i32_38 = arith.constant 0 : i32
    %50 = tpu.memref_slice %arg7[%0, %c0_i32_37, %c0_i32_38] : memref<2x496x128xbf16, #tpu.memory_space<vmem>> -> memref<1x496x128xbf16, #tpu.memory_space<vmem>>
    %51 = tpu.memref_squeeze %50 : memref<1x496x128xbf16, #tpu.memory_space<vmem>> -> memref<496x128xbf16, #tpu.memory_space<vmem>>
    %c33 = arith.constant 33 : index
    %c0_39 = arith.constant 0 : index
    %52 = vector.load %51[%c33, %c0_39] : memref<496x128xbf16, #tpu.memory_space<vmem>>, vector<432x128xbf16>
    %c5 = arith.constant 5 : index
    %c0_40 = arith.constant 0 : index
    %c0_41 = arith.constant 0 : index
    %53 = vector.load %arg3[%c5, %c0_40, %c0_41] : memref<9x128x128xbf16, #tpu.memory_space<vmem>>, vector<1x128x128xbf16>
    %54 = vector.shape_cast %53 : vector<1x128x128xbf16> to vector<128x128xbf16>
    %cst_42 = arith.constant dense<0.000000e+00> : vector<432x128xf32>
    %55 = tpu.matmul %52, %54, %cst_42 {dimension_numbers = #tpu.dot_dimension_numbers<[1], [0], [0], [1], [0, 0, 1, 1], [], []>} : vector<432x128xbf16>, vector<128x128xbf16>, vector<432x128xf32> -> vector<432x128xf32>
    %56 = arith.addf %49, %55 : vector<432x128xf32>
    %c0_i32_43 = arith.constant 0 : i32
    %c0_i32_44 = arith.constant 0 : i32
    %57 = tpu.memref_slice %arg7[%0, %c0_i32_43, %c0_i32_44] : memref<2x496x128xbf16, #tpu.memory_space<vmem>> -> memref<1x496x128xbf16, #tpu.memory_space<vmem>>
    %58 = tpu.memref_squeeze %57 : memref<1x496x128xbf16, #tpu.memory_space<vmem>> -> memref<496x128xbf16, #tpu.memory_space<vmem>>
    %c55 = arith.constant 55 : index
    %c0_45 = arith.constant 0 : index
    %59 = vector.load %58[%c55, %c0_45] : memref<496x128xbf16, #tpu.memory_space<vmem>>, vector<432x128xbf16>
    %c6 = arith.constant 6 : index
    %c0_46 = arith.constant 0 : index
    %c0_47 = arith.constant 0 : index
    %60 = vector.load %arg3[%c6, %c0_46, %c0_47] : memref<9x128x128xbf16, #tpu.memory_space<vmem>>, vector<1x128x128xbf16>
    %61 = vector.shape_cast %60 : vector<1x128x128xbf16> to vector<128x128xbf16>
    %cst_48 = arith.constant dense<0.000000e+00> : vector<432x128xf32>
    %62 = tpu.matmul %59, %61, %cst_48 {dimension_numbers = #tpu.dot_dimension_numbers<[1], [0], [0], [1], [0, 0, 1, 1], [], []>} : vector<432x128xbf16>, vector<128x128xbf16>, vector<432x128xf32> -> vector<432x128xf32>
    %63 = arith.addf %56, %62 : vector<432x128xf32>
    %c0_i32_49 = arith.constant 0 : i32
    %c0_i32_50 = arith.constant 0 : i32
    %64 = tpu.memref_slice %arg7[%0, %c0_i32_49, %c0_i32_50] : memref<2x496x128xbf16, #tpu.memory_space<vmem>> -> memref<1x496x128xbf16, #tpu.memory_space<vmem>>
    %65 = tpu.memref_squeeze %64 : memref<1x496x128xbf16, #tpu.memory_space<vmem>> -> memref<496x128xbf16, #tpu.memory_space<vmem>>
    %c56 = arith.constant 56 : index
    %c0_51 = arith.constant 0 : index
    %66 = vector.load %65[%c56, %c0_51] : memref<496x128xbf16, #tpu.memory_space<vmem>>, vector<432x128xbf16>
    %c7_52 = arith.constant 7 : index
    %c0_53 = arith.constant 0 : index
    %c0_54 = arith.constant 0 : index
    %67 = vector.load %arg3[%c7_52, %c0_53, %c0_54] : memref<9x128x128xbf16, #tpu.memory_space<vmem>>, vector<1x128x128xbf16>
    %68 = vector.shape_cast %67 : vector<1x128x128xbf16> to vector<128x128xbf16>
    %cst_55 = arith.constant dense<0.000000e+00> : vector<432x128xf32>
    %69 = tpu.matmul %66, %68, %cst_55 {dimension_numbers = #tpu.dot_dimension_numbers<[1], [0], [0], [1], [0, 0, 1, 1], [], []>} : vector<432x128xbf16>, vector<128x128xbf16>, vector<432x128xf32> -> vector<432x128xf32>
    %70 = arith.addf %63, %69 : vector<432x128xf32>
    %c0_i32_56 = arith.constant 0 : i32
    %c0_i32_57 = arith.constant 0 : i32
    %71 = tpu.memref_slice %arg7[%0, %c0_i32_56, %c0_i32_57] : memref<2x496x128xbf16, #tpu.memory_space<vmem>> -> memref<1x496x128xbf16, #tpu.memory_space<vmem>>
    %72 = tpu.memref_squeeze %71 : memref<1x496x128xbf16, #tpu.memory_space<vmem>> -> memref<496x128xbf16, #tpu.memory_space<vmem>>
    %c57 = arith.constant 57 : index
    %c0_58 = arith.constant 0 : index
    %73 = vector.load %72[%c57, %c0_58] : memref<496x128xbf16, #tpu.memory_space<vmem>>, vector<432x128xbf16>
    %c8_59 = arith.constant 8 : index
    %c0_60 = arith.constant 0 : index
    %c0_61 = arith.constant 0 : index
    %74 = vector.load %arg3[%c8_59, %c0_60, %c0_61] : memref<9x128x128xbf16, #tpu.memory_space<vmem>>, vector<1x128x128xbf16>
    %75 = vector.shape_cast %74 : vector<1x128x128xbf16> to vector<128x128xbf16>
    %cst_62 = arith.constant dense<0.000000e+00> : vector<432x128xf32>
    %76 = tpu.matmul %73, %75, %cst_62 {dimension_numbers = #tpu.dot_dimension_numbers<[1], [0], [0], [1], [0, 0, 1, 1], [], []>} : vector<432x128xbf16>, vector<128x128xbf16>, vector<432x128xf32> -> vector<432x128xf32>
    %77 = arith.addf %70, %76 : vector<432x128xf32>
    %c0_63 = arith.constant 0 : index
    %c0_64 = arith.constant 0 : index
    %78 = vector.load %arg4[%c0_63, %c0_64] : memref<1x128xf32, #tpu.memory_space<vmem>>, vector<1x128xf32>
    %79 = vector.broadcast %78 : vector<1x128xf32> to vector<432x128xf32>
    %80 = arith.addf %77, %79 : vector<432x128xf32>
    %cst_65 = arith.constant 0.000000e+00 : f32
    %81 = vector.broadcast %cst_65 : f32 to vector<432x128xf32>
    %82 = arith.maximumf %80, %81 : vector<432x128xf32>
    %c0_66 = arith.constant 0 : index
    %c0_67 = arith.constant 0 : index
    %83 = vector.load %arg5[%c0_66, %c0_67] : memref<432x1xf32, #tpu.memory_space<vmem>>, vector<432x1xf32>
    %cst_68 = arith.constant 0.000000e+00 : f32
    %84 = vector.broadcast %cst_68 : f32 to vector<432x1xf32>
    %85 = arith.cmpf ogt, %83, %84 : vector<432x1xf32>
    %cst_69 = arith.constant 0.000000e+00 : f32
    %86 = vector.shape_cast %85 : vector<432x1xi1> to vector<432x1xi1>
    %87 = vector.broadcast %86 : vector<432x1xi1> to vector<432x128xi1>
    %88 = vector.broadcast %cst_69 : f32 to vector<432x128xf32>
    %89 = arith.select %87, %82, %88 : vector<432x128xi1>, vector<432x128xf32>
    %90 = arith.truncf %89 : vector<432x128xf32> to vector<432x128xbf16>
    %c0_70 = arith.constant 0 : index
    %c0_71 = arith.constant 0 : index
    %c0_72 = arith.constant 0 : index
    %91 = vector.load %arg6[%c0_70, %c0_71, %c0_72] : memref<1x432x128xbf16, #tpu.memory_space<vmem>>, vector<1x432x128xbf16>
    %92 = vector.shape_cast %91 : vector<1x432x128xbf16> to vector<432x128xbf16>
    %93 = vector.shape_cast %90 : vector<432x128xbf16> to vector<1x432x128xbf16>
    tpu.vector_store %arg6[%c0_70, %c0_71, %c0_72], %93 {strides = array<i32>} : memref<1x432x128xbf16, #tpu.memory_space<vmem>>, vector<1x432x128xbf16>,
    return
  }
  func.func @transform_1(%arg0: i32, %arg1: i32) -> (i32, i32, i32) {
    %c0_i32 = arith.constant 0 : i32
    %c0_i32_0 = arith.constant 0 : i32
    %c0_i32_1 = arith.constant 0 : i32
    %c0_i32_2 = arith.constant 0 : i32
    return %c0_i32, %c0_i32_0, %c0_i32_1 : i32, i32, i32
  }
  func.func @transform_2(%arg0: i32, %arg1: i32) -> (i32, i32) {
    %c0_i32 = arith.constant 0 : i32
    %c0_i32_0 = arith.constant 0 : i32
    %c0_i32_1 = arith.constant 0 : i32
    return %c0_i32, %c0_i32_0 : i32, i32
  }
  func.func @transform_3(%arg0: i32, %arg1: i32) -> (i32, i32) {
    %c1_i32 = arith.constant 1 : i32
    %0 = arith.addi %arg1, %c1_i32 : i32
    %c0_i32 = arith.constant 0 : i32
    %c0_i32_0 = arith.constant 0 : i32
    return %0, %c0_i32 : i32, i32
  }
  func.func @transform_4(%arg0: i32, %arg1: i32) -> (i32, i32, i32) {
    %c1_i32 = arith.constant 1 : i32
    %0 = arith.addi %arg1, %c1_i32 : i32
    %c0_i32 = arith.constant 0 : i32
    %c0_i32_0 = arith.constant 0 : i32
    return %arg0, %0, %c0_i32 : i32, i32, i32
  }
}

</mosaic_0001>

<llo_original>
// kernel: hgblock_forward.13
$region0: #{hgblock_forward.13}
  #allocation0 [shape = 'u32[]', space=smem, size = 0x4, offset = 0x4, fixed_abs, tag = 'smem constant byte address 0x4 - core index']
  #allocation1 [shape = 'u32[144,128]{1,0:T(1,128)}', space=vmem, size = 0x12000, scoped, tag = 'internal scratch']
  %s0 = inlined_call_operand.vmem [shape: bf16[2,1296,128], index: 0, kind: input, shape index: {}]
  %s1 = inlined_call_operand.vmem [shape: bf16[2,1296,128], index: 1, kind: input, shape index: {}]
  %s2 = inlined_call_operand.vmem [shape: bf16[2,1296,128], index: 2, kind: input, shape index: {}]
  %s3 = inlined_call_operand.vmem [shape: bf16[2,1296,128], index: 3, kind: input, shape index: {}]
  %s4 = inlined_call_operand.vmem [shape: bf16[2,1296,128], index: 4, kind: input, shape index: {}]
  %s5 = inlined_call_operand.vmem [shape: bf16[2,1296,128], index: 5, kind: input, shape index: {}]
  %s6 = inlined_call_operand.vmem [shape: bf16[2,1296,128], index: 6, kind: input, shape index: {}]
  %s7 = inlined_call_operand.vmem [shape: bf16[896,128], index: 7, kind: input, shape index: {}]
  %s8 = inlined_call_operand.vmem [shape: f32[1,128], index: 8, kind: input, shape index: {}]
  %s9 = inlined_call_operand.vmem [shape: bf16[128,128], index: 9, kind: input, shape index: {}]
  %s10 = inlined_call_operand.vmem [shape: f32[1,128], index: 10, kind: input, shape index: {}]
  %s11 = inlined_call_operand.vmem [shape: bf16[2,432,128], index: 11, kind: output, shape index: {}]
  %s12 = sld [smem:[#allocation0]]
  $region77: #{hgblock_forward.13} parent=0
    _
  %s14 = ssub.s32 1, %s12
  %s15 = scalar_select 0, %s14, %s12
  loop: start=0, step=1, limit=4
  $region2: #{hgblock_forward.13} parent=0 // loop_pre_header
    _
  $region3: #{hgblock_forward.13} parent=0 // loop_header
    %s17 = sphi 0, %s21
    %p18 = scmp.ge.s32.totalorder %s17, 4
    %s24 = sphi 0, %s36
    %s25 = sphi 0, %s32
    %s26 = sphi 0, %s24
    %s27 = sphi 0, %s25
    %s28 = sphi 0, %s26
    %s29 = sphi 0, %s27
    %s43 = sphi 0, %s45
    %s46 = sphi 0, %s43
    %s47 = sphi 0, %s46
    %s63 = sphi 0, %s47
    %s73 = sphi 0, %s75
    %s76 = sphi 0, %s73
    %s77 = sphi 0, %s76
    %s93 = sphi 0, %s77
    %s103 = sphi 0, %s105
    %s106 = sphi 0, %s103
    %s107 = sphi 0, %s106
    %s123 = sphi 0, %s107
    %s133 = sphi 0, %s135
    %s136 = sphi 0, %s133
    %s137 = sphi 0, %s136
    %s153 = sphi 0, %s137
    %s163 = sphi 0, %s165
    %s166 = sphi 0, %s163
    %s167 = sphi 0, %s166
    %s183 = sphi 0, %s167
    %s193 = sphi 0, %s195
    %s196 = sphi 0, %s193
    %s197 = sphi 0, %s196
    %s213 = sphi 0, %s197
    %s223 = sphi 0, %s225
    %s226 = sphi 0, %s223
    %s227 = sphi 0, %s226
    %s243 = sphi 0, %s227
    %s247 = sphi 0, %s247
    %s249 = sphi 0, %s247
    %s250 = sphi 0, %s249
    %s264 = sphi 0, %s250
    %s268 = sphi 0, %s268
    %s270 = sphi 0, %s268
    %s271 = sphi 0, %s270
    %s285 = sphi 0, %s271
    %s289 = sphi 0, %s289
    %s291 = sphi 0, %s289
    %s292 = sphi 0, %s291
    %s306 = sphi 0, %s292
    %s310 = sphi 0, %s310
    %s312 = sphi 0, %s310
    %s313 = sphi 0, %s312
    %s327 = sphi 0, %s313
    %s335 = sphi 0, %s337
    %s338 = sphi 0, %s335
    %s339 = sphi 0, %s338
    %s355 = sphi 0, %s339
  $region4: #{hgblock_forward.13} parent=0 // loop_header_branch
    %20 = sbr.rel (%p18) target = $region8
  $region5: #{hgblock_forward.13} parent=0 // loop_body
    %s22 = ssub.s32 %s17, 1
    %s23 = ssub.s32 %s17, 2
    %s30 = sadd.s32 1, %s25
    %p31 = scmp.ge.s32.totalorder %s30, 1
    %s32 = scalar_select %p31, 0, %s30
    %s33 = sadd.s32 1, %s24
    %s34 = scalar_select %p31, %s33, %s24
    %p35 = scmp.ge.s32.totalorder %s34, 2
    %s36 = scalar_select %p35, 0, %s34
    %s37 = sadd.s32 %s25, 1
    %s38 = sadd.s32 %s32, 1
    %s39 = ssub.s32 %s24, %s36
    %s40 = ssub.s32 %s37, %s38
    %s41 = sor.u32 %s39, %s40
    %p42 = scmp.eq.s32.totalorder %s41, 0
    %s44 = sadd.s32 %s43, 1
    %s45 = scalar_select %p42, %s43, %s44
    %p48 = pneg %p42
    %p49 = scmp.eq.s32.totalorder %s17, 1
    %p50 = por %p48, %p49
    %p51 = scmp.ne.s32.totalorder %s43, %s46
    %p52 = scmp.eq.s32.totalorder %s17, 0
    %p53 = por %p51, %p52
    %p54 = scmp.ne.s32.totalorder %s43, %s46
    %p55 = scmp.eq.s32.totalorder %s22, 1
    %p56 = por %p54, %p55
    %p57 = scmp.ne.s32.totalorder %s46, %s47
    %p58 = scmp.eq.s32.totalorder %s22, 0
    %p59 = por %p57, %p58
    %p60 = scmp.ne.s32.totalorder %s46, %s47
    %p61 = scmp.eq.s32.totalorder %s23, 1
    %p62 = por %p60, %p61
    %p64 = scmp.ne.s32.totalorder %s47, %s63
    %p65 = scmp.eq.s32.totalorder %s23, 0
    %p66 = por %p64, %p65
    %s67 = sadd.s32 %s25, 1
    %s68 = sadd.s32 %s32, 1
    %s69 = ssub.s32 %s24, %s36
    %s70 = ssub.s32 %s67, %s68
    %s71 = sor.u32 %s69, %s70
    %p72 = scmp.eq.s32.totalorder %s71, 0
    %s74 = sadd.s32 %s73, 1
    %s75 = scalar_select %p72, %s73, %s74
    %p78 = pneg %p72
    %p79 = scmp.eq.s32.totalorder %s17, 1
    %p80 = por %p78, %p79
    %p81 = scmp.ne.s32.totalorder %s73, %s76
    %p82 = scmp.eq.s32.totalorder %s17, 0
    %p83 = por %p81, %p82
    %p84 = scmp.ne.s32.totalorder %s73, %s76
    %p85 = scmp.eq.s32.totalorder %s22, 1
    %p86 = por %p84, %p85
    %p87 = scmp.ne.s32.totalorder %s76, %s77
    %p88 = scmp.eq.s32.totalorder %s22, 0
    %p89 = por %p87, %p88
    %p90 = scmp.ne.s32.totalorder %s76, %s77
    %p91 = scmp.eq.s32.totalorder %s23, 1
    %p92 = por %p90, %p91
    %p94 = scmp.ne.s32.totalorder %s77, %s93
    %p95 = scmp.eq.s32.totalorder %s23, 0
    %p96 = por %p94, %p95
    %s97 = sadd.s32 %s25, 1
    %s98 = sadd.s32 %s32, 1
    %s99 = ssub.s32 %s24, %s36
    %s100 = ssub.s32 %s97, %s98
    %s101 = sor.u32 %s99, %s100
    %p102 = scmp.eq.s32.totalorder %s101, 0
    %s104 = sadd.s32 %s103, 1
    %s105 = scalar_select %p102, %s103, %s104
    %p108 = pneg %p102
    %p109 = scmp.eq.s32.totalorder %s17, 1
    %p110 = por %p108, %p109
    %p111 = scmp.ne.s32.totalorder %s103, %s106
    %p112 = scmp.eq.s32.totalorder %s17, 0
    %p113 = por %p111, %p112
    %p114 = scmp.ne.s32.totalorder %s103, %s106
    %p115 = scmp.eq.s32.totalorder %s22, 1
    %p116 = por %p114, %p115
    %p117 = scmp.ne.s32.totalorder %s106, %s107
    %p118 = scmp.eq.s32.totalorder %s22, 0
    %p119 = por %p117, %p118
    %p120 = scmp.ne.s32.totalorder %s106, %s107
    %p121 = scmp.eq.s32.totalorder %s23, 1
    %p122 = por %p120, %p121
    %p124 = scmp.ne.s32.totalorder %s107, %s123
    %p125 = scmp.eq.s32.totalorder %s23, 0
    %p126 = por %p124, %p125
    %s127 = sadd.s32 %s25, 1
    %s128 = sadd.s32 %s32, 1
    %s129 = ssub.s32 %s24, %s36
    %s130 = ssub.s32 %s127, %s128
    %s131 = sor.u32 %s129, %s130
    %p132 = scmp.eq.s32.totalorder %s131, 0
    %s134 = sadd.s32 %s133, 1
    %s135 = scalar_select %p132, %s133, %s134
    %p138 = pneg %p132
    %p139 = scmp.eq.s32.totalorder %s17, 1
    %p140 = por %p138, %p139
    %p141 = scmp.ne.s32.totalorder %s133, %s136
    %p142 = scmp.eq.s32.totalorder %s17, 0
    %p143 = por %p141, %p142
    %p144 = scmp.ne.s32.totalorder %s133, %s136
    %p145 = scmp.eq.s32.totalorder %s22, 1
    %p146 = por %p144, %p145
    %p147 = scmp.ne.s32.totalorder %s136, %s137
    %p148 = scmp.eq.s32.totalorder %s22, 0
    %p149 = por %p147, %p148
    %p150 = scmp.ne.s32.totalorder %s136, %s137
    %p151 = scmp.eq.s32.totalorder %s23, 1
    %p152 = por %p150, %p151
    %p154 = scmp.ne.s32.totalorder %s137, %s153
    %p155 = scmp.eq.s32.totalorder %s23, 0
    %p156 = por %p154, %p155
    %s157 = sadd.s32 %s25, 1
    %s158 = sadd.s32 %s32, 1
    %s159 = ssub.s32 %s24, %s36
    %s160 = ssub.s32 %s157, %s158
    %s161 = sor.u32 %s159, %s160
    %p162 = scmp.eq.s32.totalorder %s161, 0
    %s164 = sadd.s32 %s163, 1
    %s165 = scalar_select %p162, %s163, %s164
    %p168 = pneg %p162
    %p169 = scmp.eq.s32.totalorder %s17, 1
    %p170 = por %p168, %p169
    %p171 = scmp.ne.s32.totalorder %s163, %s166
    %p172 = scmp.eq.s32.totalorder %s17, 0
    %p173 = por %p171, %p172
    %p174 = scmp.ne.s32.totalorder %s163, %s166
    %p175 = scmp.eq.s32.totalorder %s22, 1
    %p176 = por %p174, %p175
    %p177 = scmp.ne.s32.totalorder %s166, %s167
    %p178 = scmp.eq.s32.totalorder %s22, 0
    %p179 = por %p177, %p178
    %p180 = scmp.ne.s32.totalorder %s166, %s167
    %p181 = scmp.eq.s32.totalorder %s23, 1
    %p182 = por %p180, %p181
    %p184 = scmp.ne.s32.totalorder %s167, %s183
    %p185 = scmp.eq.s32.totalorder %s23, 0
    %p186 = por %p184, %p185
    %s187 = sadd.s32 %s25, 1
    %s188 = sadd.s32 %s32, 1
    %s189 = ssub.s32 %s24, %s36
    %s190 = ssub.s32 %s187, %s188
    %s191 = sor.u32 %s189, %s190
    %p192 = scmp.eq.s32.totalorder %s191, 0
    %s194 = sadd.s32 %s193, 1
    %s195 = scalar_select %p192, %s193, %s194
    %p198 = pneg %p192
    %p199 = scmp.eq.s32.totalorder %s17, 1
    %p200 = por %p198, %p199
    %p201 = scmp.ne.s32.totalorder %s193, %s196
    %p202 = scmp.eq.s32.totalorder %s17, 0
    %p203 = por %p201, %p202
    %p204 = scmp.ne.s32.totalorder %s193, %s196
    %p205 = scmp.eq.s32.totalorder %s22, 1
    %p206 = por %p204, %p205
    %p207 = scmp.ne.s32.totalorder %s196, %s197
    %p208 = scmp.eq.s32.totalorder %s22, 0
    %p209 = por %p207, %p208
    %p210 = scmp.ne.s32.totalorder %s196, %s197
    %p211 = scmp.eq.s32.totalorder %s23, 1
    %p212 = por %p210, %p211
    %p214 = scmp.ne.s32.totalorder %s197, %s213
    %p215 = scmp.eq.s32.totalorder %s23, 0
    %p216 = por %p214, %p215
    %s217 = sadd.s32 %s25, 1
    %s218 = sadd.s32 %s32, 1
    %s219 = ssub.s32 %s24, %s36
    %s220 = ssub.s32 %s217, %s218
    %s221 = sor.u32 %s219, %s220
    %p222 = scmp.eq.s32.totalorder %s221, 0
    %s224 = sadd.s32 %s223, 1
    %s225 = scalar_select %p222, %s223, %s224
    %p228 = pneg %p222
    %p229 = scmp.eq.s32.totalorder %s17, 1
    %p230 = por %p228, %p229
    %p231 = scmp.ne.s32.totalorder %s223, %s226
    %p232 = scmp.eq.s32.totalorder %s17, 0
    %p233 = por %p231, %p232
    %p234 = scmp.ne.s32.totalorder %s223, %s226
    %p235 = scmp.eq.s32.totalorder %s22, 1
    %p236 = por %p234, %p235
    %p237 = scmp.ne.s32.totalorder %s226, %s227
    %p238 = scmp.eq.s32.totalorder %s22, 0
    %p239 = por %p237, %p238
    %p240 = scmp.ne.s32.totalorder %s226, %s227
    %p241 = scmp.eq.s32.totalorder %s23, 1
    %p242 = por %p240, %p241
    %p244 = scmp.ne.s32.totalorder %s227, %s243
    %p245 = scmp.eq.s32.totalorder %s23, 0
    %p246 = por %p244, %p245
    %s248 = sadd.s32 %s247, 1
    %p251 = scmp.eq.s32.totalorder %s17, 1
    %p252 = scmp.ne.s32.totalorder %s247, %s249
    %p253 = scmp.eq.s32.totalorder %s17, 0
    %p254 = por %p252, %p253
    %p255 = scmp.ne.s32.totalorder %s247, %s249
    %p256 = scmp.eq.s32.totalorder %s22, 1
    %p257 = por %p255, %p256
    %p258 = scmp.ne.s32.totalorder %s249, %s250
    %p259 = scmp.eq.s32.totalorder %s22, 0
    %p260 = por %p258, %p259
    %p261 = scmp.ne.s32.totalorder %s249, %s250
    %p262 = scmp.eq.s32.totalorder %s23, 1
    %p263 = por %p261, %p262
    %p265 = scmp.ne.s32.totalorder %s250, %s264
    %p266 = scmp.eq.s32.totalorder %s23, 0
    %p267 = por %p265, %p266
    %s269 = sadd.s32 %s268, 1
    %p272 = scmp.eq.s32.totalorder %s17, 1
    %p273 = scmp.ne.s32.totalorder %s268, %s270
    %p274 = scmp.eq.s32.totalorder %s17, 0
    %p275 = por %p273, %p274
    %p276 = scmp.ne.s32.totalorder %s268, %s270
    %p277 = scmp.eq.s32.totalorder %s22, 1
    %p278 = por %p276, %p277
    %p279 = scmp.ne.s32.totalorder %s270, %s271
    %p280 = scmp.eq.s32.totalorder %s22, 0
    %p281 = por %p279, %p280
    %p282 = scmp.ne.s32.totalorder %s270, %s271
    %p283 = scmp.eq.s32.totalorder %s23, 1
    %p284 = por %p282, %p283
    %p286 = scmp.ne.s32.totalorder %s271, %s285
    %p287 = scmp.eq.s32.totalorder %s23, 0
    %p288 = por %p286, %p287
    %s290 = sadd.s32 %s289, 1
    %p293 = scmp.eq.s32.totalorder %s17, 1
    %p294 = scmp.ne.s32.totalorder %s289, %s291
    %p295 = scmp.eq.s32.totalorder %s17, 0
    %p296 = por %p294, %p295
    %p297 = scmp.ne.s32.totalorder %s289, %s291
    %p298 = scmp.eq.s32.totalorder %s22, 1
    %p299 = por %p297, %p298
    %p300 = scmp.ne.s32.totalorder %s291, %s292
    %p301 = scmp.eq.s32.totalorder %s22, 0
    %p302 = por %p300, %p301
    %p303 = scmp.ne.s32.totalorder %s291, %s292
    %p304 = scmp.eq.s32.totalorder %s23, 1
    %p305 = por %p303, %p304
    %p307 = scmp.ne.s32.totalorder %s292, %s306
    %p308 = scmp.eq.s32.totalorder %s23, 0
    %p309 = por %p307, %p308
    %s311 = sadd.s32 %s310, 1
    %p314 = scmp.eq.s32.totalorder %s17, 1
    %p315 = scmp.ne.s32.totalorder %s310, %s312
    %p316 = scmp.eq.s32.totalorder %s17, 0
    %p317 = por %p315, %p316
    %p318 = scmp.ne.s32.totalorder %s310, %s312
    %p319 = scmp.eq.s32.totalorder %s22, 1
    %p320 = por %p318, %p319
    %p321 = scmp.ne.s32.totalorder %s312, %s313
    %p322 = scmp.eq.s32.totalorder %s22, 0
    %p323 = por %p321, %p322
    %p324 = scmp.ne.s32.totalorder %s312, %s313
    %p325 = scmp.eq.s32.totalorder %s23, 1
    %p326 = por %p324, %p325
    %p328 = scmp.ne.s32.totalorder %s313, %s327
    %p329 = scmp.eq.s32.totalorder %s23, 0
    %p330 = por %p328, %p329
    %s331 = ssub.s32 %s24, %s36
    %s332 = ssub.s32 %s25, %s32
    %s333 = sor.u32 %s331, %s332
    %p334 = scmp.eq.s32.totalorder %s333, 0
    %s336 = sadd.s32 %s335, 1
    %s337 = scalar_select %p334, %s335, %s336
    %p340 = pneg %p334
    %p341 = scmp.eq.s32.totalorder %s17, 1
    %p342 = por %p340, %p341
    %p343 = scmp.ne.s32.totalorder %s335, %s338
    %p344 = scmp.eq.s32.totalorder %s17, 0
    %p345 = por %p343, %p344
    %p346 = scmp.ne.s32.totalorder %s335, %s338
    %p347 = scmp.eq.s32.totalorder %s22, 1
    %p348 = por %p346, %p347
    %p349 = scmp.ne.s32.totalorder %s338, %s339
    %p350 = scmp.eq.s32.totalorder %s22, 0
    %p351 = por %p349, %p350
    %p352 = scmp.ne.s32.totalorder %s338, %s339
    %p353 = scmp.eq.s32.totalorder %s23, 1
    %p354 = por %p352, %p353
    %p356 = scmp.ne.s32.totalorder %s339, %s355
    %p357 = scmp.eq.s32.totalorder %s23, 0
    %p358 = por %p356, %p357
    %p359 = scmp.le.s32.totalorder 1, %s17
    %p360 = scmp.lt.s32.totalorder %s17, 3
    %p361 = pnand %p359, %p360
    %p362 = pneg %p361
    // Predicated region
    $region9: #{hgblock_forward.13} parent=5 // pred_check
      _
    $region10: #{hgblock_forward.13} parent=5 // pred_check_branch
      %364 = sbr.rel (%p361) target = $region12
    $region11: #{hgblock_forward.13} parent=5 // pred_region
      %s365 = ssub.s32 %s17, 1
      // Predicated region
      $region13: #{hgblock_forward.13} parent=11 // pred_check
        %p366 = pneg %p260
      $region14: #{hgblock_forward.13} parent=11 // pred_check_branch
        %368 = sbr.rel (%p366) target = $region16
      $region15: #{hgblock_forward.13} parent=11 // pred_region
        _
      $region16: #{hgblock_forward.13} parent=11 // pred_fallthru
        _
      // Predicated region
      $region17: #{hgblock_forward.13} parent=11 // pred_check
        %p369 = pneg %p281
      $region18: #{hgblock_forward.13} parent=11 // pred_check_branch
        %371 = sbr.rel (%p369) target = $region20
      $region19: #{hgblock_forward.13} parent=11 // pred_region
        _
      $region20: #{hgblock_forward.13} parent=11 // pred_fallthru
        _
      // Predicated region
      $region21: #{hgblock_forward.13} parent=11 // pred_check
        %p372 = pneg %p302
      $region22: #{hgblock_forward.13} parent=11 // pred_check_branch
        %374 = sbr.rel (%p372) target = $region24
      $region23: #{hgblock_forward.13} parent=11 // pred_region
        _
      $region24: #{hgblock_forward.13} parent=11 // pred_fallthru
        _
      // Predicated region
      $region25: #{hgblock_forward.13} parent=11 // pred_check
        %p375 = pneg %p323
      $region26: #{hgblock_forward.13} parent=11 // pred_check_branch
        %377 = sbr.rel (%p375) target = $region28
      $region27: #{hgblock_forward.13} parent=11 // pred_region
        _
      $region28: #{hgblock_forward.13} parent=11 // pred_fallthru
        _
    $region12: #{hgblock_forward.13} parent=5 // pred_fallthru
      _
    %p378 = scmp.lt.s32.totalorder %s17, 2
    // Predicated region
    $region29: #{hgblock_forward.13} parent=5 // pred_check
      %p379 = pneg %p378
    $region30: #{hgblock_forward.13} parent=5 // pred_check_branch
      %381 = sbr.rel (%p379) target = $region32
    $region31: #{hgblock_forward.13} parent=5 // pred_region
      // Predicated region
      $region33: #{hgblock_forward.13} parent=31 // pred_check
        %p382 = pneg %p53
      $region34: #{hgblock_forward.13} parent=31 // pred_check_branch
        %384 = sbr.rel (%p382) target = $region36
      $region35: #{hgblock_forward.13} parent=31 // pred_region
        %s385 = sadd.s32 %s25, 1
        %s386 = smul.u32 54, %s385
        %p387 = scmp.lt.s32.totalorder %s24, 1
        %s388 = scalar_select %p387, %s24, 1
        %p389 = scmp.lt.s32.totalorder %s386, 161
        %s390 = scalar_select %p389, %s386, 161
        %s391 = smul.addr %s388, 162
        %s392 = sadd.s32 %s390, %s391
        %s393 = smul.addr %s392, 4
        %s394 = scalar_lea.vmem %s0, %s393
        %s395 = sadd.s32 %s25, 1
        %s396 = smul.u32 54, %s395
      $region36: #{hgblock_forward.13} parent=31 // pred_fallthru
        _
      // Predicated region
      $region37: #{hgblock_forward.13} parent=31 // pred_check
        %p397 = pneg %p83
      $region38: #{hgblock_forward.13} parent=31 // pred_check_branch
        %399 = sbr.rel (%p397) target = $region40
      $region39: #{hgblock_forward.13} parent=31 // pred_region
        %s400 = sadd.s32 %s25, 1
        %s401 = smul.u32 54, %s400
        %p402 = scmp.lt.s32.totalorder %s24, 1
        %s403 = scalar_select %p402, %s24, 1
        %p404 = scmp.lt.s32.totalorder %s401, 161
        %s405 = scalar_select %p404, %s401, 161
        %s406 = smul.addr %s403, 162
        %s407 = sadd.s32 %s405, %s406
        %s408 = smul.addr %s407, 4
        %s409 = scalar_lea.vmem %s1, %s408
        %s410 = sadd.s32 %s25, 1
        %s411 = smul.u32 54, %s410
      $region40: #{hgblock_forward.13} parent=31 // pred_fallthru
        _
      // Predicated region
      $region41: #{hgblock_forward.13} parent=31 // pred_check
        %p412 = pneg %p113
      $region42: #{hgblock_forward.13} parent=31 // pred_check_branch
        %414 = sbr.rel (%p412) target = $region44
      $region43: #{hgblock_forward.13} parent=31 // pred_region
        %s415 = sadd.s32 %s25, 1
        %s416 = smul.u32 54, %s415
        %p417 = scmp.lt.s32.totalorder %s24, 1
        %s418 = scalar_select %p417, %s24, 1
        %p419 = scmp.lt.s32.totalorder %s416, 161
        %s420 = scalar_select %p419, %s416, 161
        %s421 = smul.addr %s418, 162
        %s422 = sadd.s32 %s420, %s421
        %s423 = smul.addr %s422, 4
        %s424 = scalar_lea.vmem %s2, %s423
        %s425 = sadd.s32 %s25, 1
        %s426 = smul.u32 54, %s425
      $region44: #{hgblock_forward.13} parent=31 // pred_fallthru
        _
      // Predicated region
      $region45: #{hgblock_forward.13} parent=31 // pred_check
        %p427 = pneg %p143
      $region46: #{hgblock_forward.13} parent=31 // pred_check_branch
        %429 = sbr.rel (%p427) target = $region48
      $region47: #{hgblock_forward.13} parent=31 // pred_region
        %s430 = sadd.s32 %s25, 1
        %s431 = smul.u32 54, %s430
        %p432 = scmp.lt.s32.totalorder %s24, 1
        %s433 = scalar_select %p432, %s24, 1
        %p434 = scmp.lt.s32.totalorder %s431, 161
        %s435 = scalar_select %p434, %s431, 161
        %s436 = smul.addr %s433, 162
        %s437 = sadd.s32 %s435, %s436
        %s438 = smul.addr %s437, 4
        %s439 = scalar_lea.vmem %s3, %s438
        %s440 = sadd.s32 %s25, 1
        %s441 = smul.u32 54, %s440
      $region48: #{hgblock_forward.13} parent=31 // pred_fallthru
        _
      // Predicated region
      $region49: #{hgblock_forward.13} parent=31 // pred_check
        %p442 = pneg %p173
      $region50: #{hgblock_forward.13} parent=31 // pred_check_branch
        %444 = sbr.rel (%p442) target = $region52
      $region51: #{hgblock_forward.13} parent=31 // pred_region
        %s445 = sadd.s32 %s25, 1
        %s446 = smul.u32 54, %s445
        %p447 = scmp.lt.s32.totalorder %s24, 1
        %s448 = scalar_select %p447, %s24, 1
        %p449 = scmp.lt.s32.totalorder %s446, 161
        %s450 = scalar_select %p449, %s446, 161
        %s451 = smul.addr %s448, 162
        %s452 = sadd.s32 %s450, %s451
        %s453 = smul.addr %s452, 4
        %s454 = scalar_lea.vmem %s4, %s453
        %s455 = sadd.s32 %s25, 1
        %s456 = smul.u32 54, %s455
      $region52: #{hgblock_forward.13} parent=31 // pred_fallthru
        _
      // Predicated region
      $region53: #{hgblock_forward.13} parent=31 // pred_check
        %p457 = pneg %p203
      $region54: #{hgblock_forward.13} parent=31 // pred_check_branch
        %459 = sbr.rel (%p457) target = $region56
      $region55: #{hgblock_forward.13} parent=31 // pred_region
        %s460 = sadd.s32 %s25, 1
        %s461 = smul.u32 54, %s460
        %p462 = scmp.lt.s32.totalorder %s24, 1
        %s463 = scalar_select %p462, %s24, 1
        %p464 = scmp.lt.s32.totalorder %s461, 161
        %s465 = scalar_select %p464, %s461, 161
        %s466 = smul.addr %s463, 162
        %s467 = sadd.s32 %s465, %s466
        %s468 = smul.addr %s467, 4
        %s469 = scalar_lea.vmem %s5, %s468
        %s470 = sadd.s32 %s25, 1
        %s471 = smul.u32 54, %s470
      $region56: #{hgblock_forward.13} parent=31 // pred_fallthru
        _
      // Predicated region
      $region57: #{hgblock_forward.13} parent=31 // pred_check
        %p472 = pneg %p233
      $region58: #{hgblock_forward.13} parent=31 // pred_check_branch
        %474 = sbr.rel (%p472) target = $region60
      $region59: #{hgblock_forward.13} parent=31 // pred_region
        %s475 = sadd.s32 %s25, 1
        %s476 = smul.u32 54, %s475
        %p477 = scmp.lt.s32.totalorder %s24, 1
        %s478 = scalar_select %p477, %s24, 1
        %p479 = scmp.lt.s32.totalorder %s476, 161
        %s480 = scalar_select %p479, %s476, 161
        %s481 = smul.addr %s478, 162
        %s482 = sadd.s32 %s480, %s481
        %s483 = smul.addr %s482, 4
        %s484 = scalar_lea.vmem %s6, %s483
        %s485 = sadd.s32 %s25, 1
        %s486 = smul.u32 54, %s485
      $region60: #{hgblock_forward.13} parent=31 // pred_fallthru
        _
    $region32: #{hgblock_forward.13} parent=5 // pred_fallthru
      _
    %p487 = scmp.le.s32.totalorder 1, %s17
    %p488 = scmp.lt.s32.totalorder %s17, 3
    %p489 = pnand %p487, %p488
    %p490 = pneg %p489
    // Predicated region
    $region61: #{hgblock_forward.13} parent=5 // pred_check
      _
    $region62: #{hgblock_forward.13} parent=5 // pred_check_branch
      %492 = sbr.rel (%p489) target = $region64
    $region63: #{hgblock_forward.13} parent=5 // pred_region
      %s493 = ssub.s32 %s17, 1
      %s494 = sadd.s32 %s27, 1
      %s495 = smul.u32 54, %s494
      %p496 = scmp.lt.s32.totalorder %s26, 1
      %s497 = scalar_select %p496, %s26, 1
      %p498 = scmp.lt.s32.totalorder %s495, 161
      %s499 = scalar_select %p498, %s495, 161
      %s500 = smul.addr %s497, 162
      %s501 = sadd.s32 %s499, %s500
      %s502 = smul.addr %s501, 4
      %s503 = scalar_lea.vmem %s0, %s502
      %p504 = pneg %p59
      %p505 = pneg %p56
      %s506 = sadd.s32 %s27, 1
      %s507 = smul.u32 54, %s506
      %p508 = scmp.lt.s32.totalorder %s26, 1
      %s509 = scalar_select %p508, %s26, 1
      %p510 = scmp.lt.s32.totalorder %s507, 161
      %s511 = scalar_select %p510, %s507, 161
      %s512 = smul.addr %s509, 162
      %s513 = sadd.s32 %s511, %s512
      %s514 = smul.addr %s513, 4
      %s515 = scalar_lea.vmem %s1, %s514
      %p516 = pneg %p89
      %p517 = pneg %p86
      %s518 = sadd.s32 %s27, 1
      %s519 = smul.u32 54, %s518
      %p520 = scmp.lt.s32.totalorder %s26, 1
      %s521 = scalar_select %p520, %s26, 1
      %p522 = scmp.lt.s32.totalorder %s519, 161
      %s523 = scalar_select %p522, %s519, 161
      %s524 = smul.addr %s521, 162
      %s525 = sadd.s32 %s523, %s524
      %s526 = smul.addr %s525, 4
      %s527 = scalar_lea.vmem %s2, %s526
      %p528 = pneg %p119
      %p529 = pneg %p116
      %s530 = sadd.s32 %s27, 1
      %s531 = smul.u32 54, %s530
      %p532 = scmp.lt.s32.totalorder %s26, 1
      %s533 = scalar_select %p532, %s26, 1
      %p534 = scmp.lt.s32.totalorder %s531, 161
      %s535 = scalar_select %p534, %s531, 161
      %s536 = smul.addr %s533, 162
      %s537 = sadd.s32 %s535, %s536
      %s538 = smul.addr %s537, 4
      %s539 = scalar_lea.vmem %s3, %s538
      %p540 = pneg %p149
      %p541 = pneg %p146
      %s542 = sadd.s32 %s27, 1
      %s543 = smul.u32 54, %s542
      %p544 = scmp.lt.s32.totalorder %s26, 1
      %s545 = scalar_select %p544, %s26, 1
      %p546 = scmp.lt.s32.totalorder %s543, 161
      %s547 = scalar_select %p546, %s543, 161
      %s548 = smul.addr %s545, 162
      %s549 = sadd.s32 %s547, %s548
      %s550 = smul.addr %s549, 4
      %s551 = scalar_lea.vmem %s4, %s550
      %p552 = pneg %p179
      %p553 = pneg %p176
      %s554 = sadd.s32 %s27, 1
      %s555 = smul.u32 54, %s554
      %p556 = scmp.lt.s32.totalorder %s26, 1
      %s557 = scalar_select %p556, %s26, 1
      %p558 = scmp.lt.s32.totalorder %s555, 161
      %s559 = scalar_select %p558, %s555, 161
      %s560 = smul.addr %s557, 162
      %s561 = sadd.s32 %s559, %s560
      %s562 = smul.addr %s561, 4
      %s563 = scalar_lea.vmem %s5, %s562
      %p564 = pneg %p209
      %p565 = pneg %p206
      %s566 = sadd.s32 %s27, 1
      %s567 = smul.u32 54, %s566
      %p568 = scmp.lt.s32.totalorder %s26, 1
      %s569 = scalar_select %p568, %s26, 1
      %p570 = scmp.lt.s32.totalorder %s567, 161
      %s571 = scalar_select %p570, %s567, 161
      %s572 = smul.addr %s569, 162
      %s573 = sadd.s32 %s571, %s572
      %s574 = smul.addr %s573, 4
      %s575 = scalar_lea.vmem %s6, %s574
      %p576 = pneg %p239
      %p577 = pneg %p236
      %p578 = pneg %p260
      %p579 = pneg %p257
      %p580 = pneg %p281
      %p581 = pneg %p278
      %p582 = pneg %p302
      %p583 = pneg %p299
      %p584 = pneg %p323
      %p585 = pneg %p320
      %p586 = pneg %p351
      %p587 = pneg %p348
      %s588 = smul.u32 54, %s27
      %p589 = scmp.lt.s32.totalorder %s26, 1
      %s590 = scalar_select %p589, %s26, 1
      %p591 = scmp.lt.s32.totalorder %s588, 53
      %s592 = scalar_select %p591, %s588, 53
      %s593 = smul.addr %s590, 54
      %s594 = sadd.s32 %s592, %s593
      %s595 = smul.addr %s594, 4
      %s596 = scalar_lea.vmem %s11, %s595
      %s597 = sadd.s32 %s27, 1
      %s598 = smul.u32 54, %s597
      %p599 = scmp.lt.s32.totalorder %s26, 1
      %s600 = scalar_select %p599, %s26, 1
      %p601 = scmp.lt.s32.totalorder %s598, 161
      %s602 = scalar_select %p601, %s598, 161
      %s603 = smul.addr %s600, 162
      %s604 = sadd.s32 %s602, %s603
      %s605 = smul.addr %s604, 4
      %s606 = scalar_lea.vmem %s0, %s605
      %s607 = sadd.s32 %s27, 1
      %s608 = smul.u32 54, %s607
      %s609 = sadd.s32 %s27, 1
      %s610 = smul.u32 54, %s609
      %p611 = scmp.lt.s32.totalorder %s26, 1
      %s612 = scalar_select %p611, %s26, 1
      %p613 = scmp.lt.s32.totalorder %s610, 161
      %s614 = scalar_select %p613, %s610, 161
      %s615 = smul.addr %s612, 162
      %s616 = sadd.s32 %s614, %s615
      %s617 = smul.addr %s616, 4
      %s618 = scalar_lea.vmem %s1, %s617
      %s619 = sadd.s32 %s27, 1
      %s620 = smul.u32 54, %s619
      %s621 = sadd.s32 %s27, 1
      %s622 = smul.u32 54, %s621
      %p623 = scmp.lt.s32.totalorder %s26, 1
      %s624 = scalar_select %p623, %s26, 1
      %p625 = scmp.lt.s32.totalorder %s622, 161
      %s626 = scalar_select %p625, %s622, 161
      %s627 = smul.addr %s624, 162
      %s628 = sadd.s32 %s626, %s627
      %s629 = smul.addr %s628, 4
      %s630 = scalar_lea.vmem %s2, %s629
      %s631 = sadd.s32 %s27, 1
      %s632 = smul.u32 54, %s631
      %s633 = sadd.s32 %s27, 1
      %s634 = smul.u32 54, %s633
      %p635 = scmp.lt.s32.totalorder %s26, 1
      %s636 = scalar_select %p635, %s26, 1
      %p637 = scmp.lt.s32.totalorder %s634, 161
      %s638 = scalar_select %p637, %s634, 161
      %s639 = smul.addr %s636, 162
      %s640 = sadd.s32 %s638, %s639
      %s641 = smul.addr %s640, 4
      %s642 = scalar_lea.vmem %s3, %s641
      %s643 = sadd.s32 %s27, 1
      %s644 = smul.u32 54, %s643
      %s645 = sadd.s32 %s27, 1
      %s646 = smul.u32 54, %s645
      %p647 = scmp.lt.s32.totalorder %s26, 1
      %s648 = scalar_select %p647, %s26, 1
      %p649 = scmp.lt.s32.totalorder %s646, 161
      %s650 = scalar_select %p649, %s646, 161
      %s651 = smul.addr %s648, 162
      %s652 = sadd.s32 %s650, %s651
      %s653 = smul.addr %s652, 4
      %s654 = scalar_lea.vmem %s4, %s653
      %s655 = sadd.s32 %s27, 1
      %s656 = smul.u32 54, %s655
      %s657 = sadd.s32 %s27, 1
      %s658 = smul.u32 54, %s657
      %p659 = scmp.lt.s32.totalorder %s26, 1
      %s660 = scalar_select %p659, %s26, 1
      %p661 = scmp.lt.s32.totalorder %s658, 161
      %s662 = scalar_select %p661, %s658, 161
      %s663 = smul.addr %s660, 162
      %s664 = sadd.s32 %s662, %s663
      %s665 = smul.addr %s664, 4
      %s666 = scalar_lea.vmem %s5, %s665
      %s667 = sadd.s32 %s27, 1
      %s668 = smul.u32 54, %s667
      %s669 = sadd.s32 %s27, 1
      %s670 = smul.u32 54, %s669
      %p671 = scmp.lt.s32.totalorder %s26, 1
      %s672 = scalar_select %p671, %s26, 1
      %p673 = scmp.lt.s32.totalorder %s670, 161
      %s674 = scalar_select %p673, %s670, 161
      %s675 = smul.addr %s672, 162
      %s676 = sadd.s32 %s674, %s675
      %s677 = smul.addr %s676, 4
      %s678 = scalar_lea.vmem %s6, %s677
      %s679 = sadd.s32 %s27, 1
      %s680 = smul.u32 54, %s679
      %s681 = smul.u32 54, %s27
      %p682 = scmp.lt.s32.totalorder %s26, 1
      %s683 = scalar_select %p682, %s26, 1
      %p684 = scmp.lt.s32.totalorder %s681, 53
      %s685 = scalar_select %p684, %s681, 53
      %s686 = smul.addr %s683, 54
      %s687 = sadd.s32 %s685, %s686
      %s688 = smul.addr %s687, 4
      %s689 = scalar_lea.vmem %s11, %s688
      %s690 = smul.u32 54, %s27
      %v692 = vld [vmem:[%s606] sm:$0xf]
      %v693 = vld [vmem:[%s606 + $0x4] sm:$0xf]
      %v694 = vld [vmem:[%s606 + $0x8] sm:$0xf]
      %v695 = vld [vmem:[%s606 + $0xc] sm:$0xf]
      %v696 = vld [vmem:[%s606 + $0x10] sm:$0xf]
      %v697 = vld [vmem:[%s606 + $0x14] sm:$0xf]
      %v698 = vld [vmem:[%s606 + $0x18] sm:$0xf]
      %v699 = vld [vmem:[%s606 + $0x1c] sm:$0xf]
      %v700 = vld [vmem:[%s606 + $0x20] sm:$0xf]
      %v701 = vld [vmem:[%s606 + $0x24] sm:$0xf]
      %v702 = vld [vmem:[%s606 + $0x28] sm:$0xf]
      %v703 = vld [vmem:[%s606 + $0x2c] sm:$0xf]
      %v704 = vld [vmem:[%s606 + $0x30] sm:$0xf]
      %v705 = vld [vmem:[%s606 + $0x34] sm:$0xf]
      %v706 = vld [vmem:[%s606 + $0x38] sm:$0xf]
      %v707 = vld [vmem:[%s606 + $0x3c] sm:$0xf]
      %v708 = vld [vmem:[%s606 + $0x40] sm:$0xf]
      %v709 = vld [vmem:[%s606 + $0x44] sm:$0xf]
      %v710 = vld [vmem:[%s606 + $0x48] sm:$0xf]
      %v711 = vld [vmem:[%s606 + $0x4c] sm:$0xf]
      %v712 = vld [vmem:[%s606 + $0x50] sm:$0xf]
      %v713 = vld [vmem:[%s606 + $0x54] sm:$0xf]
      %v714 = vld [vmem:[%s606 + $0x58] sm:$0xf]
      %v715 = vld [vmem:[%s606 + $0x5c] sm:$0xf]
      %v716 = vld [vmem:[%s606 + $0x60] sm:$0xf]
      %v717 = vld [vmem:[%s606 + $0x64] sm:$0xf]
      %v718 = vld [vmem:[%s606 + $0x68] sm:$0xf]
      %v719 = vld [vmem:[%s606 + $0x6c] sm:$0xf]
      %v720 = vld [vmem:[%s606 + $0x70] sm:$0xf]
      %v721 = vld [vmem:[%s606 + $0x74] sm:$0xf]
      %v722 = vld [vmem:[%s606 + $0x78] sm:$0xf]
      %v723 = vld [vmem:[%s606 + $0x7c] sm:$0xf]
      %v724 = vld [vmem:[%s606 + $0x80] sm:$0xf]
      %v725 = vld [vmem:[%s606 + $0x84] sm:$0xf]
      %v726 = vld [vmem:[%s606 + $0x88] sm:$0xf]
      %v727 = vld [vmem:[%s606 + $0x8c] sm:$0xf]
      %v728 = vld [vmem:[%s606 + $0x90] sm:$0xf]
      %v729 = vld [vmem:[%s606 + $0x94] sm:$0xf]
      %v730 = vld [vmem:[%s606 + $0x98] sm:$0xf]
      %v731 = vld [vmem:[%s606 + $0x9c] sm:$0xf]
      %v732 = vld [vmem:[%s606 + $0xa0] sm:$0xf]
      %v733 = vld [vmem:[%s606 + $0xa4] sm:$0xf]
      %v734 = vld [vmem:[%s606 + $0xa8] sm:$0xf]
      %v735 = vld [vmem:[%s606 + $0xac] sm:$0xf]
      %v736 = vld [vmem:[%s606 + $0xb0] sm:$0xf]
      %v737 = vld [vmem:[%s606 + $0xb4] sm:$0xf]
      %v738 = vld [vmem:[%s606 + $0xb8] sm:$0xf]
      %v739 = vld [vmem:[%s606 + $0xbc] sm:$0xf]
      %v740 = vld [vmem:[%s606 + $0xc0] sm:$0xf]
      %v741 = vld [vmem:[%s606 + $0xc4] sm:$0xf]
      %v742 = vld [vmem:[%s606 + $0xc8] sm:$0xf]
      %v743 = vld [vmem:[%s606 + $0xcc] sm:$0xf]
      %v744 = vld [vmem:[%s606 + $0xd0] sm:$0xf]
      %v745 = vld [vmem:[%s606 + $0xd4] sm:$0xf]
      %v746 = vld [vmem:[%s7] sm:$0xf]
      %v747 = vld [vmem:[%s7 + $0x4] sm:$0xf]
      %v748 = vld [vmem:[%s7 + $0x8] sm:$0xf]
      %v749 = vld [vmem:[%s7 + $0xc] sm:$0xf]
      %v750 = vld [vmem:[%s7 + $0x10] sm:$0xf]
      %v751 = vld [vmem:[%s7 + $0x14] sm:$0xf]
      %v752 = vld [vmem:[%s7 + $0x18] sm:$0xf]
      %v753 = vld [vmem:[%s7 + $0x1c] sm:$0xf]
      %v754 = vld [vmem:[%s7 + $0x20] sm:$0xf]
      %v755 = vld [vmem:[%s7 + $0x24] sm:$0xf]
      %v756 = vld [vmem:[%s7 + $0x28] sm:$0xf]
      %v757 = vld [vmem:[%s7 + $0x2c] sm:$0xf]
      %v758 = vld [vmem:[%s7 + $0x30] sm:$0xf]
      %v759 = vld [vmem:[%s7 + $0x34] sm:$0xf]
      %v760 = vld [vmem:[%s7 + $0x38] sm:$0xf]
      %v761 = vld [vmem:[%s7 + $0x3c] sm:$0xf]
      %v762 = vld [vmem:[%s618] sm:$0xf]
      %v763 = vld [vmem:[%s618 + $0x4] sm:$0xf]
      %v764 = vld [vmem:[%s618 + $0x8] sm:$0xf]
      %v765 = vld [vmem:[%s618 + $0xc] sm:$0xf]
      %v766 = vld [vmem:[%s618 + $0x10] sm:$0xf]
      %v767 = vld [vmem:[%s618 + $0x14] sm:$0xf]
      %v768 = vld [vmem:[%s618 + $0x18] sm:$0xf]
      %v769 = vld [vmem:[%s618 + $0x1c] sm:$0xf]
      %v770 = vld [vmem:[%s618 + $0x20] sm:$0xf]
      %v771 = vld [vmem:[%s618 + $0x24] sm:$0xf]
      %v772 = vld [vmem:[%s618 + $0x28] sm:$0xf]
      %v773 = vld [vmem:[%s618 + $0x2c] sm:$0xf]
      %v774 = vld [vmem:[%s618 + $0x30] sm:$0xf]
      %v775 = vld [vmem:[%s618 + $0x34] sm:$0xf]
      %v776 = vld [vmem:[%s618 + $0x38] sm:$0xf]
      %v777 = vld [vmem:[%s618 + $0x3c] sm:$0xf]
      %v778 = vld [vmem:[%s618 + $0x40] sm:$0xf]
      %v779 = vld [vmem:[%s618 + $0x44] sm:$0xf]
      %v780 = vld [vmem:[%s618 + $0x48] sm:$0xf]
      %v781 = vld [vmem:[%s618 + $0x4c] sm:$0xf]
      %v782 = vld [vmem:[%s618 + $0x50] sm:$0xf]
      %v783 = vld [vmem:[%s618 + $0x54] sm:$0xf]
      %v784 = vld [vmem:[%s618 + $0x58] sm:$0xf]
      %v785 = vld [vmem:[%s618 + $0x5c] sm:$0xf]
      %v786 = vld [vmem:[%s618 + $0x60] sm:$0xf]
      %v787 = vld [vmem:[%s618 + $0x64] sm:$0xf]
      %v788 = vld [vmem:[%s618 + $0x68] sm:$0xf]
      %v789 = vld [vmem:[%s618 + $0x6c] sm:$0xf]
      %v790 = vld [vmem:[%s618 + $0x70] sm:$0xf]
      %v791 = vld [vmem:[%s618 + $0x74] sm:$0xf]
      %v792 = vld [vmem:[%s618 + $0x78] sm:$0xf]
      %v793 = vld [vmem:[%s618 + $0x7c] sm:$0xf]
      %v794 = vld [vmem:[%s618 + $0x80] sm:$0xf]
      %v795 = vld [vmem:[%s618 + $0x84] sm:$0xf]
      %v796 = vld [vmem:[%s618 + $0x88] sm:$0xf]
      %v797 = vld [vmem:[%s618 + $0x8c] sm:$0xf]
      %v798 = vld [vmem:[%s618 + $0x90] sm:$0xf]
      %v799 = vld [vmem:[%s618 + $0x94] sm:$0xf]
      %v800 = vld [vmem:[%s618 + $0x98] sm:$0xf]
      %v801 = vld [vmem:[%s618 + $0x9c] sm:$0xf]
      %v802 = vld [vmem:[%s618 + $0xa0] sm:$0xf]
      %v803 = vld [vmem:[%s618 + $0xa4] sm:$0xf]
      %v804 = vld [vmem:[%s618 + $0xa8] sm:$0xf]
      %v805 = vld [vmem:[%s618 + $0xac] sm:$0xf]
      %v806 = vld [vmem:[%s618 + $0xb0] sm:$0xf]
      %v807 = vld [vmem:[%s618 + $0xb4] sm:$0xf]
      %v808 = vld [vmem:[%s618 + $0xb8] sm:$0xf]
      %v809 = vld [vmem:[%s618 + $0xbc] sm:$0xf]
      %v810 = vld [vmem:[%s618 + $0xc0] sm:$0xf]
      %v811 = vld [vmem:[%s618 + $0xc4] sm:$0xf]
      %v812 = vld [vmem:[%s618 + $0xc8] sm:$0xf]
      %v813 = vld [vmem:[%s618 + $0xcc] sm:$0xf]
      %v814 = vld [vmem:[%s618 + $0xd0] sm:$0xf]
      %v815 = vld [vmem:[%s618 + $0xd4] sm:$0xf]
      %v816 = vld [vmem:[%s7 + $0x40] sm:$0xf]
      %v817 = vld [vmem:[%s7 + $0x44] sm:$0xf]
      %v818 = vld [vmem:[%s7 + $0x48] sm:$0xf]
      %v819 = vld [vmem:[%s7 + $0x4c] sm:$0xf]
      %v820 = vld [vmem:[%s7 + $0x50] sm:$0xf]
      %v821 = vld [vmem:[%s7 + $0x54] sm:$0xf]
      %v822 = vld [vmem:[%s7 + $0x58] sm:$0xf]
      %v823 = vld [vmem:[%s7 + $0x5c] sm:$0xf]
      %v824 = vld [vmem:[%s7 + $0x60] sm:$0xf]
      %v825 = vld [vmem:[%s7 + $0x64] sm:$0xf]
      %v826 = vld [vmem:[%s7 + $0x68] sm:$0xf]
      %v827 = vld [vmem:[%s7 + $0x6c] sm:$0xf]
      %v828 = vld [vmem:[%s7 + $0x70] sm:$0xf]
      %v829 = vld [vmem:[%s7 + $0x74] sm:$0xf]
      %v830 = vld [vmem:[%s7 + $0x78] sm:$0xf]
      %v831 = vld [vmem:[%s7 + $0x7c] sm:$0xf]
      %v886 = vunpack.c.l.b16 %v762
      %v887 = vunpack.c.l.b16 %v763
      %v888 = vunpack.c.l.b16 %v764
      %v889 = vunpack.c.l.b16 %v765
      %v890 = vunpack.c.l.b16 %v766
      %v891 = vunpack.c.l.b16 %v767
      %v892 = vunpack.c.l.b16 %v768
      %v893 = vunpack.c.l.b16 %v769
      %v894 = vunpack.c.l.b16 %v770
      %v895 = vunpack.c.l.b16 %v771
      %v896 = vunpack.c.l.b16 %v772
      %v897 = vunpack.c.l.b16 %v773
      %v898 = vunpack.c.l.b16 %v774
      %v899 = vunpack.c.l.b16 %v775
      %v900 = vunpack.c.l.b16 %v776
      %v901 = vunpack.c.l.b16 %v777
      %v902 = vunpack.c.l.b16 %v778
      %v903 = vunpack.c.l.b16 %v779
      %v904 = vunpack.c.l.b16 %v780
      %v905 = vunpack.c.l.b16 %v781
      %v906 = vunpack.c.l.b16 %v782
      %v907 = vunpack.c.l.b16 %v783
      %v908 = vunpack.c.l.b16 %v784
      %v909 = vunpack.c.l.b16 %v785
      %v910 = vunpack.c.l.b16 %v786
      %v911 = vunpack.c.l.b16 %v787
      %v912 = vunpack.c.l.b16 %v788
      %v913 = vunpack.c.l.b16 %v789
      %v914 = vunpack.c.l.b16 %v790
      %v915 = vunpack.c.l.b16 %v791
      %v916 = vunpack.c.l.b16 %v792
      %v917 = vunpack.c.l.b16 %v793
      %v918 = vunpack.c.l.b16 %v794
      %v919 = vunpack.c.l.b16 %v795
      %v920 = vunpack.c.l.b16 %v796
      %v921 = vunpack.c.l.b16 %v797
      %v922 = vunpack.c.l.b16 %v798
      %v923 = vunpack.c.l.b16 %v799
      %v924 = vunpack.c.l.b16 %v800
      %v925 = vunpack.c.l.b16 %v801
      %v926 = vunpack.c.l.b16 %v802
      %v927 = vunpack.c.l.b16 %v803
      %v928 = vunpack.c.l.b16 %v804
      %v929 = vunpack.c.l.b16 %v805
      %v930 = vunpack.c.l.b16 %v806
      %v931 = vunpack.c.l.b16 %v807
      %v932 = vunpack.c.l.b16 %v808
      %v933 = vunpack.c.l.b16 %v809
      %v934 = vunpack.c.l.b16 %v810
      %v935 = vunpack.c.l.b16 %v811
      %v936 = vunpack.c.l.b16 %v812
      %v937 = vunpack.c.l.b16 %v813
      %v938 = vunpack.c.l.b16 %v814
      %v939 = vunpack.c.l.b16 %v815
      %v940 = vpack.c.b16 %v887, %v886
      %v941 = vpack.c.b16 %v889, %v888
      %v942 = vpack.c.b16 %v891, %v890
      %v943 = vpack.c.b16 %v893, %v892
      %v944 = vpack.c.b16 %v895, %v894
      %v945 = vpack.c.b16 %v897, %v896
      %v946 = vpack.c.b16 %v899, %v898
      %v947 = vpack.c.b16 %v901, %v900
      %v948 = vpack.c.b16 %v903, %v902
      %v949 = vpack.c.b16 %v905, %v904
      %v950 = vpack.c.b16 %v907, %v906
      %v951 = vpack.c.b16 %v909, %v908
      %v952 = vpack.c.b16 %v911, %v910
      %v953 = vpack.c.b16 %v913, %v912
      %v954 = vpack.c.b16 %v915, %v914
      %v955 = vpack.c.b16 %v917, %v916
      %v956 = vpack.c.b16 %v919, %v918
      %v957 = vpack.c.b16 %v921, %v920
      %v958 = vpack.c.b16 %v923, %v922
      %v959 = vpack.c.b16 %v925, %v924
      %v960 = vpack.c.b16 %v927, %v926
      %v961 = vpack.c.b16 %v929, %v928
      %v962 = vpack.c.b16 %v931, %v930
      %v963 = vpack.c.b16 %v933, %v932
      %v964 = vpack.c.b16 %v935, %v934
      %v965 = vpack.c.b16 %v937, %v936
      %v966 = vpack.c.b16 %v939, %v938
      %v1010 = vunpack.c.l.b16 %v816
      %v1011 = vunpack.c.l.b16 %v817
      %v1012 = vunpack.c.l.b16 %v818
      %v1013 = vunpack.c.l.b16 %v819
      %v1014 = vunpack.c.l.b16 %v820
      %v1015 = vunpack.c.l.b16 %v821
      %v1016 = vunpack.c.l.b16 %v822
      %v1017 = vunpack.c.l.b16 %v823
      %v1018 = vunpack.c.l.b16 %v824
      %v1019 = vunpack.c.l.b16 %v825
      %v1020 = vunpack.c.l.b16 %v826
      %v1021 = vunpack.c.l.b16 %v827
      %v1022 = vunpack.c.l.b16 %v828
      %v1023 = vunpack.c.l.b16 %v829
      %v1024 = vunpack.c.l.b16 %v830
      %v1025 = vunpack.c.l.b16 %v831
      %v1026 = vpack.c.b16 %v1011, %v1010
      %v1027 = vpack.c.b16 %v1013, %v1012
      %v1028 = vpack.c.b16 %v1015, %v1014
      %v1029 = vpack.c.b16 %v1017, %v1016
      %v1030 = vpack.c.b16 %v1019, %v1018
      %v1031 = vpack.c.b16 %v1021, %v1020
      %v1032 = vpack.c.b16 %v1023, %v1022
      %v1033 = vpack.c.b16 %v1025, %v1024
      %1042 = vmatprep.subr.bf16.mxu0 0
      %1043 = vmatpush1.bf16.msra.mxu0 %v1033
      %1044 = vmatprep.subr.bf16.mxu0 0
      %1045 = vmatpush1.bf16.msra.mxu0 %v1032
      %1046 = vmatprep.subr.bf16.mxu0 0
      %1047 = vmatpush1.bf16.msra.mxu0 %v1031
      %1048 = vmatprep.subr.bf16.mxu0 0
      %1049 = vmatpush1.bf16.msra.mxu0 %v1030
      %1050 = vmatprep.subr.bf16.mxu0 0
      %1051 = vmatpush1.bf16.msra.mxu0 %v1029
      %1052 = vmatprep.subr.bf16.mxu0 0
      %1053 = vmatpush1.bf16.msra.mxu0 %v1028
      %1054 = vmatprep.subr.bf16.mxu0 0
      %1055 = vmatpush1.bf16.msra.mxu0 %v1027
      %1056 = vmatprep.subr.bf16.mxu0 0
      %1057 = vmatpush1.bf16.msra.mxu0 %v1026
      %1058 = vmatprep.subr.bf16.mxu0 0
      %1059 = vmatpush2.bf16.msra.mxu0 0
      %1060 = vmatprep.subr.bf16.mxu0 0
      %1061 = vmatpush2.bf16.msra.mxu0 0
      %1062 = vmatprep.subr.bf16.mxu0 0
      %1063 = vmatpush2.bf16.msra.mxu0 0
      %1064 = vmatprep.subr.bf16.mxu0 0
      %1065 = vmatpush2.bf16.msra.mxu0 0
      %1066 = vmatprep.subr.bf16.mxu0 0
      %1067 = vmatpush2.bf16.msra.mxu0 0
      %1068 = vmatprep.subr.bf16.mxu0 0
      %1069 = vmatpush2.bf16.msra.mxu0 0
      %1070 = vmatprep.subr.bf16.mxu0 0
      %1071 = vmatpush2.bf16.msra.mxu0 0
      %1072 = vmatprep.subr.bf16.mxu0 0
      %1073 = vmatpush2.bf16.msra.mxu0 0
      %1074 = vmatprep.mubr.bf16.mxu0 0
      %1075 = vmatmul.mubr.bf16.gmra.mxu0 %v940
      %v1076 = vpop.f32.mrf.mxu0
      %v1077 = vadd.f32 0.0, %v1076
      %v1078 = vpop.f32.mrf.mxu0
      %v1079 = vpop.f32.mrf.mxu0
      %v1080 = vadd.f32 0.0, %v1079
      %v1081 = vpop.f32.mrf.mxu0
      %1082 = vmatprep.mubr.bf16.mxu0 0
      %1083 = vmatmul.mubr.bf16.gmra.mxu0 %v941
      %v1084 = vpop.f32.mrf.mxu0
      %v1085 = vadd.f32 0.0, %v1084
      %v1086 = vpop.f32.mrf.mxu0
      %v1087 = vpop.f32.mrf.mxu0
      %v1088 = vadd.f32 0.0, %v1087
      %v1089 = vpop.f32.mrf.mxu0
      %1090 = vmatprep.mubr.bf16.mxu0 0
      %1091 = vmatmul.mubr.bf16.gmra.mxu0 %v942
      %v1092 = vpop.f32.mrf.mxu0
      %v1093 = vadd.f32 0.0, %v1092
      %v1094 = vpop.f32.mrf.mxu0
      %v1095 = vpop.f32.mrf.mxu0
      %v1096 = vadd.f32 0.0, %v1095
      %v1097 = vpop.f32.mrf.mxu0
      %1098 = vmatprep.mubr.bf16.mxu0 0
      %1099 = vmatmul.mubr.bf16.gmra.mxu0 %v943
      %v1100 = vpop.f32.mrf.mxu0
      %v1101 = vadd.f32 0.0, %v1100
      %v1102 = vpop.f32.mrf.mxu0
      %v1103 = vpop.f32.mrf.mxu0
      %v1104 = vadd.f32 0.0, %v1103
      %v1105 = vpop.f32.mrf.mxu0
      %1106 = vmatprep.mubr.bf16.mxu0 0
      %1107 = vmatmul.mubr.bf16.gmra.mxu0 %v944
      %v1108 = vpop.f32.mrf.mxu0
      %v1109 = vadd.f32 0.0, %v1108
      %v1110 = vpop.f32.mrf.mxu0
      %v1111 = vpop.f32.mrf.mxu0
      %v1112 = vadd.f32 0.0, %v1111
      %v1113 = vpop.f32.mrf.mxu0
      %1114 = vmatprep.mubr.bf16.mxu0 0
      %1115 = vmatmul.mubr.bf16.gmra.mxu0 %v945
      %v1116 = vpop.f32.mrf.mxu0
      %v1117 = vadd.f32 0.0, %v1116
      %v1118 = vpop.f32.mrf.mxu0
      %v1119 = vpop.f32.mrf.mxu0
      %v1120 = vadd.f32 0.0, %v1119
      %v1121 = vpop.f32.mrf.mxu0
      %1122 = vmatprep.mubr.bf16.mxu0 0
      %1123 = vmatmul.mubr.bf16.gmra.mxu0 %v946
      %v1124 = vpop.f32.mrf.mxu0
      %v1125 = vadd.f32 0.0, %v1124
      %v1126 = vpop.f32.mrf.mxu0
      %v1127 = vpop.f32.mrf.mxu0
      %v1128 = vadd.f32 0.0, %v1127
      %v1129 = vpop.f32.mrf.mxu0
      %1130 = vmatprep.mubr.bf16.mxu0 0
      %1131 = vmatmul.mubr.bf16.gmra.mxu0 %v947
      %v1132 = vpop.f32.mrf.mxu0
      %v1133 = vadd.f32 0.0, %v1132
      %v1134 = vpop.f32.mrf.mxu0
      %v1135 = vpop.f32.mrf.mxu0
      %v1136 = vadd.f32 0.0, %v1135
      %v1137 = vpop.f32.mrf.mxu0
      %1138 = vmatprep.mubr.bf16.mxu0 0
      %1139 = vmatmul.mubr.bf16.gmra.mxu0 %v948
      %v1140 = vpop.f32.mrf.mxu0
      %v1141 = vadd.f32 0.0, %v1140
      %v1142 = vpop.f32.mrf.mxu0
      %v1143 = vpop.f32.mrf.mxu0
      %v1144 = vadd.f32 0.0, %v1143
      %v1145 = vpop.f32.mrf.mxu0
      %1146 = vmatprep.mubr.bf16.mxu0 0
      %1147 = vmatmul.mubr.bf16.gmra.mxu0 %v949
      %v1148 = vpop.f32.mrf.mxu0
      %v1149 = vadd.f32 0.0, %v1148
      %v1150 = vpop.f32.mrf.mxu0
      %v1151 = vpop.f32.mrf.mxu0
      %v1152 = vadd.f32 0.0, %v1151
      %v1153 = vpop.f32.mrf.mxu0
      %1154 = vmatprep.mubr.bf16.mxu0 0
      %1155 = vmatmul.mubr.bf16.gmra.mxu0 %v950
      %v1156 = vpop.f32.mrf.mxu0
      %v1157 = vadd.f32 0.0, %v1156
      %v1158 = vpop.f32.mrf.mxu0
      %v1159 = vpop.f32.mrf.mxu0
      %v1160 = vadd.f32 0.0, %v1159
      %v1161 = vpop.f32.mrf.mxu0
      %1162 = vmatprep.mubr.bf16.mxu0 0
      %1163 = vmatmul.mubr.bf16.gmra.mxu0 %v951
      %v1164 = vpop.f32.mrf.mxu0
      %v1165 = vadd.f32 0.0, %v1164
      %v1166 = vpop.f32.mrf.mxu0
      %v1167 = vpop.f32.mrf.mxu0
      %v1168 = vadd.f32 0.0, %v1167
      %v1169 = vpop.f32.mrf.mxu0
      %1170 = vmatprep.mubr.bf16.mxu0 0
      %1171 = vmatmul.mubr.bf16.gmra.mxu0 %v952
      %v1172 = vpop.f32.mrf.mxu0
      %v1173 = vadd.f32 0.0, %v1172
      %v1174 = vpop.f32.mrf.mxu0
      %v1175 = vpop.f32.mrf.mxu0
      %v1176 = vadd.f32 0.0, %v1175
      %v1177 = vpop.f32.mrf.mxu0
      %1178 = vmatprep.mubr.bf16.mxu0 0
      %1179 = vmatmul.mubr.bf16.gmra.mxu0 %v953
      %v1180 = vpop.f32.mrf.mxu0
      %v1181 = vadd.f32 0.0, %v1180
      %v1182 = vpop.f32.mrf.mxu0
      %v1183 = vpop.f32.mrf.mxu0
      %v1184 = vadd.f32 0.0, %v1183
      %v1185 = vpop.f32.mrf.mxu0
      %1186 = vmatprep.mubr.bf16.mxu0 0
      %1187 = vmatmul.mubr.bf16.gmra.mxu0 %v954
      %v1188 = vpop.f32.mrf.mxu0
      %v1189 = vadd.f32 0.0, %v1188
      %v1190 = vpop.f32.mrf.mxu0
      %v1191 = vpop.f32.mrf.mxu0
      %v1192 = vadd.f32 0.0, %v1191
      %v1193 = vpop.f32.mrf.mxu0
      %1194 = vmatprep.mubr.bf16.mxu0 0
      %1195 = vmatmul.mubr.bf16.gmra.mxu0 %v955
      %v1196 = vpop.f32.mrf.mxu0
      %v1197 = vadd.f32 0.0, %v1196
      %v1198 = vpop.f32.mrf.mxu0
      %v1199 = vpop.f32.mrf.mxu0
      %v1200 = vadd.f32 0.0, %v1199
      %v1201 = vpop.f32.mrf.mxu0
      %1202 = vmatprep.mubr.bf16.mxu0 0
      %1203 = vmatmul.mubr.bf16.gmra.mxu0 %v956
      %v1204 = vpop.f32.mrf.mxu0
      %v1205 = vadd.f32 0.0, %v1204
      %v1206 = vpop.f32.mrf.mxu0
      %v1207 = vpop.f32.mrf.mxu0
      %v1208 = vadd.f32 0.0, %v1207
      %v1209 = vpop.f32.mrf.mxu0
      %1210 = vmatprep.mubr.bf16.mxu0 0
      %1211 = vmatmul.mubr.bf16.gmra.mxu0 %v957
      %v1212 = vpop.f32.mrf.mxu0
      %v1213 = vadd.f32 0.0, %v1212
      %v1214 = vpop.f32.mrf.mxu0
      %v1215 = vpop.f32.mrf.mxu0
      %v1216 = vadd.f32 0.0, %v1215
      %v1217 = vpop.f32.mrf.mxu0
      %1218 = vmatprep.mubr.bf16.mxu0 0
      %1219 = vmatmul.mubr.bf16.gmra.mxu0 %v958
      %v1220 = vpop.f32.mrf.mxu0
      %v1221 = vadd.f32 0.0, %v1220
      %v1222 = vpop.f32.mrf.mxu0
      %v1223 = vpop.f32.mrf.mxu0
      %v1224 = vadd.f32 0.0, %v1223
      %v1225 = vpop.f32.mrf.mxu0
      %1226 = vmatprep.mubr.bf16.mxu0 0
      %1227 = vmatmul.mubr.bf16.gmra.mxu0 %v959
      %v1228 = vpop.f32.mrf.mxu0
      %v1229 = vadd.f32 0.0, %v1228
      %v1230 = vpop.f32.mrf.mxu0
      %v1231 = vpop.f32.mrf.mxu0
      %v1232 = vadd.f32 0.0, %v1231
      %v1233 = vpop.f32.mrf.mxu0
      %1234 = vmatprep.mubr.bf16.mxu0 0
      %1235 = vmatmul.mubr.bf16.gmra.mxu0 %v960
      %v1236 = vpop.f32.mrf.mxu0
      %v1237 = vadd.f32 0.0, %v1236
      %v1238 = vpop.f32.mrf.mxu0
      %v1239 = vpop.f32.mrf.mxu0
      %v1240 = vadd.f32 0.0, %v1239
      %v1241 = vpop.f32.mrf.mxu0
      %1242 = vmatprep.mubr.bf16.mxu0 0
      %1243 = vmatmul.mubr.bf16.gmra.mxu0 %v961
      %v1244 = vpop.f32.mrf.mxu0
      %v1245 = vadd.f32 0.0, %v1244
      %v1246 = vpop.f32.mrf.mxu0
      %v1247 = vpop.f32.mrf.mxu0
      %v1248 = vadd.f32 0.0, %v1247
      %v1249 = vpop.f32.mrf.mxu0
      %1250 = vmatprep.mubr.bf16.mxu0 0
      %1251 = vmatmul.mubr.bf16.gmra.mxu0 %v962
      %v1252 = vpop.f32.mrf.mxu0
      %v1253 = vadd.f32 0.0, %v1252
      %v1254 = vpop.f32.mrf.mxu0
      %v1255 = vpop.f32.mrf.mxu0
      %v1256 = vadd.f32 0.0, %v1255
      %v1257 = vpop.f32.mrf.mxu0
      %1258 = vmatprep.mubr.bf16.mxu0 0
      %1259 = vmatmul.mubr.bf16.gmra.mxu0 %v963
      %v1260 = vpop.f32.mrf.mxu0
      %v1261 = vadd.f32 0.0, %v1260
      %v1262 = vpop.f32.mrf.mxu0
      %v1263 = vpop.f32.mrf.mxu0
      %v1264 = vadd.f32 0.0, %v1263
      %v1265 = vpop.f32.mrf.mxu0
      %1266 = vmatprep.mubr.bf16.mxu0 0
      %1267 = vmatmul.mubr.bf16.gmra.mxu0 %v964
      %v1268 = vpop.f32.mrf.mxu0
      %v1269 = vadd.f32 0.0, %v1268
      %v1270 = vpop.f32.mrf.mxu0
      %v1271 = vpop.f32.mrf.mxu0
      %v1272 = vadd.f32 0.0, %v1271
      %v1273 = vpop.f32.mrf.mxu0
      %1274 = vmatprep.mubr.bf16.mxu0 0
      %1275 = vmatmul.mubr.bf16.gmra.mxu0 %v965
      %v1276 = vpop.f32.mrf.mxu0
      %v1277 = vadd.f32 0.0, %v1276
      %v1278 = vpop.f32.mrf.mxu0
      %v1279 = vpop.f32.mrf.mxu0
      %v1280 = vadd.f32 0.0, %v1279
      %v1281 = vpop.f32.mrf.mxu0
      %1282 = vmatprep.mubr.bf16.mxu0 0
      %1283 = vmatmul.mubr.bf16.gmra.mxu0 %v966
      %v1284 = vpop.f32.mrf.mxu0
      %v1285 = vadd.f32 0.0, %v1284
      %v1286 = vpop.f32.mrf.mxu0
      %v1287 = vpop.f32.mrf.mxu0
      %v1288 = vadd.f32 0.0, %v1287
      %v1289 = vpop.f32.mrf.mxu0
      %1290 = vdwg.mxu0
      %v1345 = vunpack.c.l.b16 %v692
      %v1346 = vunpack.c.l.b16 %v693
      %v1347 = vunpack.c.l.b16 %v694
      %v1348 = vunpack.c.l.b16 %v695
      %v1349 = vunpack.c.l.b16 %v696
      %v1350 = vunpack.c.l.b16 %v697
      %v1351 = vunpack.c.l.b16 %v698
      %v1352 = vunpack.c.l.b16 %v699
      %v1353 = vunpack.c.l.b16 %v700
      %v1354 = vunpack.c.l.b16 %v701
      %v1355 = vunpack.c.l.b16 %v702
      %v1356 = vunpack.c.l.b16 %v703
      %v1357 = vunpack.c.l.b16 %v704
      %v1358 = vunpack.c.l.b16 %v705
      %v1359 = vunpack.c.l.b16 %v706
      %v1360 = vunpack.c.l.b16 %v707
      %v1361 = vunpack.c.l.b16 %v708
      %v1362 = vunpack.c.l.b16 %v709
      %v1363 = vunpack.c.l.b16 %v710
      %v1364 = vunpack.c.l.b16 %v711
      %v1365 = vunpack.c.l.b16 %v712
      %v1366 = vunpack.c.l.b16 %v713
      %v1367 = vunpack.c.l.b16 %v714
      %v1368 = vunpack.c.l.b16 %v715
      %v1369 = vunpack.c.l.b16 %v716
      %v1370 = vunpack.c.l.b16 %v717
      %v1371 = vunpack.c.l.b16 %v718
      %v1372 = vunpack.c.l.b16 %v719
      %v1373 = vunpack.c.l.b16 %v720
      %v1374 = vunpack.c.l.b16 %v721
      %v1375 = vunpack.c.l.b16 %v722
      %v1376 = vunpack.c.l.b16 %v723
      %v1377 = vunpack.c.l.b16 %v724
      %v1378 = vunpack.c.l.b16 %v725
      %v1379 = vunpack.c.l.b16 %v726
      %v1380 = vunpack.c.l.b16 %v727
      %v1381 = vunpack.c.l.b16 %v728
      %v1382 = vunpack.c.l.b16 %v729
      %v1383 = vunpack.c.l.b16 %v730
      %v1384 = vunpack.c.l.b16 %v731
      %v1385 = vunpack.c.l.b16 %v732
      %v1386 = vunpack.c.l.b16 %v733
      %v1387 = vunpack.c.l.b16 %v734
      %v1388 = vunpack.c.l.b16 %v735
      %v1389 = vunpack.c.l.b16 %v736
      %v1390 = vunpack.c.l.b16 %v737
      %v1391 = vunpack.c.l.b16 %v738
      %v1392 = vunpack.c.l.b16 %v739
      %v1393 = vunpack.c.l.b16 %v740
      %v1394 = vunpack.c.l.b16 %v741
      %v1395 = vunpack.c.l.b16 %v742
      %v1396 = vunpack.c.l.b16 %v743
      %v1397 = vunpack.c.l.b16 %v744
      %v1398 = vunpack.c.l.b16 %v745
      %v1399 = vpack.c.b16 %v1346, %v1345
      %v1400 = vpack.c.b16 %v1348, %v1347
      %v1401 = vpack.c.b16 %v1350, %v1349
      %v1402 = vpack.c.b16 %v1352, %v1351
      %v1403 = vpack.c.b16 %v1354, %v1353
      %v1404 = vpack.c.b16 %v1356, %v1355
      %v1405 = vpack.c.b16 %v1358, %v1357
      %v1406 = vpack.c.b16 %v1360, %v1359
      %v1407 = vpack.c.b16 %v1362, %v1361
      %v1408 = vpack.c.b16 %v1364, %v1363
      %v1409 = vpack.c.b16 %v1366, %v1365
      %v1410 = vpack.c.b16 %v1368, %v1367
      %v1411 = vpack.c.b16 %v1370, %v1369
      %v1412 = vpack.c.b16 %v1372, %v1371
      %v1413 = vpack.c.b16 %v1374, %v1373
      %v1414 = vpack.c.b16 %v1376, %v1375
      %v1415 = vpack.c.b16 %v1378, %v1377
      %v1416 = vpack.c.b16 %v1380, %v1379
      %v1417 = vpack.c.b16 %v1382, %v1381
      %v1418 = vpack.c.b16 %v1384, %v1383
      %v1419 = vpack.c.b16 %v1386, %v1385
      %v1420 = vpack.c.b16 %v1388, %v1387
      %v1421 = vpack.c.b16 %v1390, %v1389
      %v1422 = vpack.c.b16 %v1392, %v1391
      %v1423 = vpack.c.b16 %v1394, %v1393
      %v1424 = vpack.c.b16 %v1396, %v1395
      %v1425 = vpack.c.b16 %v1398, %v1397
      %v1469 = vunpack.c.l.b16 %v746
      %v1470 = vunpack.c.l.b16 %v747
      %v1471 = vunpack.c.l.b16 %v748
      %v1472 = vunpack.c.l.b16 %v749
      %v1473 = vunpack.c.l.b16 %v750
      %v1474 = vunpack.c.l.b16 %v751
      %v1475 = vunpack.c.l.b16 %v752
      %v1476 = vunpack.c.l.b16 %v753
      %v1477 = vunpack.c.l.b16 %v754
      %v1478 = vunpack.c.l.b16 %v755
      %v1479 = vunpack.c.l.b16 %v756
      %v1480 = vunpack.c.l.b16 %v757
      %v1481 = vunpack.c.l.b16 %v758
      %v1482 = vunpack.c.l.b16 %v759
      %v1483 = vunpack.c.l.b16 %v760
      %v1484 = vunpack.c.l.b16 %v761
      %v1485 = vpack.c.b16 %v1470, %v1469
      %v1486 = vpack.c.b16 %v1472, %v1471
      %v1487 = vpack.c.b16 %v1474, %v1473
      %v1488 = vpack.c.b16 %v1476, %v1475
      %v1489 = vpack.c.b16 %v1478, %v1477
      %v1490 = vpack.c.b16 %v1480, %v1479
      %v1491 = vpack.c.b16 %v1482, %v1481
      %v1492 = vpack.c.b16 %v1484, %v1483
      %1501 = vmatprep.subr.bf16.mxu0 0
      %1502 = vmatpush1.bf16.msra.mxu0 %v1492
      %1503 = vmatprep.subr.bf16.mxu0 0
      %1504 = vmatpush1.bf16.msra.mxu0 %v1491
      %1505 = vmatprep.subr.bf16.mxu0 0
      %1506 = vmatpush1.bf16.msra.mxu0 %v1490
      %1507 = vmatprep.subr.bf16.mxu0 0
      %1508 = vmatpush1.bf16.msra.mxu0 %v1489
      %1509 = vmatprep.subr.bf16.mxu0 0
      %1510 = vmatpush1.bf16.msra.mxu0 %v1488
      %1511 = vmatprep.subr.bf16.mxu0 0
      %1512 = vmatpush1.bf16.msra.mxu0 %v1487
      %1513 = vmatprep.subr.bf16.mxu0 0
      %1514 = vmatpush1.bf16.msra.mxu0 %v1486
      %1515 = vmatprep.subr.bf16.mxu0 0
      %1516 = vmatpush1.bf16.msra.mxu0 %v1485
      %1517 = vmatprep.subr.bf16.mxu0 0
      %1518 = vmatpush2.bf16.msra.mxu0 0
      %1519 = vmatprep.subr.bf16.mxu0 0
      %1520 = vmatpush2.bf16.msra.mxu0 0
      %1521 = vmatprep.subr.bf16.mxu0 0
      %1522 = vmatpush2.bf16.msra.mxu0 0
      %1523 = vmatprep.subr.bf16.mxu0 0
      %1524 = vmatpush2.bf16.msra.mxu0 0
      %1525 = vmatprep.subr.bf16.mxu0 0
      %1526 = vmatpush2.bf16.msra.mxu0 0
      %1527 = vmatprep.subr.bf16.mxu0 0
      %1528 = vmatpush2.bf16.msra.mxu0 0
      %1529 = vmatprep.subr.bf16.mxu0 0
      %1530 = vmatpush2.bf16.msra.mxu0 0
      %1531 = vmatprep.subr.bf16.mxu0 0
      %1532 = vmatpush2.bf16.msra.mxu0 0
      %1533 = vmatprep.mubr.bf16.mxu0 0
      %1534 = vmatmul.mubr.bf16.gmra.mxu0 %v1399
      %v1535 = vpop.f32.mrf.mxu0
      %v1536 = vadd.f32 %v1077, %v1535
      %v1537 = vpop.f32.mrf.mxu0
      %v1538 = vpop.f32.mrf.mxu0
      %v1539 = vadd.f32 %v1080, %v1538
      %v1540 = vpop.f32.mrf.mxu0
      %1541 = vmatprep.mubr.bf16.mxu0 0
      %1542 = vmatmul.mubr.bf16.gmra.mxu0 %v1400
      %v1543 = vpop.f32.mrf.mxu0
      %v1544 = vadd.f32 %v1085, %v1543
      %v1545 = vpop.f32.mrf.mxu0
      %v1546 = vpop.f32.mrf.mxu0
      %v1547 = vadd.f32 %v1088, %v1546
      %v1548 = vpop.f32.mrf.mxu0
      %1549 = vmatprep.mubr.bf16.mxu0 0
      %1550 = vmatmul.mubr.bf16.gmra.mxu0 %v1401
      %v1551 = vpop.f32.mrf.mxu0
      %v1552 = vadd.f32 %v1093, %v1551
      %v1553 = vpop.f32.mrf.mxu0
      %v1554 = vpop.f32.mrf.mxu0
      %v1555 = vadd.f32 %v1096, %v1554
      %v1556 = vpop.f32.mrf.mxu0
      %1557 = vmatprep.mubr.bf16.mxu0 0
      %1558 = vmatmul.mubr.bf16.gmra.mxu0 %v1402
      %v1559 = vpop.f32.mrf.mxu0
      %v1560 = vadd.f32 %v1101, %v1559
      %v1561 = vpop.f32.mrf.mxu0
      %v1562 = vpop.f32.mrf.mxu0
      %v1563 = vadd.f32 %v1104, %v1562
      %v1564 = vpop.f32.mrf.mxu0
      %1565 = vmatprep.mubr.bf16.mxu0 0
      %1566 = vmatmul.mubr.bf16.gmra.mxu0 %v1403
      %v1567 = vpop.f32.mrf.mxu0
      %v1568 = vadd.f32 %v1109, %v1567
      %v1569 = vpop.f32.mrf.mxu0
      %v1570 = vpop.f32.mrf.mxu0
      %v1571 = vadd.f32 %v1112, %v1570
      %v1572 = vpop.f32.mrf.mxu0
      %1573 = vmatprep.mubr.bf16.mxu0 0
      %1574 = vmatmul.mubr.bf16.gmra.mxu0 %v1404
      %v1575 = vpop.f32.mrf.mxu0
      %v1576 = vadd.f32 %v1117, %v1575
      %v1577 = vpop.f32.mrf.mxu0
      %v1578 = vpop.f32.mrf.mxu0
      %v1579 = vadd.f32 %v1120, %v1578
      %v1580 = vpop.f32.mrf.mxu0
      %1581 = vmatprep.mubr.bf16.mxu0 0
      %1582 = vmatmul.mubr.bf16.gmra.mxu0 %v1405
      %v1583 = vpop.f32.mrf.mxu0
      %v1584 = vadd.f32 %v1125, %v1583
      %v1585 = vpop.f32.mrf.mxu0
      %v1586 = vpop.f32.mrf.mxu0
      %v1587 = vadd.f32 %v1128, %v1586
      %v1588 = vpop.f32.mrf.mxu0
      %1589 = vmatprep.mubr.bf16.mxu0 0
      %1590 = vmatmul.mubr.bf16.gmra.mxu0 %v1406
      %v1591 = vpop.f32.mrf.mxu0
      %v1592 = vadd.f32 %v1133, %v1591
      %v1593 = vpop.f32.mrf.mxu0
      %v1594 = vpop.f32.mrf.mxu0
      %v1595 = vadd.f32 %v1136, %v1594
      %v1596 = vpop.f32.mrf.mxu0
      %1597 = vmatprep.mubr.bf16.mxu0 0
      %1598 = vmatmul.mubr.bf16.gmra.mxu0 %v1407
      %v1599 = vpop.f32.mrf.mxu0
      %v1600 = vadd.f32 %v1141, %v1599
      %v1601 = vpop.f32.mrf.mxu0
      %v1602 = vpop.f32.mrf.mxu0
      %v1603 = vadd.f32 %v1144, %v1602
      %v1604 = vpop.f32.mrf.mxu0
      %1605 = vmatprep.mubr.bf16.mxu0 0
      %1606 = vmatmul.mubr.bf16.gmra.mxu0 %v1408
      %v1607 = vpop.f32.mrf.mxu0
      %v1608 = vadd.f32 %v1149, %v1607
      %v1609 = vpop.f32.mrf.mxu0
      %v1610 = vpop.f32.mrf.mxu0
      %v1611 = vadd.f32 %v1152, %v1610
      %v1612 = vpop.f32.mrf.mxu0
      %1613 = vmatprep.mubr.bf16.mxu0 0
      %1614 = vmatmul.mubr.bf16.gmra.mxu0 %v1409
      %v1615 = vpop.f32.mrf.mxu0
      %v1616 = vadd.f32 %v1157, %v1615
      %v1617 = vpop.f32.mrf.mxu0
      %v1618 = vpop.f32.mrf.mxu0
      %v1619 = vadd.f32 %v1160, %v1618
      %v1620 = vpop.f32.mrf.mxu0
      %1621 = vmatprep.mubr.bf16.mxu0 0
      %1622 = vmatmul.mubr.bf16.gmra.mxu0 %v1410
      %v1623 = vpop.f32.mrf.mxu0
      %v1624 = vadd.f32 %v1165, %v1623
      %v1625 = vpop.f32.mrf.mxu0
      %v1626 = vpop.f32.mrf.mxu0
      %v1627 = vadd.f32 %v1168, %v1626
      %v1628 = vpop.f32.mrf.mxu0
      %1629 = vmatprep.mubr.bf16.mxu0 0
      %1630 = vmatmul.mubr.bf16.gmra.mxu0 %v1411
      %v1631 = vpop.f32.mrf.mxu0
      %v1632 = vadd.f32 %v1173, %v1631
      %v1633 = vpop.f32.mrf.mxu0
      %v1634 = vpop.f32.mrf.mxu0
      %v1635 = vadd.f32 %v1176, %v1634
      %v1636 = vpop.f32.mrf.mxu0
      %1637 = vmatprep.mubr.bf16.mxu0 0
      %1638 = vmatmul.mubr.bf16.gmra.mxu0 %v1412
      %v1639 = vpop.f32.mrf.mxu0
      %v1640 = vadd.f32 %v1181, %v1639
      %v1641 = vpop.f32.mrf.mxu0
      %v1642 = vpop.f32.mrf.mxu0
      %v1643 = vadd.f32 %v1184, %v1642
      %v1644 = vpop.f32.mrf.mxu0
      %1645 = vmatprep.mubr.bf16.mxu0 0
      %1646 = vmatmul.mubr.bf16.gmra.mxu0 %v1413
      %v1647 = vpop.f32.mrf.mxu0
      %v1648 = vadd.f32 %v1189, %v1647
      %v1649 = vpop.f32.mrf.mxu0
      %v1650 = vpop.f32.mrf.mxu0
      %v1651 = vadd.f32 %v1192, %v1650
      %v1652 = vpop.f32.mrf.mxu0
      %1653 = vmatprep.mubr.bf16.mxu0 0
      %1654 = vmatmul.mubr.bf16.gmra.mxu0 %v1414
      %v1655 = vpop.f32.mrf.mxu0
      %v1656 = vadd.f32 %v1197, %v1655
      %v1657 = vpop.f32.mrf.mxu0
      %v1658 = vpop.f32.mrf.mxu0
      %v1659 = vadd.f32 %v1200, %v1658
      %v1660 = vpop.f32.mrf.mxu0
      %1661 = vmatprep.mubr.bf16.mxu0 0
      %1662 = vmatmul.mubr.bf16.gmra.mxu0 %v1415
      %v1663 = vpop.f32.mrf.mxu0
      %v1664 = vadd.f32 %v1205, %v1663
      %v1665 = vpop.f32.mrf.mxu0
      %v1666 = vpop.f32.mrf.mxu0
      %v1667 = vadd.f32 %v1208, %v1666
      %v1668 = vpop.f32.mrf.mxu0
      %1669 = vmatprep.mubr.bf16.mxu0 0
      %1670 = vmatmul.mubr.bf16.gmra.mxu0 %v1416
      %v1671 = vpop.f32.mrf.mxu0
      %v1672 = vadd.f32 %v1213, %v1671
      %v1673 = vpop.f32.mrf.mxu0
      %v1674 = vpop.f32.mrf.mxu0
      %v1675 = vadd.f32 %v1216, %v1674
      %v1676 = vpop.f32.mrf.mxu0
      %1677 = vmatprep.mubr.bf16.mxu0 0
      %1678 = vmatmul.mubr.bf16.gmra.mxu0 %v1417
      %v1679 = vpop.f32.mrf.mxu0
      %v1680 = vadd.f32 %v1221, %v1679
      %v1681 = vpop.f32.mrf.mxu0
      %v1682 = vpop.f32.mrf.mxu0
      %v1683 = vadd.f32 %v1224, %v1682
      %v1684 = vpop.f32.mrf.mxu0
      %1685 = vmatprep.mubr.bf16.mxu0 0
      %1686 = vmatmul.mubr.bf16.gmra.mxu0 %v1418
      %v1687 = vpop.f32.mrf.mxu0
      %v1688 = vadd.f32 %v1229, %v1687
      %v1689 = vpop.f32.mrf.mxu0
      %v1690 = vpop.f32.mrf.mxu0
      %v1691 = vadd.f32 %v1232, %v1690
      %v1692 = vpop.f32.mrf.mxu0
      %1693 = vmatprep.mubr.bf16.mxu0 0
      %1694 = vmatmul.mubr.bf16.gmra.mxu0 %v1419
      %v1695 = vpop.f32.mrf.mxu0
      %v1696 = vadd.f32 %v1237, %v1695
      %v1697 = vpop.f32.mrf.mxu0
      %v1698 = vpop.f32.mrf.mxu0
      %v1699 = vadd.f32 %v1240, %v1698
      %v1700 = vpop.f32.mrf.mxu0
      %1701 = vmatprep.mubr.bf16.mxu0 0
      %1702 = vmatmul.mubr.bf16.gmra.mxu0 %v1420
      %v1703 = vpop.f32.mrf.mxu0
      %v1704 = vadd.f32 %v1245, %v1703
      %v1705 = vpop.f32.mrf.mxu0
      %v1706 = vpop.f32.mrf.mxu0
      %v1707 = vadd.f32 %v1248, %v1706
      %v1708 = vpop.f32.mrf.mxu0
      %1709 = vmatprep.mubr.bf16.mxu0 0
      %1710 = vmatmul.mubr.bf16.gmra.mxu0 %v1421
      %v1711 = vpop.f32.mrf.mxu0
      %v1712 = vadd.f32 %v1253, %v1711
      %v1713 = vpop.f32.mrf.mxu0
      %v1714 = vpop.f32.mrf.mxu0
      %v1715 = vadd.f32 %v1256, %v1714
      %v1716 = vpop.f32.mrf.mxu0
      %1717 = vmatprep.mubr.bf16.mxu0 0
      %1718 = vmatmul.mubr.bf16.gmra.mxu0 %v1422
      %v1719 = vpop.f32.mrf.mxu0
      %v1720 = vadd.f32 %v1261, %v1719
      %v1721 = vpop.f32.mrf.mxu0
      %v1722 = vpop.f32.mrf.mxu0
      %v1723 = vadd.f32 %v1264, %v1722
      %v1724 = vpop.f32.mrf.mxu0
      %1725 = vmatprep.mubr.bf16.mxu0 0
      %1726 = vmatmul.mubr.bf16.gmra.mxu0 %v1423
      %v1727 = vpop.f32.mrf.mxu0
      %v1728 = vadd.f32 %v1269, %v1727
      %v1729 = vpop.f32.mrf.mxu0
      %v1730 = vpop.f32.mrf.mxu0
      %v1731 = vadd.f32 %v1272, %v1730
      %v1732 = vpop.f32.mrf.mxu0
      %1733 = vmatprep.mubr.bf16.mxu0 0
      %1734 = vmatmul.mubr.bf16.gmra.mxu0 %v1424
      %v1735 = vpop.f32.mrf.mxu0
      %v1736 = vadd.f32 %v1277, %v1735
      %v1737 = vpop.f32.mrf.mxu0
      %v1738 = vpop.f32.mrf.mxu0
      %v1739 = vadd.f32 %v1280, %v1738
      %v1740 = vpop.f32.mrf.mxu0
      %1741 = vmatprep.mubr.bf16.mxu0 0
      %1742 = vmatmul.mubr.bf16.gmra.mxu0 %v1425
      %v1743 = vpop.f32.mrf.mxu0
      %v1744 = vadd.f32 %v1285, %v1743
      %v1745 = vpop.f32.mrf.mxu0
      %v1746 = vpop.f32.mrf.mxu0
      %v1747 = vadd.f32 %v1288, %v1746
      %v1748 = vpop.f32.mrf.mxu0
      %1749 = vdwg.mxu0
      %v1750 = vld [vmem:[%s630] sm:$0xf]
      %v1751 = vld [vmem:[%s630 + $0x4] sm:$0xf]
      %v1752 = vld [vmem:[%s630 + $0x8] sm:$0xf]
      %v1753 = vld [vmem:[%s630 + $0xc] sm:$0xf]
      %v1754 = vld [vmem:[%s630 + $0x10] sm:$0xf]
      %v1755 = vld [vmem:[%s630 + $0x14] sm:$0xf]
      %v1756 = vld [vmem:[%s630 + $0x18] sm:$0xf]
      %v1757 = vld [vmem:[%s630 + $0x1c] sm:$0xf]
      %v1758 = vld [vmem:[%s630 + $0x20] sm:$0xf]
      %v1759 = vld [vmem:[%s630 + $0x24] sm:$0xf]
      %v1760 = vld [vmem:[%s630 + $0x28] sm:$0xf]
      %v1761 = vld [vmem:[%s630 + $0x2c] sm:$0xf]
      %v1762 = vld [vmem:[%s630 + $0x30] sm:$0xf]
      %v1763 = vld [vmem:[%s630 + $0x34] sm:$0xf]
      %v1764 = vld [vmem:[%s630 + $0x38] sm:$0xf]
      %v1765 = vld [vmem:[%s630 + $0x3c] sm:$0xf]
      %v1766 = vld [vmem:[%s630 + $0x40] sm:$0xf]
      %v1767 = vld [vmem:[%s630 + $0x44] sm:$0xf]
      %v1768 = vld [vmem:[%s630 + $0x48] sm:$0xf]
      %v1769 = vld [vmem:[%s630 + $0x4c] sm:$0xf]
      %v1770 = vld [vmem:[%s630 + $0x50] sm:$0xf]
      %v1771 = vld [vmem:[%s630 + $0x54] sm:$0xf]
      %v1772 = vld [vmem:[%s630 + $0x58] sm:$0xf]
      %v1773 = vld [vmem:[%s630 + $0x5c] sm:$0xf]
      %v1774 = vld [vmem:[%s630 + $0x60] sm:$0xf]
      %v1775 = vld [vmem:[%s630 + $0x64] sm:$0xf]
      %v1776 = vld [vmem:[%s630 + $0x68] sm:$0xf]
      %v1777 = vld [vmem:[%s630 + $0x6c] sm:$0xf]
      %v1778 = vld [vmem:[%s630 + $0x70] sm:$0xf]
      %v1779 = vld [vmem:[%s630 + $0x74] sm:$0xf]
      %v1780 = vld [vmem:[%s630 + $0x78] sm:$0xf]
      %v1781 = vld [vmem:[%s630 + $0x7c] sm:$0xf]
      %v1782 = vld [vmem:[%s630 + $0x80] sm:$0xf]
      %v1783 = vld [vmem:[%s630 + $0x84] sm:$0xf]
      %v1784 = vld [vmem:[%s630 + $0x88] sm:$0xf]
      %v1785 = vld [vmem:[%s630 + $0x8c] sm:$0xf]
      %v1786 = vld [vmem:[%s630 + $0x90] sm:$0xf]
      %v1787 = vld [vmem:[%s630 + $0x94] sm:$0xf]
      %v1788 = vld [vmem:[%s630 + $0x98] sm:$0xf]
      %v1789 = vld [vmem:[%s630 + $0x9c] sm:$0xf]
      %v1790 = vld [vmem:[%s630 + $0xa0] sm:$0xf]
      %v1791 = vld [vmem:[%s630 + $0xa4] sm:$0xf]
      %v1792 = vld [vmem:[%s630 + $0xa8] sm:$0xf]
      %v1793 = vld [vmem:[%s630 + $0xac] sm:$0xf]
      %v1794 = vld [vmem:[%s630 + $0xb0] sm:$0xf]
      %v1795 = vld [vmem:[%s630 + $0xb4] sm:$0xf]
      %v1796 = vld [vmem:[%s630 + $0xb8] sm:$0xf]
      %v1797 = vld [vmem:[%s630 + $0xbc] sm:$0xf]
      %v1798 = vld [vmem:[%s630 + $0xc0] sm:$0xf]
      %v1799 = vld [vmem:[%s630 + $0xc4] sm:$0xf]
      %v1800 = vld [vmem:[%s630 + $0xc8] sm:$0xf]
      %v1801 = vld [vmem:[%s630 + $0xcc] sm:$0xf]
      %v1802 = vld [vmem:[%s630 + $0xd0] sm:$0xf]
      %v1803 = vld [vmem:[%s630 + $0xd4] sm:$0xf]
      %v1804 = vld [vmem:[%s7 + $0x80] sm:$0xf]
      %v1805 = vld [vmem:[%s7 + $0x84] sm:$0xf]
      %v1806 = vld [vmem:[%s7 + $0x88] sm:$0xf]
      %v1807 = vld [vmem:[%s7 + $0x8c] sm:$0xf]
      %v1808 = vld [vmem:[%s7 + $0x90] sm:$0xf]
      %v1809 = vld [vmem:[%s7 + $0x94] sm:$0xf]
      %v1810 = vld [vmem:[%s7 + $0x98] sm:$0xf]
      %v1811 = vld [vmem:[%s7 + $0x9c] sm:$0xf]
      %v1812 = vld [vmem:[%s7 + $0xa0] sm:$0xf]
      %v1813 = vld [vmem:[%s7 + $0xa4] sm:$0xf]
      %v1814 = vld [vmem:[%s7 + $0xa8] sm:$0xf]
      %v1815 = vld [vmem:[%s7 + $0xac] sm:$0xf]
      %v1816 = vld [vmem:[%s7 + $0xb0] sm:$0xf]
      %v1817 = vld [vmem:[%s7 + $0xb4] sm:$0xf]
      %v1818 = vld [vmem:[%s7 + $0xb8] sm:$0xf]
      %v1819 = vld [vmem:[%s7 + $0xbc] sm:$0xf]
      %v1874 = vunpack.c.l.b16 %v1750
      %v1875 = vunpack.c.l.b16 %v1751
      %v1876 = vunpack.c.l.b16 %v1752
      %v1877 = vunpack.c.l.b16 %v1753
      %v1878 = vunpack.c.l.b16 %v1754
      %v1879 = vunpack.c.l.b16 %v1755
      %v1880 = vunpack.c.l.b16 %v1756
      %v1881 = vunpack.c.l.b16 %v1757
      %v1882 = vunpack.c.l.b16 %v1758
      %v1883 = vunpack.c.l.b16 %v1759
      %v1884 = vunpack.c.l.b16 %v1760
      %v1885 = vunpack.c.l.b16 %v1761
      %v1886 = vunpack.c.l.b16 %v1762
      %v1887 = vunpack.c.l.b16 %v1763
      %v1888 = vunpack.c.l.b16 %v1764
      %v1889 = vunpack.c.l.b16 %v1765
      %v1890 = vunpack.c.l.b16 %v1766
      %v1891 = vunpack.c.l.b16 %v1767
      %v1892 = vunpack.c.l.b16 %v1768
      %v1893 = vunpack.c.l.b16 %v1769
      %v1894 = vunpack.c.l.b16 %v1770
      %v1895 = vunpack.c.l.b16 %v1771
      %v1896 = vunpack.c.l.b16 %v1772
      %v1897 = vunpack.c.l.b16 %v1773
      %v1898 = vunpack.c.l.b16 %v1774
      %v1899 = vunpack.c.l.b16 %v1775
      %v1900 = vunpack.c.l.b16 %v1776
      %v1901 = vunpack.c.l.b16 %v1777
      %v1902 = vunpack.c.l.b16 %v1778
      %v1903 = vunpack.c.l.b16 %v1779
      %v1904 = vunpack.c.l.b16 %v1780
      %v1905 = vunpack.c.l.b16 %v1781
      %v1906 = vunpack.c.l.b16 %v1782
      %v1907 = vunpack.c.l.b16 %v1783
      %v1908 = vunpack.c.l.b16 %v1784
      %v1909 = vunpack.c.l.b16 %v1785
      %v1910 = vunpack.c.l.b16 %v1786
      %v1911 = vunpack.c.l.b16 %v1787
      %v1912 = vunpack.c.l.b16 %v1788
      %v1913 = vunpack.c.l.b16 %v1789
      %v1914 = vunpack.c.l.b16 %v1790
      %v1915 = vunpack.c.l.b16 %v1791
      %v1916 = vunpack.c.l.b16 %v1792
      %v1917 = vunpack.c.l.b16 %v1793
      %v1918 = vunpack.c.l.b16 %v1794
      %v1919 = vunpack.c.l.b16 %v1795
      %v1920 = vunpack.c.l.b16 %v1796
      %v1921 = vunpack.c.l.b16 %v1797
      %v1922 = vunpack.c.l.b16 %v1798
      %v1923 = vunpack.c.l.b16 %v1799
      %v1924 = vunpack.c.l.b16 %v1800
      %v1925 = vunpack.c.l.b16 %v1801
      %v1926 = vunpack.c.l.b16 %v1802
      %v1927 = vunpack.c.l.b16 %v1803
      %v1928 = vpack.c.b16 %v1875, %v1874
      %v1929 = vpack.c.b16 %v1877, %v1876
      %v1930 = vpack.c.b16 %v1879, %v1878
      %v1931 = vpack.c.b16 %v1881, %v1880
      %v1932 = vpack.c.b16 %v1883, %v1882
      %v1933 = vpack.c.b16 %v1885, %v1884
      %v1934 = vpack.c.b16 %v1887, %v1886
      %v1935 = vpack.c.b16 %v1889, %v1888
      %v1936 = vpack.c.b16 %v1891, %v1890
      %v1937 = vpack.c.b16 %v1893, %v1892
      %v1938 = vpack.c.b16 %v1895, %v1894
      %v1939 = vpack.c.b16 %v1897, %v1896
      %v1940 = vpack.c.b16 %v1899, %v1898
      %v1941 = vpack.c.b16 %v1901, %v1900
      %v1942 = vpack.c.b16 %v1903, %v1902
      %v1943 = vpack.c.b16 %v1905, %v1904
      %v1944 = vpack.c.b16 %v1907, %v1906
      %v1945 = vpack.c.b16 %v1909, %v1908
      %v1946 = vpack.c.b16 %v1911, %v1910
      %v1947 = vpack.c.b16 %v1913, %v1912
      %v1948 = vpack.c.b16 %v1915, %v1914
      %v1949 = vpack.c.b16 %v1917, %v1916
      %v1950 = vpack.c.b16 %v1919, %v1918
      %v1951 = vpack.c.b16 %v1921, %v1920
      %v1952 = vpack.c.b16 %v1923, %v1922
      %v1953 = vpack.c.b16 %v1925, %v1924
      %v1954 = vpack.c.b16 %v1927, %v1926
      %v1998 = vunpack.c.l.b16 %v1804
      %v1999 = vunpack.c.l.b16 %v1805
      %v2000 = vunpack.c.l.b16 %v1806
      %v2001 = vunpack.c.l.b16 %v1807
      %v2002 = vunpack.c.l.b16 %v1808
      %v2003 = vunpack.c.l.b16 %v1809
      %v2004 = vunpack.c.l.b16 %v1810
      %v2005 = vunpack.c.l.b16 %v1811
      %v2006 = vunpack.c.l.b16 %v1812
      %v2007 = vunpack.c.l.b16 %v1813
      %v2008 = vunpack.c.l.b16 %v1814
      %v2009 = vunpack.c.l.b16 %v1815
      %v2010 = vunpack.c.l.b16 %v1816
      %v2011 = vunpack.c.l.b16 %v1817
      %v2012 = vunpack.c.l.b16 %v1818
      %v2013 = vunpack.c.l.b16 %v1819
      %v2014 = vpack.c.b16 %v1999, %v1998
      %v2015 = vpack.c.b16 %v2001, %v2000
      %v2016 = vpack.c.b16 %v2003, %v2002
      %v2017 = vpack.c.b16 %v2005, %v2004
      %v2018 = vpack.c.b16 %v2007, %v2006
      %v2019 = vpack.c.b16 %v2009, %v2008
      %v2020 = vpack.c.b16 %v2011, %v2010
      %v2021 = vpack.c.b16 %v2013, %v2012
      %2030 = vmatprep.subr.bf16.mxu0 0
      %2031 = vmatpush1.bf16.msra.mxu0 %v2021
      %2032 = vmatprep.subr.bf16.mxu0 0
      %2033 = vmatpush1.bf16.msra.mxu0 %v2020
      %2034 = vmatprep.subr.bf16.mxu0 0
      %2035 = vmatpush1.bf16.msra.mxu0 %v2019
      %2036 = vmatprep.subr.bf16.mxu0 0
      %2037 = vmatpush1.bf16.msra.mxu0 %v2018
      %2038 = vmatprep.subr.bf16.mxu0 0
      %2039 = vmatpush1.bf16.msra.mxu0 %v2017
      %2040 = vmatprep.subr.bf16.mxu0 0
      %2041 = vmatpush1.bf16.msra.mxu0 %v2016
      %2042 = vmatprep.subr.bf16.mxu0 0
      %2043 = vmatpush1.bf16.msra.mxu0 %v2015
      %2044 = vmatprep.subr.bf16.mxu0 0
      %2045 = vmatpush1.bf16.msra.mxu0 %v2014
      %2046 = vmatprep.subr.bf16.mxu0 0
      %2047 = vmatpush2.bf16.msra.mxu0 0
      %2048 = vmatprep.subr.bf16.mxu0 0
      %2049 = vmatpush2.bf16.msra.mxu0 0
      %2050 = vmatprep.subr.bf16.mxu0 0
      %2051 = vmatpush2.bf16.msra.mxu0 0
      %2052 = vmatprep.subr.bf16.mxu0 0
      %2053 = vmatpush2.bf16.msra.mxu0 0
      %2054 = vmatprep.subr.bf16.mxu0 0
      %2055 = vmatpush2.bf16.msra.mxu0 0
      %2056 = vmatprep.subr.bf16.mxu0 0
      %2057 = vmatpush2.bf16.msra.mxu0 0
      %2058 = vmatprep.subr.bf16.mxu0 0
      %2059 = vmatpush2.bf16.msra.mxu0 0
      %2060 = vmatprep.subr.bf16.mxu0 0
      %2061 = vmatpush2.bf16.msra.mxu0 0
      %2062 = vmatprep.mubr.bf16.mxu0 0
      %2063 = vmatmul.mubr.bf16.gmra.mxu0 %v1928
      %v2064 = vpop.f32.mrf.mxu0
      %v2065 = vadd.f32 0.0, %v2064
      %v2066 = vpop.f32.mrf.mxu0
      %v2067 = vpop.f32.mrf.mxu0
      %v2068 = vadd.f32 0.0, %v2067
      %v2069 = vpop.f32.mrf.mxu0
      %2070 = vmatprep.mubr.bf16.mxu0 0
      %2071 = vmatmul.mubr.bf16.gmra.mxu0 %v1929
      %v2072 = vpop.f32.mrf.mxu0
      %v2073 = vadd.f32 0.0, %v2072
      %v2074 = vpop.f32.mrf.mxu0
      %v2075 = vpop.f32.mrf.mxu0
      %v2076 = vadd.f32 0.0, %v2075
      %v2077 = vpop.f32.mrf.mxu0
      %2078 = vmatprep.mubr.bf16.mxu0 0
      %2079 = vmatmul.mubr.bf16.gmra.mxu0 %v1930
      %v2080 = vpop.f32.mrf.mxu0
      %v2081 = vadd.f32 0.0, %v2080
      %v2082 = vpop.f32.mrf.mxu0
      %v2083 = vpop.f32.mrf.mxu0
      %v2084 = vadd.f32 0.0, %v2083
      %v2085 = vpop.f32.mrf.mxu0
      %2086 = vmatprep.mubr.bf16.mxu0 0
      %2087 = vmatmul.mubr.bf16.gmra.mxu0 %v1931
      %v2088 = vpop.f32.mrf.mxu0
      %v2089 = vadd.f32 0.0, %v2088
      %v2090 = vpop.f32.mrf.mxu0
      %v2091 = vpop.f32.mrf.mxu0
      %v2092 = vadd.f32 0.0, %v2091
      %v2093 = vpop.f32.mrf.mxu0
      %2094 = vmatprep.mubr.bf16.mxu0 0
      %2095 = vmatmul.mubr.bf16.gmra.mxu0 %v1932
      %v2096 = vpop.f32.mrf.mxu0
      %v2097 = vadd.f32 0.0, %v2096
      %v2098 = vpop.f32.mrf.mxu0
      %v2099 = vpop.f32.mrf.mxu0
      %v2100 = vadd.f32 0.0, %v2099
      %v2101 = vpop.f32.mrf.mxu0
      %2102 = vmatprep.mubr.bf16.mxu0 0
      %2103 = vmatmul.mubr.bf16.gmra.mxu0 %v1933
      %v2104 = vpop.f32.mrf.mxu0
      %v2105 = vadd.f32 0.0, %v2104
      %v2106 = vpop.f32.mrf.mxu0
      %v2107 = vpop.f32.mrf.mxu0
      %v2108 = vadd.f32 0.0, %v2107
      %v2109 = vpop.f32.mrf.mxu0
      %2110 = vmatprep.mubr.bf16.mxu0 0
      %2111 = vmatmul.mubr.bf16.gmra.mxu0 %v1934
      %v2112 = vpop.f32.mrf.mxu0
      %v2113 = vadd.f32 0.0, %v2112
      %v2114 = vpop.f32.mrf.mxu0
      %v2115 = vpop.f32.mrf.mxu0
      %v2116 = vadd.f32 0.0, %v2115
      %v2117 = vpop.f32.mrf.mxu0
      %2118 = vmatprep.mubr.bf16.mxu0 0
      %2119 = vmatmul.mubr.bf16.gmra.mxu0 %v1935
      %v2120 = vpop.f32.mrf.mxu0
      %v2121 = vadd.f32 0.0, %v2120
      %v2122 = vpop.f32.mrf.mxu0
      %v2123 = vpop.f32.mrf.mxu0
      %v2124 = vadd.f32 0.0, %v2123
      %v2125 = vpop.f32.mrf.mxu0
      %2126 = vmatprep.mubr.bf16.mxu0 0
      %2127 = vmatmul.mubr.bf16.gmra.mxu0 %v1936
      %v2128 = vpop.f32.mrf.mxu0
      %v2129 = vadd.f32 0.0, %v2128
      %v2130 = vpop.f32.mrf.mxu0
      %v2131 = vpop.f32.mrf.mxu0
      %v2132 = vadd.f32 0.0, %v2131
      %v2133 = vpop.f32.mrf.mxu0
      %2134 = vmatprep.mubr.bf16.mxu0 0
      %2135 = vmatmul.mubr.bf16.gmra.mxu0 %v1937
      %v2136 = vpop.f32.mrf.mxu0
      %v2137 = vadd.f32 0.0, %v2136
      %v2138 = vpop.f32.mrf.mxu0
      %v2139 = vpop.f32.mrf.mxu0
      %v2140 = vadd.f32 0.0, %v2139
      %v2141 = vpop.f32.mrf.mxu0
      %2142 = vmatprep.mubr.bf16.mxu0 0
      %2143 = vmatmul.mubr.bf16.gmra.mxu0 %v1938
      %v2144 = vpop.f32.mrf.mxu0
      %v2145 = vadd.f32 0.0, %v2144
      %v2146 = vpop.f32.mrf.mxu0
      %v2147 = vpop.f32.mrf.mxu0
      %v2148 = vadd.f32 0.0, %v2147
      %v2149 = vpop.f32.mrf.mxu0
      %2150 = vmatprep.mubr.bf16.mxu0 0
      %2151 = vmatmul.mubr.bf16.gmra.mxu0 %v1939
      %v2152 = vpop.f32.mrf.mxu0
      %v2153 = vadd.f32 0.0, %v2152
      %v2154 = vpop.f32.mrf.mxu0
      %v2155 = vpop.f32.mrf.mxu0
      %v2156 = vadd.f32 0.0, %v2155
      %v2157 = vpop.f32.mrf.mxu0
      %2158 = vmatprep.mubr.bf16.mxu0 0
      %2159 = vmatmul.mubr.bf16.gmra.mxu0 %v1940
      %v2160 = vpop.f32.mrf.mxu0
      %v2161 = vadd.f32 0.0, %v2160
      %v2162 = vpop.f32.mrf.mxu0
      %v2163 = vpop.f32.mrf.mxu0
      %v2164 = vadd.f32 0.0, %v2163
      %v2165 = vpop.f32.mrf.mxu0
      %2166 = vmatprep.mubr.bf16.mxu0 0
      %2167 = vmatmul.mubr.bf16.gmra.mxu0 %v1941
      %v2168 = vpop.f32.mrf.mxu0
      %v2169 = vadd.f32 0.0, %v2168
      %v2170 = vpop.f32.mrf.mxu0
      %v2171 = vpop.f32.mrf.mxu0
      %v2172 = vadd.f32 0.0, %v2171
      %v2173 = vpop.f32.mrf.mxu0
      %2174 = vmatprep.mubr.bf16.mxu0 0
      %2175 = vmatmul.mubr.bf16.gmra.mxu0 %v1942
      %v2176 = vpop.f32.mrf.mxu0
      %v2177 = vadd.f32 0.0, %v2176
      %v2178 = vpop.f32.mrf.mxu0
      %v2179 = vpop.f32.mrf.mxu0
      %v2180 = vadd.f32 0.0, %v2179
      %v2181 = vpop.f32.mrf.mxu0
      %2182 = vmatprep.mubr.bf16.mxu0 0
      %2183 = vmatmul.mubr.bf16.gmra.mxu0 %v1943
      %v2184 = vpop.f32.mrf.mxu0
      %v2185 = vadd.f32 0.0, %v2184
      %v2186 = vpop.f32.mrf.mxu0
      %v2187 = vpop.f32.mrf.mxu0
      %v2188 = vadd.f32 0.0, %v2187
      %v2189 = vpop.f32.mrf.mxu0
      %2190 = vmatprep.mubr.bf16.mxu0 0
      %2191 = vmatmul.mubr.bf16.gmra.mxu0 %v1944
      %v2192 = vpop.f32.mrf.mxu0
      %v2193 = vadd.f32 0.0, %v2192
      %v2194 = vpop.f32.mrf.mxu0
      %v2195 = vpop.f32.mrf.mxu0
      %v2196 = vadd.f32 0.0, %v2195
      %v2197 = vpop.f32.mrf.mxu0
      %2198 = vmatprep.mubr.bf16.mxu0 0
      %2199 = vmatmul.mubr.bf16.gmra.mxu0 %v1945
      %v2200 = vpop.f32.mrf.mxu0
      %v2201 = vadd.f32 0.0, %v2200
      %v2202 = vpop.f32.mrf.mxu0
      %v2203 = vpop.f32.mrf.mxu0
      %v2204 = vadd.f32 0.0, %v2203
      %v2205 = vpop.f32.mrf.mxu0
      %2206 = vmatprep.mubr.bf16.mxu0 0
      %2207 = vmatmul.mubr.bf16.gmra.mxu0 %v1946
      %v2208 = vpop.f32.mrf.mxu0
      %v2209 = vadd.f32 0.0, %v2208
      %v2210 = vpop.f32.mrf.mxu0
      %v2211 = vpop.f32.mrf.mxu0
      %v2212 = vadd.f32 0.0, %v2211
      %v2213 = vpop.f32.mrf.mxu0
      %2214 = vmatprep.mubr.bf16.mxu0 0
      %2215 = vmatmul.mubr.bf16.gmra.mxu0 %v1947
      %v2216 = vpop.f32.mrf.mxu0
      %v2217 = vadd.f32 0.0, %v2216
      %v2218 = vpop.f32.mrf.mxu0
      %v2219 = vpop.f32.mrf.mxu0
      %v2220 = vadd.f32 0.0, %v2219
      %v2221 = vpop.f32.mrf.mxu0
      %2222 = vmatprep.mubr.bf16.mxu0 0
      %2223 = vmatmul.mubr.bf16.gmra.mxu0 %v1948
      %v2224 = vpop.f32.mrf.mxu0
      %v2225 = vadd.f32 0.0, %v2224
      %v2226 = vpop.f32.mrf.mxu0
      %v2227 = vpop.f32.mrf.mxu0
      %v2228 = vadd.f32 0.0, %v2227
      %v2229 = vpop.f32.mrf.mxu0
      %2230 = vmatprep.mubr.bf16.mxu0 0
      %2231 = vmatmul.mubr.bf16.gmra.mxu0 %v1949
      %v2232 = vpop.f32.mrf.mxu0
      %v2233 = vadd.f32 0.0, %v2232
      %v2234 = vpop.f32.mrf.mxu0
      %v2235 = vpop.f32.mrf.mxu0
      %v2236 = vadd.f32 0.0, %v2235
      %v2237 = vpop.f32.mrf.mxu0
      %2238 = vmatprep.mubr.bf16.mxu0 0
      %2239 = vmatmul.mubr.bf16.gmra.mxu0 %v1950
      %v2240 = vpop.f32.mrf.mxu0
      %v2241 = vadd.f32 0.0, %v2240
      %v2242 = vpop.f32.mrf.mxu0
      %v2243 = vpop.f32.mrf.mxu0
      %v2244 = vadd.f32 0.0, %v2243
      %v2245 = vpop.f32.mrf.mxu0
      %2246 = vmatprep.mubr.bf16.mxu0 0
      %2247 = vmatmul.mubr.bf16.gmra.mxu0 %v1951
      %v2248 = vpop.f32.mrf.mxu0
      %v2249 = vadd.f32 0.0, %v2248
      %v2250 = vpop.f32.mrf.mxu0
      %v2251 = vpop.f32.mrf.mxu0
      %v2252 = vadd.f32 0.0, %v2251
      %v2253 = vpop.f32.mrf.mxu0
      %2254 = vmatprep.mubr.bf16.mxu0 0
      %2255 = vmatmul.mubr.bf16.gmra.mxu0 %v1952
      %v2256 = vpop.f32.mrf.mxu0
      %v2257 = vadd.f32 0.0, %v2256
      %v2258 = vpop.f32.mrf.mxu0
      %v2259 = vpop.f32.mrf.mxu0
      %v2260 = vadd.f32 0.0, %v2259
      %v2261 = vpop.f32.mrf.mxu0
      %2262 = vmatprep.mubr.bf16.mxu0 0
      %2263 = vmatmul.mubr.bf16.gmra.mxu0 %v1953
      %v2264 = vpop.f32.mrf.mxu0
      %v2265 = vadd.f32 0.0, %v2264
      %v2266 = vpop.f32.mrf.mxu0
      %v2267 = vpop.f32.mrf.mxu0
      %v2268 = vadd.f32 0.0, %v2267
      %v2269 = vpop.f32.mrf.mxu0
      %2270 = vmatprep.mubr.bf16.mxu0 0
      %2271 = vmatmul.mubr.bf16.gmra.mxu0 %v1954
      %v2272 = vpop.f32.mrf.mxu0
      %v2273 = vadd.f32 0.0, %v2272
      %v2274 = vpop.f32.mrf.mxu0
      %v2275 = vpop.f32.mrf.mxu0
      %v2276 = vadd.f32 0.0, %v2275
      %v2277 = vpop.f32.mrf.mxu0
      %2278 = vdwg.mxu0
      %v2279 = vadd.f32 %v1536, %v2065
      %v2280 = vadd.f32 %v1539, %v2068
      %v2281 = vadd.f32 %v1544, %v2073
      %v2282 = vadd.f32 %v1547, %v2076
      %v2283 = vadd.f32 %v1552, %v2081
      %v2284 = vadd.f32 %v1555, %v2084
      %v2285 = vadd.f32 %v1560, %v2089
      %v2286 = vadd.f32 %v1563, %v2092
      %v2287 = vadd.f32 %v1568, %v2097
      %v2288 = vadd.f32 %v1571, %v2100
      %v2289 = vadd.f32 %v1576, %v2105
      %v2290 = vadd.f32 %v1579, %v2108
      %v2291 = vadd.f32 %v1584, %v2113
      %v2292 = vadd.f32 %v1587, %v2116
      %v2293 = vadd.f32 %v1592, %v2121
      %v2294 = vadd.f32 %v1595, %v2124
      %v2295 = vadd.f32 %v1600, %v2129
      %v2296 = vadd.f32 %v1603, %v2132
      %v2297 = vadd.f32 %v1608, %v2137
      %v2298 = vadd.f32 %v1611, %v2140
      %v2299 = vadd.f32 %v1616, %v2145
      %v2300 = vadd.f32 %v1619, %v2148
      %v2301 = vadd.f32 %v1624, %v2153
      %v2302 = vadd.f32 %v1627, %v2156
      %v2303 = vadd.f32 %v1632, %v2161
      %v2304 = vadd.f32 %v1635, %v2164
      %v2305 = vadd.f32 %v1640, %v2169
      %v2306 = vadd.f32 %v1643, %v2172
      %v2307 = vadd.f32 %v1648, %v2177
      %v2308 = vadd.f32 %v1651, %v2180
      %v2309 = vadd.f32 %v1656, %v2185
      %v2310 = vadd.f32 %v1659, %v2188
      %v2311 = vadd.f32 %v1664, %v2193
      %v2312 = vadd.f32 %v1667, %v2196
      %v2313 = vadd.f32 %v1672, %v2201
      %v2314 = vadd.f32 %v1675, %v2204
      %v2315 = vadd.f32 %v1680, %v2209
      %v2316 = vadd.f32 %v1683, %v2212
      %v2317 = vadd.f32 %v1688, %v2217
      %v2318 = vadd.f32 %v1691, %v2220
      %v2319 = vadd.f32 %v1696, %v2225
      %v2320 = vadd.f32 %v1699, %v2228
      %v2321 = vadd.f32 %v1704, %v2233
      %v2322 = vadd.f32 %v1707, %v2236
      %v2323 = vadd.f32 %v1712, %v2241
      %v2324 = vadd.f32 %v1715, %v2244
      %v2325 = vadd.f32 %v1720, %v2249
      %v2326 = vadd.f32 %v1723, %v2252
      %v2327 = vadd.f32 %v1728, %v2257
      %v2328 = vadd.f32 %v1731, %v2260
      %v2329 = vadd.f32 %v1736, %v2265
      %v2330 = vadd.f32 %v1739, %v2268
      %v2331 = vadd.f32 %v1744, %v2273
      %v2332 = vadd.f32 %v1747, %v2276
      %v2333 = vld [vmem:[%s642] sm:$0xf]
      %v2334 = vld [vmem:[%s642 + $0x4] sm:$0xf]
      %v2335 = vld [vmem:[%s642 + $0x8] sm:$0xf]
      %v2336 = vld [vmem:[%s642 + $0xc] sm:$0xf]
      %v2337 = vld [vmem:[%s642 + $0x10] sm:$0xf]
      %v2338 = vld [vmem:[%s642 + $0x14] sm:$0xf]
      %v2339 = vld [vmem:[%s642 + $0x18] sm:$0xf]
      %v2340 = vld [vmem:[%s642 + $0x1c] sm:$0xf]
      %v2341 = vld [vmem:[%s642 + $0x20] sm:$0xf]
      %v2342 = vld [vmem:[%s642 + $0x24] sm:$0xf]
      %v2343 = vld [vmem:[%s642 + $0x28] sm:$0xf]
      %v2344 = vld [vmem:[%s642 + $0x2c] sm:$0xf]
      %v2345 = vld [vmem:[%s642 + $0x30] sm:$0xf]
      %v2346 = vld [vmem:[%s642 + $0x34] sm:$0xf]
      %v2347 = vld [vmem:[%s642 + $0x38] sm:$0xf]
      %v2348 = vld [vmem:[%s642 + $0x3c] sm:$0xf]
      %v2349 = vld [vmem:[%s642 + $0x40] sm:$0xf]
      %v2350 = vld [vmem:[%s642 + $0x44] sm:$0xf]
      %v2351 = vld [vmem:[%s642 + $0x48] sm:$0xf]
      %v2352 = vld [vmem:[%s642 + $0x4c] sm:$0xf]
      %v2353 = vld [vmem:[%s642 + $0x50] sm:$0xf]
      %v2354 = vld [vmem:[%s642 + $0x54] sm:$0xf]
      %v2355 = vld [vmem:[%s642 + $0x58] sm:$0xf]
      %v2356 = vld [vmem:[%s642 + $0x5c] sm:$0xf]
      %v2357 = vld [vmem:[%s642 + $0x60] sm:$0xf]
      %v2358 = vld [vmem:[%s642 + $0x64] sm:$0xf]
      %v2359 = vld [vmem:[%s642 + $0x68] sm:$0xf]
      %v2360 = vld [vmem:[%s642 + $0x6c] sm:$0xf]
      %v2361 = vld [vmem:[%s642 + $0x70] sm:$0xf]
      %v2362 = vld [vmem:[%s642 + $0x74] sm:$0xf]
      %v2363 = vld [vmem:[%s642 + $0x78] sm:$0xf]
      %v2364 = vld [vmem:[%s642 + $0x7c] sm:$0xf]
      %v2365 = vld [vmem:[%s642 + $0x80] sm:$0xf]
      %v2366 = vld [vmem:[%s642 + $0x84] sm:$0xf]
      %v2367 = vld [vmem:[%s642 + $0x88] sm:$0xf]
      %v2368 = vld [vmem:[%s642 + $0x8c] sm:$0xf]
      %v2369 = vld [vmem:[%s642 + $0x90] sm:$0xf]
      %v2370 = vld [vmem:[%s642 + $0x94] sm:$0xf]
      %v2371 = vld [vmem:[%s642 + $0x98] sm:$0xf]
      %v2372 = vld [vmem:[%s642 + $0x9c] sm:$0xf]
      %v2373 = vld [vmem:[%s642 + $0xa0] sm:$0xf]
      %v2374 = vld [vmem:[%s642 + $0xa4] sm:$0xf]
      %v2375 = vld [vmem:[%s642 + $0xa8] sm:$0xf]
      %v2376 = vld [vmem:[%s642 + $0xac] sm:$0xf]
      %v2377 = vld [vmem:[%s642 + $0xb0] sm:$0xf]
      %v2378 = vld [vmem:[%s642 + $0xb4] sm:$0xf]
      %v2379 = vld [vmem:[%s642 + $0xb8] sm:$0xf]
      %v2380 = vld [vmem:[%s642 + $0xbc] sm:$0xf]
      %v2381 = vld [vmem:[%s642 + $0xc0] sm:$0xf]
      %v2382 = vld [vmem:[%s642 + $0xc4] sm:$0xf]
      %v2383 = vld [vmem:[%s642 + $0xc8] sm:$0xf]
      %v2384 = vld [vmem:[%s642 + $0xcc] sm:$0xf]
      %v2385 = vld [vmem:[%s642 + $0xd0] sm:$0xf]
      %v2386 = vld [vmem:[%s642 + $0xd4] sm:$0xf]
      %v2387 = vld [vmem:[%s7 + $0xc0] sm:$0xf]
      %v2388 = vld [vmem:[%s7 + $0xc4] sm:$0xf]
      %v2389 = vld [vmem:[%s7 + $0xc8] sm:$0xf]
      %v2390 = vld [vmem:[%s7 + $0xcc] sm:$0xf]
      %v2391 = vld [vmem:[%s7 + $0xd0] sm:$0xf]
      %v2392 = vld [vmem:[%s7 + $0xd4] sm:$0xf]
      %v2393 = vld [vmem:[%s7 + $0xd8] sm:$0xf]
      %v2394 = vld [vmem:[%s7 + $0xdc] sm:$0xf]
      %v2395 = vld [vmem:[%s7 + $0xe0] sm:$0xf]
      %v2396 = vld [vmem:[%s7 + $0xe4] sm:$0xf]
      %v2397 = vld [vmem:[%s7 + $0xe8] sm:$0xf]
      %v2398 = vld [vmem:[%s7 + $0xec] sm:$0xf]
      %v2399 = vld [vmem:[%s7 + $0xf0] sm:$0xf]
      %v2400 = vld [vmem:[%s7 + $0xf4] sm:$0xf]
      %v2401 = vld [vmem:[%s7 + $0xf8] sm:$0xf]
      %v2402 = vld [vmem:[%s7 + $0xfc] sm:$0xf]
      %v2457 = vunpack.c.l.b16 %v2333
      %v2458 = vunpack.c.l.b16 %v2334
      %v2459 = vunpack.c.l.b16 %v2335
      %v2460 = vunpack.c.l.b16 %v2336
      %v2461 = vunpack.c.l.b16 %v2337
      %v2462 = vunpack.c.l.b16 %v2338
      %v2463 = vunpack.c.l.b16 %v2339
      %v2464 = vunpack.c.l.b16 %v2340
      %v2465 = vunpack.c.l.b16 %v2341
      %v2466 = vunpack.c.l.b16 %v2342
      %v2467 = vunpack.c.l.b16 %v2343
      %v2468 = vunpack.c.l.b16 %v2344
      %v2469 = vunpack.c.l.b16 %v2345
      %v2470 = vunpack.c.l.b16 %v2346
      %v2471 = vunpack.c.l.b16 %v2347
      %v2472 = vunpack.c.l.b16 %v2348
      %v2473 = vunpack.c.l.b16 %v2349
      %v2474 = vunpack.c.l.b16 %v2350
      %v2475 = vunpack.c.l.b16 %v2351
      %v2476 = vunpack.c.l.b16 %v2352
      %v2477 = vunpack.c.l.b16 %v2353
      %v2478 = vunpack.c.l.b16 %v2354
      %v2479 = vunpack.c.l.b16 %v2355
      %v2480 = vunpack.c.l.b16 %v2356
      %v2481 = vunpack.c.l.b16 %v2357
      %v2482 = vunpack.c.l.b16 %v2358
      %v2483 = vunpack.c.l.b16 %v2359
      %v2484 = vunpack.c.l.b16 %v2360
      %v2485 = vunpack.c.l.b16 %v2361
      %v2486 = vunpack.c.l.b16 %v2362
      %v2487 = vunpack.c.l.b16 %v2363
      %v2488 = vunpack.c.l.b16 %v2364
      %v2489 = vunpack.c.l.b16 %v2365
      %v2490 = vunpack.c.l.b16 %v2366
      %v2491 = vunpack.c.l.b16 %v2367
      %v2492 = vunpack.c.l.b16 %v2368
      %v2493 = vunpack.c.l.b16 %v2369
      %v2494 = vunpack.c.l.b16 %v2370
      %v2495 = vunpack.c.l.b16 %v2371
      %v2496 = vunpack.c.l.b16 %v2372
      %v2497 = vunpack.c.l.b16 %v2373
      %v2498 = vunpack.c.l.b16 %v2374
      %v2499 = vunpack.c.l.b16 %v2375
      %v2500 = vunpack.c.l.b16 %v2376
      %v2501 = vunpack.c.l.b16 %v2377
      %v2502 = vunpack.c.l.b16 %v2378
      %v2503 = vunpack.c.l.b16 %v2379
      %v2504 = vunpack.c.l.b16 %v2380
      %v2505 = vunpack.c.l.b16 %v2381
      %v2506 = vunpack.c.l.b16 %v2382
      %v2507 = vunpack.c.l.b16 %v2383
      %v2508 = vunpack.c.l.b16 %v2384
      %v2509 = vunpack.c.l.b16 %v2385
      %v2510 = vunpack.c.l.b16 %v2386
      %v2511 = vpack.c.b16 %v2458, %v2457
      %v2512 = vpack.c.b16 %v2460, %v2459
      %v2513 = vpack.c.b16 %v2462, %v2461
      %v2514 = vpack.c.b16 %v2464, %v2463
      %v2515 = vpack.c.b16 %v2466, %v2465
      %v2516 = vpack.c.b16 %v2468, %v2467
      %v2517 = vpack.c.b16 %v2470, %v2469
      %v2518 = vpack.c.b16 %v2472, %v2471
      %v2519 = vpack.c.b16 %v2474, %v2473
      %v2520 = vpack.c.b16 %v2476, %v2475
      %v2521 = vpack.c.b16 %v2478, %v2477
      %v2522 = vpack.c.b16 %v2480, %v2479
      %v2523 = vpack.c.b16 %v2482, %v2481
      %v2524 = vpack.c.b16 %v2484, %v2483
      %v2525 = vpack.c.b16 %v2486, %v2485
      %v2526 = vpack.c.b16 %v2488, %v2487
      %v2527 = vpack.c.b16 %v2490, %v2489
      %v2528 = vpack.c.b16 %v2492, %v2491
      %v2529 = vpack.c.b16 %v2494, %v2493
      %v2530 = vpack.c.b16 %v2496, %v2495
      %v2531 = vpack.c.b16 %v2498, %v2497
      %v2532 = vpack.c.b16 %v2500, %v2499
      %v2533 = vpack.c.b16 %v2502, %v2501
      %v2534 = vpack.c.b16 %v2504, %v2503
      %v2535 = vpack.c.b16 %v2506, %v2505
      %v2536 = vpack.c.b16 %v2508, %v2507
      %v2537 = vpack.c.b16 %v2510, %v2509
      %v2581 = vunpack.c.l.b16 %v2387
      %v2582 = vunpack.c.l.b16 %v2388
      %v2583 = vunpack.c.l.b16 %v2389
      %v2584 = vunpack.c.l.b16 %v2390
      %v2585 = vunpack.c.l.b16 %v2391
      %v2586 = vunpack.c.l.b16 %v2392
      %v2587 = vunpack.c.l.b16 %v2393
      %v2588 = vunpack.c.l.b16 %v2394
      %v2589 = vunpack.c.l.b16 %v2395
      %v2590 = vunpack.c.l.b16 %v2396
      %v2591 = vunpack.c.l.b16 %v2397
      %v2592 = vunpack.c.l.b16 %v2398
      %v2593 = vunpack.c.l.b16 %v2399
      %v2594 = vunpack.c.l.b16 %v2400
      %v2595 = vunpack.c.l.b16 %v2401
      %v2596 = vunpack.c.l.b16 %v2402
      %v2597 = vpack.c.b16 %v2582, %v2581
      %v2598 = vpack.c.b16 %v2584, %v2583
      %v2599 = vpack.c.b16 %v2586, %v2585
      %v2600 = vpack.c.b16 %v2588, %v2587
      %v2601 = vpack.c.b16 %v2590, %v2589
      %v2602 = vpack.c.b16 %v2592, %v2591
      %v2603 = vpack.c.b16 %v2594, %v2593
      %v2604 = vpack.c.b16 %v2596, %v2595
      %2613 = vmatprep.subr.bf16.mxu0 0
      %2614 = vmatpush1.bf16.msra.mxu0 %v2604
      %2615 = vmatprep.subr.bf16.mxu0 0
      %2616 = vmatpush1.bf16.msra.mxu0 %v2603
      %2617 = vmatprep.subr.bf16.mxu0 0
      %2618 = vmatpush1.bf16.msra.mxu0 %v2602
      %2619 = vmatprep.subr.bf16.mxu0 0
      %2620 = vmatpush1.bf16.msra.mxu0 %v2601
      %2621 = vmatprep.subr.bf16.mxu0 0
      %2622 = vmatpush1.bf16.msra.mxu0 %v2600
      %2623 = vmatprep.subr.bf16.mxu0 0
      %2624 = vmatpush1.bf16.msra.mxu0 %v2599
      %2625 = vmatprep.subr.bf16.mxu0 0
      %2626 = vmatpush1.bf16.msra.mxu0 %v2598
      %2627 = vmatprep.subr.bf16.mxu0 0
      %2628 = vmatpush1.bf16.msra.mxu0 %v2597
      %2629 = vmatprep.subr.bf16.mxu0 0
      %2630 = vmatpush2.bf16.msra.mxu0 0
      %2631 = vmatprep.subr.bf16.mxu0 0
      %2632 = vmatpush2.bf16.msra.mxu0 0
      %2633 = vmatprep.subr.bf16.mxu0 0
      %2634 = vmatpush2.bf16.msra.mxu0 0
      %2635 = vmatprep.subr.bf16.mxu0 0
      %2636 = vmatpush2.bf16.msra.mxu0 0
      %2637 = vmatprep.subr.bf16.mxu0 0
      %2638 = vmatpush2.bf16.msra.mxu0 0
      %2639 = vmatprep.subr.bf16.mxu0 0
      %2640 = vmatpush2.bf16.msra.mxu0 0
      %2641 = vmatprep.subr.bf16.mxu0 0
      %2642 = vmatpush2.bf16.msra.mxu0 0
      %2643 = vmatprep.subr.bf16.mxu0 0
      %2644 = vmatpush2.bf16.msra.mxu0 0
      %2645 = vmatprep.mubr.bf16.mxu0 0
      %2646 = vmatmul.mubr.bf16.gmra.mxu0 %v2511
      %v2647 = vpop.f32.mrf.mxu0
      %v2648 = vadd.f32 0.0, %v2647
      %v2649 = vpop.f32.mrf.mxu0
      %v2650 = vpop.f32.mrf.mxu0
      %v2651 = vadd.f32 0.0, %v2650
      %v2652 = vpop.f32.mrf.mxu0
      %2653 = vmatprep.mubr.bf16.mxu0 0
      %2654 = vmatmul.mubr.bf16.gmra.mxu0 %v2512
      %v2655 = vpop.f32.mrf.mxu0
      %v2656 = vadd.f32 0.0, %v2655
      %v2657 = vpop.f32.mrf.mxu0
      %v2658 = vpop.f32.mrf.mxu0
      %v2659 = vadd.f32 0.0, %v2658
      %v2660 = vpop.f32.mrf.mxu0
      %2661 = vmatprep.mubr.bf16.mxu0 0
      %2662 = vmatmul.mubr.bf16.gmra.mxu0 %v2513
      %v2663 = vpop.f32.mrf.mxu0
      %v2664 = vadd.f32 0.0, %v2663
      %v2665 = vpop.f32.mrf.mxu0
      %v2666 = vpop.f32.mrf.mxu0
      %v2667 = vadd.f32 0.0, %v2666
      %v2668 = vpop.f32.mrf.mxu0
      %2669 = vmatprep.mubr.bf16.mxu0 0
      %2670 = vmatmul.mubr.bf16.gmra.mxu0 %v2514
      %v2671 = vpop.f32.mrf.mxu0
      %v2672 = vadd.f32 0.0, %v2671
      %v2673 = vpop.f32.mrf.mxu0
      %v2674 = vpop.f32.mrf.mxu0
      %v2675 = vadd.f32 0.0, %v2674
      %v2676 = vpop.f32.mrf.mxu0
      %2677 = vmatprep.mubr.bf16.mxu0 0
      %2678 = vmatmul.mubr.bf16.gmra.mxu0 %v2515
      %v2679 = vpop.f32.mrf.mxu0
      %v2680 = vadd.f32 0.0, %v2679
      %v2681 = vpop.f32.mrf.mxu0
      %v2682 = vpop.f32.mrf.mxu0
      %v2683 = vadd.f32 0.0, %v2682
      %v2684 = vpop.f32.mrf.mxu0
      %2685 = vmatprep.mubr.bf16.mxu0 0
      %2686 = vmatmul.mubr.bf16.gmra.mxu0 %v2516
      %v2687 = vpop.f32.mrf.mxu0
      %v2688 = vadd.f32 0.0, %v2687
      %v2689 = vpop.f32.mrf.mxu0
      %v2690 = vpop.f32.mrf.mxu0
      %v2691 = vadd.f32 0.0, %v2690
      %v2692 = vpop.f32.mrf.mxu0
      %2693 = vmatprep.mubr.bf16.mxu0 0
      %2694 = vmatmul.mubr.bf16.gmra.mxu0 %v2517
      %v2695 = vpop.f32.mrf.mxu0
      %v2696 = vadd.f32 0.0, %v2695
      %v2697 = vpop.f32.mrf.mxu0
      %v2698 = vpop.f32.mrf.mxu0
      %v2699 = vadd.f32 0.0, %v2698
      %v2700 = vpop.f32.mrf.mxu0
      %2701 = vmatprep.mubr.bf16.mxu0 0
      %2702 = vmatmul.mubr.bf16.gmra.mxu0 %v2518
      %v2703 = vpop.f32.mrf.mxu0
      %v2704 = vadd.f32 0.0, %v2703
      %v2705 = vpop.f32.mrf.mxu0
      %v2706 = vpop.f32.mrf.mxu0
      %v2707 = vadd.f32 0.0, %v2706
      %v2708 = vpop.f32.mrf.mxu0
      %2709 = vmatprep.mubr.bf16.mxu0 0
      %2710 = vmatmul.mubr.bf16.gmra.mxu0 %v2519
      %v2711 = vpop.f32.mrf.mxu0
      %v2712 = vadd.f32 0.0, %v2711
      %v2713 = vpop.f32.mrf.mxu0
      %v2714 = vpop.f32.mrf.mxu0
      %v2715 = vadd.f32 0.0, %v2714
      %v2716 = vpop.f32.mrf.mxu0
      %2717 = vmatprep.mubr.bf16.mxu0 0
      %2718 = vmatmul.mubr.bf16.gmra.mxu0 %v2520
      %v2719 = vpop.f32.mrf.mxu0
      %v2720 = vadd.f32 0.0, %v2719
      %v2721 = vpop.f32.mrf.mxu0
      %v2722 = vpop.f32.mrf.mxu0
      %v2723 = vadd.f32 0.0, %v2722
      %v2724 = vpop.f32.mrf.mxu0
      %2725 = vmatprep.mubr.bf16.mxu0 0
      %2726 = vmatmul.mubr.bf16.gmra.mxu0 %v2521
      %v2727 = vpop.f32.mrf.mxu0
      %v2728 = vadd.f32 0.0, %v2727
      %v2729 = vpop.f32.mrf.mxu0
      %v2730 = vpop.f32.mrf.mxu0
      %v2731 = vadd.f32 0.0, %v2730
      %v2732 = vpop.f32.mrf.mxu0
      %2733 = vmatprep.mubr.bf16.mxu0 0
      %2734 = vmatmul.mubr.bf16.gmra.mxu0 %v2522
      %v2735 = vpop.f32.mrf.mxu0
      %v2736 = vadd.f32 0.0, %v2735
      %v2737 = vpop.f32.mrf.mxu0
      %v2738 = vpop.f32.mrf.mxu0
      %v2739 = vadd.f32 0.0, %v2738
      %v2740 = vpop.f32.mrf.mxu0
      %2741 = vmatprep.mubr.bf16.mxu0 0
      %2742 = vmatmul.mubr.bf16.gmra.mxu0 %v2523
      %v2743 = vpop.f32.mrf.mxu0
      %v2744 = vadd.f32 0.0, %v2743
      %v2745 = vpop.f32.mrf.mxu0
      %v2746 = vpop.f32.mrf.mxu0
      %v2747 = vadd.f32 0.0, %v2746
      %v2748 = vpop.f32.mrf.mxu0
      %2749 = vmatprep.mubr.bf16.mxu0 0
      %2750 = vmatmul.mubr.bf16.gmra.mxu0 %v2524
      %v2751 = vpop.f32.mrf.mxu0
      %v2752 = vadd.f32 0.0, %v2751
      %v2753 = vpop.f32.mrf.mxu0
      %v2754 = vpop.f32.mrf.mxu0
      %v2755 = vadd.f32 0.0, %v2754
      %v2756 = vpop.f32.mrf.mxu0
      %2757 = vmatprep.mubr.bf16.mxu0 0
      %2758 = vmatmul.mubr.bf16.gmra.mxu0 %v2525
      %v2759 = vpop.f32.mrf.mxu0
      %v2760 = vadd.f32 0.0, %v2759
      %v2761 = vpop.f32.mrf.mxu0
      %v2762 = vpop.f32.mrf.mxu0
      %v2763 = vadd.f32 0.0, %v2762
      %v2764 = vpop.f32.mrf.mxu0
      %2765 = vmatprep.mubr.bf16.mxu0 0
      %2766 = vmatmul.mubr.bf16.gmra.mxu0 %v2526
      %v2767 = vpop.f32.mrf.mxu0
      %v2768 = vadd.f32 0.0, %v2767
      %v2769 = vpop.f32.mrf.mxu0
      %v2770 = vpop.f32.mrf.mxu0
      %v2771 = vadd.f32 0.0, %v2770
      %v2772 = vpop.f32.mrf.mxu0
      %2773 = vmatprep.mubr.bf16.mxu0 0
      %2774 = vmatmul.mubr.bf16.gmra.mxu0 %v2527
      %v2775 = vpop.f32.mrf.mxu0
      %v2776 = vadd.f32 0.0, %v2775
      %v2777 = vpop.f32.mrf.mxu0
      %v2778 = vpop.f32.mrf.mxu0
      %v2779 = vadd.f32 0.0, %v2778
      %v2780 = vpop.f32.mrf.mxu0
      %2781 = vmatprep.mubr.bf16.mxu0 0
      %2782 = vmatmul.mubr.bf16.gmra.mxu0 %v2528
      %v2783 = vpop.f32.mrf.mxu0
      %v2784 = vadd.f32 0.0, %v2783
      %v2785 = vpop.f32.mrf.mxu0
      %v2786 = vpop.f32.mrf.mxu0
      %v2787 = vadd.f32 0.0, %v2786
      %v2788 = vpop.f32.mrf.mxu0
      %2789 = vmatprep.mubr.bf16.mxu0 0
      %2790 = vmatmul.mubr.bf16.gmra.mxu0 %v2529
      %v2791 = vpop.f32.mrf.mxu0
      %v2792 = vadd.f32 0.0, %v2791
      %v2793 = vpop.f32.mrf.mxu0
      %v2794 = vpop.f32.mrf.mxu0
      %v2795 = vadd.f32 0.0, %v2794
      %v2796 = vpop.f32.mrf.mxu0
      %2797 = vmatprep.mubr.bf16.mxu0 0
      %2798 = vmatmul.mubr.bf16.gmra.mxu0 %v2530
      %v2799 = vpop.f32.mrf.mxu0
      %v2800 = vadd.f32 0.0, %v2799
      %v2801 = vpop.f32.mrf.mxu0
      %v2802 = vpop.f32.mrf.mxu0
      %v2803 = vadd.f32 0.0, %v2802
      %v2804 = vpop.f32.mrf.mxu0
      %2805 = vmatprep.mubr.bf16.mxu0 0
      %2806 = vmatmul.mubr.bf16.gmra.mxu0 %v2531
      %v2807 = vpop.f32.mrf.mxu0
      %v2808 = vadd.f32 0.0, %v2807
      %v2809 = vpop.f32.mrf.mxu0
      %v2810 = vpop.f32.mrf.mxu0
      %v2811 = vadd.f32 0.0, %v2810
      %v2812 = vpop.f32.mrf.mxu0
      %2813 = vmatprep.mubr.bf16.mxu0 0
      %2814 = vmatmul.mubr.bf16.gmra.mxu0 %v2532
      %v2815 = vpop.f32.mrf.mxu0
      %v2816 = vadd.f32 0.0, %v2815
      %v2817 = vpop.f32.mrf.mxu0
      %v2818 = vpop.f32.mrf.mxu0
      %v2819 = vadd.f32 0.0, %v2818
      %v2820 = vpop.f32.mrf.mxu0
      %2821 = vmatprep.mubr.bf16.mxu0 0
      %2822 = vmatmul.mubr.bf16.gmra.mxu0 %v2533
      %v2823 = vpop.f32.mrf.mxu0
      %v2824 = vadd.f32 0.0, %v2823
      %v2825 = vpop.f32.mrf.mxu0
      %v2826 = vpop.f32.mrf.mxu0
      %v2827 = vadd.f32 0.0, %v2826
      %v2828 = vpop.f32.mrf.mxu0
      %2829 = vmatprep.mubr.bf16.mxu0 0
      %2830 = vmatmul.mubr.bf16.gmra.mxu0 %v2534
      %v2831 = vpop.f32.mrf.mxu0
      %v2832 = vadd.f32 0.0, %v2831
      %v2833 = vpop.f32.mrf.mxu0
      %v2834 = vpop.f32.mrf.mxu0
      %v2835 = vadd.f32 0.0, %v2834
      %v2836 = vpop.f32.mrf.mxu0
      %2837 = vmatprep.mubr.bf16.mxu0 0
      %2838 = vmatmul.mubr.bf16.gmra.mxu0 %v2535
      %v2839 = vpop.f32.mrf.mxu0
      %v2840 = vadd.f32 0.0, %v2839
      %v2841 = vpop.f32.mrf.mxu0
      %v2842 = vpop.f32.mrf.mxu0
      %v2843 = vadd.f32 0.0, %v2842
      %v2844 = vpop.f32.mrf.mxu0
      %2845 = vmatprep.mubr.bf16.mxu0 0
      %2846 = vmatmul.mubr.bf16.gmra.mxu0 %v2536
      %v2847 = vpop.f32.mrf.mxu0
      %v2848 = vadd.f32 0.0, %v2847
      %v2849 = vpop.f32.mrf.mxu0
      %v2850 = vpop.f32.mrf.mxu0
      %v2851 = vadd.f32 0.0, %v2850
      %v2852 = vpop.f32.mrf.mxu0
      %2853 = vmatprep.mubr.bf16.mxu0 0
      %2854 = vmatmul.mubr.bf16.gmra.mxu0 %v2537
      %v2855 = vpop.f32.mrf.mxu0
      %v2856 = vadd.f32 0.0, %v2855
      %v2857 = vpop.f32.mrf.mxu0
      %v2858 = vpop.f32.mrf.mxu0
      %v2859 = vadd.f32 0.0, %v2858
      %v2860 = vpop.f32.mrf.mxu0
      %2861 = vdwg.mxu0
      %v2862 = vadd.f32 %v2279, %v2648
      %v2863 = vadd.f32 %v2280, %v2651
      %v2864 = vadd.f32 %v2281, %v2656
      %v2865 = vadd.f32 %v2282, %v2659
      %v2866 = vadd.f32 %v2283, %v2664
      %v2867 = vadd.f32 %v2284, %v2667
      %v2868 = vadd.f32 %v2285, %v2672
      %v2869 = vadd.f32 %v2286, %v2675
      %v2870 = vadd.f32 %v2287, %v2680
      %v2871 = vadd.f32 %v2288, %v2683
      %v2872 = vadd.f32 %v2289, %v2688
      %v2873 = vadd.f32 %v2290, %v2691
      %v2874 = vadd.f32 %v2291, %v2696
      %v2875 = vadd.f32 %v2292, %v2699
      %v2876 = vadd.f32 %v2293, %v2704
      %v2877 = vadd.f32 %v2294, %v2707
      %v2878 = vadd.f32 %v2295, %v2712
      %v2879 = vadd.f32 %v2296, %v2715
      %v2880 = vadd.f32 %v2297, %v2720
      %v2881 = vadd.f32 %v2298, %v2723
      %v2882 = vadd.f32 %v2299, %v2728
      %v2883 = vadd.f32 %v2300, %v2731
      %v2884 = vadd.f32 %v2301, %v2736
      %v2885 = vadd.f32 %v2302, %v2739
      %v2886 = vadd.f32 %v2303, %v2744
      %v2887 = vadd.f32 %v2304, %v2747
      %v2888 = vadd.f32 %v2305, %v2752
      %v2889 = vadd.f32 %v2306, %v2755
      %v2890 = vadd.f32 %v2307, %v2760
      %v2891 = vadd.f32 %v2308, %v2763
      %v2892 = vadd.f32 %v2309, %v2768
      %v2893 = vadd.f32 %v2310, %v2771
      %v2894 = vadd.f32 %v2311, %v2776
      %v2895 = vadd.f32 %v2312, %v2779
      %v2896 = vadd.f32 %v2313, %v2784
      %v2897 = vadd.f32 %v2314, %v2787
      %v2898 = vadd.f32 %v2315, %v2792
      %v2899 = vadd.f32 %v2316, %v2795
      %v2900 = vadd.f32 %v2317, %v2800
      %v2901 = vadd.f32 %v2318, %v2803
      %v2902 = vadd.f32 %v2319, %v2808
      %v2903 = vadd.f32 %v2320, %v2811
      %v2904 = vadd.f32 %v2321, %v2816
      %v2905 = vadd.f32 %v2322, %v2819
      %v2906 = vadd.f32 %v2323, %v2824
      %v2907 = vadd.f32 %v2324, %v2827
      %v2908 = vadd.f32 %v2325, %v2832
      %v2909 = vadd.f32 %v2326, %v2835
      %v2910 = vadd.f32 %v2327, %v2840
      %v2911 = vadd.f32 %v2328, %v2843
      %v2912 = vadd.f32 %v2329, %v2848
      %v2913 = vadd.f32 %v2330, %v2851
      %v2914 = vadd.f32 %v2331, %v2856
      %v2915 = vadd.f32 %v2332, %v2859
      %v2916 = vld [vmem:[%s654] sm:$0xf]
      %v2917 = vld [vmem:[%s654 + $0x4] sm:$0xf]
      %v2918 = vld [vmem:[%s654 + $0x8] sm:$0xf]
      %v2919 = vld [vmem:[%s654 + $0xc] sm:$0xf]
      %v2920 = vld [vmem:[%s654 + $0x10] sm:$0xf]
      %v2921 = vld [vmem:[%s654 + $0x14] sm:$0xf]
      %v2922 = vld [vmem:[%s654 + $0x18] sm:$0xf]
      %v2923 = vld [vmem:[%s654 + $0x1c] sm:$0xf]
      %v2924 = vld [vmem:[%s654 + $0x20] sm:$0xf]
      %v2925 = vld [vmem:[%s654 + $0x24] sm:$0xf]
      %v2926 = vld [vmem:[%s654 + $0x28] sm:$0xf]
      %v2927 = vld [vmem:[%s654 + $0x2c] sm:$0xf]
      %v2928 = vld [vmem:[%s654 + $0x30] sm:$0xf]
      %v2929 = vld [vmem:[%s654 + $0x34] sm:$0xf]
      %v2930 = vld [vmem:[%s654 + $0x38] sm:$0xf]
      %v2931 = vld [vmem:[%s654 + $0x3c] sm:$0xf]
      %v2932 = vld [vmem:[%s654 + $0x40] sm:$0xf]
      %v2933 = vld [vmem:[%s654 + $0x44] sm:$0xf]
      %v2934 = vld [vmem:[%s654 + $0x48] sm:$0xf]
      %v2935 = vld [vmem:[%s654 + $0x4c] sm:$0xf]
      %v2936 = vld [vmem:[%s654 + $0x50] sm:$0xf]
      %v2937 = vld [vmem:[%s654 + $0x54] sm:$0xf]
      %v2938 = vld [vmem:[%s654 + $0x58] sm:$0xf]
      %v2939 = vld [vmem:[%s654 + $0x5c] sm:$0xf]
      %v2940 = vld [vmem:[%s654 + $0x60] sm:$0xf]
      %v2941 = vld [vmem:[%s654 + $0x64] sm:$0xf]
      %v2942 = vld [vmem:[%s654 + $0x68] sm:$0xf]
      %v2943 = vld [vmem:[%s654 + $0x6c] sm:$0xf]
      %v2944 = vld [vmem:[%s654 + $0x70] sm:$0xf]
      %v2945 = vld [vmem:[%s654 + $0x74] sm:$0xf]
      %v2946 = vld [vmem:[%s654 + $0x78] sm:$0xf]
      %v2947 = vld [vmem:[%s654 + $0x7c] sm:$0xf]
      %v2948 = vld [vmem:[%s654 + $0x80] sm:$0xf]
      %v2949 = vld [vmem:[%s654 + $0x84] sm:$0xf]
      %v2950 = vld [vmem:[%s654 + $0x88] sm:$0xf]
      %v2951 = vld [vmem:[%s654 + $0x8c] sm:$0xf]
      %v2952 = vld [vmem:[%s654 + $0x90] sm:$0xf]
      %v2953 = vld [vmem:[%s654 + $0x94] sm:$0xf]
      %v2954 = vld [vmem:[%s654 + $0x98] sm:$0xf]
      %v2955 = vld [vmem:[%s654 + $0x9c] sm:$0xf]
      %v2956 = vld [vmem:[%s654 + $0xa0] sm:$0xf]
      %v2957 = vld [vmem:[%s654 + $0xa4] sm:$0xf]
      %v2958 = vld [vmem:[%s654 + $0xa8] sm:$0xf]
      %v2959 = vld [vmem:[%s654 + $0xac] sm:$0xf]
      %v2960 = vld [vmem:[%s654 + $0xb0] sm:$0xf]
      %v2961 = vld [vmem:[%s654 + $0xb4] sm:$0xf]
      %v2962 = vld [vmem:[%s654 + $0xb8] sm:$0xf]
      %v2963 = vld [vmem:[%s654 + $0xbc] sm:$0xf]
      %v2964 = vld [vmem:[%s654 + $0xc0] sm:$0xf]
      %v2965 = vld [vmem:[%s654 + $0xc4] sm:$0xf]
      %v2966 = vld [vmem:[%s654 + $0xc8] sm:$0xf]
      %v2967 = vld [vmem:[%s654 + $0xcc] sm:$0xf]
      %v2968 = vld [vmem:[%s654 + $0xd0] sm:$0xf]
      %v2969 = vld [vmem:[%s654 + $0xd4] sm:$0xf]
      %v2970 = vld [vmem:[%s7 + $0x100] sm:$0xf]
      %v2971 = vld [vmem:[%s7 + $0x104] sm:$0xf]
      %v2972 = vld [vmem:[%s7 + $0x108] sm:$0xf]
      %v2973 = vld [vmem:[%s7 + $0x10c] sm:$0xf]
      %v2974 = vld [vmem:[%s7 + $0x110] sm:$0xf]
      %v2975 = vld [vmem:[%s7 + $0x114] sm:$0xf]
      %v2976 = vld [vmem:[%s7 + $0x118] sm:$0xf]
      %v2977 = vld [vmem:[%s7 + $0x11c] sm:$0xf]
      %v2978 = vld [vmem:[%s7 + $0x120] sm:$0xf]
      %v2979 = vld [vmem:[%s7 + $0x124] sm:$0xf]
      %v2980 = vld [vmem:[%s7 + $0x128] sm:$0xf]
      %v2981 = vld [vmem:[%s7 + $0x12c] sm:$0xf]
      %v2982 = vld [vmem:[%s7 + $0x130] sm:$0xf]
      %v2983 = vld [vmem:[%s7 + $0x134] sm:$0xf]
      %v2984 = vld [vmem:[%s7 + $0x138] sm:$0xf]
      %v2985 = vld [vmem:[%s7 + $0x13c] sm:$0xf]
      %v3040 = vunpack.c.l.b16 %v2916
      %v3041 = vunpack.c.l.b16 %v2917
      %v3042 = vunpack.c.l.b16 %v2918
      %v3043 = vunpack.c.l.b16 %v2919
      %v3044 = vunpack.c.l.b16 %v2920
      %v3045 = vunpack.c.l.b16 %v2921
      %v3046 = vunpack.c.l.b16 %v2922
      %v3047 = vunpack.c.l.b16 %v2923
      %v3048 = vunpack.c.l.b16 %v2924
      %v3049 = vunpack.c.l.b16 %v2925
      %v3050 = vunpack.c.l.b16 %v2926
      %v3051 = vunpack.c.l.b16 %v2927
      %v3052 = vunpack.c.l.b16 %v2928
      %v3053 = vunpack.c.l.b16 %v2929
      %v3054 = vunpack.c.l.b16 %v2930
      %v3055 = vunpack.c.l.b16 %v2931
      %v3056 = vunpack.c.l.b16 %v2932
      %v3057 = vunpack.c.l.b16 %v2933
      %v3058 = vunpack.c.l.b16 %v2934
      %v3059 = vunpack.c.l.b16 %v2935
      %v3060 = vunpack.c.l.b16 %v2936
      %v3061 = vunpack.c.l.b16 %v2937
      %v3062 = vunpack.c.l.b16 %v2938
      %v3063 = vunpack.c.l.b16 %v2939
      %v3064 = vunpack.c.l.b16 %v2940
      %v3065 = vunpack.c.l.b16 %v2941
      %v3066 = vunpack.c.l.b16 %v2942
      %v3067 = vunpack.c.l.b16 %v2943
      %v3068 = vunpack.c.l.b16 %v2944
      %v3069 = vunpack.c.l.b16 %v2945
      %v3070 = vunpack.c.l.b16 %v2946
      %v3071 = vunpack.c.l.b16 %v2947
      %v3072 = vunpack.c.l.b16 %v2948
      %v3073 = vunpack.c.l.b16 %v2949
      %v3074 = vunpack.c.l.b16 %v2950
      %v3075 = vunpack.c.l.b16 %v2951
      %v3076 = vunpack.c.l.b16 %v2952
      %v3077 = vunpack.c.l.b16 %v2953
      %v3078 = vunpack.c.l.b16 %v2954
      %v3079 = vunpack.c.l.b16 %v2955
      %v3080 = vunpack.c.l.b16 %v2956
      %v3081 = vunpack.c.l.b16 %v2957
      %v3082 = vunpack.c.l.b16 %v2958
      %v3083 = vunpack.c.l.b16 %v2959
      %v3084 = vunpack.c.l.b16 %v2960
      %v3085 = vunpack.c.l.b16 %v2961
      %v3086 = vunpack.c.l.b16 %v2962
      %v3087 = vunpack.c.l.b16 %v2963
      %v3088 = vunpack.c.l.b16 %v2964
      %v3089 = vunpack.c.l.b16 %v2965
      %v3090 = vunpack.c.l.b16 %v2966
      %v3091 = vunpack.c.l.b16 %v2967
      %v3092 = vunpack.c.l.b16 %v2968
      %v3093 = vunpack.c.l.b16 %v2969
      %v3094 = vpack.c.b16 %v3041, %v3040
      %v3095 = vpack.c.b16 %v3043, %v3042
      %v3096 = vpack.c.b16 %v3045, %v3044
      %v3097 = vpack.c.b16 %v3047, %v3046
      %v3098 = vpack.c.b16 %v3049, %v3048
      %v3099 = vpack.c.b16 %v3051, %v3050
      %v3100 = vpack.c.b16 %v3053, %v3052
      %v3101 = vpack.c.b16 %v3055, %v3054
      %v3102 = vpack.c.b16 %v3057, %v3056
      %v3103 = vpack.c.b16 %v3059, %v3058
      %v3104 = vpack.c.b16 %v3061, %v3060
      %v3105 = vpack.c.b16 %v3063, %v3062
      %v3106 = vpack.c.b16 %v3065, %v3064
      %v3107 = vpack.c.b16 %v3067, %v3066
      %v3108 = vpack.c.b16 %v3069, %v3068
      %v3109 = vpack.c.b16 %v3071, %v3070
      %v3110 = vpack.c.b16 %v3073, %v3072
      %v3111 = vpack.c.b16 %v3075, %v3074
      %v3112 = vpack.c.b16 %v3077, %v3076
      %v3113 = vpack.c.b16 %v3079, %v3078
      %v3114 = vpack.c.b16 %v3081, %v3080
      %v3115 = vpack.c.b16 %v3083, %v3082
      %v3116 = vpack.c.b16 %v3085, %v3084
      %v3117 = vpack.c.b16 %v3087, %v3086
      %v3118 = vpack.c.b16 %v3089, %v3088
      %v3119 = vpack.c.b16 %v3091, %v3090
      %v3120 = vpack.c.b16 %v3093, %v3092
      %v3164 = vunpack.c.l.b16 %v2970
      %v3165 = vunpack.c.l.b16 %v2971
      %v3166 = vunpack.c.l.b16 %v2972
      %v3167 = vunpack.c.l.b16 %v2973
      %v3168 = vunpack.c.l.b16 %v2974
      %v3169 = vunpack.c.l.b16 %v2975
      %v3170 = vunpack.c.l.b16 %v2976
      %v3171 = vunpack.c.l.b16 %v2977
      %v3172 = vunpack.c.l.b16 %v2978
      %v3173 = vunpack.c.l.b16 %v2979
      %v3174 = vunpack.c.l.b16 %v2980
      %v3175 = vunpack.c.l.b16 %v2981
      %v3176 = vunpack.c.l.b16 %v2982
      %v3177 = vunpack.c.l.b16 %v2983
      %v3178 = vunpack.c.l.b16 %v2984
      %v3179 = vunpack.c.l.b16 %v2985
      %v3180 = vpack.c.b16 %v3165, %v3164
      %v3181 = vpack.c.b16 %v3167, %v3166
      %v3182 = vpack.c.b16 %v3169, %v3168
      %v3183 = vpack.c.b16 %v3171, %v3170
      %v3184 = vpack.c.b16 %v3173, %v3172
      %v3185 = vpack.c.b16 %v3175, %v3174
      %v3186 = vpack.c.b16 %v3177, %v3176
      %v3187 = vpack.c.b16 %v3179, %v3178
      %3196 = vmatprep.subr.bf16.mxu0 0
      %3197 = vmatpush1.bf16.msra.mxu0 %v3187
      %3198 = vmatprep.subr.bf16.mxu0 0
      %3199 = vmatpush1.bf16.msra.mxu0 %v3186
      %3200 = vmatprep.subr.bf16.mxu0 0
      %3201 = vmatpush1.bf16.msra.mxu0 %v3185
      %3202 = vmatprep.subr.bf16.mxu0 0
      %3203 = vmatpush1.bf16.msra.mxu0 %v3184
      %3204 = vmatprep.subr.bf16.mxu0 0
      %3205 = vmatpush1.bf16.msra.mxu0 %v3183
      %3206 = vmatprep.subr.bf16.mxu0 0
      %3207 = vmatpush1.bf16.msra.mxu0 %v3182
      %3208 = vmatprep.subr.bf16.mxu0 0
      %3209 = vmatpush1.bf16.msra.mxu0 %v3181
      %3210 = vmatprep.subr.bf16.mxu0 0
      %3211 = vmatpush1.bf16.msra.mxu0 %v3180
      %3212 = vmatprep.subr.bf16.mxu0 0
      %3213 = vmatpush2.bf16.msra.mxu0 0
      %3214 = vmatprep.subr.bf16.mxu0 0
      %3215 = vmatpush2.bf16.msra.mxu0 0
      %3216 = vmatprep.subr.bf16.mxu0 0
      %3217 = vmatpush2.bf16.msra.mxu0 0
      %3218 = vmatprep.subr.bf16.mxu0 0
      %3219 = vmatpush2.bf16.msra.mxu0 0
      %3220 = vmatprep.subr.bf16.mxu0 0
      %3221 = vmatpush2.bf16.msra.mxu0 0
      %3222 = vmatprep.subr.bf16.mxu0 0
      %3223 = vmatpush2.bf16.msra.mxu0 0
      %3224 = vmatprep.subr.bf16.mxu0 0
      %3225 = vmatpush2.bf16.msra.mxu0 0
      %3226 = vmatprep.subr.bf16.mxu0 0
      %3227 = vmatpush2.bf16.msra.mxu0 0
      %3228 = vmatprep.mubr.bf16.mxu0 0
      %3229 = vmatmul.mubr.bf16.gmra.mxu0 %v3094
      %v3230 = vpop.f32.mrf.mxu0
      %v3231 = vadd.f32 0.0, %v3230
      %v3232 = vpop.f32.mrf.mxu0
      %v3233 = vpop.f32.mrf.mxu0
      %v3234 = vadd.f32 0.0, %v3233
      %v3235 = vpop.f32.mrf.mxu0
      %3236 = vmatprep.mubr.bf16.mxu0 0
      %3237 = vmatmul.mubr.bf16.gmra.mxu0 %v3095
      %v3238 = vpop.f32.mrf.mxu0
      %v3239 = vadd.f32 0.0, %v3238
      %v3240 = vpop.f32.mrf.mxu0
      %v3241 = vpop.f32.mrf.mxu0
      %v3242 = vadd.f32 0.0, %v3241
      %v3243 = vpop.f32.mrf.mxu0
      %3244 = vmatprep.mubr.bf16.mxu0 0
      %3245 = vmatmul.mubr.bf16.gmra.mxu0 %v3096
      %v3246 = vpop.f32.mrf.mxu0
      %v3247 = vadd.f32 0.0, %v3246
      %v3248 = vpop.f32.mrf.mxu0
      %v3249 = vpop.f32.mrf.mxu0
      %v3250 = vadd.f32 0.0, %v3249
      %v3251 = vpop.f32.mrf.mxu0
      %3252 = vmatprep.mubr.bf16.mxu0 0
      %3253 = vmatmul.mubr.bf16.gmra.mxu0 %v3097
      %v3254 = vpop.f32.mrf.mxu0
      %v3255 = vadd.f32 0.0, %v3254
      %v3256 = vpop.f32.mrf.mxu0
      %v3257 = vpop.f32.mrf.mxu0
      %v3258 = vadd.f32 0.0, %v3257
      %v3259 = vpop.f32.mrf.mxu0
      %3260 = vmatprep.mubr.bf16.mxu0 0
      %3261 = vmatmul.mubr.bf16.gmra.mxu0 %v3098
      %v3262 = vpop.f32.mrf.mxu0
      %v3263 = vadd.f32 0.0, %v3262
      %v3264 = vpop.f32.mrf.mxu0
      %v3265 = vpop.f32.mrf.mxu0
      %v3266 = vadd.f32 0.0, %v3265
      %v3267 = vpop.f32.mrf.mxu0
      %3268 = vmatprep.mubr.bf16.mxu0 0
      %3269 = vmatmul.mubr.bf16.gmra.mxu0 %v3099
      %v3270 = vpop.f32.mrf.mxu0
      %v3271 = vadd.f32 0.0, %v3270
      %v3272 = vpop.f32.mrf.mxu0
      %v3273 = vpop.f32.mrf.mxu0
      %v3274 = vadd.f32 0.0, %v3273
      %v3275 = vpop.f32.mrf.mxu0
      %3276 = vmatprep.mubr.bf16.mxu0 0
      %3277 = vmatmul.mubr.bf16.gmra.mxu0 %v3100
      %v3278 = vpop.f32.mrf.mxu0
      %v3279 = vadd.f32 0.0, %v3278
      %v3280 = vpop.f32.mrf.mxu0
      %v3281 = vpop.f32.mrf.mxu0
      %v3282 = vadd.f32 0.0, %v3281
      %v3283 = vpop.f32.mrf.mxu0
      %3284 = vmatprep.mubr.bf16.mxu0 0
      %3285 = vmatmul.mubr.bf16.gmra.mxu0 %v3101
      %v3286 = vpop.f32.mrf.mxu0
      %v3287 = vadd.f32 0.0, %v3286
      %v3288 = vpop.f32.mrf.mxu0
      %v3289 = vpop.f32.mrf.mxu0
      %v3290 = vadd.f32 0.0, %v3289
      %v3291 = vpop.f32.mrf.mxu0
      %3292 = vmatprep.mubr.bf16.mxu0 0
      %3293 = vmatmul.mubr.bf16.gmra.mxu0 %v3102
      %v3294 = vpop.f32.mrf.mxu0
      %v3295 = vadd.f32 0.0, %v3294
      %v3296 = vpop.f32.mrf.mxu0
      %v3297 = vpop.f32.mrf.mxu0
      %v3298 = vadd.f32 0.0, %v3297
      %v3299 = vpop.f32.mrf.mxu0
      %3300 = vmatprep.mubr.bf16.mxu0 0
      %3301 = vmatmul.mubr.bf16.gmra.mxu0 %v3103
      %v3302 = vpop.f32.mrf.mxu0
      %v3303 = vadd.f32 0.0, %v3302
      %v3304 = vpop.f32.mrf.mxu0
      %v3305 = vpop.f32.mrf.mxu0
      %v3306 = vadd.f32 0.0, %v3305
      %v3307 = vpop.f32.mrf.mxu0
      %3308 = vmatprep.mubr.bf16.mxu0 0
      %3309 = vmatmul.mubr.bf16.gmra.mxu0 %v3104
      %v3310 = vpop.f32.mrf.mxu0
      %v3311 = vadd.f32 0.0, %v3310
      %v3312 = vpop.f32.mrf.mxu0
      %v3313 = vpop.f32.mrf.mxu0
      %v3314 = vadd.f32 0.0, %v3313
      %v3315 = vpop.f32.mrf.mxu0
      %3316 = vmatprep.mubr.bf16.mxu0 0
      %3317 = vmatmul.mubr.bf16.gmra.mxu0 %v3105
      %v3318 = vpop.f32.mrf.mxu0
      %v3319 = vadd.f32 0.0, %v3318
      %v3320 = vpop.f32.mrf.mxu0
      %v3321 = vpop.f32.mrf.mxu0
      %v3322 = vadd.f32 0.0, %v3321
      %v3323 = vpop.f32.mrf.mxu0
      %3324 = vmatprep.mubr.bf16.mxu0 0
      %3325 = vmatmul.mubr.bf16.gmra.mxu0 %v3106
      %v3326 = vpop.f32.mrf.mxu0
      %v3327 = vadd.f32 0.0, %v3326
      %v3328 = vpop.f32.mrf.mxu0
      %v3329 = vpop.f32.mrf.mxu0
      %v3330 = vadd.f32 0.0, %v3329
      %v3331 = vpop.f32.mrf.mxu0
      %3332 = vmatprep.mubr.bf16.mxu0 0
      %3333 = vmatmul.mubr.bf16.gmra.mxu0 %v3107
      %v3334 = vpop.f32.mrf.mxu0
      %v3335 = vadd.f32 0.0, %v3334
      %v3336 = vpop.f32.mrf.mxu0
      %v3337 = vpop.f32.mrf.mxu0
      %v3338 = vadd.f32 0.0, %v3337
      %v3339 = vpop.f32.mrf.mxu0
      %3340 = vmatprep.mubr.bf16.mxu0 0
      %3341 = vmatmul.mubr.bf16.gmra.mxu0 %v3108
      %v3342 = vpop.f32.mrf.mxu0
      %v3343 = vadd.f32 0.0, %v3342
      %v3344 = vpop.f32.mrf.mxu0
      %v3345 = vpop.f32.mrf.mxu0
      %v3346 = vadd.f32 0.0, %v3345
      %v3347 = vpop.f32.mrf.mxu0
      %3348 = vmatprep.mubr.bf16.mxu0 0
      %3349 = vmatmul.mubr.bf16.gmra.mxu0 %v3109
      %v3350 = vpop.f32.mrf.mxu0
      %v3351 = vadd.f32 0.0, %v3350
      %v3352 = vpop.f32.mrf.mxu0
      %v3353 = vpop.f32.mrf.mxu0
      %v3354 = vadd.f32 0.0, %v3353
      %v3355 = vpop.f32.mrf.mxu0
      %3356 = vmatprep.mubr.bf16.mxu0 0
      %3357 = vmatmul.mubr.bf16.gmra.mxu0 %v3110
      %v3358 = vpop.f32.mrf.mxu0
      %v3359 = vadd.f32 0.0, %v3358
      %v3360 = vpop.f32.mrf.mxu0
      %v3361 = vpop.f32.mrf.mxu0
      %v3362 = vadd.f32 0.0, %v3361
      %v3363 = vpop.f32.mrf.mxu0
      %3364 = vmatprep.mubr.bf16.mxu0 0
      %3365 = vmatmul.mubr.bf16.gmra.mxu0 %v3111
      %v3366 = vpop.f32.mrf.mxu0
      %v3367 = vadd.f32 0.0, %v3366
      %v3368 = vpop.f32.mrf.mxu0
      %v3369 = vpop.f32.mrf.mxu0
      %v3370 = vadd.f32 0.0, %v3369
      %v3371 = vpop.f32.mrf.mxu0
      %3372 = vmatprep.mubr.bf16.mxu0 0
      %3373 = vmatmul.mubr.bf16.gmra.mxu0 %v3112
      %v3374 = vpop.f32.mrf.mxu0
      %v3375 = vadd.f32 0.0, %v3374
      %v3376 = vpop.f32.mrf.mxu0
      %v3377 = vpop.f32.mrf.mxu0
      %v3378 = vadd.f32 0.0, %v3377
      %v3379 = vpop.f32.mrf.mxu0
      %3380 = vmatprep.mubr.bf16.mxu0 0
      %3381 = vmatmul.mubr.bf16.gmra.mxu0 %v3113
      %v3382 = vpop.f32.mrf.mxu0
      %v3383 = vadd.f32 0.0, %v3382
      %v3384 = vpop.f32.mrf.mxu0
      %v3385 = vpop.f32.mrf.mxu0
      %v3386 = vadd.f32 0.0, %v3385
      %v3387 = vpop.f32.mrf.mxu0
      %3388 = vmatprep.mubr.bf16.mxu0 0
      %3389 = vmatmul.mubr.bf16.gmra.mxu0 %v3114
      %v3390 = vpop.f32.mrf.mxu0
      %v3391 = vadd.f32 0.0, %v3390
      %v3392 = vpop.f32.mrf.mxu0
      %v3393 = vpop.f32.mrf.mxu0
      %v3394 = vadd.f32 0.0, %v3393
      %v3395 = vpop.f32.mrf.mxu0
      %3396 = vmatprep.mubr.bf16.mxu0 0
      %3397 = vmatmul.mubr.bf16.gmra.mxu0 %v3115
      %v3398 = vpop.f32.mrf.mxu0
      %v3399 = vadd.f32 0.0, %v3398
      %v3400 = vpop.f32.mrf.mxu0
      %v3401 = vpop.f32.mrf.mxu0
      %v3402 = vadd.f32 0.0, %v3401
      %v3403 = vpop.f32.mrf.mxu0
      %3404 = vmatprep.mubr.bf16.mxu0 0
      %3405 = vmatmul.mubr.bf16.gmra.mxu0 %v3116
      %v3406 = vpop.f32.mrf.mxu0
      %v3407 = vadd.f32 0.0, %v3406
      %v3408 = vpop.f32.mrf.mxu0
      %v3409 = vpop.f32.mrf.mxu0
      %v3410 = vadd.f32 0.0, %v3409
      %v3411 = vpop.f32.mrf.mxu0
      %3412 = vmatprep.mubr.bf16.mxu0 0
      %3413 = vmatmul.mubr.bf16.gmra.mxu0 %v3117
      %v3414 = vpop.f32.mrf.mxu0
      %v3415 = vadd.f32 0.0, %v3414
      %v3416 = vpop.f32.mrf.mxu0
      %v3417 = vpop.f32.mrf.mxu0
      %v3418 = vadd.f32 0.0, %v3417
      %v3419 = vpop.f32.mrf.mxu0
      %3420 = vmatprep.mubr.bf16.mxu0 0
      %3421 = vmatmul.mubr.bf16.gmra.mxu0 %v3118
      %v3422 = vpop.f32.mrf.mxu0
      %v3423 = vadd.f32 0.0, %v3422
      %v3424 = vpop.f32.mrf.mxu0
      %v3425 = vpop.f32.mrf.mxu0
      %v3426 = vadd.f32 0.0, %v3425
      %v3427 = vpop.f32.mrf.mxu0
      %3428 = vmatprep.mubr.bf16.mxu0 0
      %3429 = vmatmul.mubr.bf16.gmra.mxu0 %v3119
      %v3430 = vpop.f32.mrf.mxu0
      %v3431 = vadd.f32 0.0, %v3430
      %v3432 = vpop.f32.mrf.mxu0
      %v3433 = vpop.f32.mrf.mxu0
      %v3434 = vadd.f32 0.0, %v3433
      %v3435 = vpop.f32.mrf.mxu0
      %3436 = vmatprep.mubr.bf16.mxu0 0
      %3437 = vmatmul.mubr.bf16.gmra.mxu0 %v3120
      %v3438 = vpop.f32.mrf.mxu0
      %v3439 = vadd.f32 0.0, %v3438
      %v3440 = vpop.f32.mrf.mxu0
      %v3441 = vpop.f32.mrf.mxu0
      %v3442 = vadd.f32 0.0, %v3441
      %v3443 = vpop.f32.mrf.mxu0
      %3444 = vdwg.mxu0
      %v3445 = vadd.f32 %v2862, %v3231
      %v3446 = vadd.f32 %v2863, %v3234
      %v3447 = vadd.f32 %v2864, %v3239
      %v3448 = vadd.f32 %v2865, %v3242
      %v3449 = vadd.f32 %v2866, %v3247
      %v3450 = vadd.f32 %v2867, %v3250
      %v3451 = vadd.f32 %v2868, %v3255
      %v3452 = vadd.f32 %v2869, %v3258
      %v3453 = vadd.f32 %v2870, %v3263
      %v3454 = vadd.f32 %v2871, %v3266
      %v3455 = vadd.f32 %v2872, %v3271
      %v3456 = vadd.f32 %v2873, %v3274
      %v3457 = vadd.f32 %v2874, %v3279
      %v3458 = vadd.f32 %v2875, %v3282
      %v3459 = vadd.f32 %v2876, %v3287
      %v3460 = vadd.f32 %v2877, %v3290
      %v3461 = vadd.f32 %v2878, %v3295
      %v3462 = vadd.f32 %v2879, %v3298
      %v3463 = vadd.f32 %v2880, %v3303
      %v3464 = vadd.f32 %v2881, %v3306
      %v3465 = vadd.f32 %v2882, %v3311
      %v3466 = vadd.f32 %v2883, %v3314
      %v3467 = vadd.f32 %v2884, %v3319
      %v3468 = vadd.f32 %v2885, %v3322
      %v3469 = vadd.f32 %v2886, %v3327
      %v3470 = vadd.f32 %v2887, %v3330
      %v3471 = vadd.f32 %v2888, %v3335
      %v3472 = vadd.f32 %v2889, %v3338
      %v3473 = vadd.f32 %v2890, %v3343
      %v3474 = vadd.f32 %v2891, %v3346
      %v3475 = vadd.f32 %v2892, %v3351
      %v3476 = vadd.f32 %v2893, %v3354
      %v3477 = vadd.f32 %v2894, %v3359
      %v3478 = vadd.f32 %v2895, %v3362
      %v3479 = vadd.f32 %v2896, %v3367
      %v3480 = vadd.f32 %v2897, %v3370
      %v3481 = vadd.f32 %v2898, %v3375
      %v3482 = vadd.f32 %v2899, %v3378
      %v3483 = vadd.f32 %v2900, %v3383
      %v3484 = vadd.f32 %v2901, %v3386
      %v3485 = vadd.f32 %v2902, %v3391
      %v3486 = vadd.f32 %v2903, %v3394
      %v3487 = vadd.f32 %v2904, %v3399
      %v3488 = vadd.f32 %v2905, %v3402
      %v3489 = vadd.f32 %v2906, %v3407
      %v3490 = vadd.f32 %v2907, %v3410
      %v3491 = vadd.f32 %v2908, %v3415
      %v3492 = vadd.f32 %v2909, %v3418
      %v3493 = vadd.f32 %v2910, %v3423
      %v3494 = vadd.f32 %v2911, %v3426
      %v3495 = vadd.f32 %v2912, %v3431
      %v3496 = vadd.f32 %v2913, %v3434
      %v3497 = vadd.f32 %v2914, %v3439
      %v3498 = vadd.f32 %v2915, %v3442
      %v3499 = vld [vmem:[%s666] sm:$0xf]
      %v3500 = vld [vmem:[%s666 + $0x4] sm:$0xf]
      %v3501 = vld [vmem:[%s666 + $0x8] sm:$0xf]
      %v3502 = vld [vmem:[%s666 + $0xc] sm:$0xf]
      %v3503 = vld [vmem:[%s666 + $0x10] sm:$0xf]
      %v3504 = vld [vmem:[%s666 + $0x14] sm:$0xf]
      %v3505 = vld [vmem:[%s666 + $0x18] sm:$0xf]
      %v3506 = vld [vmem:[%s666 + $0x1c] sm:$0xf]
      %v3507 = vld [vmem:[%s666 + $0x20] sm:$0xf]
      %v3508 = vld [vmem:[%s666 + $0x24] sm:$0xf]
      %v3509 = vld [vmem:[%s666 + $0x28] sm:$0xf]
      %v3510 = vld [vmem:[%s666 + $0x2c] sm:$0xf]
      %v3511 = vld [vmem:[%s666 + $0x30] sm:$0xf]
      %v3512 = vld [vmem:[%s666 + $0x34] sm:$0xf]
      %v3513 = vld [vmem:[%s666 + $0x38] sm:$0xf]
      %v3514 = vld [vmem:[%s666 + $0x3c] sm:$0xf]
      %v3515 = vld [vmem:[%s666 + $0x40] sm:$0xf]
      %v3516 = vld [vmem:[%s666 + $0x44] sm:$0xf]
      %v3517 = vld [vmem:[%s666 + $0x48] sm:$0xf]
      %v3518 = vld [vmem:[%s666 + $0x4c] sm:$0xf]
      %v3519 = vld [vmem:[%s666 + $0x50] sm:$0xf]
      %v3520 = vld [vmem:[%s666 + $0x54] sm:$0xf]
      %v3521 = vld [vmem:[%s666 + $0x58] sm:$0xf]
      %v3522 = vld [vmem:[%s666 + $0x5c] sm:$0xf]
      %v3523 = vld [vmem:[%s666 + $0x60] sm:$0xf]
      %v3524 = vld [vmem:[%s666 + $0x64] sm:$0xf]
      %v3525 = vld [vmem:[%s666 + $0x68] sm:$0xf]
      %v3526 = vld [vmem:[%s666 + $0x6c] sm:$0xf]
      %v3527 = vld [vmem:[%s666 + $0x70] sm:$0xf]
      %v3528 = vld [vmem:[%s666 + $0x74] sm:$0xf]
      %v3529 = vld [vmem:[%s666 + $0x78] sm:$0xf]
      %v3530 = vld [vmem:[%s666 + $0x7c] sm:$0xf]
      %v3531 = vld [vmem:[%s666 + $0x80] sm:$0xf]
      %v3532 = vld [vmem:[%s666 + $0x84] sm:$0xf]
      %v3533 = vld [vmem:[%s666 + $0x88] sm:$0xf]
      %v3534 = vld [vmem:[%s666 + $0x8c] sm:$0xf]
      %v3535 = vld [vmem:[%s666 + $0x90] sm:$0xf]
      %v3536 = vld [vmem:[%s666 + $0x94] sm:$0xf]
      %v3537 = vld [vmem:[%s666 + $0x98] sm:$0xf]
      %v3538 = vld [vmem:[%s666 + $0x9c] sm:$0xf]
      %v3539 = vld [vmem:[%s666 + $0xa0] sm:$0xf]
      %v3540 = vld [vmem:[%s666 + $0xa4] sm:$0xf]
      %v3541 = vld [vmem:[%s666 + $0xa8] sm:$0xf]
      %v3542 = vld [vmem:[%s666 + $0xac] sm:$0xf]
      %v3543 = vld [vmem:[%s666 + $0xb0] sm:$0xf]
      %v3544 = vld [vmem:[%s666 + $0xb4] sm:$0xf]
      %v3545 = vld [vmem:[%s666 + $0xb8] sm:$0xf]
      %v3546 = vld [vmem:[%s666 + $0xbc] sm:$0xf]
      %v3547 = vld [vmem:[%s666 + $0xc0] sm:$0xf]
      %v3548 = vld [vmem:[%s666 + $0xc4] sm:$0xf]
      %v3549 = vld [vmem:[%s666 + $0xc8] sm:$0xf]
      %v3550 = vld [vmem:[%s666 + $0xcc] sm:$0xf]
      %v3551 = vld [vmem:[%s666 + $0xd0] sm:$0xf]
      %v3552 = vld [vmem:[%s666 + $0xd4] sm:$0xf]
      %v3553 = vld [vmem:[%s7 + $0x140] sm:$0xf]
      %v3554 = vld [vmem:[%s7 + $0x144] sm:$0xf]
      %v3555 = vld [vmem:[%s7 + $0x148] sm:$0xf]
      %v3556 = vld [vmem:[%s7 + $0x14c] sm:$0xf]
      %v3557 = vld [vmem:[%s7 + $0x150] sm:$0xf]
      %v3558 = vld [vmem:[%s7 + $0x154] sm:$0xf]
      %v3559 = vld [vmem:[%s7 + $0x158] sm:$0xf]
      %v3560 = vld [vmem:[%s7 + $0x15c] sm:$0xf]
      %v3561 = vld [vmem:[%s7 + $0x160] sm:$0xf]
      %v3562 = vld [vmem:[%s7 + $0x164] sm:$0xf]
      %v3563 = vld [vmem:[%s7 + $0x168] sm:$0xf]
      %v3564 = vld [vmem:[%s7 + $0x16c] sm:$0xf]
      %v3565 = vld [vmem:[%s7 + $0x170] sm:$0xf]
      %v3566 = vld [vmem:[%s7 + $0x174] sm:$0xf]
      %v3567 = vld [vmem:[%s7 + $0x178] sm:$0xf]
      %v3568 = vld [vmem:[%s7 + $0x17c] sm:$0xf]
      %v3623 = vunpack.c.l.b16 %v3499
      %v3624 = vunpack.c.l.b16 %v3500
      %v3625 = vunpack.c.l.b16 %v3501
      %v3626 = vunpack.c.l.b16 %v3502
      %v3627 = vunpack.c.l.b16 %v3503
      %v3628 = vunpack.c.l.b16 %v3504
      %v3629 = vunpack.c.l.b16 %v3505
      %v3630 = vunpack.c.l.b16 %v3506
      %v3631 = vunpack.c.l.b16 %v3507
      %v3632 = vunpack.c.l.b16 %v3508
      %v3633 = vunpack.c.l.b16 %v3509
      %v3634 = vunpack.c.l.b16 %v3510
      %v3635 = vunpack.c.l.b16 %v3511
      %v3636 = vunpack.c.l.b16 %v3512
      %v3637 = vunpack.c.l.b16 %v3513
      %v3638 = vunpack.c.l.b16 %v3514
      %v3639 = vunpack.c.l.b16 %v3515
      %v3640 = vunpack.c.l.b16 %v3516
      %v3641 = vunpack.c.l.b16 %v3517
      %v3642 = vunpack.c.l.b16 %v3518
      %v3643 = vunpack.c.l.b16 %v3519
      %v3644 = vunpack.c.l.b16 %v3520
      %v3645 = vunpack.c.l.b16 %v3521
      %v3646 = vunpack.c.l.b16 %v3522
      %v3647 = vunpack.c.l.b16 %v3523
      %v3648 = vunpack.c.l.b16 %v3524
      %v3649 = vunpack.c.l.b16 %v3525
      %v3650 = vunpack.c.l.b16 %v3526
      %v3651 = vunpack.c.l.b16 %v3527
      %v3652 = vunpack.c.l.b16 %v3528
      %v3653 = vunpack.c.l.b16 %v3529
      %v3654 = vunpack.c.l.b16 %v3530
      %v3655 = vunpack.c.l.b16 %v3531
      %v3656 = vunpack.c.l.b16 %v3532
      %v3657 = vunpack.c.l.b16 %v3533
      %v3658 = vunpack.c.l.b16 %v3534
      %v3659 = vunpack.c.l.b16 %v3535
      %v3660 = vunpack.c.l.b16 %v3536
      %v3661 = vunpack.c.l.b16 %v3537
      %v3662 = vunpack.c.l.b16 %v3538
      %v3663 = vunpack.c.l.b16 %v3539
      %v3664 = vunpack.c.l.b16 %v3540
      %v3665 = vunpack.c.l.b16 %v3541
      %v3666 = vunpack.c.l.b16 %v3542
      %v3667 = vunpack.c.l.b16 %v3543
      %v3668 = vunpack.c.l.b16 %v3544
      %v3669 = vunpack.c.l.b16 %v3545
      %v3670 = vunpack.c.l.b16 %v3546
      %v3671 = vunpack.c.l.b16 %v3547
      %v3672 = vunpack.c.l.b16 %v3548
      %v3673 = vunpack.c.l.b16 %v3549
      %v3674 = vunpack.c.l.b16 %v3550
      %v3675 = vunpack.c.l.b16 %v3551
      %v3676 = vunpack.c.l.b16 %v3552
      %v3677 = vpack.c.b16 %v3624, %v3623
      %v3678 = vpack.c.b16 %v3626, %v3625
      %v3679 = vpack.c.b16 %v3628, %v3627
      %v3680 = vpack.c.b16 %v3630, %v3629
      %v3681 = vpack.c.b16 %v3632, %v3631
      %v3682 = vpack.c.b16 %v3634, %v3633
      %v3683 = vpack.c.b16 %v3636, %v3635
      %v3684 = vpack.c.b16 %v3638, %v3637
      %v3685 = vpack.c.b16 %v3640, %v3639
      %v3686 = vpack.c.b16 %v3642, %v3641
      %v3687 = vpack.c.b16 %v3644, %v3643
      %v3688 = vpack.c.b16 %v3646, %v3645
      %v3689 = vpack.c.b16 %v3648, %v3647
      %v3690 = vpack.c.b16 %v3650, %v3649
      %v3691 = vpack.c.b16 %v3652, %v3651
      %v3692 = vpack.c.b16 %v3654, %v3653
      %v3693 = vpack.c.b16 %v3656, %v3655
      %v3694 = vpack.c.b16 %v3658, %v3657
      %v3695 = vpack.c.b16 %v3660, %v3659
      %v3696 = vpack.c.b16 %v3662, %v3661
      %v3697 = vpack.c.b16 %v3664, %v3663
      %v3698 = vpack.c.b16 %v3666, %v3665
      %v3699 = vpack.c.b16 %v3668, %v3667
      %v3700 = vpack.c.b16 %v3670, %v3669
      %v3701 = vpack.c.b16 %v3672, %v3671
      %v3702 = vpack.c.b16 %v3674, %v3673
      %v3703 = vpack.c.b16 %v3676, %v3675
      %v3747 = vunpack.c.l.b16 %v3553
      %v3748 = vunpack.c.l.b16 %v3554
      %v3749 = vunpack.c.l.b16 %v3555
      %v3750 = vunpack.c.l.b16 %v3556
      %v3751 = vunpack.c.l.b16 %v3557
      %v3752 = vunpack.c.l.b16 %v3558
      %v3753 = vunpack.c.l.b16 %v3559
      %v3754 = vunpack.c.l.b16 %v3560
      %v3755 = vunpack.c.l.b16 %v3561
      %v3756 = vunpack.c.l.b16 %v3562
      %v3757 = vunpack.c.l.b16 %v3563
      %v3758 = vunpack.c.l.b16 %v3564
      %v3759 = vunpack.c.l.b16 %v3565
      %v3760 = vunpack.c.l.b16 %v3566
      %v3761 = vunpack.c.l.b16 %v3567
      %v3762 = vunpack.c.l.b16 %v3568
      %v3763 = vpack.c.b16 %v3748, %v3747
      %v3764 = vpack.c.b16 %v3750, %v3749
      %v3765 = vpack.c.b16 %v3752, %v3751
      %v3766 = vpack.c.b16 %v3754, %v3753
      %v3767 = vpack.c.b16 %v3756, %v3755
      %v3768 = vpack.c.b16 %v3758, %v3757
      %v3769 = vpack.c.b16 %v3760, %v3759
      %v3770 = vpack.c.b16 %v3762, %v3761
      %3779 = vmatprep.subr.bf16.mxu0 0
      %3780 = vmatpush1.bf16.msra.mxu0 %v3770
      %3781 = vmatprep.subr.bf16.mxu0 0
      %3782 = vmatpush1.bf16.msra.mxu0 %v3769
      %3783 = vmatprep.subr.bf16.mxu0 0
      %3784 = vmatpush1.bf16.msra.mxu0 %v3768
      %3785 = vmatprep.subr.bf16.mxu0 0
      %3786 = vmatpush1.bf16.msra.mxu0 %v3767
      %3787 = vmatprep.subr.bf16.mxu0 0
      %3788 = vmatpush1.bf16.msra.mxu0 %v3766
      %3789 = vmatprep.subr.bf16.mxu0 0
      %3790 = vmatpush1.bf16.msra.mxu0 %v3765
      %3791 = vmatprep.subr.bf16.mxu0 0
      %3792 = vmatpush1.bf16.msra.mxu0 %v3764
      %3793 = vmatprep.subr.bf16.mxu0 0
      %3794 = vmatpush1.bf16.msra.mxu0 %v3763
      %3795 = vmatprep.subr.bf16.mxu0 0
      %3796 = vmatpush2.bf16.msra.mxu0 0
      %3797 = vmatprep.subr.bf16.mxu0 0
      %3798 = vmatpush2.bf16.msra.mxu0 0
      %3799 = vmatprep.subr.bf16.mxu0 0
      %3800 = vmatpush2.bf16.msra.mxu0 0
      %3801 = vmatprep.subr.bf16.mxu0 0
      %3802 = vmatpush2.bf16.msra.mxu0 0
      %3803 = vmatprep.subr.bf16.mxu0 0
      %3804 = vmatpush2.bf16.msra.mxu0 0
      %3805 = vmatprep.subr.bf16.mxu0 0
      %3806 = vmatpush2.bf16.msra.mxu0 0
      %3807 = vmatprep.subr.bf16.mxu0 0
      %3808 = vmatpush2.bf16.msra.mxu0 0
      %3809 = vmatprep.subr.bf16.mxu0 0
      %3810 = vmatpush2.bf16.msra.mxu0 0
      %3811 = vmatprep.mubr.bf16.mxu0 0
      %3812 = vmatmul.mubr.bf16.gmra.mxu0 %v3677
      %v3813 = vpop.f32.mrf.mxu0
      %v3814 = vadd.f32 0.0, %v3813
      %v3815 = vpop.f32.mrf.mxu0
      %v3816 = vpop.f32.mrf.mxu0
      %v3817 = vadd.f32 0.0, %v3816
      %v3818 = vpop.f32.mrf.mxu0
      %3819 = vmatprep.mubr.bf16.mxu0 0
      %3820 = vmatmul.mubr.bf16.gmra.mxu0 %v3678
      %v3821 = vpop.f32.mrf.mxu0
      %v3822 = vadd.f32 0.0, %v3821
      %v3823 = vpop.f32.mrf.mxu0
      %v3824 = vpop.f32.mrf.mxu0
      %v3825 = vadd.f32 0.0, %v3824
      %v3826 = vpop.f32.mrf.mxu0
      %3827 = vmatprep.mubr.bf16.mxu0 0
      %3828 = vmatmul.mubr.bf16.gmra.mxu0 %v3679
      %v3829 = vpop.f32.mrf.mxu0
      %v3830 = vadd.f32 0.0, %v3829
      %v3831 = vpop.f32.mrf.mxu0
      %v3832 = vpop.f32.mrf.mxu0
      %v3833 = vadd.f32 0.0, %v3832
      %v3834 = vpop.f32.mrf.mxu0
      %3835 = vmatprep.mubr.bf16.mxu0 0
      %3836 = vmatmul.mubr.bf16.gmra.mxu0 %v3680
      %v3837 = vpop.f32.mrf.mxu0
      %v3838 = vadd.f32 0.0, %v3837
      %v3839 = vpop.f32.mrf.mxu0
      %v3840 = vpop.f32.mrf.mxu0
      %v3841 = vadd.f32 0.0, %v3840
      %v3842 = vpop.f32.mrf.mxu0
      %3843 = vmatprep.mubr.bf16.mxu0 0
      %3844 = vmatmul.mubr.bf16.gmra.mxu0 %v3681
      %v3845 = vpop.f32.mrf.mxu0
      %v3846 = vadd.f32 0.0, %v3845
      %v3847 = vpop.f32.mrf.mxu0
      %v3848 = vpop.f32.mrf.mxu0
      %v3849 = vadd.f32 0.0, %v3848
      %v3850 = vpop.f32.mrf.mxu0
      %3851 = vmatprep.mubr.bf16.mxu0 0
      %3852 = vmatmul.mubr.bf16.gmra.mxu0 %v3682
      %v3853 = vpop.f32.mrf.mxu0
      %v3854 = vadd.f32 0.0, %v3853
      %v3855 = vpop.f32.mrf.mxu0
      %v3856 = vpop.f32.mrf.mxu0
      %v3857 = vadd.f32 0.0, %v3856
      %v3858 = vpop.f32.mrf.mxu0
      %3859 = vmatprep.mubr.bf16.mxu0 0
      %3860 = vmatmul.mubr.bf16.gmra.mxu0 %v3683
      %v3861 = vpop.f32.mrf.mxu0
      %v3862 = vadd.f32 0.0, %v3861
      %v3863 = vpop.f32.mrf.mxu0
      %v3864 = vpop.f32.mrf.mxu0
      %v3865 = vadd.f32 0.0, %v3864
      %v3866 = vpop.f32.mrf.mxu0
      %3867 = vmatprep.mubr.bf16.mxu0 0
      %3868 = vmatmul.mubr.bf16.gmra.mxu0 %v3684
      %v3869 = vpop.f32.mrf.mxu0
      %v3870 = vadd.f32 0.0, %v3869
      %v3871 = vpop.f32.mrf.mxu0
      %v3872 = vpop.f32.mrf.mxu0
      %v3873 = vadd.f32 0.0, %v3872
      %v3874 = vpop.f32.mrf.mxu0
      %3875 = vmatprep.mubr.bf16.mxu0 0
      %3876 = vmatmul.mubr.bf16.gmra.mxu0 %v3685
      %v3877 = vpop.f32.mrf.mxu0
      %v3878 = vadd.f32 0.0, %v3877
      %v3879 = vpop.f32.mrf.mxu0
      %v3880 = vpop.f32.mrf.mxu0
      %v3881 = vadd.f32 0.0, %v3880
      %v3882 = vpop.f32.mrf.mxu0
      %3883 = vmatprep.mubr.bf16.mxu0 0
      %3884 = vmatmul.mubr.bf16.gmra.mxu0 %v3686
      %v3885 = vpop.f32.mrf.mxu0
      %v3886 = vadd.f32 0.0, %v3885
      %v3887 = vpop.f32.mrf.mxu0
      %v3888 = vpop.f32.mrf.mxu0
      %v3889 = vadd.f32 0.0, %v3888
      %v3890 = vpop.f32.mrf.mxu0
      %3891 = vmatprep.mubr.bf16.mxu0 0
      %3892 = vmatmul.mubr.bf16.gmra.mxu0 %v3687
      %v3893 = vpop.f32.mrf.mxu0
      %v3894 = vadd.f32 0.0, %v3893
      %v3895 = vpop.f32.mrf.mxu0
      %v3896 = vpop.f32.mrf.mxu0
      %v3897 = vadd.f32 0.0, %v3896
      %v3898 = vpop.f32.mrf.mxu0
      %3899 = vmatprep.mubr.bf16.mxu0 0
      %3900 = vmatmul.mubr.bf16.gmra.mxu0 %v3688
      %v3901 = vpop.f32.mrf.mxu0
      %v3902 = vadd.f32 0.0, %v3901
      %v3903 = vpop.f32.mrf.mxu0
      %v3904 = vpop.f32.mrf.mxu0
      %v3905 = vadd.f32 0.0, %v3904
      %v3906 = vpop.f32.mrf.mxu0
      %3907 = vmatprep.mubr.bf16.mxu0 0
      %3908 = vmatmul.mubr.bf16.gmra.mxu0 %v3689
      %v3909 = vpop.f32.mrf.mxu0
      %v3910 = vadd.f32 0.0, %v3909
      %v3911 = vpop.f32.mrf.mxu0
      %v3912 = vpop.f32.mrf.mxu0
      %v3913 = vadd.f32 0.0, %v3912
      %v3914 = vpop.f32.mrf.mxu0
      %3915 = vmatprep.mubr.bf16.mxu0 0
      %3916 = vmatmul.mubr.bf16.gmra.mxu0 %v3690
      %v3917 = vpop.f32.mrf.mxu0
      %v3918 = vadd.f32 0.0, %v3917
      %v3919 = vpop.f32.mrf.mxu0
      %v3920 = vpop.f32.mrf.mxu0
      %v3921 = vadd.f32 0.0, %v3920
      %v3922 = vpop.f32.mrf.mxu0
      %3923 = vmatprep.mubr.bf16.mxu0 0
      %3924 = vmatmul.mubr.bf16.gmra.mxu0 %v3691
      %v3925 = vpop.f32.mrf.mxu0
      %v3926 = vadd.f32 0.0, %v3925
      %v3927 = vpop.f32.mrf.mxu0
      %v3928 = vpop.f32.mrf.mxu0
      %v3929 = vadd.f32 0.0, %v3928
      %v3930 = vpop.f32.mrf.mxu0
      %3931 = vmatprep.mubr.bf16.mxu0 0
      %3932 = vmatmul.mubr.bf16.gmra.mxu0 %v3692
      %v3933 = vpop.f32.mrf.mxu0
      %v3934 = vadd.f32 0.0, %v3933
      %v3935 = vpop.f32.mrf.mxu0
      %v3936 = vpop.f32.mrf.mxu0
      %v3937 = vadd.f32 0.0, %v3936
      %v3938 = vpop.f32.mrf.mxu0
      %3939 = vmatprep.mubr.bf16.mxu0 0
      %3940 = vmatmul.mubr.bf16.gmra.mxu0 %v3693
      %v3941 = vpop.f32.mrf.mxu0
      %v3942 = vadd.f32 0.0, %v3941
      %v3943 = vpop.f32.mrf.mxu0
      %v3944 = vpop.f32.mrf.mxu0
      %v3945 = vadd.f32 0.0, %v3944
      %v3946 = vpop.f32.mrf.mxu0
      %3947 = vmatprep.mubr.bf16.mxu0 0
      %3948 = vmatmul.mubr.bf16.gmra.mxu0 %v3694
      %v3949 = vpop.f32.mrf.mxu0
      %v3950 = vadd.f32 0.0, %v3949
      %v3951 = vpop.f32.mrf.mxu0
      %v3952 = vpop.f32.mrf.mxu0
      %v3953 = vadd.f32 0.0, %v3952
      %v3954 = vpop.f32.mrf.mxu0
      %3955 = vmatprep.mubr.bf16.mxu0 0
      %3956 = vmatmul.mubr.bf16.gmra.mxu0 %v3695
      %v3957 = vpop.f32.mrf.mxu0
      %v3958 = vadd.f32 0.0, %v3957
      %v3959 = vpop.f32.mrf.mxu0
      %v3960 = vpop.f32.mrf.mxu0
      %v3961 = vadd.f32 0.0, %v3960
      %v3962 = vpop.f32.mrf.mxu0
      %3963 = vmatprep.mubr.bf16.mxu0 0
      %3964 = vmatmul.mubr.bf16.gmra.mxu0 %v3696
      %v3965 = vpop.f32.mrf.mxu0
      %v3966 = vadd.f32 0.0, %v3965
      %v3967 = vpop.f32.mrf.mxu0
      %v3968 = vpop.f32.mrf.mxu0
      %v3969 = vadd.f32 0.0, %v3968
      %v3970 = vpop.f32.mrf.mxu0
      %3971 = vmatprep.mubr.bf16.mxu0 0
      %3972 = vmatmul.mubr.bf16.gmra.mxu0 %v3697
      %v3973 = vpop.f32.mrf.mxu0
      %v3974 = vadd.f32 0.0, %v3973
      %v3975 = vpop.f32.mrf.mxu0
      %v3976 = vpop.f32.mrf.mxu0
      %v3977 = vadd.f32 0.0, %v3976
      %v3978 = vpop.f32.mrf.mxu0
      %3979 = vmatprep.mubr.bf16.mxu0 0
      %3980 = vmatmul.mubr.bf16.gmra.mxu0 %v3698
      %v3981 = vpop.f32.mrf.mxu0
      %v3982 = vadd.f32 0.0, %v3981
      %v3983 = vpop.f32.mrf.mxu0
      %v3984 = vpop.f32.mrf.mxu0
      %v3985 = vadd.f32 0.0, %v3984
      %v3986 = vpop.f32.mrf.mxu0
      %3987 = vmatprep.mubr.bf16.mxu0 0
      %3988 = vmatmul.mubr.bf16.gmra.mxu0 %v3699
      %v3989 = vpop.f32.mrf.mxu0
      %v3990 = vadd.f32 0.0, %v3989
      %v3991 = vpop.f32.mrf.mxu0
      %v3992 = vpop.f32.mrf.mxu0
      %v3993 = vadd.f32 0.0, %v3992
      %v3994 = vpop.f32.mrf.mxu0
      %3995 = vmatprep.mubr.bf16.mxu0 0
      %3996 = vmatmul.mubr.bf16.gmra.mxu0 %v3700
      %v3997 = vpop.f32.mrf.mxu0
      %v3998 = vadd.f32 0.0, %v3997
      %v3999 = vpop.f32.mrf.mxu0
      %v4000 = vpop.f32.mrf.mxu0
      %v4001 = vadd.f32 0.0, %v4000
      %v4002 = vpop.f32.mrf.mxu0
      %4003 = vmatprep.mubr.bf16.mxu0 0
      %4004 = vmatmul.mubr.bf16.gmra.mxu0 %v3701
      %v4005 = vpop.f32.mrf.mxu0
      %v4006 = vadd.f32 0.0, %v4005
      %v4007 = vpop.f32.mrf.mxu0
      %v4008 = vpop.f32.mrf.mxu0
      %v4009 = vadd.f32 0.0, %v4008
      %v4010 = vpop.f32.mrf.mxu0
      %4011 = vmatprep.mubr.bf16.mxu0 0
      %4012 = vmatmul.mubr.bf16.gmra.mxu0 %v3702
      %v4013 = vpop.f32.mrf.mxu0
      %v4014 = vadd.f32 0.0, %v4013
      %v4015 = vpop.f32.mrf.mxu0
      %v4016 = vpop.f32.mrf.mxu0
      %v4017 = vadd.f32 0.0, %v4016
      %v4018 = vpop.f32.mrf.mxu0
      %4019 = vmatprep.mubr.bf16.mxu0 0
      %4020 = vmatmul.mubr.bf16.gmra.mxu0 %v3703
      %v4021 = vpop.f32.mrf.mxu0
      %v4022 = vadd.f32 0.0, %v4021
      %v4023 = vpop.f32.mrf.mxu0
      %v4024 = vpop.f32.mrf.mxu0
      %v4025 = vadd.f32 0.0, %v4024
      %v4026 = vpop.f32.mrf.mxu0
      %4027 = vdwg.mxu0
      %v4028 = vadd.f32 %v3445, %v3814
      %v4029 = vadd.f32 %v3446, %v3817
      %v4030 = vadd.f32 %v3447, %v3822
      %v4031 = vadd.f32 %v3448, %v3825
      %v4032 = vadd.f32 %v3449, %v3830
      %v4033 = vadd.f32 %v3450, %v3833
      %v4034 = vadd.f32 %v3451, %v3838
      %v4035 = vadd.f32 %v3452, %v3841
      %v4036 = vadd.f32 %v3453, %v3846
      %v4037 = vadd.f32 %v3454, %v3849
      %v4038 = vadd.f32 %v3455, %v3854
      %v4039 = vadd.f32 %v3456, %v3857
      %v4040 = vadd.f32 %v3457, %v3862
      %v4041 = vadd.f32 %v3458, %v3865
      %v4042 = vadd.f32 %v3459, %v3870
      %v4043 = vadd.f32 %v3460, %v3873
      %v4044 = vadd.f32 %v3461, %v3878
      %v4045 = vadd.f32 %v3462, %v3881
      %v4046 = vadd.f32 %v3463, %v3886
      %v4047 = vadd.f32 %v3464, %v3889
      %v4048 = vadd.f32 %v3465, %v3894
      %v4049 = vadd.f32 %v3466, %v3897
      %v4050 = vadd.f32 %v3467, %v3902
      %v4051 = vadd.f32 %v3468, %v3905
      %v4052 = vadd.f32 %v3469, %v3910
      %v4053 = vadd.f32 %v3470, %v3913
      %v4054 = vadd.f32 %v3471, %v3918
      %v4055 = vadd.f32 %v3472, %v3921
      %v4056 = vadd.f32 %v3473, %v3926
      %v4057 = vadd.f32 %v3474, %v3929
      %v4058 = vadd.f32 %v3475, %v3934
      %v4059 = vadd.f32 %v3476, %v3937
      %v4060 = vadd.f32 %v3477, %v3942
      %v4061 = vadd.f32 %v3478, %v3945
      %v4062 = vadd.f32 %v3479, %v3950
      %v4063 = vadd.f32 %v3480, %v3953
      %v4064 = vadd.f32 %v3481, %v3958
      %v4065 = vadd.f32 %v3482, %v3961
      %v4066 = vadd.f32 %v3483, %v3966
      %v4067 = vadd.f32 %v3484, %v3969
      %v4068 = vadd.f32 %v3485, %v3974
      %v4069 = vadd.f32 %v3486, %v3977
      %v4070 = vadd.f32 %v3487, %v3982
      %v4071 = vadd.f32 %v3488, %v3985
      %v4072 = vadd.f32 %v3489, %v3990
      %v4073 = vadd.f32 %v3490, %v3993
      %v4074 = vadd.f32 %v3491, %v3998
      %v4075 = vadd.f32 %v3492, %v4001
      %v4076 = vadd.f32 %v3493, %v4006
      %v4077 = vadd.f32 %v3494, %v4009
      %v4078 = vadd.f32 %v3495, %v4014
      %v4079 = vadd.f32 %v3496, %v4017
      %v4080 = vadd.f32 %v3497, %v4022
      %v4081 = vadd.f32 %v3498, %v4025
      %v4082 = vld [vmem:[%s678] sm:$0xf]
      %v4083 = vld [vmem:[%s678 + $0x4] sm:$0xf]
      %v4084 = vld [vmem:[%s678 + $0x8] sm:$0xf]
      %v4085 = vld [vmem:[%s678 + $0xc] sm:$0xf]
      %v4086 = vld [vmem:[%s678 + $0x10] sm:$0xf]
      %v4087 = vld [vmem:[%s678 + $0x14] sm:$0xf]
      %v4088 = vld [vmem:[%s678 + $0x18] sm:$0xf]
      %v4089 = vld [vmem:[%s678 + $0x1c] sm:$0xf]
      %v4090 = vld [vmem:[%s678 + $0x20] sm:$0xf]
      %v4091 = vld [vmem:[%s678 + $0x24] sm:$0xf]
      %v4092 = vld [vmem:[%s678 + $0x28] sm:$0xf]
      %v4093 = vld [vmem:[%s678 + $0x2c] sm:$0xf]
      %v4094 = vld [vmem:[%s678 + $0x30] sm:$0xf]
      %v4095 = vld [vmem:[%s678 + $0x34] sm:$0xf]
      %v4096 = vld [vmem:[%s678 + $0x38] sm:$0xf]
      %v4097 = vld [vmem:[%s678 + $0x3c] sm:$0xf]
      %v4098 = vld [vmem:[%s678 + $0x40] sm:$0xf]
      %v4099 = vld [vmem:[%s678 + $0x44] sm:$0xf]
      %v4100 = vld [vmem:[%s678 + $0x48] sm:$0xf]
      %v4101 = vld [vmem:[%s678 + $0x4c] sm:$0xf]
      %v4102 = vld [vmem:[%s678 + $0x50] sm:$0xf]
      %v4103 = vld [vmem:[%s678 + $0x54] sm:$0xf]
      %v4104 = vld [vmem:[%s678 + $0x58] sm:$0xf]
      %v4105 = vld [vmem:[%s678 + $0x5c] sm:$0xf]
      %v4106 = vld [vmem:[%s678 + $0x60] sm:$0xf]
      %v4107 = vld [vmem:[%s678 + $0x64] sm:$0xf]
      %v4108 = vld [vmem:[%s678 + $0x68] sm:$0xf]
      %v4109 = vld [vmem:[%s678 + $0x6c] sm:$0xf]
      %v4110 = vld [vmem:[%s678 + $0x70] sm:$0xf]
      %v4111 = vld [vmem:[%s678 + $0x74] sm:$0xf]
      %v4112 = vld [vmem:[%s678 + $0x78] sm:$0xf]
      %v4113 = vld [vmem:[%s678 + $0x7c] sm:$0xf]
      %v4114 = vld [vmem:[%s678 + $0x80] sm:$0xf]
      %v4115 = vld [vmem:[%s678 + $0x84] sm:$0xf]
      %v4116 = vld [vmem:[%s678 + $0x88] sm:$0xf]
      %v4117 = vld [vmem:[%s678 + $0x8c] sm:$0xf]
      %v4118 = vld [vmem:[%s678 + $0x90] sm:$0xf]
      %v4119 = vld [vmem:[%s678 + $0x94] sm:$0xf]
      %v4120 = vld [vmem:[%s678 + $0x98] sm:$0xf]
      %v4121 = vld [vmem:[%s678 + $0x9c] sm:$0xf]
      %v4122 = vld [vmem:[%s678 + $0xa0] sm:$0xf]
      %v4123 = vld [vmem:[%s678 + $0xa4] sm:$0xf]
      %v4124 = vld [vmem:[%s678 + $0xa8] sm:$0xf]
      %v4125 = vld [vmem:[%s678 + $0xac] sm:$0xf]
      %v4126 = vld [vmem:[%s678 + $0xb0] sm:$0xf]
      %v4127 = vld [vmem:[%s678 + $0xb4] sm:$0xf]
      %v4128 = vld [vmem:[%s678 + $0xb8] sm:$0xf]
      %v4129 = vld [vmem:[%s678 + $0xbc] sm:$0xf]
      %v4130 = vld [vmem:[%s678 + $0xc0] sm:$0xf]
      %v4131 = vld [vmem:[%s678 + $0xc4] sm:$0xf]
      %v4132 = vld [vmem:[%s678 + $0xc8] sm:$0xf]
      %v4133 = vld [vmem:[%s678 + $0xcc] sm:$0xf]
      %v4134 = vld [vmem:[%s678 + $0xd0] sm:$0xf]
      %v4135 = vld [vmem:[%s678 + $0xd4] sm:$0xf]
      %v4136 = vld [vmem:[%s7 + $0x180] sm:$0xf]
      %v4137 = vld [vmem:[%s7 + $0x184] sm:$0xf]
      %v4138 = vld [vmem:[%s7 + $0x188] sm:$0xf]
      %v4139 = vld [vmem:[%s7 + $0x18c] sm:$0xf]
      %v4140 = vld [vmem:[%s7 + $0x190] sm:$0xf]
      %v4141 = vld [vmem:[%s7 + $0x194] sm:$0xf]
      %v4142 = vld [vmem:[%s7 + $0x198] sm:$0xf]
      %v4143 = vld [vmem:[%s7 + $0x19c] sm:$0xf]
      %v4144 = vld [vmem:[%s7 + $0x1a0] sm:$0xf]
      %v4145 = vld [vmem:[%s7 + $0x1a4] sm:$0xf]
      %v4146 = vld [vmem:[%s7 + $0x1a8] sm:$0xf]
      %v4147 = vld [vmem:[%s7 + $0x1ac] sm:$0xf]
      %v4148 = vld [vmem:[%s7 + $0x1b0] sm:$0xf]
      %v4149 = vld [vmem:[%s7 + $0x1b4] sm:$0xf]
      %v4150 = vld [vmem:[%s7 + $0x1b8] sm:$0xf]
      %v4151 = vld [vmem:[%s7 + $0x1bc] sm:$0xf]
      %v4206 = vunpack.c.l.b16 %v4082
      %v4207 = vunpack.c.l.b16 %v4083
      %v4208 = vunpack.c.l.b16 %v4084
      %v4209 = vunpack.c.l.b16 %v4085
      %v4210 = vunpack.c.l.b16 %v4086
      %v4211 = vunpack.c.l.b16 %v4087
      %v4212 = vunpack.c.l.b16 %v4088
      %v4213 = vunpack.c.l.b16 %v4089
      %v4214 = vunpack.c.l.b16 %v4090
      %v4215 = vunpack.c.l.b16 %v4091
      %v4216 = vunpack.c.l.b16 %v4092
      %v4217 = vunpack.c.l.b16 %v4093
      %v4218 = vunpack.c.l.b16 %v4094
      %v4219 = vunpack.c.l.b16 %v4095
      %v4220 = vunpack.c.l.b16 %v4096
      %v4221 = vunpack.c.l.b16 %v4097
      %v4222 = vunpack.c.l.b16 %v4098
      %v4223 = vunpack.c.l.b16 %v4099
      %v4224 = vunpack.c.l.b16 %v4100
      %v4225 = vunpack.c.l.b16 %v4101
      %v4226 = vunpack.c.l.b16 %v4102
      %v4227 = vunpack.c.l.b16 %v4103
      %v4228 = vunpack.c.l.b16 %v4104
      %v4229 = vunpack.c.l.b16 %v4105
      %v4230 = vunpack.c.l.b16 %v4106
      %v4231 = vunpack.c.l.b16 %v4107
      %v4232 = vunpack.c.l.b16 %v4108
      %v4233 = vunpack.c.l.b16 %v4109
      %v4234 = vunpack.c.l.b16 %v4110
      %v4235 = vunpack.c.l.b16 %v4111
      %v4236 = vunpack.c.l.b16 %v4112
      %v4237 = vunpack.c.l.b16 %v4113
      %v4238 = vunpack.c.l.b16 %v4114
      %v4239 = vunpack.c.l.b16 %v4115
      %v4240 = vunpack.c.l.b16 %v4116
      %v4241 = vunpack.c.l.b16 %v4117
      %v4242 = vunpack.c.l.b16 %v4118
      %v4243 = vunpack.c.l.b16 %v4119
      %v4244 = vunpack.c.l.b16 %v4120
      %v4245 = vunpack.c.l.b16 %v4121
      %v4246 = vunpack.c.l.b16 %v4122
      %v4247 = vunpack.c.l.b16 %v4123
      %v4248 = vunpack.c.l.b16 %v4124
      %v4249 = vunpack.c.l.b16 %v4125
      %v4250 = vunpack.c.l.b16 %v4126
      %v4251 = vunpack.c.l.b16 %v4127
      %v4252 = vunpack.c.l.b16 %v4128
      %v4253 = vunpack.c.l.b16 %v4129
      %v4254 = vunpack.c.l.b16 %v4130
      %v4255 = vunpack.c.l.b16 %v4131
      %v4256 = vunpack.c.l.b16 %v4132
      %v4257 = vunpack.c.l.b16 %v4133
      %v4258 = vunpack.c.l.b16 %v4134
      %v4259 = vunpack.c.l.b16 %v4135
      %v4260 = vpack.c.b16 %v4207, %v4206
      %v4261 = vpack.c.b16 %v4209, %v4208
      %v4262 = vpack.c.b16 %v4211, %v4210
      %v4263 = vpack.c.b16 %v4213, %v4212
      %v4264 = vpack.c.b16 %v4215, %v4214
      %v4265 = vpack.c.b16 %v4217, %v4216
      %v4266 = vpack.c.b16 %v4219, %v4218
      %v4267 = vpack.c.b16 %v4221, %v4220
      %v4268 = vpack.c.b16 %v4223, %v4222
      %v4269 = vpack.c.b16 %v4225, %v4224
      %v4270 = vpack.c.b16 %v4227, %v4226
      %v4271 = vpack.c.b16 %v4229, %v4228
      %v4272 = vpack.c.b16 %v4231, %v4230
      %v4273 = vpack.c.b16 %v4233, %v4232
      %v4274 = vpack.c.b16 %v4235, %v4234
      %v4275 = vpack.c.b16 %v4237, %v4236
      %v4276 = vpack.c.b16 %v4239, %v4238
      %v4277 = vpack.c.b16 %v4241, %v4240
      %v4278 = vpack.c.b16 %v4243, %v4242
      %v4279 = vpack.c.b16 %v4245, %v4244
      %v4280 = vpack.c.b16 %v4247, %v4246
      %v4281 = vpack.c.b16 %v4249, %v4248
      %v4282 = vpack.c.b16 %v4251, %v4250
      %v4283 = vpack.c.b16 %v4253, %v4252
      %v4284 = vpack.c.b16 %v4255, %v4254
      %v4285 = vpack.c.b16 %v4257, %v4256
      %v4286 = vpack.c.b16 %v4259, %v4258
      %v4330 = vunpack.c.l.b16 %v4136
      %v4331 = vunpack.c.l.b16 %v4137
      %v4332 = vunpack.c.l.b16 %v4138
      %v4333 = vunpack.c.l.b16 %v4139
      %v4334 = vunpack.c.l.b16 %v4140
      %v4335 = vunpack.c.l.b16 %v4141
      %v4336 = vunpack.c.l.b16 %v4142
      %v4337 = vunpack.c.l.b16 %v4143
      %v4338 = vunpack.c.l.b16 %v4144
      %v4339 = vunpack.c.l.b16 %v4145
      %v4340 = vunpack.c.l.b16 %v4146
      %v4341 = vunpack.c.l.b16 %v4147
      %v4342 = vunpack.c.l.b16 %v4148
      %v4343 = vunpack.c.l.b16 %v4149
      %v4344 = vunpack.c.l.b16 %v4150
      %v4345 = vunpack.c.l.b16 %v4151
      %v4346 = vpack.c.b16 %v4331, %v4330
      %v4347 = vpack.c.b16 %v4333, %v4332
      %v4348 = vpack.c.b16 %v4335, %v4334
      %v4349 = vpack.c.b16 %v4337, %v4336
      %v4350 = vpack.c.b16 %v4339, %v4338
      %v4351 = vpack.c.b16 %v4341, %v4340
      %v4352 = vpack.c.b16 %v4343, %v4342
      %v4353 = vpack.c.b16 %v4345, %v4344
      %4362 = vmatprep.subr.bf16.mxu0 0
      %4363 = vmatpush1.bf16.msra.mxu0 %v4353
      %4364 = vmatprep.subr.bf16.mxu0 0
      %4365 = vmatpush1.bf16.msra.mxu0 %v4352
      %4366 = vmatprep.subr.bf16.mxu0 0
      %4367 = vmatpush1.bf16.msra.mxu0 %v4351
      %4368 = vmatprep.subr.bf16.mxu0 0
      %4369 = vmatpush1.bf16.msra.mxu0 %v4350
      %4370 = vmatprep.subr.bf16.mxu0 0
      %4371 = vmatpush1.bf16.msra.mxu0 %v4349
      %4372 = vmatprep.subr.bf16.mxu0 0
      %4373 = vmatpush1.bf16.msra.mxu0 %v4348
      %4374 = vmatprep.subr.bf16.mxu0 0
      %4375 = vmatpush1.bf16.msra.mxu0 %v4347
      %4376 = vmatprep.subr.bf16.mxu0 0
      %4377 = vmatpush1.bf16.msra.mxu0 %v4346
      %4378 = vmatprep.subr.bf16.mxu0 0
      %4379 = vmatpush2.bf16.msra.mxu0 0
      %4380 = vmatprep.subr.bf16.mxu0 0
      %4381 = vmatpush2.bf16.msra.mxu0 0
      %4382 = vmatprep.subr.bf16.mxu0 0
      %4383 = vmatpush2.bf16.msra.mxu0 0
      %4384 = vmatprep.subr.bf16.mxu0 0
      %4385 = vmatpush2.bf16.msra.mxu0 0
      %4386 = vmatprep.subr.bf16.mxu0 0
      %4387 = vmatpush2.bf16.msra.mxu0 0
      %4388 = vmatprep.subr.bf16.mxu0 0
      %4389 = vmatpush2.bf16.msra.mxu0 0
      %4390 = vmatprep.subr.bf16.mxu0 0
      %4391 = vmatpush2.bf16.msra.mxu0 0
      %4392 = vmatprep.subr.bf16.mxu0 0
      %4393 = vmatpush2.bf16.msra.mxu0 0
      %4394 = vmatprep.mubr.bf16.mxu0 0
      %4395 = vmatmul.mubr.bf16.gmra.mxu0 %v4260
      %v4396 = vpop.f32.mrf.mxu0
      %v4397 = vadd.f32 0.0, %v4396
      %v4398 = vpop.f32.mrf.mxu0
      %v4399 = vpop.f32.mrf.mxu0
      %v4400 = vadd.f32 0.0, %v4399
      %v4401 = vpop.f32.mrf.mxu0
      %4402 = vmatprep.mubr.bf16.mxu0 0
      %4403 = vmatmul.mubr.bf16.gmra.mxu0 %v4261
      %v4404 = vpop.f32.mrf.mxu0
      %v4405 = vadd.f32 0.0, %v4404
      %v4406 = vpop.f32.mrf.mxu0
      %v4407 = vpop.f32.mrf.mxu0
      %v4408 = vadd.f32 0.0, %v4407
      %v4409 = vpop.f32.mrf.mxu0
      %4410 = vmatprep.mubr.bf16.mxu0 0
      %4411 = vmatmul.mubr.bf16.gmra.mxu0 %v4262
      %v4412 = vpop.f32.mrf.mxu0
      %v4413 = vadd.f32 0.0, %v4412
      %v4414 = vpop.f32.mrf.mxu0
      %v4415 = vpop.f32.mrf.mxu0
      %v4416 = vadd.f32 0.0, %v4415
      %v4417 = vpop.f32.mrf.mxu0
      %4418 = vmatprep.mubr.bf16.mxu0 0
      %4419 = vmatmul.mubr.bf16.gmra.mxu0 %v4263
      %v4420 = vpop.f32.mrf.mxu0
      %v4421 = vadd.f32 0.0, %v4420
      %v4422 = vpop.f32.mrf.mxu0
      %v4423 = vpop.f32.mrf.mxu0
      %v4424 = vadd.f32 0.0, %v4423
      %v4425 = vpop.f32.mrf.mxu0
      %4426 = vmatprep.mubr.bf16.mxu0 0
      %4427 = vmatmul.mubr.bf16.gmra.mxu0 %v4264
      %v4428 = vpop.f32.mrf.mxu0
      %v4429 = vadd.f32 0.0, %v4428
      %v4430 = vpop.f32.mrf.mxu0
      %v4431 = vpop.f32.mrf.mxu0
      %v4432 = vadd.f32 0.0, %v4431
      %v4433 = vpop.f32.mrf.mxu0
      %4434 = vmatprep.mubr.bf16.mxu0 0
      %4435 = vmatmul.mubr.bf16.gmra.mxu0 %v4265
      %v4436 = vpop.f32.mrf.mxu0
      %v4437 = vadd.f32 0.0, %v4436
      %v4438 = vpop.f32.mrf.mxu0
      %v4439 = vpop.f32.mrf.mxu0
      %v4440 = vadd.f32 0.0, %v4439
      %v4441 = vpop.f32.mrf.mxu0
      %4442 = vmatprep.mubr.bf16.mxu0 0
      %4443 = vmatmul.mubr.bf16.gmra.mxu0 %v4266
      %v4444 = vpop.f32.mrf.mxu0
      %v4445 = vadd.f32 0.0, %v4444
      %v4446 = vpop.f32.mrf.mxu0
      %v4447 = vpop.f32.mrf.mxu0
      %v4448 = vadd.f32 0.0, %v4447
      %v4449 = vpop.f32.mrf.mxu0
      %4450 = vmatprep.mubr.bf16.mxu0 0
      %4451 = vmatmul.mubr.bf16.gmra.mxu0 %v4267
      %v4452 = vpop.f32.mrf.mxu0
      %v4453 = vadd.f32 0.0, %v4452
      %v4454 = vpop.f32.mrf.mxu0
      %v4455 = vpop.f32.mrf.mxu0
      %v4456 = vadd.f32 0.0, %v4455
      %v4457 = vpop.f32.mrf.mxu0
      %4458 = vmatprep.mubr.bf16.mxu0 0
      %4459 = vmatmul.mubr.bf16.gmra.mxu0 %v4268
      %v4460 = vpop.f32.mrf.mxu0
      %v4461 = vadd.f32 0.0, %v4460
      %v4462 = vpop.f32.mrf.mxu0
      %v4463 = vpop.f32.mrf.mxu0
      %v4464 = vadd.f32 0.0, %v4463
      %v4465 = vpop.f32.mrf.mxu0
      %4466 = vmatprep.mubr.bf16.mxu0 0
      %4467 = vmatmul.mubr.bf16.gmra.mxu0 %v4269
      %v4468 = vpop.f32.mrf.mxu0
      %v4469 = vadd.f32 0.0, %v4468
      %v4470 = vpop.f32.mrf.mxu0
      %v4471 = vpop.f32.mrf.mxu0
      %v4472 = vadd.f32 0.0, %v4471
      %v4473 = vpop.f32.mrf.mxu0
      %4474 = vmatprep.mubr.bf16.mxu0 0
      %4475 = vmatmul.mubr.bf16.gmra.mxu0 %v4270
      %v4476 = vpop.f32.mrf.mxu0
      %v4477 = vadd.f32 0.0, %v4476
      %v4478 = vpop.f32.mrf.mxu0
      %v4479 = vpop.f32.mrf.mxu0
      %v4480 = vadd.f32 0.0, %v4479
      %v4481 = vpop.f32.mrf.mxu0
      %4482 = vmatprep.mubr.bf16.mxu0 0
      %4483 = vmatmul.mubr.bf16.gmra.mxu0 %v4271
      %v4484 = vpop.f32.mrf.mxu0
      %v4485 = vadd.f32 0.0, %v4484
      %v4486 = vpop.f32.mrf.mxu0
      %v4487 = vpop.f32.mrf.mxu0
      %v4488 = vadd.f32 0.0, %v4487
      %v4489 = vpop.f32.mrf.mxu0
      %4490 = vmatprep.mubr.bf16.mxu0 0
      %4491 = vmatmul.mubr.bf16.gmra.mxu0 %v4272
      %v4492 = vpop.f32.mrf.mxu0
      %v4493 = vadd.f32 0.0, %v4492
      %v4494 = vpop.f32.mrf.mxu0
      %v4495 = vpop.f32.mrf.mxu0
      %v4496 = vadd.f32 0.0, %v4495
      %v4497 = vpop.f32.mrf.mxu0
      %4498 = vmatprep.mubr.bf16.mxu0 0
      %4499 = vmatmul.mubr.bf16.gmra.mxu0 %v4273
      %v4500 = vpop.f32.mrf.mxu0
      %v4501 = vadd.f32 0.0, %v4500
      %v4502 = vpop.f32.mrf.mxu0
      %v4503 = vpop.f32.mrf.mxu0
      %v4504 = vadd.f32 0.0, %v4503
      %v4505 = vpop.f32.mrf.mxu0
      %4506 = vmatprep.mubr.bf16.mxu0 0
      %4507 = vmatmul.mubr.bf16.gmra.mxu0 %v4274
      %v4508 = vpop.f32.mrf.mxu0
      %v4509 = vadd.f32 0.0, %v4508
      %v4510 = vpop.f32.mrf.mxu0
      %v4511 = vpop.f32.mrf.mxu0
      %v4512 = vadd.f32 0.0, %v4511
      %v4513 = vpop.f32.mrf.mxu0
      %4514 = vmatprep.mubr.bf16.mxu0 0
      %4515 = vmatmul.mubr.bf16.gmra.mxu0 %v4275
      %v4516 = vpop.f32.mrf.mxu0
      %v4517 = vadd.f32 0.0, %v4516
      %v4518 = vpop.f32.mrf.mxu0
      %v4519 = vpop.f32.mrf.mxu0
      %v4520 = vadd.f32 0.0, %v4519
      %v4521 = vpop.f32.mrf.mxu0
      %4522 = vmatprep.mubr.bf16.mxu0 0
      %4523 = vmatmul.mubr.bf16.gmra.mxu0 %v4276
      %v4524 = vpop.f32.mrf.mxu0
      %v4525 = vadd.f32 0.0, %v4524
      %v4526 = vpop.f32.mrf.mxu0
      %v4527 = vpop.f32.mrf.mxu0
      %v4528 = vadd.f32 0.0, %v4527
      %v4529 = vpop.f32.mrf.mxu0
      %4530 = vmatprep.mubr.bf16.mxu0 0
      %4531 = vmatmul.mubr.bf16.gmra.mxu0 %v4277
      %v4532 = vpop.f32.mrf.mxu0
      %v4533 = vadd.f32 0.0, %v4532
      %v4534 = vpop.f32.mrf.mxu0
      %v4535 = vpop.f32.mrf.mxu0
      %v4536 = vadd.f32 0.0, %v4535
      %v4537 = vpop.f32.mrf.mxu0
      %4538 = vmatprep.mubr.bf16.mxu0 0
      %4539 = vmatmul.mubr.bf16.gmra.mxu0 %v4278
      %v4540 = vpop.f32.mrf.mxu0
      %v4541 = vadd.f32 0.0, %v4540
      %v4542 = vpop.f32.mrf.mxu0
      %v4543 = vpop.f32.mrf.mxu0
      %v4544 = vadd.f32 0.0, %v4543
      %v4545 = vpop.f32.mrf.mxu0
      %4546 = vmatprep.mubr.bf16.mxu0 0
      %4547 = vmatmul.mubr.bf16.gmra.mxu0 %v4279
      %v4548 = vpop.f32.mrf.mxu0
      %v4549 = vadd.f32 0.0, %v4548
      %v4550 = vpop.f32.mrf.mxu0
      %v4551 = vpop.f32.mrf.mxu0
      %v4552 = vadd.f32 0.0, %v4551
      %v4553 = vpop.f32.mrf.mxu0
      %4554 = vmatprep.mubr.bf16.mxu0 0
      %4555 = vmatmul.mubr.bf16.gmra.mxu0 %v4280
      %v4556 = vpop.f32.mrf.mxu0
      %v4557 = vadd.f32 0.0, %v4556
      %v4558 = vpop.f32.mrf.mxu0
      %v4559 = vpop.f32.mrf.mxu0
      %v4560 = vadd.f32 0.0, %v4559
      %v4561 = vpop.f32.mrf.mxu0
      %4562 = vmatprep.mubr.bf16.mxu0 0
      %4563 = vmatmul.mubr.bf16.gmra.mxu0 %v4281
      %v4564 = vpop.f32.mrf.mxu0
      %v4565 = vadd.f32 0.0, %v4564
      %v4566 = vpop.f32.mrf.mxu0
      %v4567 = vpop.f32.mrf.mxu0
      %v4568 = vadd.f32 0.0, %v4567
      %v4569 = vpop.f32.mrf.mxu0
      %4570 = vmatprep.mubr.bf16.mxu0 0
      %4571 = vmatmul.mubr.bf16.gmra.mxu0 %v4282
      %v4572 = vpop.f32.mrf.mxu0
      %v4573 = vadd.f32 0.0, %v4572
      %v4574 = vpop.f32.mrf.mxu0
      %v4575 = vpop.f32.mrf.mxu0
      %v4576 = vadd.f32 0.0, %v4575
      %v4577 = vpop.f32.mrf.mxu0
      %4578 = vmatprep.mubr.bf16.mxu0 0
      %4579 = vmatmul.mubr.bf16.gmra.mxu0 %v4283
      %v4580 = vpop.f32.mrf.mxu0
      %v4581 = vadd.f32 0.0, %v4580
      %v4582 = vpop.f32.mrf.mxu0
      %v4583 = vpop.f32.mrf.mxu0
      %v4584 = vadd.f32 0.0, %v4583
      %v4585 = vpop.f32.mrf.mxu0
      %4586 = vmatprep.mubr.bf16.mxu0 0
      %4587 = vmatmul.mubr.bf16.gmra.mxu0 %v4284
      %v4588 = vpop.f32.mrf.mxu0
      %v4589 = vadd.f32 0.0, %v4588
      %v4590 = vpop.f32.mrf.mxu0
      %v4591 = vpop.f32.mrf.mxu0
      %v4592 = vadd.f32 0.0, %v4591
      %v4593 = vpop.f32.mrf.mxu0
      %4594 = vmatprep.mubr.bf16.mxu0 0
      %4595 = vmatmul.mubr.bf16.gmra.mxu0 %v4285
      %v4596 = vpop.f32.mrf.mxu0
      %v4597 = vadd.f32 0.0, %v4596
      %v4598 = vpop.f32.mrf.mxu0
      %v4599 = vpop.f32.mrf.mxu0
      %v4600 = vadd.f32 0.0, %v4599
      %v4601 = vpop.f32.mrf.mxu0
      %4602 = vmatprep.mubr.bf16.mxu0 0
      %4603 = vmatmul.mubr.bf16.gmra.mxu0 %v4286
      %v4604 = vpop.f32.mrf.mxu0
      %v4605 = vadd.f32 0.0, %v4604
      %v4606 = vpop.f32.mrf.mxu0
      %v4607 = vpop.f32.mrf.mxu0
      %v4608 = vadd.f32 0.0, %v4607
      %v4609 = vpop.f32.mrf.mxu0
      %4610 = vdwg.mxu0
      %v4611 = vadd.f32 %v4028, %v4397
      %v4612 = vadd.f32 %v4029, %v4400
      %v4613 = vadd.f32 %v4030, %v4405
      %v4614 = vadd.f32 %v4031, %v4408
      %v4615 = vadd.f32 %v4032, %v4413
      %v4616 = vadd.f32 %v4033, %v4416
      %v4617 = vadd.f32 %v4034, %v4421
      %v4618 = vadd.f32 %v4035, %v4424
      %v4619 = vadd.f32 %v4036, %v4429
      %v4620 = vadd.f32 %v4037, %v4432
      %v4621 = vadd.f32 %v4038, %v4437
      %v4622 = vadd.f32 %v4039, %v4440
      %v4623 = vadd.f32 %v4040, %v4445
      %v4624 = vadd.f32 %v4041, %v4448
      %v4625 = vadd.f32 %v4042, %v4453
      %v4626 = vadd.f32 %v4043, %v4456
      %v4627 = vadd.f32 %v4044, %v4461
      %v4628 = vadd.f32 %v4045, %v4464
      %v4629 = vadd.f32 %v4046, %v4469
      %v4630 = vadd.f32 %v4047, %v4472
      %v4631 = vadd.f32 %v4048, %v4477
      %v4632 = vadd.f32 %v4049, %v4480
      %v4633 = vadd.f32 %v4050, %v4485
      %v4634 = vadd.f32 %v4051, %v4488
      %v4635 = vadd.f32 %v4052, %v4493
      %v4636 = vadd.f32 %v4053, %v4496
      %v4637 = vadd.f32 %v4054, %v4501
      %v4638 = vadd.f32 %v4055, %v4504
      %v4639 = vadd.f32 %v4056, %v4509
      %v4640 = vadd.f32 %v4057, %v4512
      %v4641 = vadd.f32 %v4058, %v4517
      %v4642 = vadd.f32 %v4059, %v4520
      %v4643 = vadd.f32 %v4060, %v4525
      %v4644 = vadd.f32 %v4061, %v4528
      %v4645 = vadd.f32 %v4062, %v4533
      %v4646 = vadd.f32 %v4063, %v4536
      %v4647 = vadd.f32 %v4064, %v4541
      %v4648 = vadd.f32 %v4065, %v4544
      %v4649 = vadd.f32 %v4066, %v4549
      %v4650 = vadd.f32 %v4067, %v4552
      %v4651 = vadd.f32 %v4068, %v4557
      %v4652 = vadd.f32 %v4069, %v4560
      %v4653 = vadd.f32 %v4070, %v4565
      %v4654 = vadd.f32 %v4071, %v4568
      %v4655 = vadd.f32 %v4072, %v4573
      %v4656 = vadd.f32 %v4073, %v4576
      %v4657 = vadd.f32 %v4074, %v4581
      %v4658 = vadd.f32 %v4075, %v4584
      %v4659 = vadd.f32 %v4076, %v4589
      %v4660 = vadd.f32 %v4077, %v4592
      %v4661 = vadd.f32 %v4078, %v4597
      %v4662 = vadd.f32 %v4079, %v4600
      %v4663 = vadd.f32 %v4080, %v4605
      %v4664 = vadd.f32 %v4081, %v4608
      %v4665 = vld [vmem:[%s8] sm:$0x1]
      %v4667 = vlaneseq
      %v4668 = vshrl.u32 %v4667, 7
      %v4669 = vsub.s32 0, %v4668
      %v4670 = vrot.slane %v4665, %v4669
      %v4672 = vadd.f32 %v4611, %v4670
      %v4673 = vadd.f32 %v4612, %v4670
      %v4674 = vadd.f32 %v4613, %v4670
      %v4675 = vadd.f32 %v4614, %v4670
      %v4676 = vadd.f32 %v4615, %v4670
      %v4677 = vadd.f32 %v4616, %v4670
      %v4678 = vadd.f32 %v4617, %v4670
      %v4679 = vadd.f32 %v4618, %v4670
      %v4680 = vadd.f32 %v4619, %v4670
      %v4681 = vadd.f32 %v4620, %v4670
      %v4682 = vadd.f32 %v4621, %v4670
      %v4683 = vadd.f32 %v4622, %v4670
      %v4684 = vadd.f32 %v4623, %v4670
      %v4685 = vadd.f32 %v4624, %v4670
      %v4686 = vadd.f32 %v4625, %v4670
      %v4687 = vadd.f32 %v4626, %v4670
      %v4688 = vadd.f32 %v4627, %v4670
      %v4689 = vadd.f32 %v4628, %v4670
      %v4690 = vadd.f32 %v4629, %v4670
      %v4691 = vadd.f32 %v4630, %v4670
      %v4692 = vadd.f32 %v4631, %v4670
      %v4693 = vadd.f32 %v4632, %v4670
      %v4694 = vadd.f32 %v4633, %v4670
      %v4695 = vadd.f32 %v4634, %v4670
      %v4696 = vadd.f32 %v4635, %v4670
      %v4697 = vadd.f32 %v4636, %v4670
      %v4698 = vadd.f32 %v4637, %v4670
      %v4699 = vadd.f32 %v4638, %v4670
      %v4700 = vadd.f32 %v4639, %v4670
      %v4701 = vadd.f32 %v4640, %v4670
      %v4702 = vadd.f32 %v4641, %v4670
      %v4703 = vadd.f32 %v4642, %v4670
      %v4704 = vadd.f32 %v4643, %v4670
      %v4705 = vadd.f32 %v4644, %v4670
      %v4706 = vadd.f32 %v4645, %v4670
      %v4707 = vadd.f32 %v4646, %v4670
      %v4708 = vadd.f32 %v4647, %v4670
      %v4709 = vadd.f32 %v4648, %v4670
      %v4710 = vadd.f32 %v4649, %v4670
      %v4711 = vadd.f32 %v4650, %v4670
      %v4712 = vadd.f32 %v4651, %v4670
      %v4713 = vadd.f32 %v4652, %v4670
      %v4714 = vadd.f32 %v4653, %v4670
      %v4715 = vadd.f32 %v4654, %v4670
      %v4716 = vadd.f32 %v4655, %v4670
      %v4717 = vadd.f32 %v4656, %v4670
      %v4718 = vadd.f32 %v4657, %v4670
      %v4719 = vadd.f32 %v4658, %v4670
      %v4720 = vadd.f32 %v4659, %v4670
      %v4721 = vadd.f32 %v4660, %v4670
      %v4722 = vadd.f32 %v4661, %v4670
      %v4723 = vadd.f32 %v4662, %v4670
      %v4724 = vadd.f32 %v4663, %v4670
      %v4725 = vadd.f32 %v4664, %v4670
      %v4726 = vmax.f32 %v4672, 0.0
      %v4727 = vmax.f32 %v4673, 0.0
      %v4728 = vmax.f32 %v4674, 0.0
      %v4729 = vmax.f32 %v4675, 0.0
      %v4730 = vmax.f32 %v4676, 0.0
      %v4731 = vmax.f32 %v4677, 0.0
      %v4732 = vmax.f32 %v4678, 0.0
      %v4733 = vmax.f32 %v4679, 0.0
      %v4734 = vmax.f32 %v4680, 0.0
      %v4735 = vmax.f32 %v4681, 0.0
      %v4736 = vmax.f32 %v4682, 0.0
      %v4737 = vmax.f32 %v4683, 0.0
      %v4738 = vmax.f32 %v4684, 0.0
      %v4739 = vmax.f32 %v4685, 0.0
      %v4740 = vmax.f32 %v4686, 0.0
      %v4741 = vmax.f32 %v4687, 0.0
      %v4742 = vmax.f32 %v4688, 0.0
      %v4743 = vmax.f32 %v4689, 0.0
      %v4744 = vmax.f32 %v4690, 0.0
      %v4745 = vmax.f32 %v4691, 0.0
      %v4746 = vmax.f32 %v4692, 0.0
      %v4747 = vmax.f32 %v4693, 0.0
      %v4748 = vmax.f32 %v4694, 0.0
      %v4749 = vmax.f32 %v4695, 0.0
      %v4750 = vmax.f32 %v4696, 0.0
      %v4751 = vmax.f32 %v4697, 0.0
      %v4752 = vmax.f32 %v4698, 0.0
      %v4753 = vmax.f32 %v4699, 0.0
      %v4754 = vmax.f32 %v4700, 0.0
      %v4755 = vmax.f32 %v4701, 0.0
      %v4756 = vmax.f32 %v4702, 0.0
      %v4757 = vmax.f32 %v4703, 0.0
      %v4758 = vmax.f32 %v4704, 0.0
      %v4759 = vmax.f32 %v4705, 0.0
      %v4760 = vmax.f32 %v4706, 0.0
      %v4761 = vmax.f32 %v4707, 0.0
      %v4762 = vmax.f32 %v4708, 0.0
      %v4763 = vmax.f32 %v4709, 0.0
      %v4764 = vmax.f32 %v4710, 0.0
      %v4765 = vmax.f32 %v4711, 0.0
      %v4766 = vmax.f32 %v4712, 0.0
      %v4767 = vmax.f32 %v4713, 0.0
      %v4768 = vmax.f32 %v4714, 0.0
      %v4769 = vmax.f32 %v4715, 0.0
      %v4770 = vmax.f32 %v4716, 0.0
      %v4771 = vmax.f32 %v4717, 0.0
      %v4772 = vmax.f32 %v4718, 0.0
      %v4773 = vmax.f32 %v4719, 0.0
      %v4774 = vmax.f32 %v4720, 0.0
      %v4775 = vmax.f32 %v4721, 0.0
      %v4776 = vmax.f32 %v4722, 0.0
      %v4777 = vmax.f32 %v4723, 0.0
      %v4778 = vmax.f32 %v4724, 0.0
      %v4779 = vmax.f32 %v4725, 0.0
      %v4780 = vpack.c.bf16 %v4727, %v4726
      %v4781 = vpack.c.bf16 %v4729, %v4728
      %v4782 = vpack.c.bf16 %v4731, %v4730
      %v4783 = vpack.c.bf16 %v4733, %v4732
      %v4784 = vpack.c.bf16 %v4735, %v4734
      %v4785 = vpack.c.bf16 %v4737, %v4736
      %v4786 = vpack.c.bf16 %v4739, %v4738
      %v4787 = vpack.c.bf16 %v4741, %v4740
      %v4788 = vpack.c.bf16 %v4743, %v4742
      %v4789 = vpack.c.bf16 %v4745, %v4744
      %v4790 = vpack.c.bf16 %v4747, %v4746
      %v4791 = vpack.c.bf16 %v4749, %v4748
      %v4792 = vpack.c.bf16 %v4751, %v4750
      %v4793 = vpack.c.bf16 %v4753, %v4752
      %v4794 = vpack.c.bf16 %v4755, %v4754
      %v4795 = vpack.c.bf16 %v4757, %v4756
      %v4796 = vpack.c.bf16 %v4759, %v4758
      %v4797 = vpack.c.bf16 %v4761, %v4760
      %v4798 = vpack.c.bf16 %v4763, %v4762
      %v4799 = vpack.c.bf16 %v4765, %v4764
      %v4800 = vpack.c.bf16 %v4767, %v4766
      %v4801 = vpack.c.bf16 %v4769, %v4768
      %v4802 = vpack.c.bf16 %v4771, %v4770
      %v4803 = vpack.c.bf16 %v4773, %v4772
      %v4804 = vpack.c.bf16 %v4775, %v4774
      %v4805 = vpack.c.bf16 %v4777, %v4776
      %v4806 = vpack.c.bf16 %v4779, %v4778
      %v4807 = vld [vmem:[%s9] sm:$0xf]
      %v4808 = vld [vmem:[%s9 + $0x4] sm:$0xf]
      %v4809 = vld [vmem:[%s9 + $0x8] sm:$0xf]
      %v4810 = vld [vmem:[%s9 + $0xc] sm:$0xf]
      %v4811 = vld [vmem:[%s9 + $0x10] sm:$0xf]
      %v4812 = vld [vmem:[%s9 + $0x14] sm:$0xf]
      %v4813 = vld [vmem:[%s9 + $0x18] sm:$0xf]
      %v4814 = vld [vmem:[%s9 + $0x1c] sm:$0xf]
      %v4815 = vld [vmem:[%s9 + $0x20] sm:$0xf]
      %v4816 = vld [vmem:[%s9 + $0x24] sm:$0xf]
      %v4817 = vld [vmem:[%s9 + $0x28] sm:$0xf]
      %v4818 = vld [vmem:[%s9 + $0x2c] sm:$0xf]
      %v4819 = vld [vmem:[%s9 + $0x30] sm:$0xf]
      %v4820 = vld [vmem:[%s9 + $0x34] sm:$0xf]
      %v4821 = vld [vmem:[%s9 + $0x38] sm:$0xf]
      %v4822 = vld [vmem:[%s9 + $0x3c] sm:$0xf]
      %v4823 = vld [vmem:[%s10] sm:$0x1]
      %v4825 = vlaneseq
      %v4826 = vshrl.u32 %v4825, 7
      %v4827 = vsub.s32 0, %v4826
      %v4828 = vrot.slane %v4823, %v4827
      %v4846 = vunpack.c.l.b16 %v4807
      %v4847 = vunpack.c.l.b16 %v4808
      %v4848 = vunpack.c.l.b16 %v4809
      %v4849 = vunpack.c.l.b16 %v4810
      %v4850 = vunpack.c.l.b16 %v4811
      %v4851 = vunpack.c.l.b16 %v4812
      %v4852 = vunpack.c.l.b16 %v4813
      %v4853 = vunpack.c.l.b16 %v4814
      %v4854 = vunpack.c.l.b16 %v4815
      %v4855 = vunpack.c.l.b16 %v4816
      %v4856 = vunpack.c.l.b16 %v4817
      %v4857 = vunpack.c.l.b16 %v4818
      %v4858 = vunpack.c.l.b16 %v4819
      %v4859 = vunpack.c.l.b16 %v4820
      %v4860 = vunpack.c.l.b16 %v4821
      %v4861 = vunpack.c.l.b16 %v4822
      %v4862 = vpack.c.b16 %v4847, %v4846
      %v4863 = vpack.c.b16 %v4849, %v4848
      %v4864 = vpack.c.b16 %v4851, %v4850
      %v4865 = vpack.c.b16 %v4853, %v4852
      %v4866 = vpack.c.b16 %v4855, %v4854
      %v4867 = vpack.c.b16 %v4857, %v4856
      %v4868 = vpack.c.b16 %v4859, %v4858
      %v4869 = vpack.c.b16 %v4861, %v4860
      %4878 = vmatprep.subr.bf16.mxu0 0
      %4879 = vmatpush1.bf16.msra.mxu0 %v4869
      %4880 = vmatprep.subr.bf16.mxu0 0
      %4881 = vmatpush1.bf16.msra.mxu0 %v4868
      %4882 = vmatprep.subr.bf16.mxu0 0
      %4883 = vmatpush1.bf16.msra.mxu0 %v4867
      %4884 = vmatprep.subr.bf16.mxu0 0
      %4885 = vmatpush1.bf16.msra.mxu0 %v4866
      %4886 = vmatprep.subr.bf16.mxu0 0
      %4887 = vmatpush1.bf16.msra.mxu0 %v4865
      %4888 = vmatprep.subr.bf16.mxu0 0
      %4889 = vmatpush1.bf16.msra.mxu0 %v4864
      %4890 = vmatprep.subr.bf16.mxu0 0
      %4891 = vmatpush1.bf16.msra.mxu0 %v4863
      %4892 = vmatprep.subr.bf16.mxu0 0
      %4893 = vmatpush1.bf16.msra.mxu0 %v4862
      %4894 = vmatprep.subr.bf16.mxu0 0
      %4895 = vmatpush2.bf16.msra.mxu0 0
      %4896 = vmatprep.subr.bf16.mxu0 0
      %4897 = vmatpush2.bf16.msra.mxu0 0
      %4898 = vmatprep.subr.bf16.mxu0 0
      %4899 = vmatpush2.bf16.msra.mxu0 0
      %4900 = vmatprep.subr.bf16.mxu0 0
      %4901 = vmatpush2.bf16.msra.mxu0 0
      %4902 = vmatprep.subr.bf16.mxu0 0
      %4903 = vmatpush2.bf16.msra.mxu0 0
      %4904 = vmatprep.subr.bf16.mxu0 0
      %4905 = vmatpush2.bf16.msra.mxu0 0
      %4906 = vmatprep.subr.bf16.mxu0 0
      %4907 = vmatpush2.bf16.msra.mxu0 0
      %4908 = vmatprep.subr.bf16.mxu0 0
      %4909 = vmatpush2.bf16.msra.mxu0 0
      %4910 = vmatprep.mubr.bf16.mxu0 0
      %4911 = vmatmul.mubr.bf16.gmra.mxu0 %v4780
      %v4912 = vpop.f32.mrf.mxu0
      %v4913 = vadd.f32 %v4828, %v4912
      %v4914 = vpop.f32.mrf.mxu0
      %v4915 = vpop.f32.mrf.mxu0
      %v4916 = vadd.f32 %v4828, %v4915
      %v4917 = vpop.f32.mrf.mxu0
      %4918 = vmatprep.mubr.bf16.mxu0 0
      %4919 = vmatmul.mubr.bf16.gmra.mxu0 %v4781
      %v4920 = vpop.f32.mrf.mxu0
      %v4921 = vadd.f32 %v4828, %v4920
      %v4922 = vpop.f32.mrf.mxu0
      %v4923 = vpop.f32.mrf.mxu0
      %v4924 = vadd.f32 %v4828, %v4923
      %v4925 = vpop.f32.mrf.mxu0
      %4926 = vmatprep.mubr.bf16.mxu0 0
      %4927 = vmatmul.mubr.bf16.gmra.mxu0 %v4782
      %v4928 = vpop.f32.mrf.mxu0
      %v4929 = vadd.f32 %v4828, %v4928
      %v4930 = vpop.f32.mrf.mxu0
      %v4931 = vpop.f32.mrf.mxu0
      %v4932 = vadd.f32 %v4828, %v4931
      %v4933 = vpop.f32.mrf.mxu0
      %4934 = vmatprep.mubr.bf16.mxu0 0
      %4935 = vmatmul.mubr.bf16.gmra.mxu0 %v4783
      %v4936 = vpop.f32.mrf.mxu0
      %v4937 = vadd.f32 %v4828, %v4936
      %v4938 = vpop.f32.mrf.mxu0
      %v4939 = vpop.f32.mrf.mxu0
      %v4940 = vadd.f32 %v4828, %v4939
      %v4941 = vpop.f32.mrf.mxu0
      %4942 = vmatprep.mubr.bf16.mxu0 0
      %4943 = vmatmul.mubr.bf16.gmra.mxu0 %v4784
      %v4944 = vpop.f32.mrf.mxu0
      %v4945 = vadd.f32 %v4828, %v4944
      %v4946 = vpop.f32.mrf.mxu0
      %v4947 = vpop.f32.mrf.mxu0
      %v4948 = vadd.f32 %v4828, %v4947
      %v4949 = vpop.f32.mrf.mxu0
      %4950 = vmatprep.mubr.bf16.mxu0 0
      %4951 = vmatmul.mubr.bf16.gmra.mxu0 %v4785
      %v4952 = vpop.f32.mrf.mxu0
      %v4953 = vadd.f32 %v4828, %v4952
      %v4954 = vpop.f32.mrf.mxu0
      %v4955 = vpop.f32.mrf.mxu0
      %v4956 = vadd.f32 %v4828, %v4955
      %v4957 = vpop.f32.mrf.mxu0
      %4958 = vmatprep.mubr.bf16.mxu0 0
      %4959 = vmatmul.mubr.bf16.gmra.mxu0 %v4786
      %v4960 = vpop.f32.mrf.mxu0
      %v4961 = vadd.f32 %v4828, %v4960
      %v4962 = vpop.f32.mrf.mxu0
      %v4963 = vpop.f32.mrf.mxu0
      %v4964 = vadd.f32 %v4828, %v4963
      %v4965 = vpop.f32.mrf.mxu0
      %4966 = vmatprep.mubr.bf16.mxu0 0
      %4967 = vmatmul.mubr.bf16.gmra.mxu0 %v4787
      %v4968 = vpop.f32.mrf.mxu0
      %v4969 = vadd.f32 %v4828, %v4968
      %v4970 = vpop.f32.mrf.mxu0
      %v4971 = vpop.f32.mrf.mxu0
      %v4972 = vadd.f32 %v4828, %v4971
      %v4973 = vpop.f32.mrf.mxu0
      %4974 = vmatprep.mubr.bf16.mxu0 0
      %4975 = vmatmul.mubr.bf16.gmra.mxu0 %v4788
      %v4976 = vpop.f32.mrf.mxu0
      %v4977 = vadd.f32 %v4828, %v4976
      %v4978 = vpop.f32.mrf.mxu0
      %v4979 = vpop.f32.mrf.mxu0
      %v4980 = vadd.f32 %v4828, %v4979
      %v4981 = vpop.f32.mrf.mxu0
      %4982 = vmatprep.mubr.bf16.mxu0 0
      %4983 = vmatmul.mubr.bf16.gmra.mxu0 %v4789
      %v4984 = vpop.f32.mrf.mxu0
      %v4985 = vadd.f32 %v4828, %v4984
      %v4986 = vpop.f32.mrf.mxu0
      %v4987 = vpop.f32.mrf.mxu0
      %v4988 = vadd.f32 %v4828, %v4987
      %v4989 = vpop.f32.mrf.mxu0
      %4990 = vmatprep.mubr.bf16.mxu0 0
      %4991 = vmatmul.mubr.bf16.gmra.mxu0 %v4790
      %v4992 = vpop.f32.mrf.mxu0
      %v4993 = vadd.f32 %v4828, %v4992
      %v4994 = vpop.f32.mrf.mxu0
      %v4995 = vpop.f32.mrf.mxu0
      %v4996 = vadd.f32 %v4828, %v4995
      %v4997 = vpop.f32.mrf.mxu0
      %4998 = vmatprep.mubr.bf16.mxu0 0
      %4999 = vmatmul.mubr.bf16.gmra.mxu0 %v4791
      %v5000 = vpop.f32.mrf.mxu0
      %v5001 = vadd.f32 %v4828, %v5000
      %v5002 = vpop.f32.mrf.mxu0
      %v5003 = vpop.f32.mrf.mxu0
      %v5004 = vadd.f32 %v4828, %v5003
      %v5005 = vpop.f32.mrf.mxu0
      %5006 = vmatprep.mubr.bf16.mxu0 0
      %5007 = vmatmul.mubr.bf16.gmra.mxu0 %v4792
      %v5008 = vpop.f32.mrf.mxu0
      %v5009 = vadd.f32 %v4828, %v5008
      %v5010 = vpop.f32.mrf.mxu0
      %v5011 = vpop.f32.mrf.mxu0
      %v5012 = vadd.f32 %v4828, %v5011
      %v5013 = vpop.f32.mrf.mxu0
      %5014 = vmatprep.mubr.bf16.mxu0 0
      %5015 = vmatmul.mubr.bf16.gmra.mxu0 %v4793
      %v5016 = vpop.f32.mrf.mxu0
      %v5017 = vadd.f32 %v4828, %v5016
      %v5018 = vpop.f32.mrf.mxu0
      %v5019 = vpop.f32.mrf.mxu0
      %v5020 = vadd.f32 %v4828, %v5019
      %v5021 = vpop.f32.mrf.mxu0
      %5022 = vmatprep.mubr.bf16.mxu0 0
      %5023 = vmatmul.mubr.bf16.gmra.mxu0 %v4794
      %v5024 = vpop.f32.mrf.mxu0
      %v5025 = vadd.f32 %v4828, %v5024
      %v5026 = vpop.f32.mrf.mxu0
      %v5027 = vpop.f32.mrf.mxu0
      %v5028 = vadd.f32 %v4828, %v5027
      %v5029 = vpop.f32.mrf.mxu0
      %5030 = vmatprep.mubr.bf16.mxu0 0
      %5031 = vmatmul.mubr.bf16.gmra.mxu0 %v4795
      %v5032 = vpop.f32.mrf.mxu0
      %v5033 = vadd.f32 %v4828, %v5032
      %v5034 = vpop.f32.mrf.mxu0
      %v5035 = vpop.f32.mrf.mxu0
      %v5036 = vadd.f32 %v4828, %v5035
      %v5037 = vpop.f32.mrf.mxu0
      %5038 = vmatprep.mubr.bf16.mxu0 0
      %5039 = vmatmul.mubr.bf16.gmra.mxu0 %v4796
      %v5040 = vpop.f32.mrf.mxu0
      %v5041 = vadd.f32 %v4828, %v5040
      %v5042 = vpop.f32.mrf.mxu0
      %v5043 = vpop.f32.mrf.mxu0
      %v5044 = vadd.f32 %v4828, %v5043
      %v5045 = vpop.f32.mrf.mxu0
      %5046 = vmatprep.mubr.bf16.mxu0 0
      %5047 = vmatmul.mubr.bf16.gmra.mxu0 %v4797
      %v5048 = vpop.f32.mrf.mxu0
      %v5049 = vadd.f32 %v4828, %v5048
      %v5050 = vpop.f32.mrf.mxu0
      %v5051 = vpop.f32.mrf.mxu0
      %v5052 = vadd.f32 %v4828, %v5051
      %v5053 = vpop.f32.mrf.mxu0
      %5054 = vmatprep.mubr.bf16.mxu0 0
      %5055 = vmatmul.mubr.bf16.gmra.mxu0 %v4798
      %v5056 = vpop.f32.mrf.mxu0
      %v5057 = vadd.f32 %v4828, %v5056
      %v5058 = vpop.f32.mrf.mxu0
      %v5059 = vpop.f32.mrf.mxu0
      %v5060 = vadd.f32 %v4828, %v5059
      %v5061 = vpop.f32.mrf.mxu0
      %5062 = vmatprep.mubr.bf16.mxu0 0
      %5063 = vmatmul.mubr.bf16.gmra.mxu0 %v4799
      %v5064 = vpop.f32.mrf.mxu0
      %v5065 = vadd.f32 %v4828, %v5064
      %v5066 = vpop.f32.mrf.mxu0
      %v5067 = vpop.f32.mrf.mxu0
      %v5068 = vadd.f32 %v4828, %v5067
      %v5069 = vpop.f32.mrf.mxu0
      %5070 = vmatprep.mubr.bf16.mxu0 0
      %5071 = vmatmul.mubr.bf16.gmra.mxu0 %v4800
      %v5072 = vpop.f32.mrf.mxu0
      %v5073 = vadd.f32 %v4828, %v5072
      %v5074 = vpop.f32.mrf.mxu0
      %v5075 = vpop.f32.mrf.mxu0
      %v5076 = vadd.f32 %v4828, %v5075
      %v5077 = vpop.f32.mrf.mxu0
      %5078 = vmatprep.mubr.bf16.mxu0 0
      %5079 = vmatmul.mubr.bf16.gmra.mxu0 %v4801
      %v5080 = vpop.f32.mrf.mxu0
      %v5081 = vadd.f32 %v4828, %v5080
      %v5082 = vpop.f32.mrf.mxu0
      %v5083 = vpop.f32.mrf.mxu0
      %v5084 = vadd.f32 %v4828, %v5083
      %v5085 = vpop.f32.mrf.mxu0
      %5086 = vmatprep.mubr.bf16.mxu0 0
      %5087 = vmatmul.mubr.bf16.gmra.mxu0 %v4802
      %v5088 = vpop.f32.mrf.mxu0
      %v5089 = vadd.f32 %v4828, %v5088
      %v5090 = vpop.f32.mrf.mxu0
      %v5091 = vpop.f32.mrf.mxu0
      %v5092 = vadd.f32 %v4828, %v5091
      %v5093 = vpop.f32.mrf.mxu0
      %5094 = vmatprep.mubr.bf16.mxu0 0
      %5095 = vmatmul.mubr.bf16.gmra.mxu0 %v4803
      %v5096 = vpop.f32.mrf.mxu0
      %v5097 = vadd.f32 %v4828, %v5096
      %v5098 = vpop.f32.mrf.mxu0
      %v5099 = vpop.f32.mrf.mxu0
      %v5100 = vadd.f32 %v4828, %v5099
      %v5101 = vpop.f32.mrf.mxu0
      %5102 = vmatprep.mubr.bf16.mxu0 0
      %5103 = vmatmul.mubr.bf16.gmra.mxu0 %v4804
      %v5104 = vpop.f32.mrf.mxu0
      %v5105 = vadd.f32 %v4828, %v5104
      %v5106 = vpop.f32.mrf.mxu0
      %v5107 = vpop.f32.mrf.mxu0
      %v5108 = vadd.f32 %v4828, %v5107
      %v5109 = vpop.f32.mrf.mxu0
      %5110 = vmatprep.mubr.bf16.mxu0 0
      %5111 = vmatmul.mubr.bf16.gmra.mxu0 %v4805
      %v5112 = vpop.f32.mrf.mxu0
      %v5113 = vadd.f32 %v4828, %v5112
      %v5114 = vpop.f32.mrf.mxu0
      %v5115 = vpop.f32.mrf.mxu0
      %v5116 = vadd.f32 %v4828, %v5115
      %v5117 = vpop.f32.mrf.mxu0
      %5118 = vmatprep.mubr.bf16.mxu0 0
      %5119 = vmatmul.mubr.bf16.gmra.mxu0 %v4806
      %v5120 = vpop.f32.mrf.mxu0
      %v5121 = vadd.f32 %v4828, %v5120
      %v5122 = vpop.f32.mrf.mxu0
      %v5123 = vpop.f32.mrf.mxu0
      %v5124 = vadd.f32 %v4828, %v5123
      %v5125 = vpop.f32.mrf.mxu0
      %5126 = vdwg.mxu0
      %v5127 = vmax.f32 %v4913, 0.0
      %v5128 = vmax.f32 %v4916, 0.0
      %v5129 = vmax.f32 %v4921, 0.0
      %v5130 = vmax.f32 %v4924, 0.0
      %v5131 = vmax.f32 %v4929, 0.0
      %v5132 = vmax.f32 %v4932, 0.0
      %v5133 = vmax.f32 %v4937, 0.0
      %v5134 = vmax.f32 %v4940, 0.0
      %v5135 = vmax.f32 %v4945, 0.0
      %v5136 = vmax.f32 %v4948, 0.0
      %v5137 = vmax.f32 %v4953, 0.0
      %v5138 = vmax.f32 %v4956, 0.0
      %v5139 = vmax.f32 %v4961, 0.0
      %v5140 = vmax.f32 %v4964, 0.0
      %v5141 = vmax.f32 %v4969, 0.0
      %v5142 = vmax.f32 %v4972, 0.0
      %v5143 = vmax.f32 %v4977, 0.0
      %v5144 = vmax.f32 %v4980, 0.0
      %v5145 = vmax.f32 %v4985, 0.0
      %v5146 = vmax.f32 %v4988, 0.0
      %v5147 = vmax.f32 %v4993, 0.0
      %v5148 = vmax.f32 %v4996, 0.0
      %v5149 = vmax.f32 %v5001, 0.0
      %v5150 = vmax.f32 %v5004, 0.0
      %v5151 = vmax.f32 %v5009, 0.0
      %v5152 = vmax.f32 %v5012, 0.0
      %v5153 = vmax.f32 %v5017, 0.0
      %v5154 = vmax.f32 %v5020, 0.0
      %v5155 = vmax.f32 %v5025, 0.0
      %v5156 = vmax.f32 %v5028, 0.0
      %v5157 = vmax.f32 %v5033, 0.0
      %v5158 = vmax.f32 %v5036, 0.0
      %v5159 = vmax.f32 %v5041, 0.0
      %v5160 = vmax.f32 %v5044, 0.0
      %v5161 = vmax.f32 %v5049, 0.0
      %v5162 = vmax.f32 %v5052, 0.0
      %v5163 = vmax.f32 %v5057, 0.0
      %v5164 = vmax.f32 %v5060, 0.0
      %v5165 = vmax.f32 %v5065, 0.0
      %v5166 = vmax.f32 %v5068, 0.0
      %v5167 = vmax.f32 %v5073, 0.0
      %v5168 = vmax.f32 %v5076, 0.0
      %v5169 = vmax.f32 %v5081, 0.0
      %v5170 = vmax.f32 %v5084, 0.0
      %v5171 = vmax.f32 %v5089, 0.0
      %v5172 = vmax.f32 %v5092, 0.0
      %v5173 = vmax.f32 %v5097, 0.0
      %v5174 = vmax.f32 %v5100, 0.0
      %v5175 = vmax.f32 %v5105, 0.0
      %v5176 = vmax.f32 %v5108, 0.0
      %v5177 = vmax.f32 %v5113, 0.0
      %v5178 = vmax.f32 %v5116, 0.0
      %v5179 = vmax.f32 %v5121, 0.0
      %v5180 = vmax.f32 %v5124, 0.0
      %v5181 = vpack.c.bf16 %v5128, %v5127
      %v5182 = vpack.c.bf16 %v5130, %v5129
      %v5183 = vpack.c.bf16 %v5132, %v5131
      %v5184 = vpack.c.bf16 %v5134, %v5133
      %v5185 = vpack.c.bf16 %v5136, %v5135
      %v5186 = vpack.c.bf16 %v5138, %v5137
      %v5187 = vpack.c.bf16 %v5140, %v5139
      %v5188 = vpack.c.bf16 %v5142, %v5141
      %v5189 = vpack.c.bf16 %v5144, %v5143
      %v5190 = vpack.c.bf16 %v5146, %v5145
      %v5191 = vpack.c.bf16 %v5148, %v5147
      %v5192 = vpack.c.bf16 %v5150, %v5149
      %v5193 = vpack.c.bf16 %v5152, %v5151
      %v5194 = vpack.c.bf16 %v5154, %v5153
      %v5195 = vpack.c.bf16 %v5156, %v5155
      %v5196 = vpack.c.bf16 %v5158, %v5157
      %v5197 = vpack.c.bf16 %v5160, %v5159
      %v5198 = vpack.c.bf16 %v5162, %v5161
      %v5199 = vpack.c.bf16 %v5164, %v5163
      %v5200 = vpack.c.bf16 %v5166, %v5165
      %v5201 = vpack.c.bf16 %v5168, %v5167
      %v5202 = vpack.c.bf16 %v5170, %v5169
      %v5203 = vpack.c.bf16 %v5172, %v5171
      %v5204 = vpack.c.bf16 %v5174, %v5173
      %v5205 = vpack.c.bf16 %v5176, %v5175
      %v5206 = vpack.c.bf16 %v5178, %v5177
      %v5207 = vpack.c.bf16 %v5180, %v5179
      %v5235 = vunpack.c.l.b16 %v5181
      %v5236 = vunpack.c.h.b16 %v5181
      %v5237 = vunpack.c.l.b16 %v5182
      %v5238 = vunpack.c.h.b16 %v5182
      %v5239 = vunpack.c.l.b16 %v5183
      %v5240 = vunpack.c.h.b16 %v5183
      %v5241 = vunpack.c.l.b16 %v5184
      %v5242 = vunpack.c.h.b16 %v5184
      %v5243 = vunpack.c.l.b16 %v5185
      %v5244 = vunpack.c.h.b16 %v5185
      %v5245 = vunpack.c.l.b16 %v5186
      %v5246 = vunpack.c.h.b16 %v5186
      %v5247 = vunpack.c.l.b16 %v5187
      %v5248 = vunpack.c.h.b16 %v5187
      %v5249 = vunpack.c.l.b16 %v5188
      %v5250 = vunpack.c.h.b16 %v5188
      %v5251 = vunpack.c.l.b16 %v5189
      %v5252 = vunpack.c.h.b16 %v5189
      %v5253 = vunpack.c.l.b16 %v5190
      %v5254 = vunpack.c.h.b16 %v5190
      %v5255 = vunpack.c.l.b16 %v5191
      %v5256 = vunpack.c.h.b16 %v5191
      %v5257 = vunpack.c.l.b16 %v5192
      %v5258 = vunpack.c.h.b16 %v5192
      %v5259 = vunpack.c.l.b16 %v5193
      %v5260 = vunpack.c.h.b16 %v5193
      %v5261 = vunpack.c.l.b16 %v5194
      %v5262 = vunpack.c.h.b16 %v5194
      %v5263 = vunpack.c.l.b16 %v5195
      %v5264 = vunpack.c.h.b16 %v5195
      %v5265 = vunpack.c.l.b16 %v5196
      %v5266 = vunpack.c.h.b16 %v5196
      %v5267 = vunpack.c.l.b16 %v5197
      %v5268 = vunpack.c.h.b16 %v5197
      %v5269 = vunpack.c.l.b16 %v5198
      %v5270 = vunpack.c.h.b16 %v5198
      %v5271 = vunpack.c.l.b16 %v5199
      %v5272 = vunpack.c.h.b16 %v5199
      %v5273 = vunpack.c.l.b16 %v5200
      %v5274 = vunpack.c.h.b16 %v5200
      %v5275 = vunpack.c.l.b16 %v5201
      %v5276 = vunpack.c.h.b16 %v5201
      %v5277 = vunpack.c.l.b16 %v5202
      %v5278 = vunpack.c.h.b16 %v5202
      %v5279 = vunpack.c.l.b16 %v5203
      %v5280 = vunpack.c.h.b16 %v5203
      %v5281 = vunpack.c.l.b16 %v5204
      %v5282 = vunpack.c.h.b16 %v5204
      %v5283 = vunpack.c.l.b16 %v5205
      %v5284 = vunpack.c.h.b16 %v5205
      %v5285 = vunpack.c.l.b16 %v5206
      %v5286 = vunpack.c.h.b16 %v5206
      %v5287 = vunpack.c.l.b16 %v5207
      %v5288 = vunpack.c.h.b16 %v5207
      %v5289 = vpack.c.b16 %v5235, %v5235
      %v5290 = vpack.c.b16 %v5236, %v5236
      %v5291 = vpack.c.b16 %v5237, %v5237
      %v5292 = vpack.c.b16 %v5238, %v5238
      %v5293 = vpack.c.b16 %v5239, %v5239
      %v5294 = vpack.c.b16 %v5240, %v5240
      %v5295 = vpack.c.b16 %v5241, %v5241
      %v5296 = vpack.c.b16 %v5242, %v5242
      %v5297 = vpack.c.b16 %v5243, %v5243
      %v5298 = vpack.c.b16 %v5244, %v5244
      %v5299 = vpack.c.b16 %v5245, %v5245
      %v5300 = vpack.c.b16 %v5246, %v5246
      %v5301 = vpack.c.b16 %v5247, %v5247
      %v5302 = vpack.c.b16 %v5248, %v5248
      %v5303 = vpack.c.b16 %v5249, %v5249
      %v5304 = vpack.c.b16 %v5250, %v5250
      %v5305 = vpack.c.b16 %v5251, %v5251
      %v5306 = vpack.c.b16 %v5252, %v5252
      %v5307 = vpack.c.b16 %v5253, %v5253
      %v5308 = vpack.c.b16 %v5254, %v5254
      %v5309 = vpack.c.b16 %v5255, %v5255
      %v5310 = vpack.c.b16 %v5256, %v5256
      %v5311 = vpack.c.b16 %v5257, %v5257
      %v5312 = vpack.c.b16 %v5258, %v5258
      %v5313 = vpack.c.b16 %v5259, %v5259
      %v5314 = vpack.c.b16 %v5260, %v5260
      %v5315 = vpack.c.b16 %v5261, %v5261
      %v5316 = vpack.c.b16 %v5262, %v5262
      %v5317 = vpack.c.b16 %v5263, %v5263
      %v5318 = vpack.c.b16 %v5264, %v5264
      %v5319 = vpack.c.b16 %v5265, %v5265
      %v5320 = vpack.c.b16 %v5266, %v5266
      %v5321 = vpack.c.b16 %v5267, %v5267
      %v5322 = vpack.c.b16 %v5268, %v5268
      %v5323 = vpack.c.b16 %v5269, %v5269
      %v5324 = vpack.c.b16 %v5270, %v5270
      %v5325 = vpack.c.b16 %v5271, %v5271
      %v5326 = vpack.c.b16 %v5272, %v5272
      %v5327 = vpack.c.b16 %v5273, %v5273
      %v5328 = vpack.c.b16 %v5274, %v5274
      %v5329 = vpack.c.b16 %v5275, %v5275
      %v5330 = vpack.c.b16 %v5276, %v5276
      %v5331 = vpack.c.b16 %v5277, %v5277
      %v5332 = vpack.c.b16 %v5278, %v5278
      %v5333 = vpack.c.b16 %v5279, %v5279
      %v5334 = vpack.c.b16 %v5280, %v5280
      %v5335 = vpack.c.b16 %v5281, %v5281
      %v5336 = vpack.c.b16 %v5282, %v5282
      %v5337 = vpack.c.b16 %v5283, %v5283
      %v5338 = vpack.c.b16 %v5284, %v5284
      %v5339 = vpack.c.b16 %v5285, %v5285
      %v5340 = vpack.c.b16 %v5286, %v5286
      %v5341 = vpack.c.b16 %v5287, %v5287
      %v5342 = vpack.c.b16 %v5288, %v5288
      %5397 = vst [vmem:[%s689] sm:$0xf] %v5289
      %5398 = vst [vmem:[%s689 + $0x4] sm:$0xf] %v5290
      %5399 = vst [vmem:[%s689 + $0x8] sm:$0xf] %v5291
      %5400 = vst [vmem:[%s689 + $0xc] sm:$0xf] %v5292
      %5401 = vst [vmem:[%s689 + $0x10] sm:$0xf] %v5293
      %5402 = vst [vmem:[%s689 + $0x14] sm:$0xf] %v5294
      %5403 = vst [vmem:[%s689 + $0x18] sm:$0xf] %v5295
      %5404 = vst [vmem:[%s689 + $0x1c] sm:$0xf] %v5296
      %5405 = vst [vmem:[%s689 + $0x20] sm:$0xf] %v5297
      %5406 = vst [vmem:[%s689 + $0x24] sm:$0xf] %v5298
      %5407 = vst [vmem:[%s689 + $0x28] sm:$0xf] %v5299
      %5408 = vst [vmem:[%s689 + $0x2c] sm:$0xf] %v5300
      %5409 = vst [vmem:[%s689 + $0x30] sm:$0xf] %v5301
      %5410 = vst [vmem:[%s689 + $0x34] sm:$0xf] %v5302
      %5411 = vst [vmem:[%s689 + $0x38] sm:$0xf] %v5303
      %5412 = vst [vmem:[%s689 + $0x3c] sm:$0xf] %v5304
      %5413 = vst [vmem:[%s689 + $0x40] sm:$0xf] %v5305
      %5414 = vst [vmem:[%s689 + $0x44] sm:$0xf] %v5306
      %5415 = vst [vmem:[%s689 + $0x48] sm:$0xf] %v5307
      %5416 = vst [vmem:[%s689 + $0x4c] sm:$0xf] %v5308
      %5417 = vst [vmem:[%s689 + $0x50] sm:$0xf] %v5309
      %5418 = vst [vmem:[%s689 + $0x54] sm:$0xf] %v5310
      %5419 = vst [vmem:[%s689 + $0x58] sm:$0xf] %v5311
      %5420 = vst [vmem:[%s689 + $0x5c] sm:$0xf] %v5312
      %5421 = vst [vmem:[%s689 + $0x60] sm:$0xf] %v5313
      %5422 = vst [vmem:[%s689 + $0x64] sm:$0xf] %v5314
      %5423 = vst [vmem:[%s689 + $0x68] sm:$0xf] %v5315
      %5424 = vst [vmem:[%s689 + $0x6c] sm:$0xf] %v5316
      %5425 = vst [vmem:[%s689 + $0x70] sm:$0xf] %v5317
      %5426 = vst [vmem:[%s689 + $0x74] sm:$0xf] %v5318
      %5427 = vst [vmem:[%s689 + $0x78] sm:$0xf] %v5319
      %5428 = vst [vmem:[%s689 + $0x7c] sm:$0xf] %v5320
      %5429 = vst [vmem:[%s689 + $0x80] sm:$0xf] %v5321
      %5430 = vst [vmem:[%s689 + $0x84] sm:$0xf] %v5322
      %5431 = vst [vmem:[%s689 + $0x88] sm:$0xf] %v5323
      %5432 = vst [vmem:[%s689 + $0x8c] sm:$0xf] %v5324
      %5433 = vst [vmem:[%s689 + $0x90] sm:$0xf] %v5325
      %5434 = vst [vmem:[%s689 + $0x94] sm:$0xf] %v5326
      %5435 = vst [vmem:[%s689 + $0x98] sm:$0xf] %v5327
      %5436 = vst [vmem:[%s689 + $0x9c] sm:$0xf] %v5328
      %5437 = vst [vmem:[%s689 + $0xa0] sm:$0xf] %v5329
      %5438 = vst [vmem:[%s689 + $0xa4] sm:$0xf] %v5330
      %5439 = vst [vmem:[%s689 + $0xa8] sm:$0xf] %v5331
      %5440 = vst [vmem:[%s689 + $0xac] sm:$0xf] %v5332
      %5441 = vst [vmem:[%s689 + $0xb0] sm:$0xf] %v5333
      %5442 = vst [vmem:[%s689 + $0xb4] sm:$0xf] %v5334
      %5443 = vst [vmem:[%s689 + $0xb8] sm:$0xf] %v5335
      %5444 = vst [vmem:[%s689 + $0xbc] sm:$0xf] %v5336
      %5445 = vst [vmem:[%s689 + $0xc0] sm:$0xf] %v5337
      %5446 = vst [vmem:[%s689 + $0xc4] sm:$0xf] %v5338
      %5447 = vst [vmem:[%s689 + $0xc8] sm:$0xf] %v5339
      %5448 = vst [vmem:[%s689 + $0xcc] sm:$0xf] %v5340
      %5449 = vst [vmem:[%s689 + $0xd0] sm:$0xf] %v5341
      %5450 = vst [vmem:[%s689 + $0xd4] sm:$0xf] %v5342
      %s5451 = smul.u32 54, %s27
      %p5452 = scmp.lt.s32.totalorder %s26, 1
      %s5453 = scalar_select %p5452, %s26, 1
      %p5454 = scmp.lt.s32.totalorder %s5451, 53
      %s5455 = scalar_select %p5454, %s5451, 53
      %s5456 = smul.addr %s5453, 54
      %s5457 = sadd.s32 %s5455, %s5456
      %s5458 = smul.addr %s5457, 4
      %s5459 = scalar_lea.vmem %s11, %s5458
      // Predicated region
      $region65: #{hgblock_forward.13} parent=63 // pred_check
        %p5460 = pneg %p348
      $region66: #{hgblock_forward.13} parent=63 // pred_check_branch
        %5462 = sbr.rel (%p5460) target = $region68
      $region67: #{hgblock_forward.13} parent=63 // pred_region
        %s5463 = smul.u32 54, %s27
      $region68: #{hgblock_forward.13} parent=63 // pred_fallthru
        _
    $region64: #{hgblock_forward.13} parent=5 // pred_fallthru
      _
    %p5464 = scmp.le.s32.totalorder 2, %s17
    // Predicated region
    $region69: #{hgblock_forward.13} parent=5 // pred_check
      %p5465 = pneg %p5464
    $region70: #{hgblock_forward.13} parent=5 // pred_check_branch
      %5467 = sbr.rel (%p5465) target = $region72
    $region71: #{hgblock_forward.13} parent=5 // pred_region
      %s5468 = ssub.s32 %s17, 2
      // Predicated region
      $region73: #{hgblock_forward.13} parent=71 // pred_check
        %p5469 = pneg %p354
      $region74: #{hgblock_forward.13} parent=71 // pred_check_branch
        %5471 = sbr.rel (%p5469) target = $region76
      $region75: #{hgblock_forward.13} parent=71 // pred_region
        %s5472 = smul.u32 54, %s29
        %p5473 = scmp.lt.s32.totalorder %s28, 1
        %s5474 = scalar_select %p5473, %s28, 1
        %p5475 = scmp.lt.s32.totalorder %s5472, 53
        %s5476 = scalar_select %p5475, %s5472, 53
        %s5477 = smul.addr %s5474, 54
        %s5478 = sadd.s32 %s5476, %s5477
        %s5479 = smul.addr %s5478, 4
        %s5480 = scalar_lea.vmem %s11, %s5479
      $region76: #{hgblock_forward.13} parent=71 // pred_fallthru
        _
    $region72: #{hgblock_forward.13} parent=5 // pred_fallthru
      _
  $region6: #{hgblock_forward.13} parent=0 // loop_footer
    %s21 = sadd.s32 1, %s17
  $region7: #{hgblock_forward.13} parent=0 // loop_footer_branch
    %16 = sbr.rel target = $region3
  $region8: #{hgblock_forward.13} parent=0 // loop_exit
    _

// kernel: hgblock_forward.7
$region0: #{hgblock_forward.7}
  #allocation0 [shape = 'u32[]', space=smem, size = 0x4, offset = 0x4, fixed_abs, tag = 'smem constant byte address 0x4 - core index']
  #allocation1 [shape = 'u32[144,128]{1,0:T(1,128)}', space=vmem, size = 0x12000, scoped, tag = 'internal scratch']
  #allocation2 [shape = 'bf16[2,496,128]{2,1,0:T(8,128)(2,1)}', space=vmem, size = 0x3e000, scoped, tag = 'scratch operand']
  #allocation3 [shape = 's32[2]{0}', space=sflag, size = 0x8, scoped, tag = 'scratch operand']
  #allocation4 [shape = 's32[]', space=sflag, size = 0x4, offset = 0, fixed_abs, tag = 'sflag constant byte address 0x0 - dummy sync flag']
  #allocation5 [shape = 's32[]', space=sflag, size = 0x4, offset = 0, fixed_abs, tag = 'sflag constant byte address 0x0 - dummy sync flag']
  %s0 = inlined_call_operand.vmem [shape: bf16[2,1296,128], index: 0, kind: input, shape index: {}]
  %s1 = inlined_call_operand.vmem [shape: bf16[9,128,128], index: 1, kind: input, shape index: {}]
  %s2 = inlined_call_operand.vmem [shape: f32[1,128], index: 2, kind: input, shape index: {}]
  %s3 = inlined_call_operand.vmem [shape: f32[1296,1], index: 3, kind: input, shape index: {}]
  %s4 = inlined_call_operand.vmem [shape: bf16[2,1296,128], index: 4, kind: output, shape index: {}]
  %s5 = sld [smem:[#allocation0]]
  $region121: #{hgblock_forward.7} parent=0
    _
  %s7 = ssub.s32 1, %s5
  %s8 = scalar_select 0, %s7, %s5
  loop: start=0, step=1, limit=4
  $region2: #{hgblock_forward.7} parent=0 // loop_pre_header
    _
  $region3: #{hgblock_forward.7} parent=0 // loop_header
    %s10 = sphi 0, %s14
    %p11 = scmp.ge.s32.totalorder %s10, 4
    %s17 = sphi 0, %s29
    %s18 = sphi 0, %s25
    %s19 = sphi 0, %s17
    %s20 = sphi 0, %s18
    %s21 = sphi 0, %s19
    %s22 = sphi 0, %s20
    %s30 = sphi 0, %s30
    %s32 = sphi 0, %s30
    %s33 = sphi 0, %s32
    %s47 = sphi 0, %s33
    %s51 = sphi 0, %s51
    %s53 = sphi 0, %s51
    %s54 = sphi 0, %s53
    %s68 = sphi 0, %s54
    %s76 = sphi 0, %s78
    %s79 = sphi 0, %s76
    %s80 = sphi 0, %s79
    %s96 = sphi 0, %s80
    %s106 = sphi 0, %s108
    %s109 = sphi 0, %s106
    %s110 = sphi 0, %s109
    %s126 = sphi 0, %s110
  $region4: #{hgblock_forward.7} parent=0 // loop_header_branch
    %13 = sbr.rel (%p11) target = $region8
  $region5: #{hgblock_forward.7} parent=0 // loop_body
    %s15 = ssub.s32 %s10, 1
    %s16 = ssub.s32 %s10, 2
    %s23 = sadd.s32 1, %s18
    %p24 = scmp.ge.s32.totalorder %s23, 1
    %s25 = scalar_select %p24, 0, %s23
    %s26 = sadd.s32 1, %s17
    %s27 = scalar_select %p24, %s26, %s17
    %p28 = scmp.ge.s32.totalorder %s27, 2
    %s29 = scalar_select %p28, 0, %s27
    %s31 = sadd.s32 %s30, 1
    %p34 = scmp.eq.s32.totalorder %s10, 1
    %p35 = scmp.ne.s32.totalorder %s30, %s32
    %p36 = scmp.eq.s32.totalorder %s10, 0
    %p37 = por %p35, %p36
    %p38 = scmp.ne.s32.totalorder %s30, %s32
    %p39 = scmp.eq.s32.totalorder %s15, 1
    %p40 = por %p38, %p39
    %p41 = scmp.ne.s32.totalorder %s32, %s33
    %p42 = scmp.eq.s32.totalorder %s15, 0
    %p43 = por %p41, %p42
    %p44 = scmp.ne.s32.totalorder %s32, %s33
    %p45 = scmp.eq.s32.totalorder %s16, 1
    %p46 = por %p44, %p45
    %p48 = scmp.ne.s32.totalorder %s33, %s47
    %p49 = scmp.eq.s32.totalorder %s16, 0
    %p50 = por %p48, %p49
    %s52 = sadd.s32 %s51, 1
    %p55 = scmp.eq.s32.totalorder %s10, 1
    %p56 = scmp.ne.s32.totalorder %s51, %s53
    %p57 = scmp.eq.s32.totalorder %s10, 0
    %p58 = por %p56, %p57
    %p59 = scmp.ne.s32.totalorder %s51, %s53
    %p60 = scmp.eq.s32.totalorder %s15, 1
    %p61 = por %p59, %p60
    %p62 = scmp.ne.s32.totalorder %s53, %s54
    %p63 = scmp.eq.s32.totalorder %s15, 0
    %p64 = por %p62, %p63
    %p65 = scmp.ne.s32.totalorder %s53, %s54
    %p66 = scmp.eq.s32.totalorder %s16, 1
    %p67 = por %p65, %p66
    %p69 = scmp.ne.s32.totalorder %s54, %s68
    %p70 = scmp.eq.s32.totalorder %s16, 0
    %p71 = por %p69, %p70
    %s72 = sadd.s32 %s18, 1
    %s73 = sadd.s32 %s25, 1
    %s74 = ssub.s32 %s72, %s73
    %p75 = scmp.eq.s32.totalorder %s74, 0
    %s77 = sadd.s32 %s76, 1
    %s78 = scalar_select %p75, %s76, %s77
    %p81 = pneg %p75
    %p82 = scmp.eq.s32.totalorder %s10, 1
    %p83 = por %p81, %p82
    %p84 = scmp.ne.s32.totalorder %s76, %s79
    %p85 = scmp.eq.s32.totalorder %s10, 0
    %p86 = por %p84, %p85
    %p87 = scmp.ne.s32.totalorder %s76, %s79
    %p88 = scmp.eq.s32.totalorder %s15, 1
    %p89 = por %p87, %p88
    %p90 = scmp.ne.s32.totalorder %s79, %s80
    %p91 = scmp.eq.s32.totalorder %s15, 0
    %p92 = por %p90, %p91
    %p93 = scmp.ne.s32.totalorder %s79, %s80
    %p94 = scmp.eq.s32.totalorder %s16, 1
    %p95 = por %p93, %p94
    %p97 = scmp.ne.s32.totalorder %s80, %s96
    %p98 = scmp.eq.s32.totalorder %s16, 0
    %p99 = por %p97, %p98
    %s100 = sadd.s32 %s18, 1
    %s101 = sadd.s32 %s25, 1
    %s102 = ssub.s32 %s17, %s29
    %s103 = ssub.s32 %s100, %s101
    %s104 = sor.u32 %s102, %s103
    %p105 = scmp.eq.s32.totalorder %s104, 0
    %s107 = sadd.s32 %s106, 1
    %s108 = scalar_select %p105, %s106, %s107
    %p111 = pneg %p105
    %p112 = scmp.eq.s32.totalorder %s10, 1
    %p113 = por %p111, %p112
    %p114 = scmp.ne.s32.totalorder %s106, %s109
    %p115 = scmp.eq.s32.totalorder %s10, 0
    %p116 = por %p114, %p115
    %p117 = scmp.ne.s32.totalorder %s106, %s109
    %p118 = scmp.eq.s32.totalorder %s15, 1
    %p119 = por %p117, %p118
    %p120 = scmp.ne.s32.totalorder %s109, %s110
    %p121 = scmp.eq.s32.totalorder %s15, 0
    %p122 = por %p120, %p121
    %p123 = scmp.ne.s32.totalorder %s109, %s110
    %p124 = scmp.eq.s32.totalorder %s16, 1
    %p125 = por %p123, %p124
    %p127 = scmp.ne.s32.totalorder %s110, %s126
    %p128 = scmp.eq.s32.totalorder %s16, 0
    %p129 = por %p127, %p128
    %p130 = scmp.le.s32.totalorder 1, %s10
    %p131 = scmp.lt.s32.totalorder %s10, 3
    %p132 = pnand %p130, %p131
    %p133 = pneg %p132
    // Predicated region
    $region9: #{hgblock_forward.7} parent=5 // pred_check
      _
    $region10: #{hgblock_forward.7} parent=5 // pred_check_branch
      %135 = sbr.rel (%p132) target = $region12
    $region11: #{hgblock_forward.7} parent=5 // pred_region
      %s136 = ssub.s32 %s10, 1
      // Predicated region
      $region13: #{hgblock_forward.7} parent=11 // pred_check
        %p137 = pneg %p43
      $region14: #{hgblock_forward.7} parent=11 // pred_check_branch
        %139 = sbr.rel (%p137) target = $region16
      $region15: #{hgblock_forward.7} parent=11 // pred_region
        _
      $region16: #{hgblock_forward.7} parent=11 // pred_fallthru
        _
      // Predicated region
      $region17: #{hgblock_forward.7} parent=11 // pred_check
        %p140 = pneg %p64
      $region18: #{hgblock_forward.7} parent=11 // pred_check_branch
        %142 = sbr.rel (%p140) target = $region20
      $region19: #{hgblock_forward.7} parent=11 // pred_region
        _
      $region20: #{hgblock_forward.7} parent=11 // pred_fallthru
        _
      // Predicated region
      $region21: #{hgblock_forward.7} parent=11 // pred_check
        %p143 = pneg %p92
      $region22: #{hgblock_forward.7} parent=11 // pred_check_branch
        %145 = sbr.rel (%p143) target = $region24
      $region23: #{hgblock_forward.7} parent=11 // pred_region
        %s146 = sadd.s32 %s20, 1
        %s147 = smul.u32 54, %s146
        %p148 = scmp.lt.s32.totalorder %s147, 161
        %s149 = scalar_select %p148, %s147, 161
        %s150 = smul.addr %s149, 8
        %s151 = scalar_lea.vmem %s3, %s150
        %s152 = sadd.s32 %s20, 1
        %s153 = smul.u32 54, %s152
      $region24: #{hgblock_forward.7} parent=11 // pred_fallthru
        _
    $region12: #{hgblock_forward.7} parent=5 // pred_fallthru
      _
    %p154 = scmp.lt.s32.totalorder %s10, 2
    // Predicated region
    $region25: #{hgblock_forward.7} parent=5 // pred_check
      %p155 = pneg %p154
    $region26: #{hgblock_forward.7} parent=5 // pred_check_branch
      %157 = sbr.rel (%p155) target = $region28
    $region27: #{hgblock_forward.7} parent=5 // pred_region
      _
    $region28: #{hgblock_forward.7} parent=5 // pred_fallthru
      _
    %p158 = scmp.le.s32.totalorder 1, %s10
    %p159 = scmp.lt.s32.totalorder %s10, 3
    %p160 = pnand %p158, %p159
    %p161 = pneg %p160
    // Predicated region
    $region29: #{hgblock_forward.7} parent=5 // pred_check
      _
    $region30: #{hgblock_forward.7} parent=5 // pred_check_branch
      %163 = sbr.rel (%p160) target = $region32
    $region31: #{hgblock_forward.7} parent=5 // pred_region
      %s164 = ssub.s32 %s10, 1
      %p165 = pneg %p43
      %p166 = pneg %p40
      %p167 = pneg %p64
      %p168 = pneg %p61
      %s169 = sadd.s32 %s20, 1
      %s170 = smul.u32 54, %s169
      %p171 = scmp.lt.s32.totalorder %s170, 161
      %s172 = scalar_select %p171, %s170, 161
      %s173 = smul.addr %s172, 8
      %s174 = scalar_lea.vmem %s3, %s173
      %p175 = pneg %p92
      %p176 = pneg %p89
      %p177 = pneg %p122
      %p178 = pneg %p119
      %s179 = sadd.s32 %s20, 1
      %s180 = smul.u32 54, %s179
      %p181 = scmp.lt.s32.totalorder %s19, 1
      %s182 = scalar_select %p181, %s19, 1
      %p183 = scmp.lt.s32.totalorder %s180, 161
      %s184 = scalar_select %p183, %s180, 161
      %s185 = smul.addr %s182, 162
      %s186 = sadd.s32 %s184, %s185
      %s187 = smul.addr %s186, 4
      %s188 = scalar_lea.vmem %s4, %s187
      %s189 = sadd.s32 %s20, 1
      %s190 = smul.u32 54, %s189
      %p191 = scmp.lt.s32.totalorder %s190, 161
      %s192 = scalar_select %p191, %s190, 161
      %s193 = smul.addr %s192, 8
      %s194 = scalar_lea.vmem %s3, %s193
      %s195 = sadd.s32 %s20, 1
      %s196 = smul.u32 54, %s195
      %s197 = sadd.s32 %s20, 1
      %s198 = smul.u32 54, %s197
      %p199 = scmp.lt.s32.totalorder %s19, 1
      %s200 = scalar_select %p199, %s19, 1
      %p201 = scmp.lt.s32.totalorder %s198, 161
      %s202 = scalar_select %p201, %s198, 161
      %s203 = smul.addr %s200, 162
      %s204 = sadd.s32 %s202, %s203
      %s205 = smul.addr %s204, 4
      %s206 = scalar_lea.vmem %s4, %s205
      %s207 = sadd.s32 %s20, 1
      %s208 = smul.u32 54, %s207
      %p210 = scmp.lt.s32.totalorder %s20, 0
      %s211 = ssub.s32 0, %s20
      %s212 = scalar_select %p210, %s211, %s20
      %s213 = sand.u32 %s212, 1
      %s214 = ssub.s32 0, %s213
      %s215 = scalar_select %p210, %s214, %s213
      %p216 = scmp.eq.s32.totalorder %s20, 0
      // Predicated region
      $region33: #{hgblock_forward.7} parent=31 // pred_check
        %p217 = pneg %p216
      $region34: #{hgblock_forward.7} parent=31 // pred_check_branch
        %219 = sbr.rel (%p217) target = $region36
      $region35: #{hgblock_forward.7} parent=31 // pred_region
        %s220 = sadd.s32 %s20, 1
        %s221 = smul.u32 %s220, 432
        %s222 = ssub.s32 %s221, 32
        %s223 = sshra.s32 %s222, 3
        %s224 = sand.u32 %s222, 7
        %s225 = smul.u32 %s19, 162
        %s226 = sadd.s32 %s223, %s225
        %s227 = smul.addr %s226, 4
        %s228 = scalar_lea.vmem %s0, %s227
        %s229 = smul.u32 %s215, 62
        %s230 = smul.addr %s229, 4
        %s231 = scalar_lea.vmem [#allocation2], %s230
        %s232 = scalar_lea.sflag [#allocation3], %s215
        %p234 = scmp.lt.u32.totalorder 248, 8
        %p235 = pneg %p234
        // Predicated region
        $region37: #{hgblock_forward.7} parent=35 // pred_check
          _
        $region38: #{hgblock_forward.7} parent=35 // pred_check_branch
          %237 = sbr.rel (%p234) target = $region40
        $region39: #{hgblock_forward.7} parent=35 // pred_region
          %s253 = sand.u32 248, 7
          %p254 = scmp.eq.s32.totalorder %s253, 0
          // Predicated region
          $region52: #{hgblock_forward.7} parent=39 // pred_check
            %p255 = pneg %p254
          $region53: #{hgblock_forward.7} parent=39 // pred_check_branch
            %257 = sbr.rel (%p255) target = $region55
          $region54: #{hgblock_forward.7} parent=39 // pred_region
            loop: start=0, step=1, limit=1
            $region56: #{hgblock_forward.7} parent=54 // loop_pre_header
              _
            $region57: #{hgblock_forward.7} parent=54 // loop_header
              %s259 = sphi 0, %s263
              %p260 = scmp.ge.s32.totalorder %s259, 1
              %s264 = sphi %s228, %s228
              %s265 = sphi %s231, %s231
            $region58: #{hgblock_forward.7} parent=54 // loop_header_branch
              %262 = sbr.rel (%p260) target = $region62
            $region59: #{hgblock_forward.7} parent=54 // loop_body
              %v266 = vld [vmem:[%s264] sm:$0xff]
              %267 = vst [vmem:[%s265] sm:$0xff] %v266
              %v268 = vld [vmem:[%s264 + $0x8] sm:$0xff]
              %269 = vst [vmem:[%s265 + $0x8] sm:$0xff] %v268
              %v270 = vld [vmem:[%s264 + $0x10] sm:$0xff]
              %271 = vst [vmem:[%s265 + $0x10] sm:$0xff] %v270
              %v272 = vld [vmem:[%s264 + $0x18] sm:$0xff]
              %273 = vst [vmem:[%s265 + $0x18] sm:$0xff] %v272
              %v274 = vld [vmem:[%s264 + $0x20] sm:$0xff]
              %275 = vst [vmem:[%s265 + $0x20] sm:$0xff] %v274
              %v276 = vld [vmem:[%s264 + $0x28] sm:$0xff]
              %277 = vst [vmem:[%s265 + $0x28] sm:$0xff] %v276
              %v278 = vld [vmem:[%s264 + $0x30] sm:$0xff]
              %279 = vst [vmem:[%s265 + $0x30] sm:$0xff] %v278
              %v280 = vld [vmem:[%s264 + $0x38] sm:$0xff]
              %281 = vst [vmem:[%s265 + $0x38] sm:$0xff] %v280
              %v282 = vld [vmem:[%s264 + $0x40] sm:$0xff]
              %283 = vst [vmem:[%s265 + $0x40] sm:$0xff] %v282
              %v284 = vld [vmem:[%s264 + $0x48] sm:$0xff]
              %285 = vst [vmem:[%s265 + $0x48] sm:$0xff] %v284
              %v286 = vld [vmem:[%s264 + $0x50] sm:$0xff]
              %287 = vst [vmem:[%s265 + $0x50] sm:$0xff] %v286
              %v288 = vld [vmem:[%s264 + $0x58] sm:$0xff]
              %289 = vst [vmem:[%s265 + $0x58] sm:$0xff] %v288
              %v290 = vld [vmem:[%s264 + $0x60] sm:$0xff]
              %291 = vst [vmem:[%s265 + $0x60] sm:$0xff] %v290
              %v292 = vld [vmem:[%s264 + $0x68] sm:$0xff]
              %293 = vst [vmem:[%s265 + $0x68] sm:$0xff] %v292
              %v294 = vld [vmem:[%s264 + $0x70] sm:$0xff]
              %295 = vst [vmem:[%s265 + $0x70] sm:$0xff] %v294
              %v296 = vld [vmem:[%s264 + $0x78] sm:$0xff]
              %297 = vst [vmem:[%s265 + $0x78] sm:$0xff] %v296
              %v298 = vld [vmem:[%s264 + $0x80] sm:$0xff]
              %299 = vst [vmem:[%s265 + $0x80] sm:$0xff] %v298
              %v300 = vld [vmem:[%s264 + $0x88] sm:$0xff]
              %301 = vst [vmem:[%s265 + $0x88] sm:$0xff] %v300
              %v302 = vld [vmem:[%s264 + $0x90] sm:$0xff]
              %303 = vst [vmem:[%s265 + $0x90] sm:$0xff] %v302
              %v304 = vld [vmem:[%s264 + $0x98] sm:$0xff]
              %305 = vst [vmem:[%s265 + $0x98] sm:$0xff] %v304
              %v306 = vld [vmem:[%s264 + $0xa0] sm:$0xff]
              %307 = vst [vmem:[%s265 + $0xa0] sm:$0xff] %v306
              %v308 = vld [vmem:[%s264 + $0xa8] sm:$0xff]
              %309 = vst [vmem:[%s265 + $0xa8] sm:$0xff] %v308
              %v310 = vld [vmem:[%s264 + $0xb0] sm:$0xff]
              %311 = vst [vmem:[%s265 + $0xb0] sm:$0xff] %v310
              %v312 = vld [vmem:[%s264 + $0xb8] sm:$0xff]
              %313 = vst [vmem:[%s265 + $0xb8] sm:$0xff] %v312
              %v314 = vld [vmem:[%s264 + $0xc0] sm:$0xff]
              %315 = vst [vmem:[%s265 + $0xc0] sm:$0xff] %v314
              %v316 = vld [vmem:[%s264 + $0xc8] sm:$0xff]
              %317 = vst [vmem:[%s265 + $0xc8] sm:$0xff] %v316
              %v318 = vld [vmem:[%s264 + $0xd0] sm:$0xff]
              %319 = vst [vmem:[%s265 + $0xd0] sm:$0xff] %v318
              %v320 = vld [vmem:[%s264 + $0xd8] sm:$0xff]
              %321 = vst [vmem:[%s265 + $0xd8] sm:$0xff] %v320
              %v322 = vld [vmem:[%s264 + $0xe0] sm:$0xff]
              %323 = vst [vmem:[%s265 + $0xe0] sm:$0xff] %v322
              %v324 = vld [vmem:[%s264 + $0xe8] sm:$0xff]
              %325 = vst [vmem:[%s265 + $0xe8] sm:$0xff] %v324
              %v326 = vld [vmem:[%s264 + $0xf0] sm:$0xff]
              %327 = vst [vmem:[%s265 + $0xf0] sm:$0xff] %v326
            $region60: #{hgblock_forward.7} parent=54 // loop_footer
              %s263 = sadd.s32 1, %s259
            $region61: #{hgblock_forward.7} parent=54 // loop_footer_branch
              %258 = sbr.rel target = $region57
            $region62: #{hgblock_forward.7} parent=54 // loop_exit
              _
          $region55: #{hgblock_forward.7} parent=39 // pred_fallthru
            _
          %p328 = pneg %p254
          // Predicated region
          $region63: #{hgblock_forward.7} parent=39 // pred_check
            _
          $region64: #{hgblock_forward.7} parent=39 // pred_check_branch
            %330 = sbr.rel (%p254) target = $region66
          $region65: #{hgblock_forward.7} parent=39 // pred_region
            %s331 = sand.u32 248, 7
          $region66: #{hgblock_forward.7} parent=39 // pred_fallthru
            _
        $region40: #{hgblock_forward.7} parent=35 // pred_fallthru
          _
        // Predicated region
        $region41: #{hgblock_forward.7} parent=35 // pred_check
          %p238 = pneg %p234
        $region42: #{hgblock_forward.7} parent=35 // pred_check_branch
          %240 = sbr.rel (%p238) target = $region44
        $region43: #{hgblock_forward.7} parent=35 // pred_region
          %s241 = sshll.u32 1, 248
          %s242 = ssub.s32 %s241, 1
          loop: start=0, step=1, limit=1
          $region45: #{hgblock_forward.7} parent=43 // loop_pre_header
            _
          $region46: #{hgblock_forward.7} parent=43 // loop_header
            %s244 = sphi 0, %s248
            %p245 = scmp.ge.s32.totalorder %s244, 1
            %s249 = sphi %s228, %s228
            %s250 = sphi %s231, %s231
          $region47: #{hgblock_forward.7} parent=43 // loop_header_branch
            %247 = sbr.rel (%p245) target = $region51
          $region48: #{hgblock_forward.7} parent=43 // loop_body
            %v251 = vld [vmem:[%s249] sm:%s242]
            %252 = vst [vmem:[%s250] sm:%s242] %v251
          $region49: #{hgblock_forward.7} parent=43 // loop_footer
            %s248 = sadd.s32 1, %s244
          $region50: #{hgblock_forward.7} parent=43 // loop_footer_branch
            %243 = sbr.rel target = $region46
          $region51: #{hgblock_forward.7} parent=43 // loop_exit
            _
        $region44: #{hgblock_forward.7} parent=35 // pred_fallthru
          _
        // Predicated region
        $region67: #{hgblock_forward.7} parent=35 // pred_check
          _
        $region68: #{hgblock_forward.7} parent=35 // pred_check_branch
          %334 = sbr.rel (0) target = $region70
        $region69: #{hgblock_forward.7} parent=35 // pred_region
          %335 = vsyncadd %s232, 3968
        $region70: #{hgblock_forward.7} parent=35 // pred_fallthru
          _
      $region36: #{hgblock_forward.7} parent=31 // pred_fallthru
        _
      %s336 = smul.u32 %s215, 62
      %s337 = smul.addr %s336, 4
      %s338 = scalar_lea.vmem [#allocation2], %s337
      %s339 = scalar_lea.sflag [#allocation3], %s215
      %s340 = smul.u32 4, 62
      %s341 = smul.u32 %s340, 1
      %s342 = sshll.u32 %s341, 4
      %343 = dma.done %s339, %s342
      %s344 = sadd.s32 %s20, 1
      %p345 = scmp.lt.s32.totalorder %s344, 1
      // Predicated region
      $region71: #{hgblock_forward.7} parent=31 // pred_check
        %p346 = pneg %p345
      $region72: #{hgblock_forward.7} parent=31 // pred_check_branch
        %348 = sbr.rel (%p346) target = $region74
      $region73: #{hgblock_forward.7} parent=31 // pred_region
        %s349 = ssub.s32 1, %s215
        %s350 = sadd.s32 %s20, 2
        %s351 = smul.u32 %s350, 432
        %s352 = ssub.s32 %s351, 32
        %s353 = sshra.s32 %s352, 3
        %s354 = sand.u32 %s352, 7
        %s355 = smul.u32 %s19, 162
        %s356 = sadd.s32 %s353, %s355
        %s357 = smul.addr %s356, 4
        %s358 = scalar_lea.vmem %s0, %s357
        %s359 = smul.u32 %s349, 62
        %s360 = smul.addr %s359, 4
        %s361 = scalar_lea.vmem [#allocation2], %s360
        %s362 = scalar_lea.sflag [#allocation3], %s349
        %p364 = scmp.lt.u32.totalorder 248, 8
        %p365 = pneg %p364
        // Predicated region
        $region75: #{hgblock_forward.7} parent=73 // pred_check
          _
        $region76: #{hgblock_forward.7} parent=73 // pred_check_branch
          %367 = sbr.rel (%p364) target = $region78
        $region77: #{hgblock_forward.7} parent=73 // pred_region
          %s383 = sand.u32 248, 7
          %p384 = scmp.eq.s32.totalorder %s383, 0
          // Predicated region
          $region90: #{hgblock_forward.7} parent=77 // pred_check
            %p385 = pneg %p384
          $region91: #{hgblock_forward.7} parent=77 // pred_check_branch
            %387 = sbr.rel (%p385) target = $region93
          $region92: #{hgblock_forward.7} parent=77 // pred_region
            loop: start=0, step=1, limit=1
            $region94: #{hgblock_forward.7} parent=92 // loop_pre_header
              _
            $region95: #{hgblock_forward.7} parent=92 // loop_header
              %s389 = sphi 0, %s393
              %p390 = scmp.ge.s32.totalorder %s389, 1
              %s394 = sphi %s358, %s358
              %s395 = sphi %s361, %s361
            $region96: #{hgblock_forward.7} parent=92 // loop_header_branch
              %392 = sbr.rel (%p390) target = $region100
            $region97: #{hgblock_forward.7} parent=92 // loop_body
              %v396 = vld [vmem:[%s394] sm:$0xff]
              %397 = vst [vmem:[%s395] sm:$0xff] %v396
              %v398 = vld [vmem:[%s394 + $0x8] sm:$0xff]
              %399 = vst [vmem:[%s395 + $0x8] sm:$0xff] %v398
              %v400 = vld [vmem:[%s394 + $0x10] sm:$0xff]
              %401 = vst [vmem:[%s395 + $0x10] sm:$0xff] %v400
              %v402 = vld [vmem:[%s394 + $0x18] sm:$0xff]
              %403 = vst [vmem:[%s395 + $0x18] sm:$0xff] %v402
              %v404 = vld [vmem:[%s394 + $0x20] sm:$0xff]
              %405 = vst [vmem:[%s395 + $0x20] sm:$0xff] %v404
              %v406 = vld [vmem:[%s394 + $0x28] sm:$0xff]
              %407 = vst [vmem:[%s395 + $0x28] sm:$0xff] %v406
              %v408 = vld [vmem:[%s394 + $0x30] sm:$0xff]
              %409 = vst [vmem:[%s395 + $0x30] sm:$0xff] %v408
              %v410 = vld [vmem:[%s394 + $0x38] sm:$0xff]
              %411 = vst [vmem:[%s395 + $0x38] sm:$0xff] %v410
              %v412 = vld [vmem:[%s394 + $0x40] sm:$0xff]
              %413 = vst [vmem:[%s395 + $0x40] sm:$0xff] %v412
              %v414 = vld [vmem:[%s394 + $0x48] sm:$0xff]
              %415 = vst [vmem:[%s395 + $0x48] sm:$0xff] %v414
              %v416 = vld [vmem:[%s394 + $0x50] sm:$0xff]
              %417 = vst [vmem:[%s395 + $0x50] sm:$0xff] %v416
              %v418 = vld [vmem:[%s394 + $0x58] sm:$0xff]
              %419 = vst [vmem:[%s395 + $0x58] sm:$0xff] %v418
              %v420 = vld [vmem:[%s394 + $0x60] sm:$0xff]
              %421 = vst [vmem:[%s395 + $0x60] sm:$0xff] %v420
              %v422 = vld [vmem:[%s394 + $0x68] sm:$0xff]
              %423 = vst [vmem:[%s395 + $0x68] sm:$0xff] %v422
              %v424 = vld [vmem:[%s394 + $0x70] sm:$0xff]
              %425 = vst [vmem:[%s395 + $0x70] sm:$0xff] %v424
              %v426 = vld [vmem:[%s394 + $0x78] sm:$0xff]
              %427 = vst [vmem:[%s395 + $0x78] sm:$0xff] %v426
              %v428 = vld [vmem:[%s394 + $0x80] sm:$0xff]
              %429 = vst [vmem:[%s395 + $0x80] sm:$0xff] %v428
              %v430 = vld [vmem:[%s394 + $0x88] sm:$0xff]
              %431 = vst [vmem:[%s395 + $0x88] sm:$0xff] %v430
              %v432 = vld [vmem:[%s394 + $0x90] sm:$0xff]
              %433 = vst [vmem:[%s395 + $0x90] sm:$0xff] %v432
              %v434 = vld [vmem:[%s394 + $0x98] sm:$0xff]
              %435 = vst [vmem:[%s395 + $0x98] sm:$0xff] %v434
              %v436 = vld [vmem:[%s394 + $0xa0] sm:$0xff]
              %437 = vst [vmem:[%s395 + $0xa0] sm:$0xff] %v436
              %v438 = vld [vmem:[%s394 + $0xa8] sm:$0xff]
              %439 = vst [vmem:[%s395 + $0xa8] sm:$0xff] %v438
              %v440 = vld [vmem:[%s394 + $0xb0] sm:$0xff]
              %441 = vst [vmem:[%s395 + $0xb0] sm:$0xff] %v440
              %v442 = vld [vmem:[%s394 + $0xb8] sm:$0xff]
              %443 = vst [vmem:[%s395 + $0xb8] sm:$0xff] %v442
              %v444 = vld [vmem:[%s394 + $0xc0] sm:$0xff]
              %445 = vst [vmem:[%s395 + $0xc0] sm:$0xff] %v444
              %v446 = vld [vmem:[%s394 + $0xc8] sm:$0xff]
              %447 = vst [vmem:[%s395 + $0xc8] sm:$0xff] %v446
              %v448 = vld [vmem:[%s394 + $0xd0] sm:$0xff]
              %449 = vst [vmem:[%s395 + $0xd0] sm:$0xff] %v448
              %v450 = vld [vmem:[%s394 + $0xd8] sm:$0xff]
              %451 = vst [vmem:[%s395 + $0xd8] sm:$0xff] %v450
              %v452 = vld [vmem:[%s394 + $0xe0] sm:$0xff]
              %453 = vst [vmem:[%s395 + $0xe0] sm:$0xff] %v452
              %v454 = vld [vmem:[%s394 + $0xe8] sm:$0xff]
              %455 = vst [vmem:[%s395 + $0xe8] sm:$0xff] %v454
              %v456 = vld [vmem:[%s394 + $0xf0] sm:$0xff]
              %457 = vst [vmem:[%s395 + $0xf0] sm:$0xff] %v456
            $region98: #{hgblock_forward.7} parent=92 // loop_footer
              %s393 = sadd.s32 1, %s389
            $region99: #{hgblock_forward.7} parent=92 // loop_footer_branch
              %388 = sbr.rel target = $region95
            $region100: #{hgblock_forward.7} parent=92 // loop_exit
              _
          $region93: #{hgblock_forward.7} parent=77 // pred_fallthru
            _
          %p458 = pneg %p384
          // Predicated region
          $region101: #{hgblock_forward.7} parent=77 // pred_check
            _
          $region102: #{hgblock_forward.7} parent=77 // pred_check_branch
            %460 = sbr.rel (%p384) target = $region104
          $region103: #{hgblock_forward.7} parent=77 // pred_region
            %s461 = sand.u32 248, 7
          $region104: #{hgblock_forward.7} parent=77 // pred_fallthru
            _
        $region78: #{hgblock_forward.7} parent=73 // pred_fallthru
          _
        // Predicated region
        $region79: #{hgblock_forward.7} parent=73 // pred_check
          %p368 = pneg %p364
        $region80: #{hgblock_forward.7} parent=73 // pred_check_branch
          %370 = sbr.rel (%p368) target = $region82
        $region81: #{hgblock_forward.7} parent=73 // pred_region
          %s371 = sshll.u32 1, 248
          %s372 = ssub.s32 %s371, 1
          loop: start=0, step=1, limit=1
          $region83: #{hgblock_forward.7} parent=81 // loop_pre_header
            _
          $region84: #{hgblock_forward.7} parent=81 // loop_header
            %s374 = sphi 0, %s378
            %p375 = scmp.ge.s32.totalorder %s374, 1
            %s379 = sphi %s358, %s358
            %s380 = sphi %s361, %s361
          $region85: #{hgblock_forward.7} parent=81 // loop_header_branch
            %377 = sbr.rel (%p375) target = $region89
          $region86: #{hgblock_forward.7} parent=81 // loop_body
            %v381 = vld [vmem:[%s379] sm:%s372]
            %382 = vst [vmem:[%s380] sm:%s372] %v381
          $region87: #{hgblock_forward.7} parent=81 // loop_footer
            %s378 = sadd.s32 1, %s374
          $region88: #{hgblock_forward.7} parent=81 // loop_footer_branch
            %373 = sbr.rel target = $region84
          $region89: #{hgblock_forward.7} parent=81 // loop_exit
            _
        $region82: #{hgblock_forward.7} parent=73 // pred_fallthru
          _
        // Predicated region
        $region105: #{hgblock_forward.7} parent=73 // pred_check
          _
        $region106: #{hgblock_forward.7} parent=73 // pred_check_branch
          %464 = sbr.rel (0) target = $region108
        $region107: #{hgblock_forward.7} parent=73 // pred_region
          %465 = vsyncadd %s362, 3968
        $region108: #{hgblock_forward.7} parent=73 // pred_fallthru
          _
      $region74: #{hgblock_forward.7} parent=31 // pred_fallthru
        _
      %v466 = vld [vmem:[%s338] sm:$0x8]
      %v467 = vld [vmem:[%s338 + $0x4] sm:$0xf]
      %v468 = vld [vmem:[%s338 + $0x8] sm:$0xf]
      %v469 = vld [vmem:[%s338 + $0xc] sm:$0xf]
      %v470 = vld [vmem:[%s338 + $0x10] sm:$0xf]
      %v471 = vld [vmem:[%s338 + $0x14] sm:$0xf]
      %v472 = vld [vmem:[%s338 + $0x18] sm:$0xf]
      %v473 = vld [vmem:[%s338 + $0x1c] sm:$0xf]
      %v474 = vld [vmem:[%s338 + $0x20] sm:$0xf]
      %v475 = vld [vmem:[%s338 + $0x24] sm:$0xf]
      %v476 = vld [vmem:[%s338 + $0x28] sm:$0xf]
      %v477 = vld [vmem:[%s338 + $0x2c] sm:$0xf]
      %v478 = vld [vmem:[%s338 + $0x30] sm:$0xf]
      %v479 = vld [vmem:[%s338 + $0x34] sm:$0xf]
      %v480 = vld [vmem:[%s338 + $0x38] sm:$0xf]
      %v481 = vld [vmem:[%s338 + $0x3c] sm:$0xf]
      %v482 = vld [vmem:[%s338 + $0x40] sm:$0xf]
      %v483 = vld [vmem:[%s338 + $0x44] sm:$0xf]
      %v484 = vld [vmem:[%s338 + $0x48] sm:$0xf]
      %v485 = vld [vmem:[%s338 + $0x4c] sm:$0xf]
      %v486 = vld [vmem:[%s338 + $0x50] sm:$0xf]
      %v487 = vld [vmem:[%s338 + $0x54] sm:$0xf]
      %v488 = vld [vmem:[%s338 + $0x58] sm:$0xf]
      %v489 = vld [vmem:[%s338 + $0x5c] sm:$0xf]
      %v490 = vld [vmem:[%s338 + $0x60] sm:$0xf]
      %v491 = vld [vmem:[%s338 + $0x64] sm:$0xf]
      %v492 = vld [vmem:[%s338 + $0x68] sm:$0xf]
      %v493 = vld [vmem:[%s338 + $0x6c] sm:$0xf]
      %v494 = vld [vmem:[%s338 + $0x70] sm:$0xf]
      %v495 = vld [vmem:[%s338 + $0x74] sm:$0xf]
      %v496 = vld [vmem:[%s338 + $0x78] sm:$0xf]
      %v497 = vld [vmem:[%s338 + $0x7c] sm:$0xf]
      %v498 = vld [vmem:[%s338 + $0x80] sm:$0xf]
      %v499 = vld [vmem:[%s338 + $0x84] sm:$0xf]
      %v500 = vld [vmem:[%s338 + $0x88] sm:$0xf]
      %v501 = vld [vmem:[%s338 + $0x8c] sm:$0xf]
      %v502 = vld [vmem:[%s338 + $0x90] sm:$0xf]
      %v503 = vld [vmem:[%s338 + $0x94] sm:$0xf]
      %v504 = vld [vmem:[%s338 + $0x98] sm:$0xf]
      %v505 = vld [vmem:[%s338 + $0x9c] sm:$0xf]
      %v506 = vld [vmem:[%s338 + $0xa0] sm:$0xf]
      %v507 = vld [vmem:[%s338 + $0xa4] sm:$0xf]
      %v508 = vld [vmem:[%s338 + $0xa8] sm:$0xf]
      %v509 = vld [vmem:[%s338 + $0xac] sm:$0xf]
      %v510 = vld [vmem:[%s338 + $0xb0] sm:$0xf]
      %v511 = vld [vmem:[%s338 + $0xb4] sm:$0xf]
      %v512 = vld [vmem:[%s338 + $0xb8] sm:$0xf]
      %v513 = vld [vmem:[%s338 + $0xbc] sm:$0xf]
      %v514 = vld [vmem:[%s338 + $0xc0] sm:$0xf]
      %v515 = vld [vmem:[%s338 + $0xc4] sm:$0xf]
      %v516 = vld [vmem:[%s338 + $0xc8] sm:$0xf]
      %v517 = vld [vmem:[%s338 + $0xcc] sm:$0xf]
      %v518 = vld [vmem:[%s338 + $0xd0] sm:$0xf]
      %v519 = vld [vmem:[%s338 + $0xd4] sm:$0xf]
      %v520 = vld [vmem:[%s338 + $0xd8] sm:$0xf]
      %v521 = vld [vmem:[%s1] sm:$0xf]
      %v522 = vld [vmem:[%s1 + $0x4] sm:$0xf]
      %v523 = vld [vmem:[%s1 + $0x8] sm:$0xf]
      %v524 = vld [vmem:[%s1 + $0xc] sm:$0xf]
      %v525 = vld [vmem:[%s1 + $0x10] sm:$0xf]
      %v526 = vld [vmem:[%s1 + $0x14] sm:$0xf]
      %v527 = vld [vmem:[%s1 + $0x18] sm:$0xf]
      %v528 = vld [vmem:[%s1 + $0x1c] sm:$0xf]
      %v529 = vld [vmem:[%s1 + $0x20] sm:$0xf]
      %v530 = vld [vmem:[%s1 + $0x24] sm:$0xf]
      %v531 = vld [vmem:[%s1 + $0x28] sm:$0xf]
      %v532 = vld [vmem:[%s1 + $0x2c] sm:$0xf]
      %v533 = vld [vmem:[%s1 + $0x30] sm:$0xf]
      %v534 = vld [vmem:[%s1 + $0x34] sm:$0xf]
      %v535 = vld [vmem:[%s1 + $0x38] sm:$0xf]
      %v536 = vld [vmem:[%s1 + $0x3c] sm:$0xf]
      %s537 = scalar_lea.vmem %s1, 64
      %v538 = vld [vmem:[%s537] sm:$0xf]
      %v539 = vld [vmem:[%s537 + $0x4] sm:$0xf]
      %v540 = vld [vmem:[%s537 + $0x8] sm:$0xf]
      %v541 = vld [vmem:[%s537 + $0xc] sm:$0xf]
      %v542 = vld [vmem:[%s537 + $0x10] sm:$0xf]
      %v543 = vld [vmem:[%s537 + $0x14] sm:$0xf]
      %v544 = vld [vmem:[%s537 + $0x18] sm:$0xf]
      %v545 = vld [vmem:[%s537 + $0x1c] sm:$0xf]
      %v546 = vld [vmem:[%s537 + $0x20] sm:$0xf]
      %v547 = vld [vmem:[%s537 + $0x24] sm:$0xf]
      %v548 = vld [vmem:[%s537 + $0x28] sm:$0xf]
      %v549 = vld [vmem:[%s537 + $0x2c] sm:$0xf]
      %v550 = vld [vmem:[%s537 + $0x30] sm:$0xf]
      %v551 = vld [vmem:[%s537 + $0x34] sm:$0xf]
      %v552 = vld [vmem:[%s537 + $0x38] sm:$0xf]
      %v553 = vld [vmem:[%s537 + $0x3c] sm:$0xf]
      %v608 = vunpack.c.l.b16 %v467
      %v609 = vunpack.c.l.b16 %v468
      %v610 = vunpack.c.l.b16 %v469
      %v611 = vunpack.c.l.b16 %v470
      %v612 = vunpack.c.l.b16 %v471
      %v613 = vunpack.c.l.b16 %v472
      %v614 = vunpack.c.l.b16 %v473
      %v615 = vunpack.c.l.b16 %v474
      %v616 = vunpack.c.l.b16 %v475
      %v617 = vunpack.c.l.b16 %v476
      %v618 = vunpack.c.l.b16 %v477
      %v619 = vunpack.c.l.b16 %v478
      %v620 = vunpack.c.l.b16 %v479
      %v621 = vunpack.c.l.b16 %v480
      %v622 = vunpack.c.l.b16 %v481
      %v623 = vunpack.c.l.b16 %v482
      %v624 = vunpack.c.l.b16 %v483
      %v625 = vunpack.c.l.b16 %v484
      %v626 = vunpack.c.l.b16 %v485
      %v627 = vunpack.c.l.b16 %v486
      %v628 = vunpack.c.l.b16 %v487
      %v629 = vunpack.c.l.b16 %v488
      %v630 = vunpack.c.l.b16 %v489
      %v631 = vunpack.c.l.b16 %v490
      %v632 = vunpack.c.l.b16 %v491
      %v633 = vunpack.c.l.b16 %v492
      %v634 = vunpack.c.l.b16 %v493
      %v635 = vunpack.c.l.b16 %v494
      %v636 = vunpack.c.l.b16 %v495
      %v637 = vunpack.c.l.b16 %v496
      %v638 = vunpack.c.l.b16 %v497
      %v639 = vunpack.c.l.b16 %v498
      %v640 = vunpack.c.l.b16 %v499
      %v641 = vunpack.c.l.b16 %v500
      %v642 = vunpack.c.l.b16 %v501
      %v643 = vunpack.c.l.b16 %v502
      %v644 = vunpack.c.l.b16 %v503
      %v645 = vunpack.c.l.b16 %v504
      %v646 = vunpack.c.l.b16 %v505
      %v647 = vunpack.c.l.b16 %v506
      %v648 = vunpack.c.l.b16 %v507
      %v649 = vunpack.c.l.b16 %v508
      %v650 = vunpack.c.l.b16 %v509
      %v651 = vunpack.c.l.b16 %v510
      %v652 = vunpack.c.l.b16 %v511
      %v653 = vunpack.c.l.b16 %v512
      %v654 = vunpack.c.l.b16 %v513
      %v655 = vunpack.c.l.b16 %v514
      %v656 = vunpack.c.l.b16 %v515
      %v657 = vunpack.c.l.b16 %v516
      %v658 = vunpack.c.l.b16 %v517
      %v659 = vunpack.c.l.b16 %v518
      %v660 = vunpack.c.l.b16 %v519
      %v661 = vunpack.c.l.b16 %v520
      %v662 = vpack.c.b16 %v609, %v608
      %v663 = vpack.c.b16 %v611, %v610
      %v664 = vpack.c.b16 %v613, %v612
      %v665 = vpack.c.b16 %v615, %v614
      %v666 = vpack.c.b16 %v617, %v616
      %v667 = vpack.c.b16 %v619, %v618
      %v668 = vpack.c.b16 %v621, %v620
      %v669 = vpack.c.b16 %v623, %v622
      %v670 = vpack.c.b16 %v625, %v624
      %v671 = vpack.c.b16 %v627, %v626
      %v672 = vpack.c.b16 %v629, %v628
      %v673 = vpack.c.b16 %v631, %v630
      %v674 = vpack.c.b16 %v633, %v632
      %v675 = vpack.c.b16 %v635, %v634
      %v676 = vpack.c.b16 %v637, %v636
      %v677 = vpack.c.b16 %v639, %v638
      %v678 = vpack.c.b16 %v641, %v640
      %v679 = vpack.c.b16 %v643, %v642
      %v680 = vpack.c.b16 %v645, %v644
      %v681 = vpack.c.b16 %v647, %v646
      %v682 = vpack.c.b16 %v649, %v648
      %v683 = vpack.c.b16 %v651, %v650
      %v684 = vpack.c.b16 %v653, %v652
      %v685 = vpack.c.b16 %v655, %v654
      %v686 = vpack.c.b16 %v657, %v656
      %v687 = vpack.c.b16 %v659, %v658
      %v688 = vpack.c.b16 %v661, %v660
      %v732 = vunpack.c.l.b16 %v538
      %v733 = vunpack.c.l.b16 %v539
      %v734 = vunpack.c.l.b16 %v540
      %v735 = vunpack.c.l.b16 %v541
      %v736 = vunpack.c.l.b16 %v542
      %v737 = vunpack.c.l.b16 %v543
      %v738 = vunpack.c.l.b16 %v544
      %v739 = vunpack.c.l.b16 %v545
      %v740 = vunpack.c.l.b16 %v546
      %v741 = vunpack.c.l.b16 %v547
      %v742 = vunpack.c.l.b16 %v548
      %v743 = vunpack.c.l.b16 %v549
      %v744 = vunpack.c.l.b16 %v550
      %v745 = vunpack.c.l.b16 %v551
      %v746 = vunpack.c.l.b16 %v552
      %v747 = vunpack.c.l.b16 %v553
      %v748 = vpack.c.b16 %v733, %v732
      %v749 = vpack.c.b16 %v735, %v734
      %v750 = vpack.c.b16 %v737, %v736
      %v751 = vpack.c.b16 %v739, %v738
      %v752 = vpack.c.b16 %v741, %v740
      %v753 = vpack.c.b16 %v743, %v742
      %v754 = vpack.c.b16 %v745, %v744
      %v755 = vpack.c.b16 %v747, %v746
      %764 = vmatprep.subr.bf16.mxu0 0
      %765 = vmatpush1.bf16.msra.mxu0 %v755
      %766 = vmatprep.subr.bf16.mxu0 0
      %767 = vmatpush1.bf16.msra.mxu0 %v754
      %768 = vmatprep.subr.bf16.mxu0 0
      %769 = vmatpush1.bf16.msra.mxu0 %v753
      %770 = vmatprep.subr.bf16.mxu0 0
      %771 = vmatpush1.bf16.msra.mxu0 %v752
      %772 = vmatprep.subr.bf16.mxu0 0
      %773 = vmatpush1.bf16.msra.mxu0 %v751
      %774 = vmatprep.subr.bf16.mxu0 0
      %775 = vmatpush1.bf16.msra.mxu0 %v750
      %776 = vmatprep.subr.bf16.mxu0 0
      %777 = vmatpush1.bf16.msra.mxu0 %v749
      %778 = vmatprep.subr.bf16.mxu0 0
      %779 = vmatpush1.bf16.msra.mxu0 %v748
      %780 = vmatprep.subr.bf16.mxu0 0
      %781 = vmatpush2.bf16.msra.mxu0 0
      %782 = vmatprep.subr.bf16.mxu0 0
      %783 = vmatpush2.bf16.msra.mxu0 0
      %784 = vmatprep.subr.bf16.mxu0 0
      %785 = vmatpush2.bf16.msra.mxu0 0
      %786 = vmatprep.subr.bf16.mxu0 0
      %787 = vmatpush2.bf16.msra.mxu0 0
      %788 = vmatprep.subr.bf16.mxu0 0
      %789 = vmatpush2.bf16.msra.mxu0 0
      %790 = vmatprep.subr.bf16.mxu0 0
      %791 = vmatpush2.bf16.msra.mxu0 0
      %792 = vmatprep.subr.bf16.mxu0 0
      %793 = vmatpush2.bf16.msra.mxu0 0
      %794 = vmatprep.subr.bf16.mxu0 0
      %795 = vmatpush2.bf16.msra.mxu0 0
      %796 = vmatprep.mubr.bf16.mxu0 0
      %797 = vmatmul.mubr.bf16.gmra.mxu0 %v662
      %v798 = vpop.f32.mrf.mxu0
      %v799 = vadd.f32 0.0, %v798
      %v800 = vpop.f32.mrf.mxu0
      %v801 = vpop.f32.mrf.mxu0
      %v802 = vadd.f32 0.0, %v801
      %v803 = vpop.f32.mrf.mxu0
      %804 = vmatprep.mubr.bf16.mxu0 0
      %805 = vmatmul.mubr.bf16.gmra.mxu0 %v663
      %v806 = vpop.f32.mrf.mxu0
      %v807 = vadd.f32 0.0, %v806
      %v808 = vpop.f32.mrf.mxu0
      %v809 = vpop.f32.mrf.mxu0
      %v810 = vadd.f32 0.0, %v809
      %v811 = vpop.f32.mrf.mxu0
      %812 = vmatprep.mubr.bf16.mxu0 0
      %813 = vmatmul.mubr.bf16.gmra.mxu0 %v664
      %v814 = vpop.f32.mrf.mxu0
      %v815 = vadd.f32 0.0, %v814
      %v816 = vpop.f32.mrf.mxu0
      %v817 = vpop.f32.mrf.mxu0
      %v818 = vadd.f32 0.0, %v817
      %v819 = vpop.f32.mrf.mxu0
      %820 = vmatprep.mubr.bf16.mxu0 0
      %821 = vmatmul.mubr.bf16.gmra.mxu0 %v665
      %v822 = vpop.f32.mrf.mxu0
      %v823 = vadd.f32 0.0, %v822
      %v824 = vpop.f32.mrf.mxu0
      %v825 = vpop.f32.mrf.mxu0
      %v826 = vadd.f32 0.0, %v825
      %v827 = vpop.f32.mrf.mxu0
      %828 = vmatprep.mubr.bf16.mxu0 0
      %829 = vmatmul.mubr.bf16.gmra.mxu0 %v666
      %v830 = vpop.f32.mrf.mxu0
      %v831 = vadd.f32 0.0, %v830
      %v832 = vpop.f32.mrf.mxu0
      %v833 = vpop.f32.mrf.mxu0
      %v834 = vadd.f32 0.0, %v833
      %v835 = vpop.f32.mrf.mxu0
      %836 = vmatprep.mubr.bf16.mxu0 0
      %837 = vmatmul.mubr.bf16.gmra.mxu0 %v667
      %v838 = vpop.f32.mrf.mxu0
      %v839 = vadd.f32 0.0, %v838
      %v840 = vpop.f32.mrf.mxu0
      %v841 = vpop.f32.mrf.mxu0
      %v842 = vadd.f32 0.0, %v841
      %v843 = vpop.f32.mrf.mxu0
      %844 = vmatprep.mubr.bf16.mxu0 0
      %845 = vmatmul.mubr.bf16.gmra.mxu0 %v668
      %v846 = vpop.f32.mrf.mxu0
      %v847 = vadd.f32 0.0, %v846
      %v848 = vpop.f32.mrf.mxu0
      %v849 = vpop.f32.mrf.mxu0
      %v850 = vadd.f32 0.0, %v849
      %v851 = vpop.f32.mrf.mxu0
      %852 = vmatprep.mubr.bf16.mxu0 0
      %853 = vmatmul.mubr.bf16.gmra.mxu0 %v669
      %v854 = vpop.f32.mrf.mxu0
      %v855 = vadd.f32 0.0, %v854
      %v856 = vpop.f32.mrf.mxu0
      %v857 = vpop.f32.mrf.mxu0
      %v858 = vadd.f32 0.0, %v857
      %v859 = vpop.f32.mrf.mxu0
      %860 = vmatprep.mubr.bf16.mxu0 0
      %861 = vmatmul.mubr.bf16.gmra.mxu0 %v670
      %v862 = vpop.f32.mrf.mxu0
      %v863 = vadd.f32 0.0, %v862
      %v864 = vpop.f32.mrf.mxu0
      %v865 = vpop.f32.mrf.mxu0
      %v866 = vadd.f32 0.0, %v865
      %v867 = vpop.f32.mrf.mxu0
      %868 = vmatprep.mubr.bf16.mxu0 0
      %869 = vmatmul.mubr.bf16.gmra.mxu0 %v671
      %v870 = vpop.f32.mrf.mxu0
      %v871 = vadd.f32 0.0, %v870
      %v872 = vpop.f32.mrf.mxu0
      %v873 = vpop.f32.mrf.mxu0
      %v874 = vadd.f32 0.0, %v873
      %v875 = vpop.f32.mrf.mxu0
      %876 = vmatprep.mubr.bf16.mxu0 0
      %877 = vmatmul.mubr.bf16.gmra.mxu0 %v672
      %v878 = vpop.f32.mrf.mxu0
      %v879 = vadd.f32 0.0, %v878
      %v880 = vpop.f32.mrf.mxu0
      %v881 = vpop.f32.mrf.mxu0
      %v882 = vadd.f32 0.0, %v881
      %v883 = vpop.f32.mrf.mxu0
      %884 = vmatprep.mubr.bf16.mxu0 0
      %885 = vmatmul.mubr.bf16.gmra.mxu0 %v673
      %v886 = vpop.f32.mrf.mxu0
      %v887 = vadd.f32 0.0, %v886
      %v888 = vpop.f32.mrf.mxu0
      %v889 = vpop.f32.mrf.mxu0
      %v890 = vadd.f32 0.0, %v889
      %v891 = vpop.f32.mrf.mxu0
      %892 = vmatprep.mubr.bf16.mxu0 0
      %893 = vmatmul.mubr.bf16.gmra.mxu0 %v674
      %v894 = vpop.f32.mrf.mxu0
      %v895 = vadd.f32 0.0, %v894
      %v896 = vpop.f32.mrf.mxu0
      %v897 = vpop.f32.mrf.mxu0
      %v898 = vadd.f32 0.0, %v897
      %v899 = vpop.f32.mrf.mxu0
      %900 = vmatprep.mubr.bf16.mxu0 0
      %901 = vmatmul.mubr.bf16.gmra.mxu0 %v675
      %v902 = vpop.f32.mrf.mxu0
      %v903 = vadd.f32 0.0, %v902
      %v904 = vpop.f32.mrf.mxu0
      %v905 = vpop.f32.mrf.mxu0
      %v906 = vadd.f32 0.0, %v905
      %v907 = vpop.f32.mrf.mxu0
      %908 = vmatprep.mubr.bf16.mxu0 0
      %909 = vmatmul.mubr.bf16.gmra.mxu0 %v676
      %v910 = vpop.f32.mrf.mxu0
      %v911 = vadd.f32 0.0, %v910
      %v912 = vpop.f32.mrf.mxu0
      %v913 = vpop.f32.mrf.mxu0
      %v914 = vadd.f32 0.0, %v913
      %v915 = vpop.f32.mrf.mxu0
      %916 = vmatprep.mubr.bf16.mxu0 0
      %917 = vmatmul.mubr.bf16.gmra.mxu0 %v677
      %v918 = vpop.f32.mrf.mxu0
      %v919 = vadd.f32 0.0, %v918
      %v920 = vpop.f32.mrf.mxu0
      %v921 = vpop.f32.mrf.mxu0
      %v922 = vadd.f32 0.0, %v921
      %v923 = vpop.f32.mrf.mxu0
      %924 = vmatprep.mubr.bf16.mxu0 0
      %925 = vmatmul.mubr.bf16.gmra.mxu0 %v678
      %v926 = vpop.f32.mrf.mxu0
      %v927 = vadd.f32 0.0, %v926
      %v928 = vpop.f32.mrf.mxu0
      %v929 = vpop.f32.mrf.mxu0
      %v930 = vadd.f32 0.0, %v929
      %v931 = vpop.f32.mrf.mxu0
      %932 = vmatprep.mubr.bf16.mxu0 0
      %933 = vmatmul.mubr.bf16.gmra.mxu0 %v679
      %v934 = vpop.f32.mrf.mxu0
      %v935 = vadd.f32 0.0, %v934
      %v936 = vpop.f32.mrf.mxu0
      %v937 = vpop.f32.mrf.mxu0
      %v938 = vadd.f32 0.0, %v937
      %v939 = vpop.f32.mrf.mxu0
      %940 = vmatprep.mubr.bf16.mxu0 0
      %941 = vmatmul.mubr.bf16.gmra.mxu0 %v680
      %v942 = vpop.f32.mrf.mxu0
      %v943 = vadd.f32 0.0, %v942
      %v944 = vpop.f32.mrf.mxu0
      %v945 = vpop.f32.mrf.mxu0
      %v946 = vadd.f32 0.0, %v945
      %v947 = vpop.f32.mrf.mxu0
      %948 = vmatprep.mubr.bf16.mxu0 0
      %949 = vmatmul.mubr.bf16.gmra.mxu0 %v681
      %v950 = vpop.f32.mrf.mxu0
      %v951 = vadd.f32 0.0, %v950
      %v952 = vpop.f32.mrf.mxu0
      %v953 = vpop.f32.mrf.mxu0
      %v954 = vadd.f32 0.0, %v953
      %v955 = vpop.f32.mrf.mxu0
      %956 = vmatprep.mubr.bf16.mxu0 0
      %957 = vmatmul.mubr.bf16.gmra.mxu0 %v682
      %v958 = vpop.f32.mrf.mxu0
      %v959 = vadd.f32 0.0, %v958
      %v960 = vpop.f32.mrf.mxu0
      %v961 = vpop.f32.mrf.mxu0
      %v962 = vadd.f32 0.0, %v961
      %v963 = vpop.f32.mrf.mxu0
      %964 = vmatprep.mubr.bf16.mxu0 0
      %965 = vmatmul.mubr.bf16.gmra.mxu0 %v683
      %v966 = vpop.f32.mrf.mxu0
      %v967 = vadd.f32 0.0, %v966
      %v968 = vpop.f32.mrf.mxu0
      %v969 = vpop.f32.mrf.mxu0
      %v970 = vadd.f32 0.0, %v969
      %v971 = vpop.f32.mrf.mxu0
      %972 = vmatprep.mubr.bf16.mxu0 0
      %973 = vmatmul.mubr.bf16.gmra.mxu0 %v684
      %v974 = vpop.f32.mrf.mxu0
      %v975 = vadd.f32 0.0, %v974
      %v976 = vpop.f32.mrf.mxu0
      %v977 = vpop.f32.mrf.mxu0
      %v978 = vadd.f32 0.0, %v977
      %v979 = vpop.f32.mrf.mxu0
      %980 = vmatprep.mubr.bf16.mxu0 0
      %981 = vmatmul.mubr.bf16.gmra.mxu0 %v685
      %v982 = vpop.f32.mrf.mxu0
      %v983 = vadd.f32 0.0, %v982
      %v984 = vpop.f32.mrf.mxu0
      %v985 = vpop.f32.mrf.mxu0
      %v986 = vadd.f32 0.0, %v985
      %v987 = vpop.f32.mrf.mxu0
      %988 = vmatprep.mubr.bf16.mxu0 0
      %989 = vmatmul.mubr.bf16.gmra.mxu0 %v686
      %v990 = vpop.f32.mrf.mxu0
      %v991 = vadd.f32 0.0, %v990
      %v992 = vpop.f32.mrf.mxu0
      %v993 = vpop.f32.mrf.mxu0
      %v994 = vadd.f32 0.0, %v993
      %v995 = vpop.f32.mrf.mxu0
      %996 = vmatprep.mubr.bf16.mxu0 0
      %997 = vmatmul.mubr.bf16.gmra.mxu0 %v687
      %v998 = vpop.f32.mrf.mxu0
      %v999 = vadd.f32 0.0, %v998
      %v1000 = vpop.f32.mrf.mxu0
      %v1001 = vpop.f32.mrf.mxu0
      %v1002 = vadd.f32 0.0, %v1001
      %v1003 = vpop.f32.mrf.mxu0
      %1004 = vmatprep.mubr.bf16.mxu0 0
      %1005 = vmatmul.mubr.bf16.gmra.mxu0 %v688
      %v1006 = vpop.f32.mrf.mxu0
      %v1007 = vadd.f32 0.0, %v1006
      %v1008 = vpop.f32.mrf.mxu0
      %v1009 = vpop.f32.mrf.mxu0
      %v1010 = vadd.f32 0.0, %v1009
      %v1011 = vpop.f32.mrf.mxu0
      %1012 = vdwg.mxu0
      %v1014 = vunpack.c.l.b16 %v466
      %v1015 = vpack.c.b16 %v608, %v1014
      %v1016 = vpack.c.b16 %v610, %v609
      %v1017 = vpack.c.b16 %v612, %v611
      %v1018 = vpack.c.b16 %v614, %v613
      %v1019 = vpack.c.b16 %v616, %v615
      %v1020 = vpack.c.b16 %v618, %v617
      %v1021 = vpack.c.b16 %v620, %v619
      %v1022 = vpack.c.b16 %v622, %v621
      %v1023 = vpack.c.b16 %v624, %v623
      %v1024 = vpack.c.b16 %v626, %v625
      %v1025 = vpack.c.b16 %v628, %v627
      %v1026 = vpack.c.b16 %v630, %v629
      %v1027 = vpack.c.b16 %v632, %v631
      %v1028 = vpack.c.b16 %v634, %v633
      %v1029 = vpack.c.b16 %v636, %v635
      %v1030 = vpack.c.b16 %v638, %v637
      %v1031 = vpack.c.b16 %v640, %v639
      %v1032 = vpack.c.b16 %v642, %v641
      %v1033 = vpack.c.b16 %v644, %v643
      %v1034 = vpack.c.b16 %v646, %v645
      %v1035 = vpack.c.b16 %v648, %v647
      %v1036 = vpack.c.b16 %v650, %v649
      %v1037 = vpack.c.b16 %v652, %v651
      %v1038 = vpack.c.b16 %v654, %v653
      %v1039 = vpack.c.b16 %v656, %v655
      %v1040 = vpack.c.b16 %v658, %v657
      %v1041 = vpack.c.b16 %v660, %v659
      %v1042 = vpack.c.b16 %v661, %v661
      %vm1043 = vsmask.f32 4352
      %v1045 = vshrl.u32 %v1015, 16
      %v1047 = vrot.slane %v1045, 3
      %v1048 = vshll.u32 %v1015, 16
      %v1050 = vrot.slane %v1048, 4
      %v1051 = vor.u32 %v1047, %v1050
      %v1053 = vshrl.u32 %v1016, 16
      %v1055 = vrot.slane %v1053, 3
      %v1056 = vshll.u32 %v1016, 16
      %v1058 = vrot.slane %v1056, 4
      %v1059 = vor.u32 %v1055, %v1058
      %v1060 = vsel %vm1043, %v1051, %v1059
      %v1062 = vshrl.u32 %v1017, 16
      %v1064 = vrot.slane %v1062, 3
      %v1065 = vshll.u32 %v1017, 16
      %v1067 = vrot.slane %v1065, 4
      %v1068 = vor.u32 %v1064, %v1067
      %v1069 = vsel %vm1043, %v1059, %v1068
      %v1071 = vshrl.u32 %v1018, 16
      %v1073 = vrot.slane %v1071, 3
      %v1074 = vshll.u32 %v1018, 16
      %v1076 = vrot.slane %v1074, 4
      %v1077 = vor.u32 %v1073, %v1076
      %v1078 = vsel %vm1043, %v1068, %v1077
      %v1080 = vshrl.u32 %v1019, 16
      %v1082 = vrot.slane %v1080, 3
      %v1083 = vshll.u32 %v1019, 16
      %v1085 = vrot.slane %v1083, 4
      %v1086 = vor.u32 %v1082, %v1085
      %v1087 = vsel %vm1043, %v1077, %v1086
      %v1089 = vshrl.u32 %v1020, 16
      %v1091 = vrot.slane %v1089, 3
      %v1092 = vshll.u32 %v1020, 16
      %v1094 = vrot.slane %v1092, 4
      %v1095 = vor.u32 %v1091, %v1094
      %v1096 = vsel %vm1043, %v1086, %v1095
      %v1098 = vshrl.u32 %v1021, 16
      %v1100 = vrot.slane %v1098, 3
      %v1101 = vshll.u32 %v1021, 16
      %v1103 = vrot.slane %v1101, 4
      %v1104 = vor.u32 %v1100, %v1103
      %v1105 = vsel %vm1043, %v1095, %v1104
      %v1107 = vshrl.u32 %v1022, 16
      %v1109 = vrot.slane %v1107, 3
      %v1110 = vshll.u32 %v1022, 16
      %v1112 = vrot.slane %v1110, 4
      %v1113 = vor.u32 %v1109, %v1112
      %v1114 = vsel %vm1043, %v1104, %v1113
      %v1116 = vshrl.u32 %v1023, 16
      %v1118 = vrot.slane %v1116, 3
      %v1119 = vshll.u32 %v1023, 16
      %v1121 = vrot.slane %v1119, 4
      %v1122 = vor.u32 %v1118, %v1121
      %v1123 = vsel %vm1043, %v1113, %v1122
      %v1125 = vshrl.u32 %v1024, 16
      %v1127 = vrot.slane %v1125, 3
      %v1128 = vshll.u32 %v1024, 16
      %v1130 = vrot.slane %v1128, 4
      %v1131 = vor.u32 %v1127, %v1130
      %v1132 = vsel %vm1043, %v1122, %v1131
      %v1134 = vshrl.u32 %v1025, 16
      %v1136 = vrot.slane %v1134, 3
      %v1137 = vshll.u32 %v1025, 16
      %v1139 = vrot.slane %v1137, 4
      %v1140 = vor.u32 %v1136, %v1139
      %v1141 = vsel %vm1043, %v1131, %v1140
      %v1143 = vshrl.u32 %v1026, 16
      %v1145 = vrot.slane %v1143, 3
      %v1146 = vshll.u32 %v1026, 16
      %v1148 = vrot.slane %v1146, 4
      %v1149 = vor.u32 %v1145, %v1148
      %v1150 = vsel %vm1043, %v1140, %v1149
      %v1152 = vshrl.u32 %v1027, 16
      %v1154 = vrot.slane %v1152, 3
      %v1155 = vshll.u32 %v1027, 16
      %v1157 = vrot.slane %v1155, 4
      %v1158 = vor.u32 %v1154, %v1157
      %v1159 = vsel %vm1043, %v1149, %v1158
      %v1161 = vshrl.u32 %v1028, 16
      %v1163 = vrot.slane %v1161, 3
      %v1164 = vshll.u32 %v1028, 16
      %v1166 = vrot.slane %v1164, 4
      %v1167 = vor.u32 %v1163, %v1166
      %v1168 = vsel %vm1043, %v1158, %v1167
      %v1170 = vshrl.u32 %v1029, 16
      %v1172 = vrot.slane %v1170, 3
      %v1173 = vshll.u32 %v1029, 16
      %v1175 = vrot.slane %v1173, 4
      %v1176 = vor.u32 %v1172, %v1175
      %v1177 = vsel %vm1043, %v1167, %v1176
      %v1179 = vshrl.u32 %v1030, 16
      %v1181 = vrot.slane %v1179, 3
      %v1182 = vshll.u32 %v1030, 16
      %v1184 = vrot.slane %v1182, 4
      %v1185 = vor.u32 %v1181, %v1184
      %v1186 = vsel %vm1043, %v1176, %v1185
      %v1188 = vshrl.u32 %v1031, 16
      %v1190 = vrot.slane %v1188, 3
      %v1191 = vshll.u32 %v1031, 16
      %v1193 = vrot.slane %v1191, 4
      %v1194 = vor.u32 %v1190, %v1193
      %v1195 = vsel %vm1043, %v1185, %v1194
      %v1197 = vshrl.u32 %v1032, 16
      %v1199 = vrot.slane %v1197, 3
      %v1200 = vshll.u32 %v1032, 16
      %v1202 = vrot.slane %v1200, 4
      %v1203 = vor.u32 %v1199, %v1202
      %v1204 = vsel %vm1043, %v1194, %v1203
      %v1206 = vshrl.u32 %v1033, 16
      %v1208 = vrot.slane %v1206, 3
      %v1209 = vshll.u32 %v1033, 16
      %v1211 = vrot.slane %v1209, 4
      %v1212 = vor.u32 %v1208, %v1211
      %v1213 = vsel %vm1043, %v1203, %v1212
      %v1215 = vshrl.u32 %v1034, 16
      %v1217 = vrot.slane %v1215, 3
      %v1218 = vshll.u32 %v1034, 16
      %v1220 = vrot.slane %v1218, 4
      %v1221 = vor.u32 %v1217, %v1220
      %v1222 = vsel %vm1043, %v1212, %v1221
      %v1224 = vshrl.u32 %v1035, 16
      %v1226 = vrot.slane %v1224, 3
      %v1227 = vshll.u32 %v1035, 16
      %v1229 = vrot.slane %v1227, 4
      %v1230 = vor.u32 %v1226, %v1229
      %v1231 = vsel %vm1043, %v1221, %v1230
      %v1233 = vshrl.u32 %v1036, 16
      %v1235 = vrot.slane %v1233, 3
      %v1236 = vshll.u32 %v1036, 16
      %v1238 = vrot.slane %v1236, 4
      %v1239 = vor.u32 %v1235, %v1238
      %v1240 = vsel %vm1043, %v1230, %v1239
      %v1242 = vshrl.u32 %v1037, 16
      %v1244 = vrot.slane %v1242, 3
      %v1245 = vshll.u32 %v1037, 16
      %v1247 = vrot.slane %v1245, 4
      %v1248 = vor.u32 %v1244, %v1247
      %v1249 = vsel %vm1043, %v1239, %v1248
      %v1251 = vshrl.u32 %v1038, 16
      %v1253 = vrot.slane %v1251, 3
      %v1254 = vshll.u32 %v1038, 16
      %v1256 = vrot.slane %v1254, 4
      %v1257 = vor.u32 %v1253, %v1256
      %v1258 = vsel %vm1043, %v1248, %v1257
      %v1260 = vshrl.u32 %v1039, 16
      %v1262 = vrot.slane %v1260, 3
      %v1263 = vshll.u32 %v1039, 16
      %v1265 = vrot.slane %v1263, 4
      %v1266 = vor.u32 %v1262, %v1265
      %v1267 = vsel %vm1043, %v1257, %v1266
      %v1269 = vshrl.u32 %v1040, 16
      %v1271 = vrot.slane %v1269, 3
      %v1272 = vshll.u32 %v1040, 16
      %v1274 = vrot.slane %v1272, 4
      %v1275 = vor.u32 %v1271, %v1274
      %v1276 = vsel %vm1043, %v1266, %v1275
      %v1278 = vshrl.u32 %v1041, 16
      %v1280 = vrot.slane %v1278, 3
      %v1281 = vshll.u32 %v1041, 16
      %v1283 = vrot.slane %v1281, 4
      %v1284 = vor.u32 %v1280, %v1283
      %v1285 = vsel %vm1043, %v1275, %v1284
      %v1287 = vshrl.u32 %v1042, 16
      %v1289 = vrot.slane %v1287, 3
      %v1290 = vshll.u32 %v1042, 16
      %v1292 = vrot.slane %v1290, 4
      %v1293 = vor.u32 %v1289, %v1292
      %v1294 = vsel %vm1043, %v1284, %v1293
      %v1338 = vunpack.c.l.b16 %v521
      %v1339 = vunpack.c.l.b16 %v522
      %v1340 = vunpack.c.l.b16 %v523
      %v1341 = vunpack.c.l.b16 %v524
      %v1342 = vunpack.c.l.b16 %v525
      %v1343 = vunpack.c.l.b16 %v526
      %v1344 = vunpack.c.l.b16 %v527
      %v1345 = vunpack.c.l.b16 %v528
      %v1346 = vunpack.c.l.b16 %v529
      %v1347 = vunpack.c.l.b16 %v530
      %v1348 = vunpack.c.l.b16 %v531
      %v1349 = vunpack.c.l.b16 %v532
      %v1350 = vunpack.c.l.b16 %v533
      %v1351 = vunpack.c.l.b16 %v534
      %v1352 = vunpack.c.l.b16 %v535
      %v1353 = vunpack.c.l.b16 %v536
      %v1354 = vpack.c.b16 %v1339, %v1338
      %v1355 = vpack.c.b16 %v1341, %v1340
      %v1356 = vpack.c.b16 %v1343, %v1342
      %v1357 = vpack.c.b16 %v1345, %v1344
      %v1358 = vpack.c.b16 %v1347, %v1346
      %v1359 = vpack.c.b16 %v1349, %v1348
      %v1360 = vpack.c.b16 %v1351, %v1350
      %v1361 = vpack.c.b16 %v1353, %v1352
      %1370 = vmatprep.subr.bf16.mxu0 0
      %1371 = vmatpush1.bf16.msra.mxu0 %v1361
      %1372 = vmatprep.subr.bf16.mxu0 0
      %1373 = vmatpush1.bf16.msra.mxu0 %v1360
      %1374 = vmatprep.subr.bf16.mxu0 0
      %1375 = vmatpush1.bf16.msra.mxu0 %v1359
      %1376 = vmatprep.subr.bf16.mxu0 0
      %1377 = vmatpush1.bf16.msra.mxu0 %v1358
      %1378 = vmatprep.subr.bf16.mxu0 0
      %1379 = vmatpush1.bf16.msra.mxu0 %v1357
      %1380 = vmatprep.subr.bf16.mxu0 0
      %1381 = vmatpush1.bf16.msra.mxu0 %v1356
      %1382 = vmatprep.subr.bf16.mxu0 0
      %1383 = vmatpush1.bf16.msra.mxu0 %v1355
      %1384 = vmatprep.subr.bf16.mxu0 0
      %1385 = vmatpush1.bf16.msra.mxu0 %v1354
      %1386 = vmatprep.subr.bf16.mxu0 0
      %1387 = vmatpush2.bf16.msra.mxu0 0
      %1388 = vmatprep.subr.bf16.mxu0 0
      %1389 = vmatpush2.bf16.msra.mxu0 0
      %1390 = vmatprep.subr.bf16.mxu0 0
      %1391 = vmatpush2.bf16.msra.mxu0 0
      %1392 = vmatprep.subr.bf16.mxu0 0
      %1393 = vmatpush2.bf16.msra.mxu0 0
      %1394 = vmatprep.subr.bf16.mxu0 0
      %1395 = vmatpush2.bf16.msra.mxu0 0
      %1396 = vmatprep.subr.bf16.mxu0 0
      %1397 = vmatpush2.bf16.msra.mxu0 0
      %1398 = vmatprep.subr.bf16.mxu0 0
      %1399 = vmatpush2.bf16.msra.mxu0 0
      %1400 = vmatprep.subr.bf16.mxu0 0
      %1401 = vmatpush2.bf16.msra.mxu0 0
      %1402 = vmatprep.mubr.bf16.mxu0 0
      %1403 = vmatmul.mubr.bf16.gmra.mxu0 %v1060
      %v1404 = vpop.f32.mrf.mxu0
      %v1405 = vadd.f32 %v799, %v1404
      %v1406 = vpop.f32.mrf.mxu0
      %v1407 = vpop.f32.mrf.mxu0
      %v1408 = vadd.f32 %v802, %v1407
      %v1409 = vpop.f32.mrf.mxu0
      %1410 = vmatprep.mubr.bf16.mxu0 0
      %1411 = vmatmul.mubr.bf16.gmra.mxu0 %v1069
      %v1412 = vpop.f32.mrf.mxu0
      %v1413 = vadd.f32 %v807, %v1412
      %v1414 = vpop.f32.mrf.mxu0
      %v1415 = vpop.f32.mrf.mxu0
      %v1416 = vadd.f32 %v810, %v1415
      %v1417 = vpop.f32.mrf.mxu0
      %1418 = vmatprep.mubr.bf16.mxu0 0
      %1419 = vmatmul.mubr.bf16.gmra.mxu0 %v1078
      %v1420 = vpop.f32.mrf.mxu0
      %v1421 = vadd.f32 %v815, %v1420
      %v1422 = vpop.f32.mrf.mxu0
      %v1423 = vpop.f32.mrf.mxu0
      %v1424 = vadd.f32 %v818, %v1423
      %v1425 = vpop.f32.mrf.mxu0
      %1426 = vmatprep.mubr.bf16.mxu0 0
      %1427 = vmatmul.mubr.bf16.gmra.mxu0 %v1087
      %v1428 = vpop.f32.mrf.mxu0
      %v1429 = vadd.f32 %v823, %v1428
      %v1430 = vpop.f32.mrf.mxu0
      %v1431 = vpop.f32.mrf.mxu0
      %v1432 = vadd.f32 %v826, %v1431
      %v1433 = vpop.f32.mrf.mxu0
      %1434 = vmatprep.mubr.bf16.mxu0 0
      %1435 = vmatmul.mubr.bf16.gmra.mxu0 %v1096
      %v1436 = vpop.f32.mrf.mxu0
      %v1437 = vadd.f32 %v831, %v1436
      %v1438 = vpop.f32.mrf.mxu0
      %v1439 = vpop.f32.mrf.mxu0
      %v1440 = vadd.f32 %v834, %v1439
      %v1441 = vpop.f32.mrf.mxu0
      %1442 = vmatprep.mubr.bf16.mxu0 0
      %1443 = vmatmul.mubr.bf16.gmra.mxu0 %v1105
      %v1444 = vpop.f32.mrf.mxu0
      %v1445 = vadd.f32 %v839, %v1444
      %v1446 = vpop.f32.mrf.mxu0
      %v1447 = vpop.f32.mrf.mxu0
      %v1448 = vadd.f32 %v842, %v1447
      %v1449 = vpop.f32.mrf.mxu0
      %1450 = vmatprep.mubr.bf16.mxu0 0
      %1451 = vmatmul.mubr.bf16.gmra.mxu0 %v1114
      %v1452 = vpop.f32.mrf.mxu0
      %v1453 = vadd.f32 %v847, %v1452
      %v1454 = vpop.f32.mrf.mxu0
      %v1455 = vpop.f32.mrf.mxu0
      %v1456 = vadd.f32 %v850, %v1455
      %v1457 = vpop.f32.mrf.mxu0
      %1458 = vmatprep.mubr.bf16.mxu0 0
      %1459 = vmatmul.mubr.bf16.gmra.mxu0 %v1123
      %v1460 = vpop.f32.mrf.mxu0
      %v1461 = vadd.f32 %v855, %v1460
      %v1462 = vpop.f32.mrf.mxu0
      %v1463 = vpop.f32.mrf.mxu0
      %v1464 = vadd.f32 %v858, %v1463
      %v1465 = vpop.f32.mrf.mxu0
      %1466 = vmatprep.mubr.bf16.mxu0 0
      %1467 = vmatmul.mubr.bf16.gmra.mxu0 %v1132
      %v1468 = vpop.f32.mrf.mxu0
      %v1469 = vadd.f32 %v863, %v1468
      %v1470 = vpop.f32.mrf.mxu0
      %v1471 = vpop.f32.mrf.mxu0
      %v1472 = vadd.f32 %v866, %v1471
      %v1473 = vpop.f32.mrf.mxu0
      %1474 = vmatprep.mubr.bf16.mxu0 0
      %1475 = vmatmul.mubr.bf16.gmra.mxu0 %v1141
      %v1476 = vpop.f32.mrf.mxu0
      %v1477 = vadd.f32 %v871, %v1476
      %v1478 = vpop.f32.mrf.mxu0
      %v1479 = vpop.f32.mrf.mxu0
      %v1480 = vadd.f32 %v874, %v1479
      %v1481 = vpop.f32.mrf.mxu0
      %1482 = vmatprep.mubr.bf16.mxu0 0
      %1483 = vmatmul.mubr.bf16.gmra.mxu0 %v1150
      %v1484 = vpop.f32.mrf.mxu0
      %v1485 = vadd.f32 %v879, %v1484
      %v1486 = vpop.f32.mrf.mxu0
      %v1487 = vpop.f32.mrf.mxu0
      %v1488 = vadd.f32 %v882, %v1487
      %v1489 = vpop.f32.mrf.mxu0
      %1490 = vmatprep.mubr.bf16.mxu0 0
      %1491 = vmatmul.mubr.bf16.gmra.mxu0 %v1159
      %v1492 = vpop.f32.mrf.mxu0
      %v1493 = vadd.f32 %v887, %v1492
      %v1494 = vpop.f32.mrf.mxu0
      %v1495 = vpop.f32.mrf.mxu0
      %v1496 = vadd.f32 %v890, %v1495
      %v1497 = vpop.f32.mrf.mxu0
      %1498 = vmatprep.mubr.bf16.mxu0 0
      %1499 = vmatmul.mubr.bf16.gmra.mxu0 %v1168
      %v1500 = vpop.f32.mrf.mxu0
      %v1501 = vadd.f32 %v895, %v1500
      %v1502 = vpop.f32.mrf.mxu0
      %v1503 = vpop.f32.mrf.mxu0
      %v1504 = vadd.f32 %v898, %v1503
      %v1505 = vpop.f32.mrf.mxu0
      %1506 = vmatprep.mubr.bf16.mxu0 0
      %1507 = vmatmul.mubr.bf16.gmra.mxu0 %v1177
      %v1508 = vpop.f32.mrf.mxu0
      %v1509 = vadd.f32 %v903, %v1508
      %v1510 = vpop.f32.mrf.mxu0
      %v1511 = vpop.f32.mrf.mxu0
      %v1512 = vadd.f32 %v906, %v1511
      %v1513 = vpop.f32.mrf.mxu0
      %1514 = vmatprep.mubr.bf16.mxu0 0
      %1515 = vmatmul.mubr.bf16.gmra.mxu0 %v1186
      %v1516 = vpop.f32.mrf.mxu0
      %v1517 = vadd.f32 %v911, %v1516
      %v1518 = vpop.f32.mrf.mxu0
      %v1519 = vpop.f32.mrf.mxu0
      %v1520 = vadd.f32 %v914, %v1519
      %v1521 = vpop.f32.mrf.mxu0
      %1522 = vmatprep.mubr.bf16.mxu0 0
      %1523 = vmatmul.mubr.bf16.gmra.mxu0 %v1195
      %v1524 = vpop.f32.mrf.mxu0
      %v1525 = vadd.f32 %v919, %v1524
      %v1526 = vpop.f32.mrf.mxu0
      %v1527 = vpop.f32.mrf.mxu0
      %v1528 = vadd.f32 %v922, %v1527
      %v1529 = vpop.f32.mrf.mxu0
      %1530 = vmatprep.mubr.bf16.mxu0 0
      %1531 = vmatmul.mubr.bf16.gmra.mxu0 %v1204
      %v1532 = vpop.f32.mrf.mxu0
      %v1533 = vadd.f32 %v927, %v1532
      %v1534 = vpop.f32.mrf.mxu0
      %v1535 = vpop.f32.mrf.mxu0
      %v1536 = vadd.f32 %v930, %v1535
      %v1537 = vpop.f32.mrf.mxu0
      %1538 = vmatprep.mubr.bf16.mxu0 0
      %1539 = vmatmul.mubr.bf16.gmra.mxu0 %v1213
      %v1540 = vpop.f32.mrf.mxu0
      %v1541 = vadd.f32 %v935, %v1540
      %v1542 = vpop.f32.mrf.mxu0
      %v1543 = vpop.f32.mrf.mxu0
      %v1544 = vadd.f32 %v938, %v1543
      %v1545 = vpop.f32.mrf.mxu0
      %1546 = vmatprep.mubr.bf16.mxu0 0
      %1547 = vmatmul.mubr.bf16.gmra.mxu0 %v1222
      %v1548 = vpop.f32.mrf.mxu0
      %v1549 = vadd.f32 %v943, %v1548
      %v1550 = vpop.f32.mrf.mxu0
      %v1551 = vpop.f32.mrf.mxu0
      %v1552 = vadd.f32 %v946, %v1551
      %v1553 = vpop.f32.mrf.mxu0
      %1554 = vmatprep.mubr.bf16.mxu0 0
      %1555 = vmatmul.mubr.bf16.gmra.mxu0 %v1231
      %v1556 = vpop.f32.mrf.mxu0
      %v1557 = vadd.f32 %v951, %v1556
      %v1558 = vpop.f32.mrf.mxu0
      %v1559 = vpop.f32.mrf.mxu0
      %v1560 = vadd.f32 %v954, %v1559
      %v1561 = vpop.f32.mrf.mxu0
      %1562 = vmatprep.mubr.bf16.mxu0 0
      %1563 = vmatmul.mubr.bf16.gmra.mxu0 %v1240
      %v1564 = vpop.f32.mrf.mxu0
      %v1565 = vadd.f32 %v959, %v1564
      %v1566 = vpop.f32.mrf.mxu0
      %v1567 = vpop.f32.mrf.mxu0
      %v1568 = vadd.f32 %v962, %v1567
      %v1569 = vpop.f32.mrf.mxu0
      %1570 = vmatprep.mubr.bf16.mxu0 0
      %1571 = vmatmul.mubr.bf16.gmra.mxu0 %v1249
      %v1572 = vpop.f32.mrf.mxu0
      %v1573 = vadd.f32 %v967, %v1572
      %v1574 = vpop.f32.mrf.mxu0
      %v1575 = vpop.f32.mrf.mxu0
      %v1576 = vadd.f32 %v970, %v1575
      %v1577 = vpop.f32.mrf.mxu0
      %1578 = vmatprep.mubr.bf16.mxu0 0
      %1579 = vmatmul.mubr.bf16.gmra.mxu0 %v1258
      %v1580 = vpop.f32.mrf.mxu0
      %v1581 = vadd.f32 %v975, %v1580
      %v1582 = vpop.f32.mrf.mxu0
      %v1583 = vpop.f32.mrf.mxu0
      %v1584 = vadd.f32 %v978, %v1583
      %v1585 = vpop.f32.mrf.mxu0
      %1586 = vmatprep.mubr.bf16.mxu0 0
      %1587 = vmatmul.mubr.bf16.gmra.mxu0 %v1267
      %v1588 = vpop.f32.mrf.mxu0
      %v1589 = vadd.f32 %v983, %v1588
      %v1590 = vpop.f32.mrf.mxu0
      %v1591 = vpop.f32.mrf.mxu0
      %v1592 = vadd.f32 %v986, %v1591
      %v1593 = vpop.f32.mrf.mxu0
      %1594 = vmatprep.mubr.bf16.mxu0 0
      %1595 = vmatmul.mubr.bf16.gmra.mxu0 %v1276
      %v1596 = vpop.f32.mrf.mxu0
      %v1597 = vadd.f32 %v991, %v1596
      %v1598 = vpop.f32.mrf.mxu0
      %v1599 = vpop.f32.mrf.mxu0
      %v1600 = vadd.f32 %v994, %v1599
      %v1601 = vpop.f32.mrf.mxu0
      %1602 = vmatprep.mubr.bf16.mxu0 0
      %1603 = vmatmul.mubr.bf16.gmra.mxu0 %v1285
      %v1604 = vpop.f32.mrf.mxu0
      %v1605 = vadd.f32 %v999, %v1604
      %v1606 = vpop.f32.mrf.mxu0
      %v1607 = vpop.f32.mrf.mxu0
      %v1608 = vadd.f32 %v1002, %v1607
      %v1609 = vpop.f32.mrf.mxu0
      %1610 = vmatprep.mubr.bf16.mxu0 0
      %1611 = vmatmul.mubr.bf16.gmra.mxu0 %v1294
      %v1612 = vpop.f32.mrf.mxu0
      %v1613 = vadd.f32 %v1007, %v1612
      %v1614 = vpop.f32.mrf.mxu0
      %v1615 = vpop.f32.mrf.mxu0
      %v1616 = vadd.f32 %v1010, %v1615
      %v1617 = vpop.f32.mrf.mxu0
      %1618 = vdwg.mxu0
      %v1619 = vld [vmem:[%s338 + $0x4] sm:$0xf]
      %v1620 = vld [vmem:[%s338 + $0x8] sm:$0xf]
      %v1621 = vld [vmem:[%s338 + $0xc] sm:$0xf]
      %v1622 = vld [vmem:[%s338 + $0x10] sm:$0xf]
      %v1623 = vld [vmem:[%s338 + $0x14] sm:$0xf]
      %v1624 = vld [vmem:[%s338 + $0x18] sm:$0xf]
      %v1625 = vld [vmem:[%s338 + $0x1c] sm:$0xf]
      %v1626 = vld [vmem:[%s338 + $0x20] sm:$0xf]
      %v1627 = vld [vmem:[%s338 + $0x24] sm:$0xf]
      %v1628 = vld [vmem:[%s338 + $0x28] sm:$0xf]
      %v1629 = vld [vmem:[%s338 + $0x2c] sm:$0xf]
      %v1630 = vld [vmem:[%s338 + $0x30] sm:$0xf]
      %v1631 = vld [vmem:[%s338 + $0x34] sm:$0xf]
      %v1632 = vld [vmem:[%s338 + $0x38] sm:$0xf]
      %v1633 = vld [vmem:[%s338 + $0x3c] sm:$0xf]
      %v1634 = vld [vmem:[%s338 + $0x40] sm:$0xf]
      %v1635 = vld [vmem:[%s338 + $0x44] sm:$0xf]
      %v1636 = vld [vmem:[%s338 + $0x48] sm:$0xf]
      %v1637 = vld [vmem:[%s338 + $0x4c] sm:$0xf]
      %v1638 = vld [vmem:[%s338 + $0x50] sm:$0xf]
      %v1639 = vld [vmem:[%s338 + $0x54] sm:$0xf]
      %v1640 = vld [vmem:[%s338 + $0x58] sm:$0xf]
      %v1641 = vld [vmem:[%s338 + $0x5c] sm:$0xf]
      %v1642 = vld [vmem:[%s338 + $0x60] sm:$0xf]
      %v1643 = vld [vmem:[%s338 + $0x64] sm:$0xf]
      %v1644 = vld [vmem:[%s338 + $0x68] sm:$0xf]
      %v1645 = vld [vmem:[%s338 + $0x6c] sm:$0xf]
      %v1646 = vld [vmem:[%s338 + $0x70] sm:$0xf]
      %v1647 = vld [vmem:[%s338 + $0x74] sm:$0xf]
      %v1648 = vld [vmem:[%s338 + $0x78] sm:$0xf]
      %v1649 = vld [vmem:[%s338 + $0x7c] sm:$0xf]
      %v1650 = vld [vmem:[%s338 + $0x80] sm:$0xf]
      %v1651 = vld [vmem:[%s338 + $0x84] sm:$0xf]
      %v1652 = vld [vmem:[%s338 + $0x88] sm:$0xf]
      %v1653 = vld [vmem:[%s338 + $0x8c] sm:$0xf]
      %v1654 = vld [vmem:[%s338 + $0x90] sm:$0xf]
      %v1655 = vld [vmem:[%s338 + $0x94] sm:$0xf]
      %v1656 = vld [vmem:[%s338 + $0x98] sm:$0xf]
      %v1657 = vld [vmem:[%s338 + $0x9c] sm:$0xf]
      %v1658 = vld [vmem:[%s338 + $0xa0] sm:$0xf]
      %v1659 = vld [vmem:[%s338 + $0xa4] sm:$0xf]
      %v1660 = vld [vmem:[%s338 + $0xa8] sm:$0xf]
      %v1661 = vld [vmem:[%s338 + $0xac] sm:$0xf]
      %v1662 = vld [vmem:[%s338 + $0xb0] sm:$0xf]
      %v1663 = vld [vmem:[%s338 + $0xb4] sm:$0xf]
      %v1664 = vld [vmem:[%s338 + $0xb8] sm:$0xf]
      %v1665 = vld [vmem:[%s338 + $0xbc] sm:$0xf]
      %v1666 = vld [vmem:[%s338 + $0xc0] sm:$0xf]
      %v1667 = vld [vmem:[%s338 + $0xc4] sm:$0xf]
      %v1668 = vld [vmem:[%s338 + $0xc8] sm:$0xf]
      %v1669 = vld [vmem:[%s338 + $0xcc] sm:$0xf]
      %v1670 = vld [vmem:[%s338 + $0xd0] sm:$0xf]
      %v1671 = vld [vmem:[%s338 + $0xd4] sm:$0xf]
      %v1672 = vld [vmem:[%s338 + $0xd8] sm:$0xf]
      %v1673 = vld [vmem:[%s338 + $0xdc] sm:$0x1]
      %s1674 = scalar_lea.vmem %s1, 128
      %v1675 = vld [vmem:[%s1674] sm:$0xf]
      %v1676 = vld [vmem:[%s1674 + $0x4] sm:$0xf]
      %v1677 = vld [vmem:[%s1674 + $0x8] sm:$0xf]
      %v1678 = vld [vmem:[%s1674 + $0xc] sm:$0xf]
      %v1679 = vld [vmem:[%s1674 + $0x10] sm:$0xf]
      %v1680 = vld [vmem:[%s1674 + $0x14] sm:$0xf]
      %v1681 = vld [vmem:[%s1674 + $0x18] sm:$0xf]
      %v1682 = vld [vmem:[%s1674 + $0x1c] sm:$0xf]
      %v1683 = vld [vmem:[%s1674 + $0x20] sm:$0xf]
      %v1684 = vld [vmem:[%s1674 + $0x24] sm:$0xf]
      %v1685 = vld [vmem:[%s1674 + $0x28] sm:$0xf]
      %v1686 = vld [vmem:[%s1674 + $0x2c] sm:$0xf]
      %v1687 = vld [vmem:[%s1674 + $0x30] sm:$0xf]
      %v1688 = vld [vmem:[%s1674 + $0x34] sm:$0xf]
      %v1689 = vld [vmem:[%s1674 + $0x38] sm:$0xf]
      %v1690 = vld [vmem:[%s1674 + $0x3c] sm:$0xf]
      %v1746 = vunpack.c.l.b16 %v1619
      %v1747 = vunpack.c.l.b16 %v1620
      %v1748 = vunpack.c.l.b16 %v1621
      %v1749 = vunpack.c.l.b16 %v1622
      %v1750 = vunpack.c.l.b16 %v1623
      %v1751 = vunpack.c.l.b16 %v1624
      %v1752 = vunpack.c.l.b16 %v1625
      %v1753 = vunpack.c.l.b16 %v1626
      %v1754 = vunpack.c.l.b16 %v1627
      %v1755 = vunpack.c.l.b16 %v1628
      %v1756 = vunpack.c.l.b16 %v1629
      %v1757 = vunpack.c.l.b16 %v1630
      %v1758 = vunpack.c.l.b16 %v1631
      %v1759 = vunpack.c.l.b16 %v1632
      %v1760 = vunpack.c.l.b16 %v1633
      %v1761 = vunpack.c.l.b16 %v1634
      %v1762 = vunpack.c.l.b16 %v1635
      %v1763 = vunpack.c.l.b16 %v1636
      %v1764 = vunpack.c.l.b16 %v1637
      %v1765 = vunpack.c.l.b16 %v1638
      %v1766 = vunpack.c.l.b16 %v1639
      %v1767 = vunpack.c.l.b16 %v1640
      %v1768 = vunpack.c.l.b16 %v1641
      %v1769 = vunpack.c.l.b16 %v1642
      %v1770 = vunpack.c.l.b16 %v1643
      %v1771 = vunpack.c.l.b16 %v1644
      %v1772 = vunpack.c.l.b16 %v1645
      %v1773 = vunpack.c.l.b16 %v1646
      %v1774 = vunpack.c.l.b16 %v1647
      %v1775 = vunpack.c.l.b16 %v1648
      %v1776 = vunpack.c.l.b16 %v1649
      %v1777 = vunpack.c.l.b16 %v1650
      %v1778 = vunpack.c.l.b16 %v1651
      %v1779 = vunpack.c.l.b16 %v1652
      %v1780 = vunpack.c.l.b16 %v1653
      %v1781 = vunpack.c.l.b16 %v1654
      %v1782 = vunpack.c.l.b16 %v1655
      %v1783 = vunpack.c.l.b16 %v1656
      %v1784 = vunpack.c.l.b16 %v1657
      %v1785 = vunpack.c.l.b16 %v1658
      %v1786 = vunpack.c.l.b16 %v1659
      %v1787 = vunpack.c.l.b16 %v1660
      %v1788 = vunpack.c.l.b16 %v1661
      %v1789 = vunpack.c.l.b16 %v1662
      %v1790 = vunpack.c.l.b16 %v1663
      %v1791 = vunpack.c.l.b16 %v1664
      %v1792 = vunpack.c.l.b16 %v1665
      %v1793 = vunpack.c.l.b16 %v1666
      %v1794 = vunpack.c.l.b16 %v1667
      %v1795 = vunpack.c.l.b16 %v1668
      %v1796 = vunpack.c.l.b16 %v1669
      %v1797 = vunpack.c.l.b16 %v1670
      %v1798 = vunpack.c.l.b16 %v1671
      %v1799 = vunpack.c.l.b16 %v1672
      %v1800 = vunpack.c.l.b16 %v1673
      %v1801 = vpack.c.b16 %v1747, %v1746
      %v1802 = vpack.c.b16 %v1749, %v1748
      %v1803 = vpack.c.b16 %v1751, %v1750
      %v1804 = vpack.c.b16 %v1753, %v1752
      %v1805 = vpack.c.b16 %v1755, %v1754
      %v1806 = vpack.c.b16 %v1757, %v1756
      %v1807 = vpack.c.b16 %v1759, %v1758
      %v1808 = vpack.c.b16 %v1761, %v1760
      %v1809 = vpack.c.b16 %v1763, %v1762
      %v1810 = vpack.c.b16 %v1765, %v1764
      %v1811 = vpack.c.b16 %v1767, %v1766
      %v1812 = vpack.c.b16 %v1769, %v1768
      %v1813 = vpack.c.b16 %v1771, %v1770
      %v1814 = vpack.c.b16 %v1773, %v1772
      %v1815 = vpack.c.b16 %v1775, %v1774
      %v1816 = vpack.c.b16 %v1777, %v1776
      %v1817 = vpack.c.b16 %v1779, %v1778
      %v1818 = vpack.c.b16 %v1781, %v1780
      %v1819 = vpack.c.b16 %v1783, %v1782
      %v1820 = vpack.c.b16 %v1785, %v1784
      %v1821 = vpack.c.b16 %v1787, %v1786
      %v1822 = vpack.c.b16 %v1789, %v1788
      %v1823 = vpack.c.b16 %v1791, %v1790
      %v1824 = vpack.c.b16 %v1793, %v1792
      %v1825 = vpack.c.b16 %v1795, %v1794
      %v1826 = vpack.c.b16 %v1797, %v1796
      %v1827 = vpack.c.b16 %v1799, %v1798
      %v1828 = vpack.c.b16 %v1800, %v1800
      %vm1829 = vsmask.f32 7424
      %v1831 = vshrl.u32 %v1801, 16
      %v1833 = vshll.u32 %v1801, 16
      %v1835 = vrot.slane %v1833, 1
      %v1836 = vor.u32 %v1831, %v1835
      %v1838 = vshll.u32 %v1802, 16
      %v1840 = vrot.slane %v1838, 1
      %v1841 = vsel %vm1829, %v1836, %v1840
      %v1842 = vshrl.u32 %v1802, 16
      %v1844 = vor.u32 %v1842, %v1840
      %v1846 = vshll.u32 %v1803, 16
      %v1848 = vrot.slane %v1846, 1
      %v1849 = vsel %vm1829, %v1844, %v1848
      %v1850 = vshrl.u32 %v1803, 16
      %v1852 = vor.u32 %v1850, %v1848
      %v1854 = vshll.u32 %v1804, 16
      %v1856 = vrot.slane %v1854, 1
      %v1857 = vsel %vm1829, %v1852, %v1856
      %v1858 = vshrl.u32 %v1804, 16
      %v1860 = vor.u32 %v1858, %v1856
      %v1862 = vshll.u32 %v1805, 16
      %v1864 = vrot.slane %v1862, 1
      %v1865 = vsel %vm1829, %v1860, %v1864
      %v1866 = vshrl.u32 %v1805, 16
      %v1868 = vor.u32 %v1866, %v1864
      %v1870 = vshll.u32 %v1806, 16
      %v1872 = vrot.slane %v1870, 1
      %v1873 = vsel %vm1829, %v1868, %v1872
      %v1874 = vshrl.u32 %v1806, 16
      %v1876 = vor.u32 %v1874, %v1872
      %v1878 = vshll.u32 %v1807, 16
      %v1880 = vrot.slane %v1878, 1
      %v1881 = vsel %vm1829, %v1876, %v1880
      %v1882 = vshrl.u32 %v1807, 16
      %v1884 = vor.u32 %v1882, %v1880
      %v1886 = vshll.u32 %v1808, 16
      %v1888 = vrot.slane %v1886, 1
      %v1889 = vsel %vm1829, %v1884, %v1888
      %v1890 = vshrl.u32 %v1808, 16
      %v1892 = vor.u32 %v1890, %v1888
      %v1894 = vshll.u32 %v1809, 16
      %v1896 = vrot.slane %v1894, 1
      %v1897 = vsel %vm1829, %v1892, %v1896
      %v1898 = vshrl.u32 %v1809, 16
      %v1900 = vor.u32 %v1898, %v1896
      %v1902 = vshll.u32 %v1810, 16
      %v1904 = vrot.slane %v1902, 1
      %v1905 = vsel %vm1829, %v1900, %v1904
      %v1906 = vshrl.u32 %v1810, 16
      %v1908 = vor.u32 %v1906, %v1904
      %v1910 = vshll.u32 %v1811, 16
      %v1912 = vrot.slane %v1910, 1
      %v1913 = vsel %vm1829, %v1908, %v1912
      %v1914 = vshrl.u32 %v1811, 16
      %v1916 = vor.u32 %v1914, %v1912
      %v1918 = vshll.u32 %v1812, 16
      %v1920 = vrot.slane %v1918, 1
      %v1921 = vsel %vm1829, %v1916, %v1920
      %v1922 = vshrl.u32 %v1812, 16
      %v1924 = vor.u32 %v1922, %v1920
      %v1926 = vshll.u32 %v1813, 16
      %v1928 = vrot.slane %v1926, 1
      %v1929 = vsel %vm1829, %v1924, %v1928
      %v1930 = vshrl.u32 %v1813, 16
      %v1932 = vor.u32 %v1930, %v1928
      %v1934 = vshll.u32 %v1814, 16
      %v1936 = vrot.slane %v1934, 1
      %v1937 = vsel %vm1829, %v1932, %v1936
      %v1938 = vshrl.u32 %v1814, 16
      %v1940 = vor.u32 %v1938, %v1936
      %v1942 = vshll.u32 %v1815, 16
      %v1944 = vrot.slane %v1942, 1
      %v1945 = vsel %vm1829, %v1940, %v1944
      %v1946 = vshrl.u32 %v1815, 16
      %v1948 = vor.u32 %v1946, %v1944
      %v1950 = vshll.u32 %v1816, 16
      %v1952 = vrot.slane %v1950, 1
      %v1953 = vsel %vm1829, %v1948, %v1952
      %v1954 = vshrl.u32 %v1816, 16
      %v1956 = vor.u32 %v1954, %v1952
      %v1958 = vshll.u32 %v1817, 16
      %v1960 = vrot.slane %v1958, 1
      %v1961 = vsel %vm1829, %v1956, %v1960
      %v1962 = vshrl.u32 %v1817, 16
      %v1964 = vor.u32 %v1962, %v1960
      %v1966 = vshll.u32 %v1818, 16
      %v1968 = vrot.slane %v1966, 1
      %v1969 = vsel %vm1829, %v1964, %v1968
      %v1970 = vshrl.u32 %v1818, 16
      %v1972 = vor.u32 %v1970, %v1968
      %v1974 = vshll.u32 %v1819, 16
      %v1976 = vrot.slane %v1974, 1
      %v1977 = vsel %vm1829, %v1972, %v1976
      %v1978 = vshrl.u32 %v1819, 16
      %v1980 = vor.u32 %v1978, %v1976
      %v1982 = vshll.u32 %v1820, 16
      %v1984 = vrot.slane %v1982, 1
      %v1985 = vsel %vm1829, %v1980, %v1984
      %v1986 = vshrl.u32 %v1820, 16
      %v1988 = vor.u32 %v1986, %v1984
      %v1990 = vshll.u32 %v1821, 16
      %v1992 = vrot.slane %v1990, 1
      %v1993 = vsel %vm1829, %v1988, %v1992
      %v1994 = vshrl.u32 %v1821, 16
      %v1996 = vor.u32 %v1994, %v1992
      %v1998 = vshll.u32 %v1822, 16
      %v2000 = vrot.slane %v1998, 1
      %v2001 = vsel %vm1829, %v1996, %v2000
      %v2002 = vshrl.u32 %v1822, 16
      %v2004 = vor.u32 %v2002, %v2000
      %v2006 = vshll.u32 %v1823, 16
      %v2008 = vrot.slane %v2006, 1
      %v2009 = vsel %vm1829, %v2004, %v2008
      %v2010 = vshrl.u32 %v1823, 16
      %v2012 = vor.u32 %v2010, %v2008
      %v2014 = vshll.u32 %v1824, 16
      %v2016 = vrot.slane %v2014, 1
      %v2017 = vsel %vm1829, %v2012, %v2016
      %v2018 = vshrl.u32 %v1824, 16
      %v2020 = vor.u32 %v2018, %v2016
      %v2022 = vshll.u32 %v1825, 16
      %v2024 = vrot.slane %v2022, 1
      %v2025 = vsel %vm1829, %v2020, %v2024
      %v2026 = vshrl.u32 %v1825, 16
      %v2028 = vor.u32 %v2026, %v2024
      %v2030 = vshll.u32 %v1826, 16
      %v2032 = vrot.slane %v2030, 1
      %v2033 = vsel %vm1829, %v2028, %v2032
      %v2034 = vshrl.u32 %v1826, 16
      %v2036 = vor.u32 %v2034, %v2032
      %v2038 = vshll.u32 %v1827, 16
      %v2040 = vrot.slane %v2038, 1
      %v2041 = vsel %vm1829, %v2036, %v2040
      %v2042 = vshrl.u32 %v1827, 16
      %v2044 = vor.u32 %v2042, %v2040
      %v2046 = vshll.u32 %v1828, 16
      %v2048 = vrot.slane %v2046, 1
      %v2049 = vsel %vm1829, %v2044, %v2048
      %v2093 = vunpack.c.l.b16 %v1675
      %v2094 = vunpack.c.l.b16 %v1676
      %v2095 = vunpack.c.l.b16 %v1677
      %v2096 = vunpack.c.l.b16 %v1678
      %v2097 = vunpack.c.l.b16 %v1679
      %v2098 = vunpack.c.l.b16 %v1680
      %v2099 = vunpack.c.l.b16 %v1681
      %v2100 = vunpack.c.l.b16 %v1682
      %v2101 = vunpack.c.l.b16 %v1683
      %v2102 = vunpack.c.l.b16 %v1684
      %v2103 = vunpack.c.l.b16 %v1685
      %v2104 = vunpack.c.l.b16 %v1686
      %v2105 = vunpack.c.l.b16 %v1687
      %v2106 = vunpack.c.l.b16 %v1688
      %v2107 = vunpack.c.l.b16 %v1689
      %v2108 = vunpack.c.l.b16 %v1690
      %v2109 = vpack.c.b16 %v2094, %v2093
      %v2110 = vpack.c.b16 %v2096, %v2095
      %v2111 = vpack.c.b16 %v2098, %v2097
      %v2112 = vpack.c.b16 %v2100, %v2099
      %v2113 = vpack.c.b16 %v2102, %v2101
      %v2114 = vpack.c.b16 %v2104, %v2103
      %v2115 = vpack.c.b16 %v2106, %v2105
      %v2116 = vpack.c.b16 %v2108, %v2107
      %2125 = vmatprep.subr.bf16.mxu0 0
      %2126 = vmatpush1.bf16.msra.mxu0 %v2116
      %2127 = vmatprep.subr.bf16.mxu0 0
      %2128 = vmatpush1.bf16.msra.mxu0 %v2115
      %2129 = vmatprep.subr.bf16.mxu0 0
      %2130 = vmatpush1.bf16.msra.mxu0 %v2114
      %2131 = vmatprep.subr.bf16.mxu0 0
      %2132 = vmatpush1.bf16.msra.mxu0 %v2113
      %2133 = vmatprep.subr.bf16.mxu0 0
      %2134 = vmatpush1.bf16.msra.mxu0 %v2112
      %2135 = vmatprep.subr.bf16.mxu0 0
      %2136 = vmatpush1.bf16.msra.mxu0 %v2111
      %2137 = vmatprep.subr.bf16.mxu0 0
      %2138 = vmatpush1.bf16.msra.mxu0 %v2110
      %2139 = vmatprep.subr.bf16.mxu0 0
      %2140 = vmatpush1.bf16.msra.mxu0 %v2109
      %2141 = vmatprep.subr.bf16.mxu0 0
      %2142 = vmatpush2.bf16.msra.mxu0 0
      %2143 = vmatprep.subr.bf16.mxu0 0
      %2144 = vmatpush2.bf16.msra.mxu0 0
      %2145 = vmatprep.subr.bf16.mxu0 0
      %2146 = vmatpush2.bf16.msra.mxu0 0
      %2147 = vmatprep.subr.bf16.mxu0 0
      %2148 = vmatpush2.bf16.msra.mxu0 0
      %2149 = vmatprep.subr.bf16.mxu0 0
      %2150 = vmatpush2.bf16.msra.mxu0 0
      %2151 = vmatprep.subr.bf16.mxu0 0
      %2152 = vmatpush2.bf16.msra.mxu0 0
      %2153 = vmatprep.subr.bf16.mxu0 0
      %2154 = vmatpush2.bf16.msra.mxu0 0
      %2155 = vmatprep.subr.bf16.mxu0 0
      %2156 = vmatpush2.bf16.msra.mxu0 0
      %2157 = vmatprep.mubr.bf16.mxu0 0
      %2158 = vmatmul.mubr.bf16.gmra.mxu0 %v1841
      %v2159 = vpop.f32.mrf.mxu0
      %v2160 = vadd.f32 0.0, %v2159
      %v2161 = vpop.f32.mrf.mxu0
      %v2162 = vpop.f32.mrf.mxu0
      %v2163 = vadd.f32 0.0, %v2162
      %v2164 = vpop.f32.mrf.mxu0
      %2165 = vmatprep.mubr.bf16.mxu0 0
      %2166 = vmatmul.mubr.bf16.gmra.mxu0 %v1849
      %v2167 = vpop.f32.mrf.mxu0
      %v2168 = vadd.f32 0.0, %v2167
      %v2169 = vpop.f32.mrf.mxu0
      %v2170 = vpop.f32.mrf.mxu0
      %v2171 = vadd.f32 0.0, %v2170
      %v2172 = vpop.f32.mrf.mxu0
      %2173 = vmatprep.mubr.bf16.mxu0 0
      %2174 = vmatmul.mubr.bf16.gmra.mxu0 %v1857
      %v2175 = vpop.f32.mrf.mxu0
      %v2176 = vadd.f32 0.0, %v2175
      %v2177 = vpop.f32.mrf.mxu0
      %v2178 = vpop.f32.mrf.mxu0
      %v2179 = vadd.f32 0.0, %v2178
      %v2180 = vpop.f32.mrf.mxu0
      %2181 = vmatprep.mubr.bf16.mxu0 0
      %2182 = vmatmul.mubr.bf16.gmra.mxu0 %v1865
      %v2183 = vpop.f32.mrf.mxu0
      %v2184 = vadd.f32 0.0, %v2183
      %v2185 = vpop.f32.mrf.mxu0
      %v2186 = vpop.f32.mrf.mxu0
      %v2187 = vadd.f32 0.0, %v2186
      %v2188 = vpop.f32.mrf.mxu0
      %2189 = vmatprep.mubr.bf16.mxu0 0
      %2190 = vmatmul.mubr.bf16.gmra.mxu0 %v1873
      %v2191 = vpop.f32.mrf.mxu0
      %v2192 = vadd.f32 0.0, %v2191
      %v2193 = vpop.f32.mrf.mxu0
      %v2194 = vpop.f32.mrf.mxu0
      %v2195 = vadd.f32 0.0, %v2194
      %v2196 = vpop.f32.mrf.mxu0
      %2197 = vmatprep.mubr.bf16.mxu0 0
      %2198 = vmatmul.mubr.bf16.gmra.mxu0 %v1881
      %v2199 = vpop.f32.mrf.mxu0
      %v2200 = vadd.f32 0.0, %v2199
      %v2201 = vpop.f32.mrf.mxu0
      %v2202 = vpop.f32.mrf.mxu0
      %v2203 = vadd.f32 0.0, %v2202
      %v2204 = vpop.f32.mrf.mxu0
      %2205 = vmatprep.mubr.bf16.mxu0 0
      %2206 = vmatmul.mubr.bf16.gmra.mxu0 %v1889
      %v2207 = vpop.f32.mrf.mxu0
      %v2208 = vadd.f32 0.0, %v2207
      %v2209 = vpop.f32.mrf.mxu0
      %v2210 = vpop.f32.mrf.mxu0
      %v2211 = vadd.f32 0.0, %v2210
      %v2212 = vpop.f32.mrf.mxu0
      %2213 = vmatprep.mubr.bf16.mxu0 0
      %2214 = vmatmul.mubr.bf16.gmra.mxu0 %v1897
      %v2215 = vpop.f32.mrf.mxu0
      %v2216 = vadd.f32 0.0, %v2215
      %v2217 = vpop.f32.mrf.mxu0
      %v2218 = vpop.f32.mrf.mxu0
      %v2219 = vadd.f32 0.0, %v2218
      %v2220 = vpop.f32.mrf.mxu0
      %2221 = vmatprep.mubr.bf16.mxu0 0
      %2222 = vmatmul.mubr.bf16.gmra.mxu0 %v1905
      %v2223 = vpop.f32.mrf.mxu0
      %v2224 = vadd.f32 0.0, %v2223
      %v2225 = vpop.f32.mrf.mxu0
      %v2226 = vpop.f32.mrf.mxu0
      %v2227 = vadd.f32 0.0, %v2226
      %v2228 = vpop.f32.mrf.mxu0
      %2229 = vmatprep.mubr.bf16.mxu0 0
      %2230 = vmatmul.mubr.bf16.gmra.mxu0 %v1913
      %v2231 = vpop.f32.mrf.mxu0
      %v2232 = vadd.f32 0.0, %v2231
      %v2233 = vpop.f32.mrf.mxu0
      %v2234 = vpop.f32.mrf.mxu0
      %v2235 = vadd.f32 0.0, %v2234
      %v2236 = vpop.f32.mrf.mxu0
      %2237 = vmatprep.mubr.bf16.mxu0 0
      %2238 = vmatmul.mubr.bf16.gmra.mxu0 %v1921
      %v2239 = vpop.f32.mrf.mxu0
      %v2240 = vadd.f32 0.0, %v2239
      %v2241 = vpop.f32.mrf.mxu0
      %v2242 = vpop.f32.mrf.mxu0
      %v2243 = vadd.f32 0.0, %v2242
      %v2244 = vpop.f32.mrf.mxu0
      %2245 = vmatprep.mubr.bf16.mxu0 0
      %2246 = vmatmul.mubr.bf16.gmra.mxu0 %v1929
      %v2247 = vpop.f32.mrf.mxu0
      %v2248 = vadd.f32 0.0, %v2247
      %v2249 = vpop.f32.mrf.mxu0
      %v2250 = vpop.f32.mrf.mxu0
      %v2251 = vadd.f32 0.0, %v2250
      %v2252 = vpop.f32.mrf.mxu0
      %2253 = vmatprep.mubr.bf16.mxu0 0
      %2254 = vmatmul.mubr.bf16.gmra.mxu0 %v1937
      %v2255 = vpop.f32.mrf.mxu0
      %v2256 = vadd.f32 0.0, %v2255
      %v2257 = vpop.f32.mrf.mxu0
      %v2258 = vpop.f32.mrf.mxu0
      %v2259 = vadd.f32 0.0, %v2258
      %v2260 = vpop.f32.mrf.mxu0
      %2261 = vmatprep.mubr.bf16.mxu0 0
      %2262 = vmatmul.mubr.bf16.gmra.mxu0 %v1945
      %v2263 = vpop.f32.mrf.mxu0
      %v2264 = vadd.f32 0.0, %v2263
      %v2265 = vpop.f32.mrf.mxu0
      %v2266 = vpop.f32.mrf.mxu0
      %v2267 = vadd.f32 0.0, %v2266
      %v2268 = vpop.f32.mrf.mxu0
      %2269 = vmatprep.mubr.bf16.mxu0 0
      %2270 = vmatmul.mubr.bf16.gmra.mxu0 %v1953
      %v2271 = vpop.f32.mrf.mxu0
      %v2272 = vadd.f32 0.0, %v2271
      %v2273 = vpop.f32.mrf.mxu0
      %v2274 = vpop.f32.mrf.mxu0
      %v2275 = vadd.f32 0.0, %v2274
      %v2276 = vpop.f32.mrf.mxu0
      %2277 = vmatprep.mubr.bf16.mxu0 0
      %2278 = vmatmul.mubr.bf16.gmra.mxu0 %v1961
      %v2279 = vpop.f32.mrf.mxu0
      %v2280 = vadd.f32 0.0, %v2279
      %v2281 = vpop.f32.mrf.mxu0
      %v2282 = vpop.f32.mrf.mxu0
      %v2283 = vadd.f32 0.0, %v2282
      %v2284 = vpop.f32.mrf.mxu0
      %2285 = vmatprep.mubr.bf16.mxu0 0
      %2286 = vmatmul.mubr.bf16.gmra.mxu0 %v1969
      %v2287 = vpop.f32.mrf.mxu0
      %v2288 = vadd.f32 0.0, %v2287
      %v2289 = vpop.f32.mrf.mxu0
      %v2290 = vpop.f32.mrf.mxu0
      %v2291 = vadd.f32 0.0, %v2290
      %v2292 = vpop.f32.mrf.mxu0
      %2293 = vmatprep.mubr.bf16.mxu0 0
      %2294 = vmatmul.mubr.bf16.gmra.mxu0 %v1977
      %v2295 = vpop.f32.mrf.mxu0
      %v2296 = vadd.f32 0.0, %v2295
      %v2297 = vpop.f32.mrf.mxu0
      %v2298 = vpop.f32.mrf.mxu0
      %v2299 = vadd.f32 0.0, %v2298
      %v2300 = vpop.f32.mrf.mxu0
      %2301 = vmatprep.mubr.bf16.mxu0 0
      %2302 = vmatmul.mubr.bf16.gmra.mxu0 %v1985
      %v2303 = vpop.f32.mrf.mxu0
      %v2304 = vadd.f32 0.0, %v2303
      %v2305 = vpop.f32.mrf.mxu0
      %v2306 = vpop.f32.mrf.mxu0
      %v2307 = vadd.f32 0.0, %v2306
      %v2308 = vpop.f32.mrf.mxu0
      %2309 = vmatprep.mubr.bf16.mxu0 0
      %2310 = vmatmul.mubr.bf16.gmra.mxu0 %v1993
      %v2311 = vpop.f32.mrf.mxu0
      %v2312 = vadd.f32 0.0, %v2311
      %v2313 = vpop.f32.mrf.mxu0
      %v2314 = vpop.f32.mrf.mxu0
      %v2315 = vadd.f32 0.0, %v2314
      %v2316 = vpop.f32.mrf.mxu0
      %2317 = vmatprep.mubr.bf16.mxu0 0
      %2318 = vmatmul.mubr.bf16.gmra.mxu0 %v2001
      %v2319 = vpop.f32.mrf.mxu0
      %v2320 = vadd.f32 0.0, %v2319
      %v2321 = vpop.f32.mrf.mxu0
      %v2322 = vpop.f32.mrf.mxu0
      %v2323 = vadd.f32 0.0, %v2322
      %v2324 = vpop.f32.mrf.mxu0
      %2325 = vmatprep.mubr.bf16.mxu0 0
      %2326 = vmatmul.mubr.bf16.gmra.mxu0 %v2009
      %v2327 = vpop.f32.mrf.mxu0
      %v2328 = vadd.f32 0.0, %v2327
      %v2329 = vpop.f32.mrf.mxu0
      %v2330 = vpop.f32.mrf.mxu0
      %v2331 = vadd.f32 0.0, %v2330
      %v2332 = vpop.f32.mrf.mxu0
      %2333 = vmatprep.mubr.bf16.mxu0 0
      %2334 = vmatmul.mubr.bf16.gmra.mxu0 %v2017
      %v2335 = vpop.f32.mrf.mxu0
      %v2336 = vadd.f32 0.0, %v2335
      %v2337 = vpop.f32.mrf.mxu0
      %v2338 = vpop.f32.mrf.mxu0
      %v2339 = vadd.f32 0.0, %v2338
      %v2340 = vpop.f32.mrf.mxu0
      %2341 = vmatprep.mubr.bf16.mxu0 0
      %2342 = vmatmul.mubr.bf16.gmra.mxu0 %v2025
      %v2343 = vpop.f32.mrf.mxu0
      %v2344 = vadd.f32 0.0, %v2343
      %v2345 = vpop.f32.mrf.mxu0
      %v2346 = vpop.f32.mrf.mxu0
      %v2347 = vadd.f32 0.0, %v2346
      %v2348 = vpop.f32.mrf.mxu0
      %2349 = vmatprep.mubr.bf16.mxu0 0
      %2350 = vmatmul.mubr.bf16.gmra.mxu0 %v2033
      %v2351 = vpop.f32.mrf.mxu0
      %v2352 = vadd.f32 0.0, %v2351
      %v2353 = vpop.f32.mrf.mxu0
      %v2354 = vpop.f32.mrf.mxu0
      %v2355 = vadd.f32 0.0, %v2354
      %v2356 = vpop.f32.mrf.mxu0
      %2357 = vmatprep.mubr.bf16.mxu0 0
      %2358 = vmatmul.mubr.bf16.gmra.mxu0 %v2041
      %v2359 = vpop.f32.mrf.mxu0
      %v2360 = vadd.f32 0.0, %v2359
      %v2361 = vpop.f32.mrf.mxu0
      %v2362 = vpop.f32.mrf.mxu0
      %v2363 = vadd.f32 0.0, %v2362
      %v2364 = vpop.f32.mrf.mxu0
      %2365 = vmatprep.mubr.bf16.mxu0 0
      %2366 = vmatmul.mubr.bf16.gmra.mxu0 %v2049
      %v2367 = vpop.f32.mrf.mxu0
      %v2368 = vadd.f32 0.0, %v2367
      %v2369 = vpop.f32.mrf.mxu0
      %v2370 = vpop.f32.mrf.mxu0
      %v2371 = vadd.f32 0.0, %v2370
      %v2372 = vpop.f32.mrf.mxu0
      %2373 = vdwg.mxu0
      %v2374 = vadd.f32 %v1405, %v2160
      %v2375 = vadd.f32 %v1408, %v2163
      %v2376 = vadd.f32 %v1413, %v2168
      %v2377 = vadd.f32 %v1416, %v2171
      %v2378 = vadd.f32 %v1421, %v2176
      %v2379 = vadd.f32 %v1424, %v2179
      %v2380 = vadd.f32 %v1429, %v2184
      %v2381 = vadd.f32 %v1432, %v2187
      %v2382 = vadd.f32 %v1437, %v2192
      %v2383 = vadd.f32 %v1440, %v2195
      %v2384 = vadd.f32 %v1445, %v2200
      %v2385 = vadd.f32 %v1448, %v2203
      %v2386 = vadd.f32 %v1453, %v2208
      %v2387 = vadd.f32 %v1456, %v2211
      %v2388 = vadd.f32 %v1461, %v2216
      %v2389 = vadd.f32 %v1464, %v2219
      %v2390 = vadd.f32 %v1469, %v2224
      %v2391 = vadd.f32 %v1472, %v2227
      %v2392 = vadd.f32 %v1477, %v2232
      %v2393 = vadd.f32 %v1480, %v2235
      %v2394 = vadd.f32 %v1485, %v2240
      %v2395 = vadd.f32 %v1488, %v2243
      %v2396 = vadd.f32 %v1493, %v2248
      %v2397 = vadd.f32 %v1496, %v2251
      %v2398 = vadd.f32 %v1501, %v2256
      %v2399 = vadd.f32 %v1504, %v2259
      %v2400 = vadd.f32 %v1509, %v2264
      %v2401 = vadd.f32 %v1512, %v2267
      %v2402 = vadd.f32 %v1517, %v2272
      %v2403 = vadd.f32 %v1520, %v2275
      %v2404 = vadd.f32 %v1525, %v2280
      %v2405 = vadd.f32 %v1528, %v2283
      %v2406 = vadd.f32 %v1533, %v2288
      %v2407 = vadd.f32 %v1536, %v2291
      %v2408 = vadd.f32 %v1541, %v2296
      %v2409 = vadd.f32 %v1544, %v2299
      %v2410 = vadd.f32 %v1549, %v2304
      %v2411 = vadd.f32 %v1552, %v2307
      %v2412 = vadd.f32 %v1557, %v2312
      %v2413 = vadd.f32 %v1560, %v2315
      %v2414 = vadd.f32 %v1565, %v2320
      %v2415 = vadd.f32 %v1568, %v2323
      %v2416 = vadd.f32 %v1573, %v2328
      %v2417 = vadd.f32 %v1576, %v2331
      %v2418 = vadd.f32 %v1581, %v2336
      %v2419 = vadd.f32 %v1584, %v2339
      %v2420 = vadd.f32 %v1589, %v2344
      %v2421 = vadd.f32 %v1592, %v2347
      %v2422 = vadd.f32 %v1597, %v2352
      %v2423 = vadd.f32 %v1600, %v2355
      %v2424 = vadd.f32 %v1605, %v2360
      %v2425 = vadd.f32 %v1608, %v2363
      %v2426 = vadd.f32 %v1613, %v2368
      %v2427 = vadd.f32 %v1616, %v2371
      %v2428 = vld [vmem:[%s338 + $0xc] sm:$0x8]
      %v2429 = vld [vmem:[%s338 + $0x10] sm:$0xf]
      %v2430 = vld [vmem:[%s338 + $0x14] sm:$0xf]
      %v2431 = vld [vmem:[%s338 + $0x18] sm:$0xf]
      %v2432 = vld [vmem:[%s338 + $0x1c] sm:$0xf]
      %v2433 = vld [vmem:[%s338 + $0x20] sm:$0xf]
      %v2434 = vld [vmem:[%s338 + $0x24] sm:$0xf]
      %v2435 = vld [vmem:[%s338 + $0x28] sm:$0xf]
      %v2436 = vld [vmem:[%s338 + $0x2c] sm:$0xf]
      %v2437 = vld [vmem:[%s338 + $0x30] sm:$0xf]
      %v2438 = vld [vmem:[%s338 + $0x34] sm:$0xf]
      %v2439 = vld [vmem:[%s338 + $0x38] sm:$0xf]
      %v2440 = vld [vmem:[%s338 + $0x3c] sm:$0xf]
      %v2441 = vld [vmem:[%s338 + $0x40] sm:$0xf]
      %v2442 = vld [vmem:[%s338 + $0x44] sm:$0xf]
      %v2443 = vld [vmem:[%s338 + $0x48] sm:$0xf]
      %v2444 = vld [vmem:[%s338 + $0x4c] sm:$0xf]
      %v2445 = vld [vmem:[%s338 + $0x50] sm:$0xf]
      %v2446 = vld [vmem:[%s338 + $0x54] sm:$0xf]
      %v2447 = vld [vmem:[%s338 + $0x58] sm:$0xf]
      %v2448 = vld [vmem:[%s338 + $0x5c] sm:$0xf]
      %v2449 = vld [vmem:[%s338 + $0x60] sm:$0xf]
      %v2450 = vld [vmem:[%s338 + $0x64] sm:$0xf]
      %v2451 = vld [vmem:[%s338 + $0x68] sm:$0xf]
      %v2452 = vld [vmem:[%s338 + $0x6c] sm:$0xf]
      %v2453 = vld [vmem:[%s338 + $0x70] sm:$0xf]
      %v2454 = vld [vmem:[%s338 + $0x74] sm:$0xf]
      %v2455 = vld [vmem:[%s338 + $0x78] sm:$0xf]
      %v2456 = vld [vmem:[%s338 + $0x7c] sm:$0xf]
      %v2457 = vld [vmem:[%s338 + $0x80] sm:$0xf]
      %v2458 = vld [vmem:[%s338 + $0x84] sm:$0xf]
      %v2459 = vld [vmem:[%s338 + $0x88] sm:$0xf]
      %v2460 = vld [vmem:[%s338 + $0x8c] sm:$0xf]
      %v2461 = vld [vmem:[%s338 + $0x90] sm:$0xf]
      %v2462 = vld [vmem:[%s338 + $0x94] sm:$0xf]
      %v2463 = vld [vmem:[%s338 + $0x98] sm:$0xf]
      %v2464 = vld [vmem:[%s338 + $0x9c] sm:$0xf]
      %v2465 = vld [vmem:[%s338 + $0xa0] sm:$0xf]
      %v2466 = vld [vmem:[%s338 + $0xa4] sm:$0xf]
      %v2467 = vld [vmem:[%s338 + $0xa8] sm:$0xf]
      %v2468 = vld [vmem:[%s338 + $0xac] sm:$0xf]
      %v2469 = vld [vmem:[%s338 + $0xb0] sm:$0xf]
      %v2470 = vld [vmem:[%s338 + $0xb4] sm:$0xf]
      %v2471 = vld [vmem:[%s338 + $0xb8] sm:$0xf]
      %v2472 = vld [vmem:[%s338 + $0xbc] sm:$0xf]
      %v2473 = vld [vmem:[%s338 + $0xc0] sm:$0xf]
      %v2474 = vld [vmem:[%s338 + $0xc4] sm:$0xf]
      %v2475 = vld [vmem:[%s338 + $0xc8] sm:$0xf]
      %v2476 = vld [vmem:[%s338 + $0xcc] sm:$0xf]
      %v2477 = vld [vmem:[%s338 + $0xd0] sm:$0xf]
      %v2478 = vld [vmem:[%s338 + $0xd4] sm:$0xf]
      %v2479 = vld [vmem:[%s338 + $0xd8] sm:$0xf]
      %v2480 = vld [vmem:[%s338 + $0xdc] sm:$0xf]
      %v2481 = vld [vmem:[%s338 + $0xe0] sm:$0xf]
      %v2482 = vld [vmem:[%s338 + $0xe4] sm:$0xf]
      %s2483 = scalar_lea.vmem %s1, 192
      %v2484 = vld [vmem:[%s2483] sm:$0xf]
      %v2485 = vld [vmem:[%s2483 + $0x4] sm:$0xf]
      %v2486 = vld [vmem:[%s2483 + $0x8] sm:$0xf]
      %v2487 = vld [vmem:[%s2483 + $0xc] sm:$0xf]
      %v2488 = vld [vmem:[%s2483 + $0x10] sm:$0xf]
      %v2489 = vld [vmem:[%s2483 + $0x14] sm:$0xf]
      %v2490 = vld [vmem:[%s2483 + $0x18] sm:$0xf]
      %v2491 = vld [vmem:[%s2483 + $0x1c] sm:$0xf]
      %v2492 = vld [vmem:[%s2483 + $0x20] sm:$0xf]
      %v2493 = vld [vmem:[%s2483 + $0x24] sm:$0xf]
      %v2494 = vld [vmem:[%s2483 + $0x28] sm:$0xf]
      %v2495 = vld [vmem:[%s2483 + $0x2c] sm:$0xf]
      %v2496 = vld [vmem:[%s2483 + $0x30] sm:$0xf]
      %v2497 = vld [vmem:[%s2483 + $0x34] sm:$0xf]
      %v2498 = vld [vmem:[%s2483 + $0x38] sm:$0xf]
      %v2499 = vld [vmem:[%s2483 + $0x3c] sm:$0xf]
      %v2555 = vunpack.c.l.b16 %v2428
      %v2556 = vunpack.c.l.b16 %v2429
      %v2557 = vunpack.c.l.b16 %v2430
      %v2558 = vunpack.c.l.b16 %v2431
      %v2559 = vunpack.c.l.b16 %v2432
      %v2560 = vunpack.c.l.b16 %v2433
      %v2561 = vunpack.c.l.b16 %v2434
      %v2562 = vunpack.c.l.b16 %v2435
      %v2563 = vunpack.c.l.b16 %v2436
      %v2564 = vunpack.c.l.b16 %v2437
      %v2565 = vunpack.c.l.b16 %v2438
      %v2566 = vunpack.c.l.b16 %v2439
      %v2567 = vunpack.c.l.b16 %v2440
      %v2568 = vunpack.c.l.b16 %v2441
      %v2569 = vunpack.c.l.b16 %v2442
      %v2570 = vunpack.c.l.b16 %v2443
      %v2571 = vunpack.c.l.b16 %v2444
      %v2572 = vunpack.c.l.b16 %v2445
      %v2573 = vunpack.c.l.b16 %v2446
      %v2574 = vunpack.c.l.b16 %v2447
      %v2575 = vunpack.c.l.b16 %v2448
      %v2576 = vunpack.c.l.b16 %v2449
      %v2577 = vunpack.c.l.b16 %v2450
      %v2578 = vunpack.c.l.b16 %v2451
      %v2579 = vunpack.c.l.b16 %v2452
      %v2580 = vunpack.c.l.b16 %v2453
      %v2581 = vunpack.c.l.b16 %v2454
      %v2582 = vunpack.c.l.b16 %v2455
      %v2583 = vunpack.c.l.b16 %v2456
      %v2584 = vunpack.c.l.b16 %v2457
      %v2585 = vunpack.c.l.b16 %v2458
      %v2586 = vunpack.c.l.b16 %v2459
      %v2587 = vunpack.c.l.b16 %v2460
      %v2588 = vunpack.c.l.b16 %v2461
      %v2589 = vunpack.c.l.b16 %v2462
      %v2590 = vunpack.c.l.b16 %v2463
      %v2591 = vunpack.c.l.b16 %v2464
      %v2592 = vunpack.c.l.b16 %v2465
      %v2593 = vunpack.c.l.b16 %v2466
      %v2594 = vunpack.c.l.b16 %v2467
      %v2595 = vunpack.c.l.b16 %v2468
      %v2596 = vunpack.c.l.b16 %v2469
      %v2597 = vunpack.c.l.b16 %v2470
      %v2598 = vunpack.c.l.b16 %v2471
      %v2599 = vunpack.c.l.b16 %v2472
      %v2600 = vunpack.c.l.b16 %v2473
      %v2601 = vunpack.c.l.b16 %v2474
      %v2602 = vunpack.c.l.b16 %v2475
      %v2603 = vunpack.c.l.b16 %v2476
      %v2604 = vunpack.c.l.b16 %v2477
      %v2605 = vunpack.c.l.b16 %v2478
      %v2606 = vunpack.c.l.b16 %v2479
      %v2607 = vunpack.c.l.b16 %v2480
      %v2608 = vunpack.c.l.b16 %v2481
      %v2609 = vunpack.c.l.b16 %v2482
      %v2610 = vpack.c.b16 %v2556, %v2555
      %v2611 = vpack.c.b16 %v2558, %v2557
      %v2612 = vpack.c.b16 %v2560, %v2559
      %v2613 = vpack.c.b16 %v2562, %v2561
      %v2614 = vpack.c.b16 %v2564, %v2563
      %v2615 = vpack.c.b16 %v2566, %v2565
      %v2616 = vpack.c.b16 %v2568, %v2567
      %v2617 = vpack.c.b16 %v2570, %v2569
      %v2618 = vpack.c.b16 %v2572, %v2571
      %v2619 = vpack.c.b16 %v2574, %v2573
      %v2620 = vpack.c.b16 %v2576, %v2575
      %v2621 = vpack.c.b16 %v2578, %v2577
      %v2622 = vpack.c.b16 %v2580, %v2579
      %v2623 = vpack.c.b16 %v2582, %v2581
      %v2624 = vpack.c.b16 %v2584, %v2583
      %v2625 = vpack.c.b16 %v2586, %v2585
      %v2626 = vpack.c.b16 %v2588, %v2587
      %v2627 = vpack.c.b16 %v2590, %v2589
      %v2628 = vpack.c.b16 %v2592, %v2591
      %v2629 = vpack.c.b16 %v2594, %v2593
      %v2630 = vpack.c.b16 %v2596, %v2595
      %v2631 = vpack.c.b16 %v2598, %v2597
      %v2632 = vpack.c.b16 %v2600, %v2599
      %v2633 = vpack.c.b16 %v2602, %v2601
      %v2634 = vpack.c.b16 %v2604, %v2603
      %v2635 = vpack.c.b16 %v2606, %v2605
      %v2636 = vpack.c.b16 %v2608, %v2607
      %v2637 = vpack.c.b16 %v2609, %v2609
      %v2639 = vshrl.u32 %v2610, 16
      %v2641 = vrot.slane %v2639, 3
      %v2642 = vshll.u32 %v2610, 16
      %v2644 = vrot.slane %v2642, 4
      %v2645 = vor.u32 %v2641, %v2644
      %v2647 = vshrl.u32 %v2611, 16
      %v2649 = vrot.slane %v2647, 3
      %v2650 = vshll.u32 %v2611, 16
      %v2652 = vrot.slane %v2650, 4
      %v2653 = vor.u32 %v2649, %v2652
      %v2654 = vsel %vm1043, %v2645, %v2653
      %v2656 = vshrl.u32 %v2612, 16
      %v2658 = vrot.slane %v2656, 3
      %v2659 = vshll.u32 %v2612, 16
      %v2661 = vrot.slane %v2659, 4
      %v2662 = vor.u32 %v2658, %v2661
      %v2663 = vsel %vm1043, %v2653, %v2662
      %v2665 = vshrl.u32 %v2613, 16
      %v2667 = vrot.slane %v2665, 3
      %v2668 = vshll.u32 %v2613, 16
      %v2670 = vrot.slane %v2668, 4
      %v2671 = vor.u32 %v2667, %v2670
      %v2672 = vsel %vm1043, %v2662, %v2671
      %v2674 = vshrl.u32 %v2614, 16
      %v2676 = vrot.slane %v2674, 3
      %v2677 = vshll.u32 %v2614, 16
      %v2679 = vrot.slane %v2677, 4
      %v2680 = vor.u32 %v2676, %v2679
      %v2681 = vsel %vm1043, %v2671, %v2680
      %v2683 = vshrl.u32 %v2615, 16
      %v2685 = vrot.slane %v2683, 3
      %v2686 = vshll.u32 %v2615, 16
      %v2688 = vrot.slane %v2686, 4
      %v2689 = vor.u32 %v2685, %v2688
      %v2690 = vsel %vm1043, %v2680, %v2689
      %v2692 = vshrl.u32 %v2616, 16
      %v2694 = vrot.slane %v2692, 3
      %v2695 = vshll.u32 %v2616, 16
      %v2697 = vrot.slane %v2695, 4
      %v2698 = vor.u32 %v2694, %v2697
      %v2699 = vsel %vm1043, %v2689, %v2698
      %v2701 = vshrl.u32 %v2617, 16
      %v2703 = vrot.slane %v2701, 3
      %v2704 = vshll.u32 %v2617, 16
      %v2706 = vrot.slane %v2704, 4
      %v2707 = vor.u32 %v2703, %v2706
      %v2708 = vsel %vm1043, %v2698, %v2707
      %v2710 = vshrl.u32 %v2618, 16
      %v2712 = vrot.slane %v2710, 3
      %v2713 = vshll.u32 %v2618, 16
      %v2715 = vrot.slane %v2713, 4
      %v2716 = vor.u32 %v2712, %v2715
      %v2717 = vsel %vm1043, %v2707, %v2716
      %v2719 = vshrl.u32 %v2619, 16
      %v2721 = vrot.slane %v2719, 3
      %v2722 = vshll.u32 %v2619, 16
      %v2724 = vrot.slane %v2722, 4
      %v2725 = vor.u32 %v2721, %v2724
      %v2726 = vsel %vm1043, %v2716, %v2725
      %v2728 = vshrl.u32 %v2620, 16
      %v2730 = vrot.slane %v2728, 3
      %v2731 = vshll.u32 %v2620, 16
      %v2733 = vrot.slane %v2731, 4
      %v2734 = vor.u32 %v2730, %v2733
      %v2735 = vsel %vm1043, %v2725, %v2734
      %v2737 = vshrl.u32 %v2621, 16
      %v2739 = vrot.slane %v2737, 3
      %v2740 = vshll.u32 %v2621, 16
      %v2742 = vrot.slane %v2740, 4
      %v2743 = vor.u32 %v2739, %v2742
      %v2744 = vsel %vm1043, %v2734, %v2743
      %v2746 = vshrl.u32 %v2622, 16
      %v2748 = vrot.slane %v2746, 3
      %v2749 = vshll.u32 %v2622, 16
      %v2751 = vrot.slane %v2749, 4
      %v2752 = vor.u32 %v2748, %v2751
      %v2753 = vsel %vm1043, %v2743, %v2752
      %v2755 = vshrl.u32 %v2623, 16
      %v2757 = vrot.slane %v2755, 3
      %v2758 = vshll.u32 %v2623, 16
      %v2760 = vrot.slane %v2758, 4
      %v2761 = vor.u32 %v2757, %v2760
      %v2762 = vsel %vm1043, %v2752, %v2761
      %v2764 = vshrl.u32 %v2624, 16
      %v2766 = vrot.slane %v2764, 3
      %v2767 = vshll.u32 %v2624, 16
      %v2769 = vrot.slane %v2767, 4
      %v2770 = vor.u32 %v2766, %v2769
      %v2771 = vsel %vm1043, %v2761, %v2770
      %v2773 = vshrl.u32 %v2625, 16
      %v2775 = vrot.slane %v2773, 3
      %v2776 = vshll.u32 %v2625, 16
      %v2778 = vrot.slane %v2776, 4
      %v2779 = vor.u32 %v2775, %v2778
      %v2780 = vsel %vm1043, %v2770, %v2779
      %v2782 = vshrl.u32 %v2626, 16
      %v2784 = vrot.slane %v2782, 3
      %v2785 = vshll.u32 %v2626, 16
      %v2787 = vrot.slane %v2785, 4
      %v2788 = vor.u32 %v2784, %v2787
      %v2789 = vsel %vm1043, %v2779, %v2788
      %v2791 = vshrl.u32 %v2627, 16
      %v2793 = vrot.slane %v2791, 3
      %v2794 = vshll.u32 %v2627, 16
      %v2796 = vrot.slane %v2794, 4
      %v2797 = vor.u32 %v2793, %v2796
      %v2798 = vsel %vm1043, %v2788, %v2797
      %v2800 = vshrl.u32 %v2628, 16
      %v2802 = vrot.slane %v2800, 3
      %v2803 = vshll.u32 %v2628, 16
      %v2805 = vrot.slane %v2803, 4
      %v2806 = vor.u32 %v2802, %v2805
      %v2807 = vsel %vm1043, %v2797, %v2806
      %v2809 = vshrl.u32 %v2629, 16
      %v2811 = vrot.slane %v2809, 3
      %v2812 = vshll.u32 %v2629, 16
      %v2814 = vrot.slane %v2812, 4
      %v2815 = vor.u32 %v2811, %v2814
      %v2816 = vsel %vm1043, %v2806, %v2815
      %v2818 = vshrl.u32 %v2630, 16
      %v2820 = vrot.slane %v2818, 3
      %v2821 = vshll.u32 %v2630, 16
      %v2823 = vrot.slane %v2821, 4
      %v2824 = vor.u32 %v2820, %v2823
      %v2825 = vsel %vm1043, %v2815, %v2824
      %v2827 = vshrl.u32 %v2631, 16
      %v2829 = vrot.slane %v2827, 3
      %v2830 = vshll.u32 %v2631, 16
      %v2832 = vrot.slane %v2830, 4
      %v2833 = vor.u32 %v2829, %v2832
      %v2834 = vsel %vm1043, %v2824, %v2833
      %v2836 = vshrl.u32 %v2632, 16
      %v2838 = vrot.slane %v2836, 3
      %v2839 = vshll.u32 %v2632, 16
      %v2841 = vrot.slane %v2839, 4
      %v2842 = vor.u32 %v2838, %v2841
      %v2843 = vsel %vm1043, %v2833, %v2842
      %v2845 = vshrl.u32 %v2633, 16
      %v2847 = vrot.slane %v2845, 3
      %v2848 = vshll.u32 %v2633, 16
      %v2850 = vrot.slane %v2848, 4
      %v2851 = vor.u32 %v2847, %v2850
      %v2852 = vsel %vm1043, %v2842, %v2851
      %v2854 = vshrl.u32 %v2634, 16
      %v2856 = vrot.slane %v2854, 3
      %v2857 = vshll.u32 %v2634, 16
      %v2859 = vrot.slane %v2857, 4
      %v2860 = vor.u32 %v2856, %v2859
      %v2861 = vsel %vm1043, %v2851, %v2860
      %v2863 = vshrl.u32 %v2635, 16
      %v2865 = vrot.slane %v2863, 3
      %v2866 = vshll.u32 %v2635, 16
      %v2868 = vrot.slane %v2866, 4
      %v2869 = vor.u32 %v2865, %v2868
      %v2870 = vsel %vm1043, %v2860, %v2869
      %v2872 = vshrl.u32 %v2636, 16
      %v2874 = vrot.slane %v2872, 3
      %v2875 = vshll.u32 %v2636, 16
      %v2877 = vrot.slane %v2875, 4
      %v2878 = vor.u32 %v2874, %v2877
      %v2879 = vsel %vm1043, %v2869, %v2878
      %v2881 = vshrl.u32 %v2637, 16
      %v2883 = vrot.slane %v2881, 3
      %v2884 = vshll.u32 %v2637, 16
      %v2886 = vrot.slane %v2884, 4
      %v2887 = vor.u32 %v2883, %v2886
      %v2888 = vsel %vm1043, %v2878, %v2887
      %v2932 = vunpack.c.l.b16 %v2484
      %v2933 = vunpack.c.l.b16 %v2485
      %v2934 = vunpack.c.l.b16 %v2486
      %v2935 = vunpack.c.l.b16 %v2487
      %v2936 = vunpack.c.l.b16 %v2488
      %v2937 = vunpack.c.l.b16 %v2489
      %v2938 = vunpack.c.l.b16 %v2490
      %v2939 = vunpack.c.l.b16 %v2491
      %v2940 = vunpack.c.l.b16 %v2492
      %v2941 = vunpack.c.l.b16 %v2493
      %v2942 = vunpack.c.l.b16 %v2494
      %v2943 = vunpack.c.l.b16 %v2495
      %v2944 = vunpack.c.l.b16 %v2496
      %v2945 = vunpack.c.l.b16 %v2497
      %v2946 = vunpack.c.l.b16 %v2498
      %v2947 = vunpack.c.l.b16 %v2499
      %v2948 = vpack.c.b16 %v2933, %v2932
      %v2949 = vpack.c.b16 %v2935, %v2934
      %v2950 = vpack.c.b16 %v2937, %v2936
      %v2951 = vpack.c.b16 %v2939, %v2938
      %v2952 = vpack.c.b16 %v2941, %v2940
      %v2953 = vpack.c.b16 %v2943, %v2942
      %v2954 = vpack.c.b16 %v2945, %v2944
      %v2955 = vpack.c.b16 %v2947, %v2946
      %2964 = vmatprep.subr.bf16.mxu0 0
      %2965 = vmatpush1.bf16.msra.mxu0 %v2955
      %2966 = vmatprep.subr.bf16.mxu0 0
      %2967 = vmatpush1.bf16.msra.mxu0 %v2954
      %2968 = vmatprep.subr.bf16.mxu0 0
      %2969 = vmatpush1.bf16.msra.mxu0 %v2953
      %2970 = vmatprep.subr.bf16.mxu0 0
      %2971 = vmatpush1.bf16.msra.mxu0 %v2952
      %2972 = vmatprep.subr.bf16.mxu0 0
      %2973 = vmatpush1.bf16.msra.mxu0 %v2951
      %2974 = vmatprep.subr.bf16.mxu0 0
      %2975 = vmatpush1.bf16.msra.mxu0 %v2950
      %2976 = vmatprep.subr.bf16.mxu0 0
      %2977 = vmatpush1.bf16.msra.mxu0 %v2949
      %2978 = vmatprep.subr.bf16.mxu0 0
      %2979 = vmatpush1.bf16.msra.mxu0 %v2948
      %2980 = vmatprep.subr.bf16.mxu0 0
      %2981 = vmatpush2.bf16.msra.mxu0 0
      %2982 = vmatprep.subr.bf16.mxu0 0
      %2983 = vmatpush2.bf16.msra.mxu0 0
      %2984 = vmatprep.subr.bf16.mxu0 0
      %2985 = vmatpush2.bf16.msra.mxu0 0
      %2986 = vmatprep.subr.bf16.mxu0 0
      %2987 = vmatpush2.bf16.msra.mxu0 0
      %2988 = vmatprep.subr.bf16.mxu0 0
      %2989 = vmatpush2.bf16.msra.mxu0 0
      %2990 = vmatprep.subr.bf16.mxu0 0
      %2991 = vmatpush2.bf16.msra.mxu0 0
      %2992 = vmatprep.subr.bf16.mxu0 0
      %2993 = vmatpush2.bf16.msra.mxu0 0
      %2994 = vmatprep.subr.bf16.mxu0 0
      %2995 = vmatpush2.bf16.msra.mxu0 0
      %2996 = vmatprep.mubr.bf16.mxu0 0
      %2997 = vmatmul.mubr.bf16.gmra.mxu0 %v2654
      %v2998 = vpop.f32.mrf.mxu0
      %v2999 = vadd.f32 0.0, %v2998
      %v3000 = vpop.f32.mrf.mxu0
      %v3001 = vpop.f32.mrf.mxu0
      %v3002 = vadd.f32 0.0, %v3001
      %v3003 = vpop.f32.mrf.mxu0
      %3004 = vmatprep.mubr.bf16.mxu0 0
      %3005 = vmatmul.mubr.bf16.gmra.mxu0 %v2663
      %v3006 = vpop.f32.mrf.mxu0
      %v3007 = vadd.f32 0.0, %v3006
      %v3008 = vpop.f32.mrf.mxu0
      %v3009 = vpop.f32.mrf.mxu0
      %v3010 = vadd.f32 0.0, %v3009
      %v3011 = vpop.f32.mrf.mxu0
      %3012 = vmatprep.mubr.bf16.mxu0 0
      %3013 = vmatmul.mubr.bf16.gmra.mxu0 %v2672
      %v3014 = vpop.f32.mrf.mxu0
      %v3015 = vadd.f32 0.0, %v3014
      %v3016 = vpop.f32.mrf.mxu0
      %v3017 = vpop.f32.mrf.mxu0
      %v3018 = vadd.f32 0.0, %v3017
      %v3019 = vpop.f32.mrf.mxu0
      %3020 = vmatprep.mubr.bf16.mxu0 0
      %3021 = vmatmul.mubr.bf16.gmra.mxu0 %v2681
      %v3022 = vpop.f32.mrf.mxu0
      %v3023 = vadd.f32 0.0, %v3022
      %v3024 = vpop.f32.mrf.mxu0
      %v3025 = vpop.f32.mrf.mxu0
      %v3026 = vadd.f32 0.0, %v3025
      %v3027 = vpop.f32.mrf.mxu0
      %3028 = vmatprep.mubr.bf16.mxu0 0
      %3029 = vmatmul.mubr.bf16.gmra.mxu0 %v2690
      %v3030 = vpop.f32.mrf.mxu0
      %v3031 = vadd.f32 0.0, %v3030
      %v3032 = vpop.f32.mrf.mxu0
      %v3033 = vpop.f32.mrf.mxu0
      %v3034 = vadd.f32 0.0, %v3033
      %v3035 = vpop.f32.mrf.mxu0
      %3036 = vmatprep.mubr.bf16.mxu0 0
      %3037 = vmatmul.mubr.bf16.gmra.mxu0 %v2699
      %v3038 = vpop.f32.mrf.mxu0
      %v3039 = vadd.f32 0.0, %v3038
      %v3040 = vpop.f32.mrf.mxu0
      %v3041 = vpop.f32.mrf.mxu0
      %v3042 = vadd.f32 0.0, %v3041
      %v3043 = vpop.f32.mrf.mxu0
      %3044 = vmatprep.mubr.bf16.mxu0 0
      %3045 = vmatmul.mubr.bf16.gmra.mxu0 %v2708
      %v3046 = vpop.f32.mrf.mxu0
      %v3047 = vadd.f32 0.0, %v3046
      %v3048 = vpop.f32.mrf.mxu0
      %v3049 = vpop.f32.mrf.mxu0
      %v3050 = vadd.f32 0.0, %v3049
      %v3051 = vpop.f32.mrf.mxu0
      %3052 = vmatprep.mubr.bf16.mxu0 0
      %3053 = vmatmul.mubr.bf16.gmra.mxu0 %v2717
      %v3054 = vpop.f32.mrf.mxu0
      %v3055 = vadd.f32 0.0, %v3054
      %v3056 = vpop.f32.mrf.mxu0
      %v3057 = vpop.f32.mrf.mxu0
      %v3058 = vadd.f32 0.0, %v3057
      %v3059 = vpop.f32.mrf.mxu0
      %3060 = vmatprep.mubr.bf16.mxu0 0
      %3061 = vmatmul.mubr.bf16.gmra.mxu0 %v2726
      %v3062 = vpop.f32.mrf.mxu0
      %v3063 = vadd.f32 0.0, %v3062
      %v3064 = vpop.f32.mrf.mxu0
      %v3065 = vpop.f32.mrf.mxu0
      %v3066 = vadd.f32 0.0, %v3065
      %v3067 = vpop.f32.mrf.mxu0
      %3068 = vmatprep.mubr.bf16.mxu0 0
      %3069 = vmatmul.mubr.bf16.gmra.mxu0 %v2735
      %v3070 = vpop.f32.mrf.mxu0
      %v3071 = vadd.f32 0.0, %v3070
      %v3072 = vpop.f32.mrf.mxu0
      %v3073 = vpop.f32.mrf.mxu0
      %v3074 = vadd.f32 0.0, %v3073
      %v3075 = vpop.f32.mrf.mxu0
      %3076 = vmatprep.mubr.bf16.mxu0 0
      %3077 = vmatmul.mubr.bf16.gmra.mxu0 %v2744
      %v3078 = vpop.f32.mrf.mxu0
      %v3079 = vadd.f32 0.0, %v3078
      %v3080 = vpop.f32.mrf.mxu0
      %v3081 = vpop.f32.mrf.mxu0
      %v3082 = vadd.f32 0.0, %v3081
      %v3083 = vpop.f32.mrf.mxu0
      %3084 = vmatprep.mubr.bf16.mxu0 0
      %3085 = vmatmul.mubr.bf16.gmra.mxu0 %v2753
      %v3086 = vpop.f32.mrf.mxu0
      %v3087 = vadd.f32 0.0, %v3086
      %v3088 = vpop.f32.mrf.mxu0
      %v3089 = vpop.f32.mrf.mxu0
      %v3090 = vadd.f32 0.0, %v3089
      %v3091 = vpop.f32.mrf.mxu0
      %3092 = vmatprep.mubr.bf16.mxu0 0
      %3093 = vmatmul.mubr.bf16.gmra.mxu0 %v2762
      %v3094 = vpop.f32.mrf.mxu0
      %v3095 = vadd.f32 0.0, %v3094
      %v3096 = vpop.f32.mrf.mxu0
      %v3097 = vpop.f32.mrf.mxu0
      %v3098 = vadd.f32 0.0, %v3097
      %v3099 = vpop.f32.mrf.mxu0
      %3100 = vmatprep.mubr.bf16.mxu0 0
      %3101 = vmatmul.mubr.bf16.gmra.mxu0 %v2771
      %v3102 = vpop.f32.mrf.mxu0
      %v3103 = vadd.f32 0.0, %v3102
      %v3104 = vpop.f32.mrf.mxu0
      %v3105 = vpop.f32.mrf.mxu0
      %v3106 = vadd.f32 0.0, %v3105
      %v3107 = vpop.f32.mrf.mxu0
      %3108 = vmatprep.mubr.bf16.mxu0 0
      %3109 = vmatmul.mubr.bf16.gmra.mxu0 %v2780
      %v3110 = vpop.f32.mrf.mxu0
      %v3111 = vadd.f32 0.0, %v3110
      %v3112 = vpop.f32.mrf.mxu0
      %v3113 = vpop.f32.mrf.mxu0
      %v3114 = vadd.f32 0.0, %v3113
      %v3115 = vpop.f32.mrf.mxu0
      %3116 = vmatprep.mubr.bf16.mxu0 0
      %3117 = vmatmul.mubr.bf16.gmra.mxu0 %v2789
      %v3118 = vpop.f32.mrf.mxu0
      %v3119 = vadd.f32 0.0, %v3118
      %v3120 = vpop.f32.mrf.mxu0
      %v3121 = vpop.f32.mrf.mxu0
      %v3122 = vadd.f32 0.0, %v3121
      %v3123 = vpop.f32.mrf.mxu0
      %3124 = vmatprep.mubr.bf16.mxu0 0
      %3125 = vmatmul.mubr.bf16.gmra.mxu0 %v2798
      %v3126 = vpop.f32.mrf.mxu0
      %v3127 = vadd.f32 0.0, %v3126
      %v3128 = vpop.f32.mrf.mxu0
      %v3129 = vpop.f32.mrf.mxu0
      %v3130 = vadd.f32 0.0, %v3129
      %v3131 = vpop.f32.mrf.mxu0
      %3132 = vmatprep.mubr.bf16.mxu0 0
      %3133 = vmatmul.mubr.bf16.gmra.mxu0 %v2807
      %v3134 = vpop.f32.mrf.mxu0
      %v3135 = vadd.f32 0.0, %v3134
      %v3136 = vpop.f32.mrf.mxu0
      %v3137 = vpop.f32.mrf.mxu0
      %v3138 = vadd.f32 0.0, %v3137
      %v3139 = vpop.f32.mrf.mxu0
      %3140 = vmatprep.mubr.bf16.mxu0 0
      %3141 = vmatmul.mubr.bf16.gmra.mxu0 %v2816
      %v3142 = vpop.f32.mrf.mxu0
      %v3143 = vadd.f32 0.0, %v3142
      %v3144 = vpop.f32.mrf.mxu0
      %v3145 = vpop.f32.mrf.mxu0
      %v3146 = vadd.f32 0.0, %v3145
      %v3147 = vpop.f32.mrf.mxu0
      %3148 = vmatprep.mubr.bf16.mxu0 0
      %3149 = vmatmul.mubr.bf16.gmra.mxu0 %v2825
      %v3150 = vpop.f32.mrf.mxu0
      %v3151 = vadd.f32 0.0, %v3150
      %v3152 = vpop.f32.mrf.mxu0
      %v3153 = vpop.f32.mrf.mxu0
      %v3154 = vadd.f32 0.0, %v3153
      %v3155 = vpop.f32.mrf.mxu0
      %3156 = vmatprep.mubr.bf16.mxu0 0
      %3157 = vmatmul.mubr.bf16.gmra.mxu0 %v2834
      %v3158 = vpop.f32.mrf.mxu0
      %v3159 = vadd.f32 0.0, %v3158
      %v3160 = vpop.f32.mrf.mxu0
      %v3161 = vpop.f32.mrf.mxu0
      %v3162 = vadd.f32 0.0, %v3161
      %v3163 = vpop.f32.mrf.mxu0
      %3164 = vmatprep.mubr.bf16.mxu0 0
      %3165 = vmatmul.mubr.bf16.gmra.mxu0 %v2843
      %v3166 = vpop.f32.mrf.mxu0
      %v3167 = vadd.f32 0.0, %v3166
      %v3168 = vpop.f32.mrf.mxu0
      %v3169 = vpop.f32.mrf.mxu0
      %v3170 = vadd.f32 0.0, %v3169
      %v3171 = vpop.f32.mrf.mxu0
      %3172 = vmatprep.mubr.bf16.mxu0 0
      %3173 = vmatmul.mubr.bf16.gmra.mxu0 %v2852
      %v3174 = vpop.f32.mrf.mxu0
      %v3175 = vadd.f32 0.0, %v3174
      %v3176 = vpop.f32.mrf.mxu0
      %v3177 = vpop.f32.mrf.mxu0
      %v3178 = vadd.f32 0.0, %v3177
      %v3179 = vpop.f32.mrf.mxu0
      %3180 = vmatprep.mubr.bf16.mxu0 0
      %3181 = vmatmul.mubr.bf16.gmra.mxu0 %v2861
      %v3182 = vpop.f32.mrf.mxu0
      %v3183 = vadd.f32 0.0, %v3182
      %v3184 = vpop.f32.mrf.mxu0
      %v3185 = vpop.f32.mrf.mxu0
      %v3186 = vadd.f32 0.0, %v3185
      %v3187 = vpop.f32.mrf.mxu0
      %3188 = vmatprep.mubr.bf16.mxu0 0
      %3189 = vmatmul.mubr.bf16.gmra.mxu0 %v2870
      %v3190 = vpop.f32.mrf.mxu0
      %v3191 = vadd.f32 0.0, %v3190
      %v3192 = vpop.f32.mrf.mxu0
      %v3193 = vpop.f32.mrf.mxu0
      %v3194 = vadd.f32 0.0, %v3193
      %v3195 = vpop.f32.mrf.mxu0
      %3196 = vmatprep.mubr.bf16.mxu0 0
      %3197 = vmatmul.mubr.bf16.gmra.mxu0 %v2879
      %v3198 = vpop.f32.mrf.mxu0
      %v3199 = vadd.f32 0.0, %v3198
      %v3200 = vpop.f32.mrf.mxu0
      %v3201 = vpop.f32.mrf.mxu0
      %v3202 = vadd.f32 0.0, %v3201
      %v3203 = vpop.f32.mrf.mxu0
      %3204 = vmatprep.mubr.bf16.mxu0 0
      %3205 = vmatmul.mubr.bf16.gmra.mxu0 %v2888
      %v3206 = vpop.f32.mrf.mxu0
      %v3207 = vadd.f32 0.0, %v3206
      %v3208 = vpop.f32.mrf.mxu0
      %v3209 = vpop.f32.mrf.mxu0
      %v3210 = vadd.f32 0.0, %v3209
      %v3211 = vpop.f32.mrf.mxu0
      %3212 = vdwg.mxu0
      %v3213 = vadd.f32 %v2374, %v2999
      %v3214 = vadd.f32 %v2375, %v3002
      %v3215 = vadd.f32 %v2376, %v3007
      %v3216 = vadd.f32 %v2377, %v3010
      %v3217 = vadd.f32 %v2378, %v3015
      %v3218 = vadd.f32 %v2379, %v3018
      %v3219 = vadd.f32 %v2380, %v3023
      %v3220 = vadd.f32 %v2381, %v3026
      %v3221 = vadd.f32 %v2382, %v3031
      %v3222 = vadd.f32 %v2383, %v3034
      %v3223 = vadd.f32 %v2384, %v3039
      %v3224 = vadd.f32 %v2385, %v3042
      %v3225 = vadd.f32 %v2386, %v3047
      %v3226 = vadd.f32 %v2387, %v3050
      %v3227 = vadd.f32 %v2388, %v3055
      %v3228 = vadd.f32 %v2389, %v3058
      %v3229 = vadd.f32 %v2390, %v3063
      %v3230 = vadd.f32 %v2391, %v3066
      %v3231 = vadd.f32 %v2392, %v3071
      %v3232 = vadd.f32 %v2393, %v3074
      %v3233 = vadd.f32 %v2394, %v3079
      %v3234 = vadd.f32 %v2395, %v3082
      %v3235 = vadd.f32 %v2396, %v3087
      %v3236 = vadd.f32 %v2397, %v3090
      %v3237 = vadd.f32 %v2398, %v3095
      %v3238 = vadd.f32 %v2399, %v3098
      %v3239 = vadd.f32 %v2400, %v3103
      %v3240 = vadd.f32 %v2401, %v3106
      %v3241 = vadd.f32 %v2402, %v3111
      %v3242 = vadd.f32 %v2403, %v3114
      %v3243 = vadd.f32 %v2404, %v3119
      %v3244 = vadd.f32 %v2405, %v3122
      %v3245 = vadd.f32 %v2406, %v3127
      %v3246 = vadd.f32 %v2407, %v3130
      %v3247 = vadd.f32 %v2408, %v3135
      %v3248 = vadd.f32 %v2409, %v3138
      %v3249 = vadd.f32 %v2410, %v3143
      %v3250 = vadd.f32 %v2411, %v3146
      %v3251 = vadd.f32 %v2412, %v3151
      %v3252 = vadd.f32 %v2413, %v3154
      %v3253 = vadd.f32 %v2414, %v3159
      %v3254 = vadd.f32 %v2415, %v3162
      %v3255 = vadd.f32 %v2416, %v3167
      %v3256 = vadd.f32 %v2417, %v3170
      %v3257 = vadd.f32 %v2418, %v3175
      %v3258 = vadd.f32 %v2419, %v3178
      %v3259 = vadd.f32 %v2420, %v3183
      %v3260 = vadd.f32 %v2421, %v3186
      %v3261 = vadd.f32 %v2422, %v3191
      %v3262 = vadd.f32 %v2423, %v3194
      %v3263 = vadd.f32 %v2424, %v3199
      %v3264 = vadd.f32 %v2425, %v3202
      %v3265 = vadd.f32 %v2426, %v3207
      %v3266 = vadd.f32 %v2427, %v3210
      %s3267 = scalar_lea.vmem %s1, 256
      %v3268 = vld [vmem:[%s3267] sm:$0xf]
      %v3269 = vld [vmem:[%s3267 + $0x4] sm:$0xf]
      %v3270 = vld [vmem:[%s3267 + $0x8] sm:$0xf]
      %v3271 = vld [vmem:[%s3267 + $0xc] sm:$0xf]
      %v3272 = vld [vmem:[%s3267 + $0x10] sm:$0xf]
      %v3273 = vld [vmem:[%s3267 + $0x14] sm:$0xf]
      %v3274 = vld [vmem:[%s3267 + $0x18] sm:$0xf]
      %v3275 = vld [vmem:[%s3267 + $0x1c] sm:$0xf]
      %v3276 = vld [vmem:[%s3267 + $0x20] sm:$0xf]
      %v3277 = vld [vmem:[%s3267 + $0x24] sm:$0xf]
      %v3278 = vld [vmem:[%s3267 + $0x28] sm:$0xf]
      %v3279 = vld [vmem:[%s3267 + $0x2c] sm:$0xf]
      %v3280 = vld [vmem:[%s3267 + $0x30] sm:$0xf]
      %v3281 = vld [vmem:[%s3267 + $0x34] sm:$0xf]
      %v3282 = vld [vmem:[%s3267 + $0x38] sm:$0xf]
      %v3283 = vld [vmem:[%s3267 + $0x3c] sm:$0xf]
      %v3284 = vpack.c.b16 %v2557, %v2556
      %v3285 = vpack.c.b16 %v2559, %v2558
      %v3286 = vpack.c.b16 %v2561, %v2560
      %v3287 = vpack.c.b16 %v2563, %v2562
      %v3288 = vpack.c.b16 %v2565, %v2564
      %v3289 = vpack.c.b16 %v2567, %v2566
      %v3290 = vpack.c.b16 %v2569, %v2568
      %v3291 = vpack.c.b16 %v2571, %v2570
      %v3292 = vpack.c.b16 %v2573, %v2572
      %v3293 = vpack.c.b16 %v2575, %v2574
      %v3294 = vpack.c.b16 %v2577, %v2576
      %v3295 = vpack.c.b16 %v2579, %v2578
      %v3296 = vpack.c.b16 %v2581, %v2580
      %v3297 = vpack.c.b16 %v2583, %v2582
      %v3298 = vpack.c.b16 %v2585, %v2584
      %v3299 = vpack.c.b16 %v2587, %v2586
      %v3300 = vpack.c.b16 %v2589, %v2588
      %v3301 = vpack.c.b16 %v2591, %v2590
      %v3302 = vpack.c.b16 %v2593, %v2592
      %v3303 = vpack.c.b16 %v2595, %v2594
      %v3304 = vpack.c.b16 %v2597, %v2596
      %v3305 = vpack.c.b16 %v2599, %v2598
      %v3306 = vpack.c.b16 %v2601, %v2600
      %v3307 = vpack.c.b16 %v2603, %v2602
      %v3308 = vpack.c.b16 %v2605, %v2604
      %v3309 = vpack.c.b16 %v2607, %v2606
      %v3310 = vpack.c.b16 %v2609, %v2608
      %v3354 = vunpack.c.l.b16 %v3268
      %v3355 = vunpack.c.l.b16 %v3269
      %v3356 = vunpack.c.l.b16 %v3270
      %v3357 = vunpack.c.l.b16 %v3271
      %v3358 = vunpack.c.l.b16 %v3272
      %v3359 = vunpack.c.l.b16 %v3273
      %v3360 = vunpack.c.l.b16 %v3274
      %v3361 = vunpack.c.l.b16 %v3275
      %v3362 = vunpack.c.l.b16 %v3276
      %v3363 = vunpack.c.l.b16 %v3277
      %v3364 = vunpack.c.l.b16 %v3278
      %v3365 = vunpack.c.l.b16 %v3279
      %v3366 = vunpack.c.l.b16 %v3280
      %v3367 = vunpack.c.l.b16 %v3281
      %v3368 = vunpack.c.l.b16 %v3282
      %v3369 = vunpack.c.l.b16 %v3283
      %v3370 = vpack.c.b16 %v3355, %v3354
      %v3371 = vpack.c.b16 %v3357, %v3356
      %v3372 = vpack.c.b16 %v3359, %v3358
      %v3373 = vpack.c.b16 %v3361, %v3360
      %v3374 = vpack.c.b16 %v3363, %v3362
      %v3375 = vpack.c.b16 %v3365, %v3364
      %v3376 = vpack.c.b16 %v3367, %v3366
      %v3377 = vpack.c.b16 %v3369, %v3368
      %3386 = vmatprep.subr.bf16.mxu0 0
      %3387 = vmatpush1.bf16.msra.mxu0 %v3377
      %3388 = vmatprep.subr.bf16.mxu0 0
      %3389 = vmatpush1.bf16.msra.mxu0 %v3376
      %3390 = vmatprep.subr.bf16.mxu0 0
      %3391 = vmatpush1.bf16.msra.mxu0 %v3375
      %3392 = vmatprep.subr.bf16.mxu0 0
      %3393 = vmatpush1.bf16.msra.mxu0 %v3374
      %3394 = vmatprep.subr.bf16.mxu0 0
      %3395 = vmatpush1.bf16.msra.mxu0 %v3373
      %3396 = vmatprep.subr.bf16.mxu0 0
      %3397 = vmatpush1.bf16.msra.mxu0 %v3372
      %3398 = vmatprep.subr.bf16.mxu0 0
      %3399 = vmatpush1.bf16.msra.mxu0 %v3371
      %3400 = vmatprep.subr.bf16.mxu0 0
      %3401 = vmatpush1.bf16.msra.mxu0 %v3370
      %3402 = vmatprep.subr.bf16.mxu0 0
      %3403 = vmatpush2.bf16.msra.mxu0 0
      %3404 = vmatprep.subr.bf16.mxu0 0
      %3405 = vmatpush2.bf16.msra.mxu0 0
      %3406 = vmatprep.subr.bf16.mxu0 0
      %3407 = vmatpush2.bf16.msra.mxu0 0
      %3408 = vmatprep.subr.bf16.mxu0 0
      %3409 = vmatpush2.bf16.msra.mxu0 0
      %3410 = vmatprep.subr.bf16.mxu0 0
      %3411 = vmatpush2.bf16.msra.mxu0 0
      %3412 = vmatprep.subr.bf16.mxu0 0
      %3413 = vmatpush2.bf16.msra.mxu0 0
      %3414 = vmatprep.subr.bf16.mxu0 0
      %3415 = vmatpush2.bf16.msra.mxu0 0
      %3416 = vmatprep.subr.bf16.mxu0 0
      %3417 = vmatpush2.bf16.msra.mxu0 0
      %3418 = vmatprep.mubr.bf16.mxu0 0
      %3419 = vmatmul.mubr.bf16.gmra.mxu0 %v3284
      %v3420 = vpop.f32.mrf.mxu0
      %v3421 = vadd.f32 0.0, %v3420
      %v3422 = vpop.f32.mrf.mxu0
      %v3423 = vpop.f32.mrf.mxu0
      %v3424 = vadd.f32 0.0, %v3423
      %v3425 = vpop.f32.mrf.mxu0
      %3426 = vmatprep.mubr.bf16.mxu0 0
      %3427 = vmatmul.mubr.bf16.gmra.mxu0 %v3285
      %v3428 = vpop.f32.mrf.mxu0
      %v3429 = vadd.f32 0.0, %v3428
      %v3430 = vpop.f32.mrf.mxu0
      %v3431 = vpop.f32.mrf.mxu0
      %v3432 = vadd.f32 0.0, %v3431
      %v3433 = vpop.f32.mrf.mxu0
      %3434 = vmatprep.mubr.bf16.mxu0 0
      %3435 = vmatmul.mubr.bf16.gmra.mxu0 %v3286
      %v3436 = vpop.f32.mrf.mxu0
      %v3437 = vadd.f32 0.0, %v3436
      %v3438 = vpop.f32.mrf.mxu0
      %v3439 = vpop.f32.mrf.mxu0
      %v3440 = vadd.f32 0.0, %v3439
      %v3441 = vpop.f32.mrf.mxu0
      %3442 = vmatprep.mubr.bf16.mxu0 0
      %3443 = vmatmul.mubr.bf16.gmra.mxu0 %v3287
      %v3444 = vpop.f32.mrf.mxu0
      %v3445 = vadd.f32 0.0, %v3444
      %v3446 = vpop.f32.mrf.mxu0
      %v3447 = vpop.f32.mrf.mxu0
      %v3448 = vadd.f32 0.0, %v3447
      %v3449 = vpop.f32.mrf.mxu0
      %3450 = vmatprep.mubr.bf16.mxu0 0
      %3451 = vmatmul.mubr.bf16.gmra.mxu0 %v3288
      %v3452 = vpop.f32.mrf.mxu0
      %v3453 = vadd.f32 0.0, %v3452
      %v3454 = vpop.f32.mrf.mxu0
      %v3455 = vpop.f32.mrf.mxu0
      %v3456 = vadd.f32 0.0, %v3455
      %v3457 = vpop.f32.mrf.mxu0
      %3458 = vmatprep.mubr.bf16.mxu0 0
      %3459 = vmatmul.mubr.bf16.gmra.mxu0 %v3289
      %v3460 = vpop.f32.mrf.mxu0
      %v3461 = vadd.f32 0.0, %v3460
      %v3462 = vpop.f32.mrf.mxu0
      %v3463 = vpop.f32.mrf.mxu0
      %v3464 = vadd.f32 0.0, %v3463
      %v3465 = vpop.f32.mrf.mxu0
      %3466 = vmatprep.mubr.bf16.mxu0 0
      %3467 = vmatmul.mubr.bf16.gmra.mxu0 %v3290
      %v3468 = vpop.f32.mrf.mxu0
      %v3469 = vadd.f32 0.0, %v3468
      %v3470 = vpop.f32.mrf.mxu0
      %v3471 = vpop.f32.mrf.mxu0
      %v3472 = vadd.f32 0.0, %v3471
      %v3473 = vpop.f32.mrf.mxu0
      %3474 = vmatprep.mubr.bf16.mxu0 0
      %3475 = vmatmul.mubr.bf16.gmra.mxu0 %v3291
      %v3476 = vpop.f32.mrf.mxu0
      %v3477 = vadd.f32 0.0, %v3476
      %v3478 = vpop.f32.mrf.mxu0
      %v3479 = vpop.f32.mrf.mxu0
      %v3480 = vadd.f32 0.0, %v3479
      %v3481 = vpop.f32.mrf.mxu0
      %3482 = vmatprep.mubr.bf16.mxu0 0
      %3483 = vmatmul.mubr.bf16.gmra.mxu0 %v3292
      %v3484 = vpop.f32.mrf.mxu0
      %v3485 = vadd.f32 0.0, %v3484
      %v3486 = vpop.f32.mrf.mxu0
      %v3487 = vpop.f32.mrf.mxu0
      %v3488 = vadd.f32 0.0, %v3487
      %v3489 = vpop.f32.mrf.mxu0
      %3490 = vmatprep.mubr.bf16.mxu0 0
      %3491 = vmatmul.mubr.bf16.gmra.mxu0 %v3293
      %v3492 = vpop.f32.mrf.mxu0
      %v3493 = vadd.f32 0.0, %v3492
      %v3494 = vpop.f32.mrf.mxu0
      %v3495 = vpop.f32.mrf.mxu0
      %v3496 = vadd.f32 0.0, %v3495
      %v3497 = vpop.f32.mrf.mxu0
      %3498 = vmatprep.mubr.bf16.mxu0 0
      %3499 = vmatmul.mubr.bf16.gmra.mxu0 %v3294
      %v3500 = vpop.f32.mrf.mxu0
      %v3501 = vadd.f32 0.0, %v3500
      %v3502 = vpop.f32.mrf.mxu0
      %v3503 = vpop.f32.mrf.mxu0
      %v3504 = vadd.f32 0.0, %v3503
      %v3505 = vpop.f32.mrf.mxu0
      %3506 = vmatprep.mubr.bf16.mxu0 0
      %3507 = vmatmul.mubr.bf16.gmra.mxu0 %v3295
      %v3508 = vpop.f32.mrf.mxu0
      %v3509 = vadd.f32 0.0, %v3508
      %v3510 = vpop.f32.mrf.mxu0
      %v3511 = vpop.f32.mrf.mxu0
      %v3512 = vadd.f32 0.0, %v3511
      %v3513 = vpop.f32.mrf.mxu0
      %3514 = vmatprep.mubr.bf16.mxu0 0
      %3515 = vmatmul.mubr.bf16.gmra.mxu0 %v3296
      %v3516 = vpop.f32.mrf.mxu0
      %v3517 = vadd.f32 0.0, %v3516
      %v3518 = vpop.f32.mrf.mxu0
      %v3519 = vpop.f32.mrf.mxu0
      %v3520 = vadd.f32 0.0, %v3519
      %v3521 = vpop.f32.mrf.mxu0
      %3522 = vmatprep.mubr.bf16.mxu0 0
      %3523 = vmatmul.mubr.bf16.gmra.mxu0 %v3297
      %v3524 = vpop.f32.mrf.mxu0
      %v3525 = vadd.f32 0.0, %v3524
      %v3526 = vpop.f32.mrf.mxu0
      %v3527 = vpop.f32.mrf.mxu0
      %v3528 = vadd.f32 0.0, %v3527
      %v3529 = vpop.f32.mrf.mxu0
      %3530 = vmatprep.mubr.bf16.mxu0 0
      %3531 = vmatmul.mubr.bf16.gmra.mxu0 %v3298
      %v3532 = vpop.f32.mrf.mxu0
      %v3533 = vadd.f32 0.0, %v3532
      %v3534 = vpop.f32.mrf.mxu0
      %v3535 = vpop.f32.mrf.mxu0
      %v3536 = vadd.f32 0.0, %v3535
      %v3537 = vpop.f32.mrf.mxu0
      %3538 = vmatprep.mubr.bf16.mxu0 0
      %3539 = vmatmul.mubr.bf16.gmra.mxu0 %v3299
      %v3540 = vpop.f32.mrf.mxu0
      %v3541 = vadd.f32 0.0, %v3540
      %v3542 = vpop.f32.mrf.mxu0
      %v3543 = vpop.f32.mrf.mxu0
      %v3544 = vadd.f32 0.0, %v3543
      %v3545 = vpop.f32.mrf.mxu0
      %3546 = vmatprep.mubr.bf16.mxu0 0
      %3547 = vmatmul.mubr.bf16.gmra.mxu0 %v3300
      %v3548 = vpop.f32.mrf.mxu0
      %v3549 = vadd.f32 0.0, %v3548
      %v3550 = vpop.f32.mrf.mxu0
      %v3551 = vpop.f32.mrf.mxu0
      %v3552 = vadd.f32 0.0, %v3551
      %v3553 = vpop.f32.mrf.mxu0
      %3554 = vmatprep.mubr.bf16.mxu0 0
      %3555 = vmatmul.mubr.bf16.gmra.mxu0 %v3301
      %v3556 = vpop.f32.mrf.mxu0
      %v3557 = vadd.f32 0.0, %v3556
      %v3558 = vpop.f32.mrf.mxu0
      %v3559 = vpop.f32.mrf.mxu0
      %v3560 = vadd.f32 0.0, %v3559
      %v3561 = vpop.f32.mrf.mxu0
      %3562 = vmatprep.mubr.bf16.mxu0 0
      %3563 = vmatmul.mubr.bf16.gmra.mxu0 %v3302
      %v3564 = vpop.f32.mrf.mxu0
      %v3565 = vadd.f32 0.0, %v3564
      %v3566 = vpop.f32.mrf.mxu0
      %v3567 = vpop.f32.mrf.mxu0
      %v3568 = vadd.f32 0.0, %v3567
      %v3569 = vpop.f32.mrf.mxu0
      %3570 = vmatprep.mubr.bf16.mxu0 0
      %3571 = vmatmul.mubr.bf16.gmra.mxu0 %v3303
      %v3572 = vpop.f32.mrf.mxu0
      %v3573 = vadd.f32 0.0, %v3572
      %v3574 = vpop.f32.mrf.mxu0
      %v3575 = vpop.f32.mrf.mxu0
      %v3576 = vadd.f32 0.0, %v3575
      %v3577 = vpop.f32.mrf.mxu0
      %3578 = vmatprep.mubr.bf16.mxu0 0
      %3579 = vmatmul.mubr.bf16.gmra.mxu0 %v3304
      %v3580 = vpop.f32.mrf.mxu0
      %v3581 = vadd.f32 0.0, %v3580
      %v3582 = vpop.f32.mrf.mxu0
      %v3583 = vpop.f32.mrf.mxu0
      %v3584 = vadd.f32 0.0, %v3583
      %v3585 = vpop.f32.mrf.mxu0
      %3586 = vmatprep.mubr.bf16.mxu0 0
      %3587 = vmatmul.mubr.bf16.gmra.mxu0 %v3305
      %v3588 = vpop.f32.mrf.mxu0
      %v3589 = vadd.f32 0.0, %v3588
      %v3590 = vpop.f32.mrf.mxu0
      %v3591 = vpop.f32.mrf.mxu0
      %v3592 = vadd.f32 0.0, %v3591
      %v3593 = vpop.f32.mrf.mxu0
      %3594 = vmatprep.mubr.bf16.mxu0 0
      %3595 = vmatmul.mubr.bf16.gmra.mxu0 %v3306
      %v3596 = vpop.f32.mrf.mxu0
      %v3597 = vadd.f32 0.0, %v3596
      %v3598 = vpop.f32.mrf.mxu0
      %v3599 = vpop.f32.mrf.mxu0
      %v3600 = vadd.f32 0.0, %v3599
      %v3601 = vpop.f32.mrf.mxu0
      %3602 = vmatprep.mubr.bf16.mxu0 0
      %3603 = vmatmul.mubr.bf16.gmra.mxu0 %v3307
      %v3604 = vpop.f32.mrf.mxu0
      %v3605 = vadd.f32 0.0, %v3604
      %v3606 = vpop.f32.mrf.mxu0
      %v3607 = vpop.f32.mrf.mxu0
      %v3608 = vadd.f32 0.0, %v3607
      %v3609 = vpop.f32.mrf.mxu0
      %3610 = vmatprep.mubr.bf16.mxu0 0
      %3611 = vmatmul.mubr.bf16.gmra.mxu0 %v3308
      %v3612 = vpop.f32.mrf.mxu0
      %v3613 = vadd.f32 0.0, %v3612
      %v3614 = vpop.f32.mrf.mxu0
      %v3615 = vpop.f32.mrf.mxu0
      %v3616 = vadd.f32 0.0, %v3615
      %v3617 = vpop.f32.mrf.mxu0
      %3618 = vmatprep.mubr.bf16.mxu0 0
      %3619 = vmatmul.mubr.bf16.gmra.mxu0 %v3309
      %v3620 = vpop.f32.mrf.mxu0
      %v3621 = vadd.f32 0.0, %v3620
      %v3622 = vpop.f32.mrf.mxu0
      %v3623 = vpop.f32.mrf.mxu0
      %v3624 = vadd.f32 0.0, %v3623
      %v3625 = vpop.f32.mrf.mxu0
      %3626 = vmatprep.mubr.bf16.mxu0 0
      %3627 = vmatmul.mubr.bf16.gmra.mxu0 %v3310
      %v3628 = vpop.f32.mrf.mxu0
      %v3629 = vadd.f32 0.0, %v3628
      %v3630 = vpop.f32.mrf.mxu0
      %v3631 = vpop.f32.mrf.mxu0
      %v3632 = vadd.f32 0.0, %v3631
      %v3633 = vpop.f32.mrf.mxu0
      %3634 = vdwg.mxu0
      %v3635 = vadd.f32 %v3213, %v3421
      %v3636 = vadd.f32 %v3214, %v3424
      %v3637 = vadd.f32 %v3215, %v3429
      %v3638 = vadd.f32 %v3216, %v3432
      %v3639 = vadd.f32 %v3217, %v3437
      %v3640 = vadd.f32 %v3218, %v3440
      %v3641 = vadd.f32 %v3219, %v3445
      %v3642 = vadd.f32 %v3220, %v3448
      %v3643 = vadd.f32 %v3221, %v3453
      %v3644 = vadd.f32 %v3222, %v3456
      %v3645 = vadd.f32 %v3223, %v3461
      %v3646 = vadd.f32 %v3224, %v3464
      %v3647 = vadd.f32 %v3225, %v3469
      %v3648 = vadd.f32 %v3226, %v3472
      %v3649 = vadd.f32 %v3227, %v3477
      %v3650 = vadd.f32 %v3228, %v3480
      %v3651 = vadd.f32 %v3229, %v3485
      %v3652 = vadd.f32 %v3230, %v3488
      %v3653 = vadd.f32 %v3231, %v3493
      %v3654 = vadd.f32 %v3232, %v3496
      %v3655 = vadd.f32 %v3233, %v3501
      %v3656 = vadd.f32 %v3234, %v3504
      %v3657 = vadd.f32 %v3235, %v3509
      %v3658 = vadd.f32 %v3236, %v3512
      %v3659 = vadd.f32 %v3237, %v3517
      %v3660 = vadd.f32 %v3238, %v3520
      %v3661 = vadd.f32 %v3239, %v3525
      %v3662 = vadd.f32 %v3240, %v3528
      %v3663 = vadd.f32 %v3241, %v3533
      %v3664 = vadd.f32 %v3242, %v3536
      %v3665 = vadd.f32 %v3243, %v3541
      %v3666 = vadd.f32 %v3244, %v3544
      %v3667 = vadd.f32 %v3245, %v3549
      %v3668 = vadd.f32 %v3246, %v3552
      %v3669 = vadd.f32 %v3247, %v3557
      %v3670 = vadd.f32 %v3248, %v3560
      %v3671 = vadd.f32 %v3249, %v3565
      %v3672 = vadd.f32 %v3250, %v3568
      %v3673 = vadd.f32 %v3251, %v3573
      %v3674 = vadd.f32 %v3252, %v3576
      %v3675 = vadd.f32 %v3253, %v3581
      %v3676 = vadd.f32 %v3254, %v3584
      %v3677 = vadd.f32 %v3255, %v3589
      %v3678 = vadd.f32 %v3256, %v3592
      %v3679 = vadd.f32 %v3257, %v3597
      %v3680 = vadd.f32 %v3258, %v3600
      %v3681 = vadd.f32 %v3259, %v3605
      %v3682 = vadd.f32 %v3260, %v3608
      %v3683 = vadd.f32 %v3261, %v3613
      %v3684 = vadd.f32 %v3262, %v3616
      %v3685 = vadd.f32 %v3263, %v3621
      %v3686 = vadd.f32 %v3264, %v3624
      %v3687 = vadd.f32 %v3265, %v3629
      %v3688 = vadd.f32 %v3266, %v3632
      %v3689 = vld [vmem:[%s338 + $0x10] sm:$0xf]
      %v3690 = vld [vmem:[%s338 + $0x14] sm:$0xf]
      %v3691 = vld [vmem:[%s338 + $0x18] sm:$0xf]
      %v3692 = vld [vmem:[%s338 + $0x1c] sm:$0xf]
      %v3693 = vld [vmem:[%s338 + $0x20] sm:$0xf]
      %v3694 = vld [vmem:[%s338 + $0x24] sm:$0xf]
      %v3695 = vld [vmem:[%s338 + $0x28] sm:$0xf]
      %v3696 = vld [vmem:[%s338 + $0x2c] sm:$0xf]
      %v3697 = vld [vmem:[%s338 + $0x30] sm:$0xf]
      %v3698 = vld [vmem:[%s338 + $0x34] sm:$0xf]
      %v3699 = vld [vmem:[%s338 + $0x38] sm:$0xf]
      %v3700 = vld [vmem:[%s338 + $0x3c] sm:$0xf]
      %v3701 = vld [vmem:[%s338 + $0x40] sm:$0xf]
      %v3702 = vld [vmem:[%s338 + $0x44] sm:$0xf]
      %v3703 = vld [vmem:[%s338 + $0x48] sm:$0xf]
      %v3704 = vld [vmem:[%s338 + $0x4c] sm:$0xf]
      %v3705 = vld [vmem:[%s338 + $0x50] sm:$0xf]
      %v3706 = vld [vmem:[%s338 + $0x54] sm:$0xf]
      %v3707 = vld [vmem:[%s338 + $0x58] sm:$0xf]
      %v3708 = vld [vmem:[%s338 + $0x5c] sm:$0xf]
      %v3709 = vld [vmem:[%s338 + $0x60] sm:$0xf]
      %v3710 = vld [vmem:[%s338 + $0x64] sm:$0xf]
      %v3711 = vld [vmem:[%s338 + $0x68] sm:$0xf]
      %v3712 = vld [vmem:[%s338 + $0x6c] sm:$0xf]
      %v3713 = vld [vmem:[%s338 + $0x70] sm:$0xf]
      %v3714 = vld [vmem:[%s338 + $0x74] sm:$0xf]
      %v3715 = vld [vmem:[%s338 + $0x78] sm:$0xf]
      %v3716 = vld [vmem:[%s338 + $0x7c] sm:$0xf]
      %v3717 = vld [vmem:[%s338 + $0x80] sm:$0xf]
      %v3718 = vld [vmem:[%s338 + $0x84] sm:$0xf]
      %v3719 = vld [vmem:[%s338 + $0x88] sm:$0xf]
      %v3720 = vld [vmem:[%s338 + $0x8c] sm:$0xf]
      %v3721 = vld [vmem:[%s338 + $0x90] sm:$0xf]
      %v3722 = vld [vmem:[%s338 + $0x94] sm:$0xf]
      %v3723 = vld [vmem:[%s338 + $0x98] sm:$0xf]
      %v3724 = vld [vmem:[%s338 + $0x9c] sm:$0xf]
      %v3725 = vld [vmem:[%s338 + $0xa0] sm:$0xf]
      %v3726 = vld [vmem:[%s338 + $0xa4] sm:$0xf]
      %v3727 = vld [vmem:[%s338 + $0xa8] sm:$0xf]
      %v3728 = vld [vmem:[%s338 + $0xac] sm:$0xf]
      %v3729 = vld [vmem:[%s338 + $0xb0] sm:$0xf]
      %v3730 = vld [vmem:[%s338 + $0xb4] sm:$0xf]
      %v3731 = vld [vmem:[%s338 + $0xb8] sm:$0xf]
      %v3732 = vld [vmem:[%s338 + $0xbc] sm:$0xf]
      %v3733 = vld [vmem:[%s338 + $0xc0] sm:$0xf]
      %v3734 = vld [vmem:[%s338 + $0xc4] sm:$0xf]
      %v3735 = vld [vmem:[%s338 + $0xc8] sm:$0xf]
      %v3736 = vld [vmem:[%s338 + $0xcc] sm:$0xf]
      %v3737 = vld [vmem:[%s338 + $0xd0] sm:$0xf]
      %v3738 = vld [vmem:[%s338 + $0xd4] sm:$0xf]
      %v3739 = vld [vmem:[%s338 + $0xd8] sm:$0xf]
      %v3740 = vld [vmem:[%s338 + $0xdc] sm:$0xf]
      %v3741 = vld [vmem:[%s338 + $0xe0] sm:$0xf]
      %v3742 = vld [vmem:[%s338 + $0xe4] sm:$0xf]
      %v3743 = vld [vmem:[%s338 + $0xe8] sm:$0x1]
      %s3744 = scalar_lea.vmem %s1, 320
      %v3745 = vld [vmem:[%s3744] sm:$0xf]
      %v3746 = vld [vmem:[%s3744 + $0x4] sm:$0xf]
      %v3747 = vld [vmem:[%s3744 + $0x8] sm:$0xf]
      %v3748 = vld [vmem:[%s3744 + $0xc] sm:$0xf]
      %v3749 = vld [vmem:[%s3744 + $0x10] sm:$0xf]
      %v3750 = vld [vmem:[%s3744 + $0x14] sm:$0xf]
      %v3751 = vld [vmem:[%s3744 + $0x18] sm:$0xf]
      %v3752 = vld [vmem:[%s3744 + $0x1c] sm:$0xf]
      %v3753 = vld [vmem:[%s3744 + $0x20] sm:$0xf]
      %v3754 = vld [vmem:[%s3744 + $0x24] sm:$0xf]
      %v3755 = vld [vmem:[%s3744 + $0x28] sm:$0xf]
      %v3756 = vld [vmem:[%s3744 + $0x2c] sm:$0xf]
      %v3757 = vld [vmem:[%s3744 + $0x30] sm:$0xf]
      %v3758 = vld [vmem:[%s3744 + $0x34] sm:$0xf]
      %v3759 = vld [vmem:[%s3744 + $0x38] sm:$0xf]
      %v3760 = vld [vmem:[%s3744 + $0x3c] sm:$0xf]
      %v3816 = vunpack.c.l.b16 %v3689
      %v3817 = vunpack.c.l.b16 %v3690
      %v3818 = vunpack.c.l.b16 %v3691
      %v3819 = vunpack.c.l.b16 %v3692
      %v3820 = vunpack.c.l.b16 %v3693
      %v3821 = vunpack.c.l.b16 %v3694
      %v3822 = vunpack.c.l.b16 %v3695
      %v3823 = vunpack.c.l.b16 %v3696
      %v3824 = vunpack.c.l.b16 %v3697
      %v3825 = vunpack.c.l.b16 %v3698
      %v3826 = vunpack.c.l.b16 %v3699
      %v3827 = vunpack.c.l.b16 %v3700
      %v3828 = vunpack.c.l.b16 %v3701
      %v3829 = vunpack.c.l.b16 %v3702
      %v3830 = vunpack.c.l.b16 %v3703
      %v3831 = vunpack.c.l.b16 %v3704
      %v3832 = vunpack.c.l.b16 %v3705
      %v3833 = vunpack.c.l.b16 %v3706
      %v3834 = vunpack.c.l.b16 %v3707
      %v3835 = vunpack.c.l.b16 %v3708
      %v3836 = vunpack.c.l.b16 %v3709
      %v3837 = vunpack.c.l.b16 %v3710
      %v3838 = vunpack.c.l.b16 %v3711
      %v3839 = vunpack.c.l.b16 %v3712
      %v3840 = vunpack.c.l.b16 %v3713
      %v3841 = vunpack.c.l.b16 %v3714
      %v3842 = vunpack.c.l.b16 %v3715
      %v3843 = vunpack.c.l.b16 %v3716
      %v3844 = vunpack.c.l.b16 %v3717
      %v3845 = vunpack.c.l.b16 %v3718
      %v3846 = vunpack.c.l.b16 %v3719
      %v3847 = vunpack.c.l.b16 %v3720
      %v3848 = vunpack.c.l.b16 %v3721
      %v3849 = vunpack.c.l.b16 %v3722
      %v3850 = vunpack.c.l.b16 %v3723
      %v3851 = vunpack.c.l.b16 %v3724
      %v3852 = vunpack.c.l.b16 %v3725
      %v3853 = vunpack.c.l.b16 %v3726
      %v3854 = vunpack.c.l.b16 %v3727
      %v3855 = vunpack.c.l.b16 %v3728
      %v3856 = vunpack.c.l.b16 %v3729
      %v3857 = vunpack.c.l.b16 %v3730
      %v3858 = vunpack.c.l.b16 %v3731
      %v3859 = vunpack.c.l.b16 %v3732
      %v3860 = vunpack.c.l.b16 %v3733
      %v3861 = vunpack.c.l.b16 %v3734
      %v3862 = vunpack.c.l.b16 %v3735
      %v3863 = vunpack.c.l.b16 %v3736
      %v3864 = vunpack.c.l.b16 %v3737
      %v3865 = vunpack.c.l.b16 %v3738
      %v3866 = vunpack.c.l.b16 %v3739
      %v3867 = vunpack.c.l.b16 %v3740
      %v3868 = vunpack.c.l.b16 %v3741
      %v3869 = vunpack.c.l.b16 %v3742
      %v3870 = vunpack.c.l.b16 %v3743
      %v3871 = vpack.c.b16 %v3817, %v3816
      %v3872 = vpack.c.b16 %v3819, %v3818
      %v3873 = vpack.c.b16 %v3821, %v3820
      %v3874 = vpack.c.b16 %v3823, %v3822
      %v3875 = vpack.c.b16 %v3825, %v3824
      %v3876 = vpack.c.b16 %v3827, %v3826
      %v3877 = vpack.c.b16 %v3829, %v3828
      %v3878 = vpack.c.b16 %v3831, %v3830
      %v3879 = vpack.c.b16 %v3833, %v3832
      %v3880 = vpack.c.b16 %v3835, %v3834
      %v3881 = vpack.c.b16 %v3837, %v3836
      %v3882 = vpack.c.b16 %v3839, %v3838
      %v3883 = vpack.c.b16 %v3841, %v3840
      %v3884 = vpack.c.b16 %v3843, %v3842
      %v3885 = vpack.c.b16 %v3845, %v3844
      %v3886 = vpack.c.b16 %v3847, %v3846
      %v3887 = vpack.c.b16 %v3849, %v3848
      %v3888 = vpack.c.b16 %v3851, %v3850
      %v3889 = vpack.c.b16 %v3853, %v3852
      %v3890 = vpack.c.b16 %v3855, %v3854
      %v3891 = vpack.c.b16 %v3857, %v3856
      %v3892 = vpack.c.b16 %v3859, %v3858
      %v3893 = vpack.c.b16 %v3861, %v3860
      %v3894 = vpack.c.b16 %v3863, %v3862
      %v3895 = vpack.c.b16 %v3865, %v3864
      %v3896 = vpack.c.b16 %v3867, %v3866
      %v3897 = vpack.c.b16 %v3869, %v3868
      %v3898 = vpack.c.b16 %v3870, %v3870
      %v3900 = vshrl.u32 %v3871, 16
      %v3902 = vshll.u32 %v3871, 16
      %v3904 = vrot.slane %v3902, 1
      %v3905 = vor.u32 %v3900, %v3904
      %v3907 = vshll.u32 %v3872, 16
      %v3909 = vrot.slane %v3907, 1
      %v3910 = vsel %vm1829, %v3905, %v3909
      %v3911 = vshrl.u32 %v3872, 16
      %v3913 = vor.u32 %v3911, %v3909
      %v3915 = vshll.u32 %v3873, 16
      %v3917 = vrot.slane %v3915, 1
      %v3918 = vsel %vm1829, %v3913, %v3917
      %v3919 = vshrl.u32 %v3873, 16
      %v3921 = vor.u32 %v3919, %v3917
      %v3923 = vshll.u32 %v3874, 16
      %v3925 = vrot.slane %v3923, 1
      %v3926 = vsel %vm1829, %v3921, %v3925
      %v3927 = vshrl.u32 %v3874, 16
      %v3929 = vor.u32 %v3927, %v3925
      %v3931 = vshll.u32 %v3875, 16
      %v3933 = vrot.slane %v3931, 1
      %v3934 = vsel %vm1829, %v3929, %v3933
      %v3935 = vshrl.u32 %v3875, 16
      %v3937 = vor.u32 %v3935, %v3933
      %v3939 = vshll.u32 %v3876, 16
      %v3941 = vrot.slane %v3939, 1
      %v3942 = vsel %vm1829, %v3937, %v3941
      %v3943 = vshrl.u32 %v3876, 16
      %v3945 = vor.u32 %v3943, %v3941
      %v3947 = vshll.u32 %v3877, 16
      %v3949 = vrot.slane %v3947, 1
      %v3950 = vsel %vm1829, %v3945, %v3949
      %v3951 = vshrl.u32 %v3877, 16
      %v3953 = vor.u32 %v3951, %v3949
      %v3955 = vshll.u32 %v3878, 16
      %v3957 = vrot.slane %v3955, 1
      %v3958 = vsel %vm1829, %v3953, %v3957
      %v3959 = vshrl.u32 %v3878, 16
      %v3961 = vor.u32 %v3959, %v3957
      %v3963 = vshll.u32 %v3879, 16
      %v3965 = vrot.slane %v3963, 1
      %v3966 = vsel %vm1829, %v3961, %v3965
      %v3967 = vshrl.u32 %v3879, 16
      %v3969 = vor.u32 %v3967, %v3965
      %v3971 = vshll.u32 %v3880, 16
      %v3973 = vrot.slane %v3971, 1
      %v3974 = vsel %vm1829, %v3969, %v3973
      %v3975 = vshrl.u32 %v3880, 16
      %v3977 = vor.u32 %v3975, %v3973
      %v3979 = vshll.u32 %v3881, 16
      %v3981 = vrot.slane %v3979, 1
      %v3982 = vsel %vm1829, %v3977, %v3981
      %v3983 = vshrl.u32 %v3881, 16
      %v3985 = vor.u32 %v3983, %v3981
      %v3987 = vshll.u32 %v3882, 16
      %v3989 = vrot.slane %v3987, 1
      %v3990 = vsel %vm1829, %v3985, %v3989
      %v3991 = vshrl.u32 %v3882, 16
      %v3993 = vor.u32 %v3991, %v3989
      %v3995 = vshll.u32 %v3883, 16
      %v3997 = vrot.slane %v3995, 1
      %v3998 = vsel %vm1829, %v3993, %v3997
      %v3999 = vshrl.u32 %v3883, 16
      %v4001 = vor.u32 %v3999, %v3997
      %v4003 = vshll.u32 %v3884, 16
      %v4005 = vrot.slane %v4003, 1
      %v4006 = vsel %vm1829, %v4001, %v4005
      %v4007 = vshrl.u32 %v3884, 16
      %v4009 = vor.u32 %v4007, %v4005
      %v4011 = vshll.u32 %v3885, 16
      %v4013 = vrot.slane %v4011, 1
      %v4014 = vsel %vm1829, %v4009, %v4013
      %v4015 = vshrl.u32 %v3885, 16
      %v4017 = vor.u32 %v4015, %v4013
      %v4019 = vshll.u32 %v3886, 16
      %v4021 = vrot.slane %v4019, 1
      %v4022 = vsel %vm1829, %v4017, %v4021
      %v4023 = vshrl.u32 %v3886, 16
      %v4025 = vor.u32 %v4023, %v4021
      %v4027 = vshll.u32 %v3887, 16
      %v4029 = vrot.slane %v4027, 1
      %v4030 = vsel %vm1829, %v4025, %v4029
      %v4031 = vshrl.u32 %v3887, 16
      %v4033 = vor.u32 %v4031, %v4029
      %v4035 = vshll.u32 %v3888, 16
      %v4037 = vrot.slane %v4035, 1
      %v4038 = vsel %vm1829, %v4033, %v4037
      %v4039 = vshrl.u32 %v3888, 16
      %v4041 = vor.u32 %v4039, %v4037
      %v4043 = vshll.u32 %v3889, 16
      %v4045 = vrot.slane %v4043, 1
      %v4046 = vsel %vm1829, %v4041, %v4045
      %v4047 = vshrl.u32 %v3889, 16
      %v4049 = vor.u32 %v4047, %v4045
      %v4051 = vshll.u32 %v3890, 16
      %v4053 = vrot.slane %v4051, 1
      %v4054 = vsel %vm1829, %v4049, %v4053
      %v4055 = vshrl.u32 %v3890, 16
      %v4057 = vor.u32 %v4055, %v4053
      %v4059 = vshll.u32 %v3891, 16
      %v4061 = vrot.slane %v4059, 1
      %v4062 = vsel %vm1829, %v4057, %v4061
      %v4063 = vshrl.u32 %v3891, 16
      %v4065 = vor.u32 %v4063, %v4061
      %v4067 = vshll.u32 %v3892, 16
      %v4069 = vrot.slane %v4067, 1
      %v4070 = vsel %vm1829, %v4065, %v4069
      %v4071 = vshrl.u32 %v3892, 16
      %v4073 = vor.u32 %v4071, %v4069
      %v4075 = vshll.u32 %v3893, 16
      %v4077 = vrot.slane %v4075, 1
      %v4078 = vsel %vm1829, %v4073, %v4077
      %v4079 = vshrl.u32 %v3893, 16
      %v4081 = vor.u32 %v4079, %v4077
      %v4083 = vshll.u32 %v3894, 16
      %v4085 = vrot.slane %v4083, 1
      %v4086 = vsel %vm1829, %v4081, %v4085
      %v4087 = vshrl.u32 %v3894, 16
      %v4089 = vor.u32 %v4087, %v4085
      %v4091 = vshll.u32 %v3895, 16
      %v4093 = vrot.slane %v4091, 1
      %v4094 = vsel %vm1829, %v4089, %v4093
      %v4095 = vshrl.u32 %v3895, 16
      %v4097 = vor.u32 %v4095, %v4093
      %v4099 = vshll.u32 %v3896, 16
      %v4101 = vrot.slane %v4099, 1
      %v4102 = vsel %vm1829, %v4097, %v4101
      %v4103 = vshrl.u32 %v3896, 16
      %v4105 = vor.u32 %v4103, %v4101
      %v4107 = vshll.u32 %v3897, 16
      %v4109 = vrot.slane %v4107, 1
      %v4110 = vsel %vm1829, %v4105, %v4109
      %v4111 = vshrl.u32 %v3897, 16
      %v4113 = vor.u32 %v4111, %v4109
      %v4115 = vshll.u32 %v3898, 16
      %v4117 = vrot.slane %v4115, 1
      %v4118 = vsel %vm1829, %v4113, %v4117
      %v4162 = vunpack.c.l.b16 %v3745
      %v4163 = vunpack.c.l.b16 %v3746
      %v4164 = vunpack.c.l.b16 %v3747
      %v4165 = vunpack.c.l.b16 %v3748
      %v4166 = vunpack.c.l.b16 %v3749
      %v4167 = vunpack.c.l.b16 %v3750
      %v4168 = vunpack.c.l.b16 %v3751
      %v4169 = vunpack.c.l.b16 %v3752
      %v4170 = vunpack.c.l.b16 %v3753
      %v4171 = vunpack.c.l.b16 %v3754
      %v4172 = vunpack.c.l.b16 %v3755
      %v4173 = vunpack.c.l.b16 %v3756
      %v4174 = vunpack.c.l.b16 %v3757
      %v4175 = vunpack.c.l.b16 %v3758
      %v4176 = vunpack.c.l.b16 %v3759
      %v4177 = vunpack.c.l.b16 %v3760
      %v4178 = vpack.c.b16 %v4163, %v4162
      %v4179 = vpack.c.b16 %v4165, %v4164
      %v4180 = vpack.c.b16 %v4167, %v4166
      %v4181 = vpack.c.b16 %v4169, %v4168
      %v4182 = vpack.c.b16 %v4171, %v4170
      %v4183 = vpack.c.b16 %v4173, %v4172
      %v4184 = vpack.c.b16 %v4175, %v4174
      %v4185 = vpack.c.b16 %v4177, %v4176
      %4194 = vmatprep.subr.bf16.mxu0 0
      %4195 = vmatpush1.bf16.msra.mxu0 %v4185
      %4196 = vmatprep.subr.bf16.mxu0 0
      %4197 = vmatpush1.bf16.msra.mxu0 %v4184
      %4198 = vmatprep.subr.bf16.mxu0 0
      %4199 = vmatpush1.bf16.msra.mxu0 %v4183
      %4200 = vmatprep.subr.bf16.mxu0 0
      %4201 = vmatpush1.bf16.msra.mxu0 %v4182
      %4202 = vmatprep.subr.bf16.mxu0 0
      %4203 = vmatpush1.bf16.msra.mxu0 %v4181
      %4204 = vmatprep.subr.bf16.mxu0 0
      %4205 = vmatpush1.bf16.msra.mxu0 %v4180
      %4206 = vmatprep.subr.bf16.mxu0 0
      %4207 = vmatpush1.bf16.msra.mxu0 %v4179
      %4208 = vmatprep.subr.bf16.mxu0 0
      %4209 = vmatpush1.bf16.msra.mxu0 %v4178
      %4210 = vmatprep.subr.bf16.mxu0 0
      %4211 = vmatpush2.bf16.msra.mxu0 0
      %4212 = vmatprep.subr.bf16.mxu0 0
      %4213 = vmatpush2.bf16.msra.mxu0 0
      %4214 = vmatprep.subr.bf16.mxu0 0
      %4215 = vmatpush2.bf16.msra.mxu0 0
      %4216 = vmatprep.subr.bf16.mxu0 0
      %4217 = vmatpush2.bf16.msra.mxu0 0
      %4218 = vmatprep.subr.bf16.mxu0 0
      %4219 = vmatpush2.bf16.msra.mxu0 0
      %4220 = vmatprep.subr.bf16.mxu0 0
      %4221 = vmatpush2.bf16.msra.mxu0 0
      %4222 = vmatprep.subr.bf16.mxu0 0
      %4223 = vmatpush2.bf16.msra.mxu0 0
      %4224 = vmatprep.subr.bf16.mxu0 0
      %4225 = vmatpush2.bf16.msra.mxu0 0
      %4226 = vmatprep.mubr.bf16.mxu0 0
      %4227 = vmatmul.mubr.bf16.gmra.mxu0 %v3910
      %v4228 = vpop.f32.mrf.mxu0
      %v4229 = vadd.f32 0.0, %v4228
      %v4230 = vpop.f32.mrf.mxu0
      %v4231 = vpop.f32.mrf.mxu0
      %v4232 = vadd.f32 0.0, %v4231
      %v4233 = vpop.f32.mrf.mxu0
      %4234 = vmatprep.mubr.bf16.mxu0 0
      %4235 = vmatmul.mubr.bf16.gmra.mxu0 %v3918
      %v4236 = vpop.f32.mrf.mxu0
      %v4237 = vadd.f32 0.0, %v4236
      %v4238 = vpop.f32.mrf.mxu0
      %v4239 = vpop.f32.mrf.mxu0
      %v4240 = vadd.f32 0.0, %v4239
      %v4241 = vpop.f32.mrf.mxu0
      %4242 = vmatprep.mubr.bf16.mxu0 0
      %4243 = vmatmul.mubr.bf16.gmra.mxu0 %v3926
      %v4244 = vpop.f32.mrf.mxu0
      %v4245 = vadd.f32 0.0, %v4244
      %v4246 = vpop.f32.mrf.mxu0
      %v4247 = vpop.f32.mrf.mxu0
      %v4248 = vadd.f32 0.0, %v4247
      %v4249 = vpop.f32.mrf.mxu0
      %4250 = vmatprep.mubr.bf16.mxu0 0
      %4251 = vmatmul.mubr.bf16.gmra.mxu0 %v3934
      %v4252 = vpop.f32.mrf.mxu0
      %v4253 = vadd.f32 0.0, %v4252
      %v4254 = vpop.f32.mrf.mxu0
      %v4255 = vpop.f32.mrf.mxu0
      %v4256 = vadd.f32 0.0, %v4255
      %v4257 = vpop.f32.mrf.mxu0
      %4258 = vmatprep.mubr.bf16.mxu0 0
      %4259 = vmatmul.mubr.bf16.gmra.mxu0 %v3942
      %v4260 = vpop.f32.mrf.mxu0
      %v4261 = vadd.f32 0.0, %v4260
      %v4262 = vpop.f32.mrf.mxu0
      %v4263 = vpop.f32.mrf.mxu0
      %v4264 = vadd.f32 0.0, %v4263
      %v4265 = vpop.f32.mrf.mxu0
      %4266 = vmatprep.mubr.bf16.mxu0 0
      %4267 = vmatmul.mubr.bf16.gmra.mxu0 %v3950
      %v4268 = vpop.f32.mrf.mxu0
      %v4269 = vadd.f32 0.0, %v4268
      %v4270 = vpop.f32.mrf.mxu0
      %v4271 = vpop.f32.mrf.mxu0
      %v4272 = vadd.f32 0.0, %v4271
      %v4273 = vpop.f32.mrf.mxu0
      %4274 = vmatprep.mubr.bf16.mxu0 0
      %4275 = vmatmul.mubr.bf16.gmra.mxu0 %v3958
      %v4276 = vpop.f32.mrf.mxu0
      %v4277 = vadd.f32 0.0, %v4276
      %v4278 = vpop.f32.mrf.mxu0
      %v4279 = vpop.f32.mrf.mxu0
      %v4280 = vadd.f32 0.0, %v4279
      %v4281 = vpop.f32.mrf.mxu0
      %4282 = vmatprep.mubr.bf16.mxu0 0
      %4283 = vmatmul.mubr.bf16.gmra.mxu0 %v3966
      %v4284 = vpop.f32.mrf.mxu0
      %v4285 = vadd.f32 0.0, %v4284
      %v4286 = vpop.f32.mrf.mxu0
      %v4287 = vpop.f32.mrf.mxu0
      %v4288 = vadd.f32 0.0, %v4287
      %v4289 = vpop.f32.mrf.mxu0
      %4290 = vmatprep.mubr.bf16.mxu0 0
      %4291 = vmatmul.mubr.bf16.gmra.mxu0 %v3974
      %v4292 = vpop.f32.mrf.mxu0
      %v4293 = vadd.f32 0.0, %v4292
      %v4294 = vpop.f32.mrf.mxu0
      %v4295 = vpop.f32.mrf.mxu0
      %v4296 = vadd.f32 0.0, %v4295
      %v4297 = vpop.f32.mrf.mxu0
      %4298 = vmatprep.mubr.bf16.mxu0 0
      %4299 = vmatmul.mubr.bf16.gmra.mxu0 %v3982
      %v4300 = vpop.f32.mrf.mxu0
      %v4301 = vadd.f32 0.0, %v4300
      %v4302 = vpop.f32.mrf.mxu0
      %v4303 = vpop.f32.mrf.mxu0
      %v4304 = vadd.f32 0.0, %v4303
      %v4305 = vpop.f32.mrf.mxu0
      %4306 = vmatprep.mubr.bf16.mxu0 0
      %4307 = vmatmul.mubr.bf16.gmra.mxu0 %v3990
      %v4308 = vpop.f32.mrf.mxu0
      %v4309 = vadd.f32 0.0, %v4308
      %v4310 = vpop.f32.mrf.mxu0
      %v4311 = vpop.f32.mrf.mxu0
      %v4312 = vadd.f32 0.0, %v4311
      %v4313 = vpop.f32.mrf.mxu0
      %4314 = vmatprep.mubr.bf16.mxu0 0
      %4315 = vmatmul.mubr.bf16.gmra.mxu0 %v3998
      %v4316 = vpop.f32.mrf.mxu0
      %v4317 = vadd.f32 0.0, %v4316
      %v4318 = vpop.f32.mrf.mxu0
      %v4319 = vpop.f32.mrf.mxu0
      %v4320 = vadd.f32 0.0, %v4319
      %v4321 = vpop.f32.mrf.mxu0
      %4322 = vmatprep.mubr.bf16.mxu0 0
      %4323 = vmatmul.mubr.bf16.gmra.mxu0 %v4006
      %v4324 = vpop.f32.mrf.mxu0
      %v4325 = vadd.f32 0.0, %v4324
      %v4326 = vpop.f32.mrf.mxu0
      %v4327 = vpop.f32.mrf.mxu0
      %v4328 = vadd.f32 0.0, %v4327
      %v4329 = vpop.f32.mrf.mxu0
      %4330 = vmatprep.mubr.bf16.mxu0 0
      %4331 = vmatmul.mubr.bf16.gmra.mxu0 %v4014
      %v4332 = vpop.f32.mrf.mxu0
      %v4333 = vadd.f32 0.0, %v4332
      %v4334 = vpop.f32.mrf.mxu0
      %v4335 = vpop.f32.mrf.mxu0
      %v4336 = vadd.f32 0.0, %v4335
      %v4337 = vpop.f32.mrf.mxu0
      %4338 = vmatprep.mubr.bf16.mxu0 0
      %4339 = vmatmul.mubr.bf16.gmra.mxu0 %v4022
      %v4340 = vpop.f32.mrf.mxu0
      %v4341 = vadd.f32 0.0, %v4340
      %v4342 = vpop.f32.mrf.mxu0
      %v4343 = vpop.f32.mrf.mxu0
      %v4344 = vadd.f32 0.0, %v4343
      %v4345 = vpop.f32.mrf.mxu0
      %4346 = vmatprep.mubr.bf16.mxu0 0
      %4347 = vmatmul.mubr.bf16.gmra.mxu0 %v4030
      %v4348 = vpop.f32.mrf.mxu0
      %v4349 = vadd.f32 0.0, %v4348
      %v4350 = vpop.f32.mrf.mxu0
      %v4351 = vpop.f32.mrf.mxu0
      %v4352 = vadd.f32 0.0, %v4351
      %v4353 = vpop.f32.mrf.mxu0
      %4354 = vmatprep.mubr.bf16.mxu0 0
      %4355 = vmatmul.mubr.bf16.gmra.mxu0 %v4038
      %v4356 = vpop.f32.mrf.mxu0
      %v4357 = vadd.f32 0.0, %v4356
      %v4358 = vpop.f32.mrf.mxu0
      %v4359 = vpop.f32.mrf.mxu0
      %v4360 = vadd.f32 0.0, %v4359
      %v4361 = vpop.f32.mrf.mxu0
      %4362 = vmatprep.mubr.bf16.mxu0 0
      %4363 = vmatmul.mubr.bf16.gmra.mxu0 %v4046
      %v4364 = vpop.f32.mrf.mxu0
      %v4365 = vadd.f32 0.0, %v4364
      %v4366 = vpop.f32.mrf.mxu0
      %v4367 = vpop.f32.mrf.mxu0
      %v4368 = vadd.f32 0.0, %v4367
      %v4369 = vpop.f32.mrf.mxu0
      %4370 = vmatprep.mubr.bf16.mxu0 0
      %4371 = vmatmul.mubr.bf16.gmra.mxu0 %v4054
      %v4372 = vpop.f32.mrf.mxu0
      %v4373 = vadd.f32 0.0, %v4372
      %v4374 = vpop.f32.mrf.mxu0
      %v4375 = vpop.f32.mrf.mxu0
      %v4376 = vadd.f32 0.0, %v4375
      %v4377 = vpop.f32.mrf.mxu0
      %4378 = vmatprep.mubr.bf16.mxu0 0
      %4379 = vmatmul.mubr.bf16.gmra.mxu0 %v4062
      %v4380 = vpop.f32.mrf.mxu0
      %v4381 = vadd.f32 0.0, %v4380
      %v4382 = vpop.f32.mrf.mxu0
      %v4383 = vpop.f32.mrf.mxu0
      %v4384 = vadd.f32 0.0, %v4383
      %v4385 = vpop.f32.mrf.mxu0
      %4386 = vmatprep.mubr.bf16.mxu0 0
      %4387 = vmatmul.mubr.bf16.gmra.mxu0 %v4070
      %v4388 = vpop.f32.mrf.mxu0
      %v4389 = vadd.f32 0.0, %v4388
      %v4390 = vpop.f32.mrf.mxu0
      %v4391 = vpop.f32.mrf.mxu0
      %v4392 = vadd.f32 0.0, %v4391
      %v4393 = vpop.f32.mrf.mxu0
      %4394 = vmatprep.mubr.bf16.mxu0 0
      %4395 = vmatmul.mubr.bf16.gmra.mxu0 %v4078
      %v4396 = vpop.f32.mrf.mxu0
      %v4397 = vadd.f32 0.0, %v4396
      %v4398 = vpop.f32.mrf.mxu0
      %v4399 = vpop.f32.mrf.mxu0
      %v4400 = vadd.f32 0.0, %v4399
      %v4401 = vpop.f32.mrf.mxu0
      %4402 = vmatprep.mubr.bf16.mxu0 0
      %4403 = vmatmul.mubr.bf16.gmra.mxu0 %v4086
      %v4404 = vpop.f32.mrf.mxu0
      %v4405 = vadd.f32 0.0, %v4404
      %v4406 = vpop.f32.mrf.mxu0
      %v4407 = vpop.f32.mrf.mxu0
      %v4408 = vadd.f32 0.0, %v4407
      %v4409 = vpop.f32.mrf.mxu0
      %4410 = vmatprep.mubr.bf16.mxu0 0
      %4411 = vmatmul.mubr.bf16.gmra.mxu0 %v4094
      %v4412 = vpop.f32.mrf.mxu0
      %v4413 = vadd.f32 0.0, %v4412
      %v4414 = vpop.f32.mrf.mxu0
      %v4415 = vpop.f32.mrf.mxu0
      %v4416 = vadd.f32 0.0, %v4415
      %v4417 = vpop.f32.mrf.mxu0
      %4418 = vmatprep.mubr.bf16.mxu0 0
      %4419 = vmatmul.mubr.bf16.gmra.mxu0 %v4102
      %v4420 = vpop.f32.mrf.mxu0
      %v4421 = vadd.f32 0.0, %v4420
      %v4422 = vpop.f32.mrf.mxu0
      %v4423 = vpop.f32.mrf.mxu0
      %v4424 = vadd.f32 0.0, %v4423
      %v4425 = vpop.f32.mrf.mxu0
      %4426 = vmatprep.mubr.bf16.mxu0 0
      %4427 = vmatmul.mubr.bf16.gmra.mxu0 %v4110
      %v4428 = vpop.f32.mrf.mxu0
      %v4429 = vadd.f32 0.0, %v4428
      %v4430 = vpop.f32.mrf.mxu0
      %v4431 = vpop.f32.mrf.mxu0
      %v4432 = vadd.f32 0.0, %v4431
      %v4433 = vpop.f32.mrf.mxu0
      %4434 = vmatprep.mubr.bf16.mxu0 0
      %4435 = vmatmul.mubr.bf16.gmra.mxu0 %v4118
      %v4436 = vpop.f32.mrf.mxu0
      %v4437 = vadd.f32 0.0, %v4436
      %v4438 = vpop.f32.mrf.mxu0
      %v4439 = vpop.f32.mrf.mxu0
      %v4440 = vadd.f32 0.0, %v4439
      %v4441 = vpop.f32.mrf.mxu0
      %4442 = vdwg.mxu0
      %v4443 = vadd.f32 %v3635, %v4229
      %v4444 = vadd.f32 %v3636, %v4232
      %v4445 = vadd.f32 %v3637, %v4237
      %v4446 = vadd.f32 %v3638, %v4240
      %v4447 = vadd.f32 %v3639, %v4245
      %v4448 = vadd.f32 %v3640, %v4248
      %v4449 = vadd.f32 %v3641, %v4253
      %v4450 = vadd.f32 %v3642, %v4256
      %v4451 = vadd.f32 %v3643, %v4261
      %v4452 = vadd.f32 %v3644, %v4264
      %v4453 = vadd.f32 %v3645, %v4269
      %v4454 = vadd.f32 %v3646, %v4272
      %v4455 = vadd.f32 %v3647, %v4277
      %v4456 = vadd.f32 %v3648, %v4280
      %v4457 = vadd.f32 %v3649, %v4285
      %v4458 = vadd.f32 %v3650, %v4288
      %v4459 = vadd.f32 %v3651, %v4293
      %v4460 = vadd.f32 %v3652, %v4296
      %v4461 = vadd.f32 %v3653, %v4301
      %v4462 = vadd.f32 %v3654, %v4304
      %v4463 = vadd.f32 %v3655, %v4309
      %v4464 = vadd.f32 %v3656, %v4312
      %v4465 = vadd.f32 %v3657, %v4317
      %v4466 = vadd.f32 %v3658, %v4320
      %v4467 = vadd.f32 %v3659, %v4325
      %v4468 = vadd.f32 %v3660, %v4328
      %v4469 = vadd.f32 %v3661, %v4333
      %v4470 = vadd.f32 %v3662, %v4336
      %v4471 = vadd.f32 %v3663, %v4341
      %v4472 = vadd.f32 %v3664, %v4344
      %v4473 = vadd.f32 %v3665, %v4349
      %v4474 = vadd.f32 %v3666, %v4352
      %v4475 = vadd.f32 %v3667, %v4357
      %v4476 = vadd.f32 %v3668, %v4360
      %v4477 = vadd.f32 %v3669, %v4365
      %v4478 = vadd.f32 %v3670, %v4368
      %v4479 = vadd.f32 %v3671, %v4373
      %v4480 = vadd.f32 %v3672, %v4376
      %v4481 = vadd.f32 %v3673, %v4381
      %v4482 = vadd.f32 %v3674, %v4384
      %v4483 = vadd.f32 %v3675, %v4389
      %v4484 = vadd.f32 %v3676, %v4392
      %v4485 = vadd.f32 %v3677, %v4397
      %v4486 = vadd.f32 %v3678, %v4400
      %v4487 = vadd.f32 %v3679, %v4405
      %v4488 = vadd.f32 %v3680, %v4408
      %v4489 = vadd.f32 %v3681, %v4413
      %v4490 = vadd.f32 %v3682, %v4416
      %v4491 = vadd.f32 %v3683, %v4421
      %v4492 = vadd.f32 %v3684, %v4424
      %v4493 = vadd.f32 %v3685, %v4429
      %v4494 = vadd.f32 %v3686, %v4432
      %v4495 = vadd.f32 %v3687, %v4437
      %v4496 = vadd.f32 %v3688, %v4440
      %v4497 = vld [vmem:[%s338 + $0x18] sm:$0x8]
      %v4498 = vld [vmem:[%s338 + $0x1c] sm:$0xf]
      %v4499 = vld [vmem:[%s338 + $0x20] sm:$0xf]
      %v4500 = vld [vmem:[%s338 + $0x24] sm:$0xf]
      %v4501 = vld [vmem:[%s338 + $0x28] sm:$0xf]
      %v4502 = vld [vmem:[%s338 + $0x2c] sm:$0xf]
      %v4503 = vld [vmem:[%s338 + $0x30] sm:$0xf]
      %v4504 = vld [vmem:[%s338 + $0x34] sm:$0xf]
      %v4505 = vld [vmem:[%s338 + $0x38] sm:$0xf]
      %v4506 = vld [vmem:[%s338 + $0x3c] sm:$0xf]
      %v4507 = vld [vmem:[%s338 + $0x40] sm:$0xf]
      %v4508 = vld [vmem:[%s338 + $0x44] sm:$0xf]
      %v4509 = vld [vmem:[%s338 + $0x48] sm:$0xf]
      %v4510 = vld [vmem:[%s338 + $0x4c] sm:$0xf]
      %v4511 = vld [vmem:[%s338 + $0x50] sm:$0xf]
      %v4512 = vld [vmem:[%s338 + $0x54] sm:$0xf]
      %v4513 = vld [vmem:[%s338 + $0x58] sm:$0xf]
      %v4514 = vld [vmem:[%s338 + $0x5c] sm:$0xf]
      %v4515 = vld [vmem:[%s338 + $0x60] sm:$0xf]
      %v4516 = vld [vmem:[%s338 + $0x64] sm:$0xf]
      %v4517 = vld [vmem:[%s338 + $0x68] sm:$0xf]
      %v4518 = vld [vmem:[%s338 + $0x6c] sm:$0xf]
      %v4519 = vld [vmem:[%s338 + $0x70] sm:$0xf]
      %v4520 = vld [vmem:[%s338 + $0x74] sm:$0xf]
      %v4521 = vld [vmem:[%s338 + $0x78] sm:$0xf]
      %v4522 = vld [vmem:[%s338 + $0x7c] sm:$0xf]
      %v4523 = vld [vmem:[%s338 + $0x80] sm:$0xf]
      %v4524 = vld [vmem:[%s338 + $0x84] sm:$0xf]
      %v4525 = vld [vmem:[%s338 + $0x88] sm:$0xf]
      %v4526 = vld [vmem:[%s338 + $0x8c] sm:$0xf]
      %v4527 = vld [vmem:[%s338 + $0x90] sm:$0xf]
      %v4528 = vld [vmem:[%s338 + $0x94] sm:$0xf]
      %v4529 = vld [vmem:[%s338 + $0x98] sm:$0xf]
      %v4530 = vld [vmem:[%s338 + $0x9c] sm:$0xf]
      %v4531 = vld [vmem:[%s338 + $0xa0] sm:$0xf]
      %v4532 = vld [vmem:[%s338 + $0xa4] sm:$0xf]
      %v4533 = vld [vmem:[%s338 + $0xa8] sm:$0xf]
      %v4534 = vld [vmem:[%s338 + $0xac] sm:$0xf]
      %v4535 = vld [vmem:[%s338 + $0xb0] sm:$0xf]
      %v4536 = vld [vmem:[%s338 + $0xb4] sm:$0xf]
      %v4537 = vld [vmem:[%s338 + $0xb8] sm:$0xf]
      %v4538 = vld [vmem:[%s338 + $0xbc] sm:$0xf]
      %v4539 = vld [vmem:[%s338 + $0xc0] sm:$0xf]
      %v4540 = vld [vmem:[%s338 + $0xc4] sm:$0xf]
      %v4541 = vld [vmem:[%s338 + $0xc8] sm:$0xf]
      %v4542 = vld [vmem:[%s338 + $0xcc] sm:$0xf]
      %v4543 = vld [vmem:[%s338 + $0xd0] sm:$0xf]
      %v4544 = vld [vmem:[%s338 + $0xd4] sm:$0xf]
      %v4545 = vld [vmem:[%s338 + $0xd8] sm:$0xf]
      %v4546 = vld [vmem:[%s338 + $0xdc] sm:$0xf]
      %v4547 = vld [vmem:[%s338 + $0xe0] sm:$0xf]
      %v4548 = vld [vmem:[%s338 + $0xe4] sm:$0xf]
      %v4549 = vld [vmem:[%s338 + $0xe8] sm:$0xf]
      %v4550 = vld [vmem:[%s338 + $0xec] sm:$0xf]
      %v4551 = vld [vmem:[%s338 + $0xf0] sm:$0xf]
      %s4552 = scalar_lea.vmem %s1, 384
      %v4553 = vld [vmem:[%s4552] sm:$0xf]
      %v4554 = vld [vmem:[%s4552 + $0x4] sm:$0xf]
      %v4555 = vld [vmem:[%s4552 + $0x8] sm:$0xf]
      %v4556 = vld [vmem:[%s4552 + $0xc] sm:$0xf]
      %v4557 = vld [vmem:[%s4552 + $0x10] sm:$0xf]
      %v4558 = vld [vmem:[%s4552 + $0x14] sm:$0xf]
      %v4559 = vld [vmem:[%s4552 + $0x18] sm:$0xf]
      %v4560 = vld [vmem:[%s4552 + $0x1c] sm:$0xf]
      %v4561 = vld [vmem:[%s4552 + $0x20] sm:$0xf]
      %v4562 = vld [vmem:[%s4552 + $0x24] sm:$0xf]
      %v4563 = vld [vmem:[%s4552 + $0x28] sm:$0xf]
      %v4564 = vld [vmem:[%s4552 + $0x2c] sm:$0xf]
      %v4565 = vld [vmem:[%s4552 + $0x30] sm:$0xf]
      %v4566 = vld [vmem:[%s4552 + $0x34] sm:$0xf]
      %v4567 = vld [vmem:[%s4552 + $0x38] sm:$0xf]
      %v4568 = vld [vmem:[%s4552 + $0x3c] sm:$0xf]
      %v4624 = vunpack.c.l.b16 %v4497
      %v4625 = vunpack.c.l.b16 %v4498
      %v4626 = vunpack.c.l.b16 %v4499
      %v4627 = vunpack.c.l.b16 %v4500
      %v4628 = vunpack.c.l.b16 %v4501
      %v4629 = vunpack.c.l.b16 %v4502
      %v4630 = vunpack.c.l.b16 %v4503
      %v4631 = vunpack.c.l.b16 %v4504
      %v4632 = vunpack.c.l.b16 %v4505
      %v4633 = vunpack.c.l.b16 %v4506
      %v4634 = vunpack.c.l.b16 %v4507
      %v4635 = vunpack.c.l.b16 %v4508
      %v4636 = vunpack.c.l.b16 %v4509
      %v4637 = vunpack.c.l.b16 %v4510
      %v4638 = vunpack.c.l.b16 %v4511
      %v4639 = vunpack.c.l.b16 %v4512
      %v4640 = vunpack.c.l.b16 %v4513
      %v4641 = vunpack.c.l.b16 %v4514
      %v4642 = vunpack.c.l.b16 %v4515
      %v4643 = vunpack.c.l.b16 %v4516
      %v4644 = vunpack.c.l.b16 %v4517
      %v4645 = vunpack.c.l.b16 %v4518
      %v4646 = vunpack.c.l.b16 %v4519
      %v4647 = vunpack.c.l.b16 %v4520
      %v4648 = vunpack.c.l.b16 %v4521
      %v4649 = vunpack.c.l.b16 %v4522
      %v4650 = vunpack.c.l.b16 %v4523
      %v4651 = vunpack.c.l.b16 %v4524
      %v4652 = vunpack.c.l.b16 %v4525
      %v4653 = vunpack.c.l.b16 %v4526
      %v4654 = vunpack.c.l.b16 %v4527
      %v4655 = vunpack.c.l.b16 %v4528
      %v4656 = vunpack.c.l.b16 %v4529
      %v4657 = vunpack.c.l.b16 %v4530
      %v4658 = vunpack.c.l.b16 %v4531
      %v4659 = vunpack.c.l.b16 %v4532
      %v4660 = vunpack.c.l.b16 %v4533
      %v4661 = vunpack.c.l.b16 %v4534
      %v4662 = vunpack.c.l.b16 %v4535
      %v4663 = vunpack.c.l.b16 %v4536
      %v4664 = vunpack.c.l.b16 %v4537
      %v4665 = vunpack.c.l.b16 %v4538
      %v4666 = vunpack.c.l.b16 %v4539
      %v4667 = vunpack.c.l.b16 %v4540
      %v4668 = vunpack.c.l.b16 %v4541
      %v4669 = vunpack.c.l.b16 %v4542
      %v4670 = vunpack.c.l.b16 %v4543
      %v4671 = vunpack.c.l.b16 %v4544
      %v4672 = vunpack.c.l.b16 %v4545
      %v4673 = vunpack.c.l.b16 %v4546
      %v4674 = vunpack.c.l.b16 %v4547
      %v4675 = vunpack.c.l.b16 %v4548
      %v4676 = vunpack.c.l.b16 %v4549
      %v4677 = vunpack.c.l.b16 %v4550
      %v4678 = vunpack.c.l.b16 %v4551
      %v4679 = vpack.c.b16 %v4625, %v4624
      %v4680 = vpack.c.b16 %v4627, %v4626
      %v4681 = vpack.c.b16 %v4629, %v4628
      %v4682 = vpack.c.b16 %v4631, %v4630
      %v4683 = vpack.c.b16 %v4633, %v4632
      %v4684 = vpack.c.b16 %v4635, %v4634
      %v4685 = vpack.c.b16 %v4637, %v4636
      %v4686 = vpack.c.b16 %v4639, %v4638
      %v4687 = vpack.c.b16 %v4641, %v4640
      %v4688 = vpack.c.b16 %v4643, %v4642
      %v4689 = vpack.c.b16 %v4645, %v4644
      %v4690 = vpack.c.b16 %v4647, %v4646
      %v4691 = vpack.c.b16 %v4649, %v4648
      %v4692 = vpack.c.b16 %v4651, %v4650
      %v4693 = vpack.c.b16 %v4653, %v4652
      %v4694 = vpack.c.b16 %v4655, %v4654
      %v4695 = vpack.c.b16 %v4657, %v4656
      %v4696 = vpack.c.b16 %v4659, %v4658
      %v4697 = vpack.c.b16 %v4661, %v4660
      %v4698 = vpack.c.b16 %v4663, %v4662
      %v4699 = vpack.c.b16 %v4665, %v4664
      %v4700 = vpack.c.b16 %v4667, %v4666
      %v4701 = vpack.c.b16 %v4669, %v4668
      %v4702 = vpack.c.b16 %v4671, %v4670
      %v4703 = vpack.c.b16 %v4673, %v4672
      %v4704 = vpack.c.b16 %v4675, %v4674
      %v4705 = vpack.c.b16 %v4677, %v4676
      %v4706 = vpack.c.b16 %v4678, %v4678
      %v4708 = vshrl.u32 %v4679, 16
      %v4710 = vrot.slane %v4708, 3
      %v4711 = vshll.u32 %v4679, 16
      %v4713 = vrot.slane %v4711, 4
      %v4714 = vor.u32 %v4710, %v4713
      %v4716 = vshrl.u32 %v4680, 16
      %v4718 = vrot.slane %v4716, 3
      %v4719 = vshll.u32 %v4680, 16
      %v4721 = vrot.slane %v4719, 4
      %v4722 = vor.u32 %v4718, %v4721
      %v4723 = vsel %vm1043, %v4714, %v4722
      %v4725 = vshrl.u32 %v4681, 16
      %v4727 = vrot.slane %v4725, 3
      %v4728 = vshll.u32 %v4681, 16
      %v4730 = vrot.slane %v4728, 4
      %v4731 = vor.u32 %v4727, %v4730
      %v4732 = vsel %vm1043, %v4722, %v4731
      %v4734 = vshrl.u32 %v4682, 16
      %v4736 = vrot.slane %v4734, 3
      %v4737 = vshll.u32 %v4682, 16
      %v4739 = vrot.slane %v4737, 4
      %v4740 = vor.u32 %v4736, %v4739
      %v4741 = vsel %vm1043, %v4731, %v4740
      %v4743 = vshrl.u32 %v4683, 16
      %v4745 = vrot.slane %v4743, 3
      %v4746 = vshll.u32 %v4683, 16
      %v4748 = vrot.slane %v4746, 4
      %v4749 = vor.u32 %v4745, %v4748
      %v4750 = vsel %vm1043, %v4740, %v4749
      %v4752 = vshrl.u32 %v4684, 16
      %v4754 = vrot.slane %v4752, 3
      %v4755 = vshll.u32 %v4684, 16
      %v4757 = vrot.slane %v4755, 4
      %v4758 = vor.u32 %v4754, %v4757
      %v4759 = vsel %vm1043, %v4749, %v4758
      %v4761 = vshrl.u32 %v4685, 16
      %v4763 = vrot.slane %v4761, 3
      %v4764 = vshll.u32 %v4685, 16
      %v4766 = vrot.slane %v4764, 4
      %v4767 = vor.u32 %v4763, %v4766
      %v4768 = vsel %vm1043, %v4758, %v4767
      %v4770 = vshrl.u32 %v4686, 16
      %v4772 = vrot.slane %v4770, 3
      %v4773 = vshll.u32 %v4686, 16
      %v4775 = vrot.slane %v4773, 4
      %v4776 = vor.u32 %v4772, %v4775
      %v4777 = vsel %vm1043, %v4767, %v4776
      %v4779 = vshrl.u32 %v4687, 16
      %v4781 = vrot.slane %v4779, 3
      %v4782 = vshll.u32 %v4687, 16
      %v4784 = vrot.slane %v4782, 4
      %v4785 = vor.u32 %v4781, %v4784
      %v4786 = vsel %vm1043, %v4776, %v4785
      %v4788 = vshrl.u32 %v4688, 16
      %v4790 = vrot.slane %v4788, 3
      %v4791 = vshll.u32 %v4688, 16
      %v4793 = vrot.slane %v4791, 4
      %v4794 = vor.u32 %v4790, %v4793
      %v4795 = vsel %vm1043, %v4785, %v4794
      %v4797 = vshrl.u32 %v4689, 16
      %v4799 = vrot.slane %v4797, 3
      %v4800 = vshll.u32 %v4689, 16
      %v4802 = vrot.slane %v4800, 4
      %v4803 = vor.u32 %v4799, %v4802
      %v4804 = vsel %vm1043, %v4794, %v4803
      %v4806 = vshrl.u32 %v4690, 16
      %v4808 = vrot.slane %v4806, 3
      %v4809 = vshll.u32 %v4690, 16
      %v4811 = vrot.slane %v4809, 4
      %v4812 = vor.u32 %v4808, %v4811
      %v4813 = vsel %vm1043, %v4803, %v4812
      %v4815 = vshrl.u32 %v4691, 16
      %v4817 = vrot.slane %v4815, 3
      %v4818 = vshll.u32 %v4691, 16
      %v4820 = vrot.slane %v4818, 4
      %v4821 = vor.u32 %v4817, %v4820
      %v4822 = vsel %vm1043, %v4812, %v4821
      %v4824 = vshrl.u32 %v4692, 16
      %v4826 = vrot.slane %v4824, 3
      %v4827 = vshll.u32 %v4692, 16
      %v4829 = vrot.slane %v4827, 4
      %v4830 = vor.u32 %v4826, %v4829
      %v4831 = vsel %vm1043, %v4821, %v4830
      %v4833 = vshrl.u32 %v4693, 16
      %v4835 = vrot.slane %v4833, 3
      %v4836 = vshll.u32 %v4693, 16
      %v4838 = vrot.slane %v4836, 4
      %v4839 = vor.u32 %v4835, %v4838
      %v4840 = vsel %vm1043, %v4830, %v4839
      %v4842 = vshrl.u32 %v4694, 16
      %v4844 = vrot.slane %v4842, 3
      %v4845 = vshll.u32 %v4694, 16
      %v4847 = vrot.slane %v4845, 4
      %v4848 = vor.u32 %v4844, %v4847
      %v4849 = vsel %vm1043, %v4839, %v4848
      %v4851 = vshrl.u32 %v4695, 16
      %v4853 = vrot.slane %v4851, 3
      %v4854 = vshll.u32 %v4695, 16
      %v4856 = vrot.slane %v4854, 4
      %v4857 = vor.u32 %v4853, %v4856
      %v4858 = vsel %vm1043, %v4848, %v4857
      %v4860 = vshrl.u32 %v4696, 16
      %v4862 = vrot.slane %v4860, 3
      %v4863 = vshll.u32 %v4696, 16
      %v4865 = vrot.slane %v4863, 4
      %v4866 = vor.u32 %v4862, %v4865
      %v4867 = vsel %vm1043, %v4857, %v4866
      %v4869 = vshrl.u32 %v4697, 16
      %v4871 = vrot.slane %v4869, 3
      %v4872 = vshll.u32 %v4697, 16
      %v4874 = vrot.slane %v4872, 4
      %v4875 = vor.u32 %v4871, %v4874
      %v4876 = vsel %vm1043, %v4866, %v4875
      %v4878 = vshrl.u32 %v4698, 16
      %v4880 = vrot.slane %v4878, 3
      %v4881 = vshll.u32 %v4698, 16
      %v4883 = vrot.slane %v4881, 4
      %v4884 = vor.u32 %v4880, %v4883
      %v4885 = vsel %vm1043, %v4875, %v4884
      %v4887 = vshrl.u32 %v4699, 16
      %v4889 = vrot.slane %v4887, 3
      %v4890 = vshll.u32 %v4699, 16
      %v4892 = vrot.slane %v4890, 4
      %v4893 = vor.u32 %v4889, %v4892
      %v4894 = vsel %vm1043, %v4884, %v4893
      %v4896 = vshrl.u32 %v4700, 16
      %v4898 = vrot.slane %v4896, 3
      %v4899 = vshll.u32 %v4700, 16
      %v4901 = vrot.slane %v4899, 4
      %v4902 = vor.u32 %v4898, %v4901
      %v4903 = vsel %vm1043, %v4893, %v4902
      %v4905 = vshrl.u32 %v4701, 16
      %v4907 = vrot.slane %v4905, 3
      %v4908 = vshll.u32 %v4701, 16
      %v4910 = vrot.slane %v4908, 4
      %v4911 = vor.u32 %v4907, %v4910
      %v4912 = vsel %vm1043, %v4902, %v4911
      %v4914 = vshrl.u32 %v4702, 16
      %v4916 = vrot.slane %v4914, 3
      %v4917 = vshll.u32 %v4702, 16
      %v4919 = vrot.slane %v4917, 4
      %v4920 = vor.u32 %v4916, %v4919
      %v4921 = vsel %vm1043, %v4911, %v4920
      %v4923 = vshrl.u32 %v4703, 16
      %v4925 = vrot.slane %v4923, 3
      %v4926 = vshll.u32 %v4703, 16
      %v4928 = vrot.slane %v4926, 4
      %v4929 = vor.u32 %v4925, %v4928
      %v4930 = vsel %vm1043, %v4920, %v4929
      %v4932 = vshrl.u32 %v4704, 16
      %v4934 = vrot.slane %v4932, 3
      %v4935 = vshll.u32 %v4704, 16
      %v4937 = vrot.slane %v4935, 4
      %v4938 = vor.u32 %v4934, %v4937
      %v4939 = vsel %vm1043, %v4929, %v4938
      %v4941 = vshrl.u32 %v4705, 16
      %v4943 = vrot.slane %v4941, 3
      %v4944 = vshll.u32 %v4705, 16
      %v4946 = vrot.slane %v4944, 4
      %v4947 = vor.u32 %v4943, %v4946
      %v4948 = vsel %vm1043, %v4938, %v4947
      %v4950 = vshrl.u32 %v4706, 16
      %v4952 = vrot.slane %v4950, 3
      %v4953 = vshll.u32 %v4706, 16
      %v4955 = vrot.slane %v4953, 4
      %v4956 = vor.u32 %v4952, %v4955
      %v4957 = vsel %vm1043, %v4947, %v4956
      %v5001 = vunpack.c.l.b16 %v4553
      %v5002 = vunpack.c.l.b16 %v4554
      %v5003 = vunpack.c.l.b16 %v4555
      %v5004 = vunpack.c.l.b16 %v4556
      %v5005 = vunpack.c.l.b16 %v4557
      %v5006 = vunpack.c.l.b16 %v4558
      %v5007 = vunpack.c.l.b16 %v4559
      %v5008 = vunpack.c.l.b16 %v4560
      %v5009 = vunpack.c.l.b16 %v4561
      %v5010 = vunpack.c.l.b16 %v4562
      %v5011 = vunpack.c.l.b16 %v4563
      %v5012 = vunpack.c.l.b16 %v4564
      %v5013 = vunpack.c.l.b16 %v4565
      %v5014 = vunpack.c.l.b16 %v4566
      %v5015 = vunpack.c.l.b16 %v4567
      %v5016 = vunpack.c.l.b16 %v4568
      %v5017 = vpack.c.b16 %v5002, %v5001
      %v5018 = vpack.c.b16 %v5004, %v5003
      %v5019 = vpack.c.b16 %v5006, %v5005
      %v5020 = vpack.c.b16 %v5008, %v5007
      %v5021 = vpack.c.b16 %v5010, %v5009
      %v5022 = vpack.c.b16 %v5012, %v5011
      %v5023 = vpack.c.b16 %v5014, %v5013
      %v5024 = vpack.c.b16 %v5016, %v5015
      %5033 = vmatprep.subr.bf16.mxu0 0
      %5034 = vmatpush1.bf16.msra.mxu0 %v5024
      %5035 = vmatprep.subr.bf16.mxu0 0
      %5036 = vmatpush1.bf16.msra.mxu0 %v5023
      %5037 = vmatprep.subr.bf16.mxu0 0
      %5038 = vmatpush1.bf16.msra.mxu0 %v5022
      %5039 = vmatprep.subr.bf16.mxu0 0
      %5040 = vmatpush1.bf16.msra.mxu0 %v5021
      %5041 = vmatprep.subr.bf16.mxu0 0
      %5042 = vmatpush1.bf16.msra.mxu0 %v5020
      %5043 = vmatprep.subr.bf16.mxu0 0
      %5044 = vmatpush1.bf16.msra.mxu0 %v5019
      %5045 = vmatprep.subr.bf16.mxu0 0
      %5046 = vmatpush1.bf16.msra.mxu0 %v5018
      %5047 = vmatprep.subr.bf16.mxu0 0
      %5048 = vmatpush1.bf16.msra.mxu0 %v5017
      %5049 = vmatprep.subr.bf16.mxu0 0
      %5050 = vmatpush2.bf16.msra.mxu0 0
      %5051 = vmatprep.subr.bf16.mxu0 0
      %5052 = vmatpush2.bf16.msra.mxu0 0
      %5053 = vmatprep.subr.bf16.mxu0 0
      %5054 = vmatpush2.bf16.msra.mxu0 0
      %5055 = vmatprep.subr.bf16.mxu0 0
      %5056 = vmatpush2.bf16.msra.mxu0 0
      %5057 = vmatprep.subr.bf16.mxu0 0
      %5058 = vmatpush2.bf16.msra.mxu0 0
      %5059 = vmatprep.subr.bf16.mxu0 0
      %5060 = vmatpush2.bf16.msra.mxu0 0
      %5061 = vmatprep.subr.bf16.mxu0 0
      %5062 = vmatpush2.bf16.msra.mxu0 0
      %5063 = vmatprep.subr.bf16.mxu0 0
      %5064 = vmatpush2.bf16.msra.mxu0 0
      %5065 = vmatprep.mubr.bf16.mxu0 0
      %5066 = vmatmul.mubr.bf16.gmra.mxu0 %v4723
      %v5067 = vpop.f32.mrf.mxu0
      %v5068 = vadd.f32 0.0, %v5067
      %v5069 = vpop.f32.mrf.mxu0
      %v5070 = vpop.f32.mrf.mxu0
      %v5071 = vadd.f32 0.0, %v5070
      %v5072 = vpop.f32.mrf.mxu0
      %5073 = vmatprep.mubr.bf16.mxu0 0
      %5074 = vmatmul.mubr.bf16.gmra.mxu0 %v4732
      %v5075 = vpop.f32.mrf.mxu0
      %v5076 = vadd.f32 0.0, %v5075
      %v5077 = vpop.f32.mrf.mxu0
      %v5078 = vpop.f32.mrf.mxu0
      %v5079 = vadd.f32 0.0, %v5078
      %v5080 = vpop.f32.mrf.mxu0
      %5081 = vmatprep.mubr.bf16.mxu0 0
      %5082 = vmatmul.mubr.bf16.gmra.mxu0 %v4741
      %v5083 = vpop.f32.mrf.mxu0
      %v5084 = vadd.f32 0.0, %v5083
      %v5085 = vpop.f32.mrf.mxu0
      %v5086 = vpop.f32.mrf.mxu0
      %v5087 = vadd.f32 0.0, %v5086
      %v5088 = vpop.f32.mrf.mxu0
      %5089 = vmatprep.mubr.bf16.mxu0 0
      %5090 = vmatmul.mubr.bf16.gmra.mxu0 %v4750
      %v5091 = vpop.f32.mrf.mxu0
      %v5092 = vadd.f32 0.0, %v5091
      %v5093 = vpop.f32.mrf.mxu0
      %v5094 = vpop.f32.mrf.mxu0
      %v5095 = vadd.f32 0.0, %v5094
      %v5096 = vpop.f32.mrf.mxu0
      %5097 = vmatprep.mubr.bf16.mxu0 0
      %5098 = vmatmul.mubr.bf16.gmra.mxu0 %v4759
      %v5099 = vpop.f32.mrf.mxu0
      %v5100 = vadd.f32 0.0, %v5099
      %v5101 = vpop.f32.mrf.mxu0
      %v5102 = vpop.f32.mrf.mxu0
      %v5103 = vadd.f32 0.0, %v5102
      %v5104 = vpop.f32.mrf.mxu0
      %5105 = vmatprep.mubr.bf16.mxu0 0
      %5106 = vmatmul.mubr.bf16.gmra.mxu0 %v4768
      %v5107 = vpop.f32.mrf.mxu0
      %v5108 = vadd.f32 0.0, %v5107
      %v5109 = vpop.f32.mrf.mxu0
      %v5110 = vpop.f32.mrf.mxu0
      %v5111 = vadd.f32 0.0, %v5110
      %v5112 = vpop.f32.mrf.mxu0
      %5113 = vmatprep.mubr.bf16.mxu0 0
      %5114 = vmatmul.mubr.bf16.gmra.mxu0 %v4777
      %v5115 = vpop.f32.mrf.mxu0
      %v5116 = vadd.f32 0.0, %v5115
      %v5117 = vpop.f32.mrf.mxu0
      %v5118 = vpop.f32.mrf.mxu0
      %v5119 = vadd.f32 0.0, %v5118
      %v5120 = vpop.f32.mrf.mxu0
      %5121 = vmatprep.mubr.bf16.mxu0 0
      %5122 = vmatmul.mubr.bf16.gmra.mxu0 %v4786
      %v5123 = vpop.f32.mrf.mxu0
      %v5124 = vadd.f32 0.0, %v5123
      %v5125 = vpop.f32.mrf.mxu0
      %v5126 = vpop.f32.mrf.mxu0
      %v5127 = vadd.f32 0.0, %v5126
      %v5128 = vpop.f32.mrf.mxu0
      %5129 = vmatprep.mubr.bf16.mxu0 0
      %5130 = vmatmul.mubr.bf16.gmra.mxu0 %v4795
      %v5131 = vpop.f32.mrf.mxu0
      %v5132 = vadd.f32 0.0, %v5131
      %v5133 = vpop.f32.mrf.mxu0
      %v5134 = vpop.f32.mrf.mxu0
      %v5135 = vadd.f32 0.0, %v5134
      %v5136 = vpop.f32.mrf.mxu0
      %5137 = vmatprep.mubr.bf16.mxu0 0
      %5138 = vmatmul.mubr.bf16.gmra.mxu0 %v4804
      %v5139 = vpop.f32.mrf.mxu0
      %v5140 = vadd.f32 0.0, %v5139
      %v5141 = vpop.f32.mrf.mxu0
      %v5142 = vpop.f32.mrf.mxu0
      %v5143 = vadd.f32 0.0, %v5142
      %v5144 = vpop.f32.mrf.mxu0
      %5145 = vmatprep.mubr.bf16.mxu0 0
      %5146 = vmatmul.mubr.bf16.gmra.mxu0 %v4813
      %v5147 = vpop.f32.mrf.mxu0
      %v5148 = vadd.f32 0.0, %v5147
      %v5149 = vpop.f32.mrf.mxu0
      %v5150 = vpop.f32.mrf.mxu0
      %v5151 = vadd.f32 0.0, %v5150
      %v5152 = vpop.f32.mrf.mxu0
      %5153 = vmatprep.mubr.bf16.mxu0 0
      %5154 = vmatmul.mubr.bf16.gmra.mxu0 %v4822
      %v5155 = vpop.f32.mrf.mxu0
      %v5156 = vadd.f32 0.0, %v5155
      %v5157 = vpop.f32.mrf.mxu0
      %v5158 = vpop.f32.mrf.mxu0
      %v5159 = vadd.f32 0.0, %v5158
      %v5160 = vpop.f32.mrf.mxu0
      %5161 = vmatprep.mubr.bf16.mxu0 0
      %5162 = vmatmul.mubr.bf16.gmra.mxu0 %v4831
      %v5163 = vpop.f32.mrf.mxu0
      %v5164 = vadd.f32 0.0, %v5163
      %v5165 = vpop.f32.mrf.mxu0
      %v5166 = vpop.f32.mrf.mxu0
      %v5167 = vadd.f32 0.0, %v5166
      %v5168 = vpop.f32.mrf.mxu0
      %5169 = vmatprep.mubr.bf16.mxu0 0
      %5170 = vmatmul.mubr.bf16.gmra.mxu0 %v4840
      %v5171 = vpop.f32.mrf.mxu0
      %v5172 = vadd.f32 0.0, %v5171
      %v5173 = vpop.f32.mrf.mxu0
      %v5174 = vpop.f32.mrf.mxu0
      %v5175 = vadd.f32 0.0, %v5174
      %v5176 = vpop.f32.mrf.mxu0
      %5177 = vmatprep.mubr.bf16.mxu0 0
      %5178 = vmatmul.mubr.bf16.gmra.mxu0 %v4849
      %v5179 = vpop.f32.mrf.mxu0
      %v5180 = vadd.f32 0.0, %v5179
      %v5181 = vpop.f32.mrf.mxu0
      %v5182 = vpop.f32.mrf.mxu0
      %v5183 = vadd.f32 0.0, %v5182
      %v5184 = vpop.f32.mrf.mxu0
      %5185 = vmatprep.mubr.bf16.mxu0 0
      %5186 = vmatmul.mubr.bf16.gmra.mxu0 %v4858
      %v5187 = vpop.f32.mrf.mxu0
      %v5188 = vadd.f32 0.0, %v5187
      %v5189 = vpop.f32.mrf.mxu0
      %v5190 = vpop.f32.mrf.mxu0
      %v5191 = vadd.f32 0.0, %v5190
      %v5192 = vpop.f32.mrf.mxu0
      %5193 = vmatprep.mubr.bf16.mxu0 0
      %5194 = vmatmul.mubr.bf16.gmra.mxu0 %v4867
      %v5195 = vpop.f32.mrf.mxu0
      %v5196 = vadd.f32 0.0, %v5195
      %v5197 = vpop.f32.mrf.mxu0
      %v5198 = vpop.f32.mrf.mxu0
      %v5199 = vadd.f32 0.0, %v5198
      %v5200 = vpop.f32.mrf.mxu0
      %5201 = vmatprep.mubr.bf16.mxu0 0
      %5202 = vmatmul.mubr.bf16.gmra.mxu0 %v4876
      %v5203 = vpop.f32.mrf.mxu0
      %v5204 = vadd.f32 0.0, %v5203
      %v5205 = vpop.f32.mrf.mxu0
      %v5206 = vpop.f32.mrf.mxu0
      %v5207 = vadd.f32 0.0, %v5206
      %v5208 = vpop.f32.mrf.mxu0
      %5209 = vmatprep.mubr.bf16.mxu0 0
      %5210 = vmatmul.mubr.bf16.gmra.mxu0 %v4885
      %v5211 = vpop.f32.mrf.mxu0
      %v5212 = vadd.f32 0.0, %v5211
      %v5213 = vpop.f32.mrf.mxu0
      %v5214 = vpop.f32.mrf.mxu0
      %v5215 = vadd.f32 0.0, %v5214
      %v5216 = vpop.f32.mrf.mxu0
      %5217 = vmatprep.mubr.bf16.mxu0 0
      %5218 = vmatmul.mubr.bf16.gmra.mxu0 %v4894
      %v5219 = vpop.f32.mrf.mxu0
      %v5220 = vadd.f32 0.0, %v5219
      %v5221 = vpop.f32.mrf.mxu0
      %v5222 = vpop.f32.mrf.mxu0
      %v5223 = vadd.f32 0.0, %v5222
      %v5224 = vpop.f32.mrf.mxu0
      %5225 = vmatprep.mubr.bf16.mxu0 0
      %5226 = vmatmul.mubr.bf16.gmra.mxu0 %v4903
      %v5227 = vpop.f32.mrf.mxu0
      %v5228 = vadd.f32 0.0, %v5227
      %v5229 = vpop.f32.mrf.mxu0
      %v5230 = vpop.f32.mrf.mxu0
      %v5231 = vadd.f32 0.0, %v5230
      %v5232 = vpop.f32.mrf.mxu0
      %5233 = vmatprep.mubr.bf16.mxu0 0
      %5234 = vmatmul.mubr.bf16.gmra.mxu0 %v4912
      %v5235 = vpop.f32.mrf.mxu0
      %v5236 = vadd.f32 0.0, %v5235
      %v5237 = vpop.f32.mrf.mxu0
      %v5238 = vpop.f32.mrf.mxu0
      %v5239 = vadd.f32 0.0, %v5238
      %v5240 = vpop.f32.mrf.mxu0
      %5241 = vmatprep.mubr.bf16.mxu0 0
      %5242 = vmatmul.mubr.bf16.gmra.mxu0 %v4921
      %v5243 = vpop.f32.mrf.mxu0
      %v5244 = vadd.f32 0.0, %v5243
      %v5245 = vpop.f32.mrf.mxu0
      %v5246 = vpop.f32.mrf.mxu0
      %v5247 = vadd.f32 0.0, %v5246
      %v5248 = vpop.f32.mrf.mxu0
      %5249 = vmatprep.mubr.bf16.mxu0 0
      %5250 = vmatmul.mubr.bf16.gmra.mxu0 %v4930
      %v5251 = vpop.f32.mrf.mxu0
      %v5252 = vadd.f32 0.0, %v5251
      %v5253 = vpop.f32.mrf.mxu0
      %v5254 = vpop.f32.mrf.mxu0
      %v5255 = vadd.f32 0.0, %v5254
      %v5256 = vpop.f32.mrf.mxu0
      %5257 = vmatprep.mubr.bf16.mxu0 0
      %5258 = vmatmul.mubr.bf16.gmra.mxu0 %v4939
      %v5259 = vpop.f32.mrf.mxu0
      %v5260 = vadd.f32 0.0, %v5259
      %v5261 = vpop.f32.mrf.mxu0
      %v5262 = vpop.f32.mrf.mxu0
      %v5263 = vadd.f32 0.0, %v5262
      %v5264 = vpop.f32.mrf.mxu0
      %5265 = vmatprep.mubr.bf16.mxu0 0
      %5266 = vmatmul.mubr.bf16.gmra.mxu0 %v4948
      %v5267 = vpop.f32.mrf.mxu0
      %v5268 = vadd.f32 0.0, %v5267
      %v5269 = vpop.f32.mrf.mxu0
      %v5270 = vpop.f32.mrf.mxu0
      %v5271 = vadd.f32 0.0, %v5270
      %v5272 = vpop.f32.mrf.mxu0
      %5273 = vmatprep.mubr.bf16.mxu0 0
      %5274 = vmatmul.mubr.bf16.gmra.mxu0 %v4957
      %v5275 = vpop.f32.mrf.mxu0
      %v5276 = vadd.f32 0.0, %v5275
      %v5277 = vpop.f32.mrf.mxu0
      %v5278 = vpop.f32.mrf.mxu0
      %v5279 = vadd.f32 0.0, %v5278
      %v5280 = vpop.f32.mrf.mxu0
      %5281 = vdwg.mxu0
      %v5282 = vadd.f32 %v4443, %v5068
      %v5283 = vadd.f32 %v4444, %v5071
      %v5284 = vadd.f32 %v4445, %v5076
      %v5285 = vadd.f32 %v4446, %v5079
      %v5286 = vadd.f32 %v4447, %v5084
      %v5287 = vadd.f32 %v4448, %v5087
      %v5288 = vadd.f32 %v4449, %v5092
      %v5289 = vadd.f32 %v4450, %v5095
      %v5290 = vadd.f32 %v4451, %v5100
      %v5291 = vadd.f32 %v4452, %v5103
      %v5292 = vadd.f32 %v4453, %v5108
      %v5293 = vadd.f32 %v4454, %v5111
      %v5294 = vadd.f32 %v4455, %v5116
      %v5295 = vadd.f32 %v4456, %v5119
      %v5296 = vadd.f32 %v4457, %v5124
      %v5297 = vadd.f32 %v4458, %v5127
      %v5298 = vadd.f32 %v4459, %v5132
      %v5299 = vadd.f32 %v4460, %v5135
      %v5300 = vadd.f32 %v4461, %v5140
      %v5301 = vadd.f32 %v4462, %v5143
      %v5302 = vadd.f32 %v4463, %v5148
      %v5303 = vadd.f32 %v4464, %v5151
      %v5304 = vadd.f32 %v4465, %v5156
      %v5305 = vadd.f32 %v4466, %v5159
      %v5306 = vadd.f32 %v4467, %v5164
      %v5307 = vadd.f32 %v4468, %v5167
      %v5308 = vadd.f32 %v4469, %v5172
      %v5309 = vadd.f32 %v4470, %v5175
      %v5310 = vadd.f32 %v4471, %v5180
      %v5311 = vadd.f32 %v4472, %v5183
      %v5312 = vadd.f32 %v4473, %v5188
      %v5313 = vadd.f32 %v4474, %v5191
      %v5314 = vadd.f32 %v4475, %v5196
      %v5315 = vadd.f32 %v4476, %v5199
      %v5316 = vadd.f32 %v4477, %v5204
      %v5317 = vadd.f32 %v4478, %v5207
      %v5318 = vadd.f32 %v4479, %v5212
      %v5319 = vadd.f32 %v4480, %v5215
      %v5320 = vadd.f32 %v4481, %v5220
      %v5321 = vadd.f32 %v4482, %v5223
      %v5322 = vadd.f32 %v4483, %v5228
      %v5323 = vadd.f32 %v4484, %v5231
      %v5324 = vadd.f32 %v4485, %v5236
      %v5325 = vadd.f32 %v4486, %v5239
      %v5326 = vadd.f32 %v4487, %v5244
      %v5327 = vadd.f32 %v4488, %v5247
      %v5328 = vadd.f32 %v4489, %v5252
      %v5329 = vadd.f32 %v4490, %v5255
      %v5330 = vadd.f32 %v4491, %v5260
      %v5331 = vadd.f32 %v4492, %v5263
      %v5332 = vadd.f32 %v4493, %v5268
      %v5333 = vadd.f32 %v4494, %v5271
      %v5334 = vadd.f32 %v4495, %v5276
      %v5335 = vadd.f32 %v4496, %v5279
      %s5336 = scalar_lea.vmem %s1, 448
      %v5337 = vld [vmem:[%s5336] sm:$0xf]
      %v5338 = vld [vmem:[%s5336 + $0x4] sm:$0xf]
      %v5339 = vld [vmem:[%s5336 + $0x8] sm:$0xf]
      %v5340 = vld [vmem:[%s5336 + $0xc] sm:$0xf]
      %v5341 = vld [vmem:[%s5336 + $0x10] sm:$0xf]
      %v5342 = vld [vmem:[%s5336 + $0x14] sm:$0xf]
      %v5343 = vld [vmem:[%s5336 + $0x18] sm:$0xf]
      %v5344 = vld [vmem:[%s5336 + $0x1c] sm:$0xf]
      %v5345 = vld [vmem:[%s5336 + $0x20] sm:$0xf]
      %v5346 = vld [vmem:[%s5336 + $0x24] sm:$0xf]
      %v5347 = vld [vmem:[%s5336 + $0x28] sm:$0xf]
      %v5348 = vld [vmem:[%s5336 + $0x2c] sm:$0xf]
      %v5349 = vld [vmem:[%s5336 + $0x30] sm:$0xf]
      %v5350 = vld [vmem:[%s5336 + $0x34] sm:$0xf]
      %v5351 = vld [vmem:[%s5336 + $0x38] sm:$0xf]
      %v5352 = vld [vmem:[%s5336 + $0x3c] sm:$0xf]
      %v5353 = vpack.c.b16 %v4626, %v4625
      %v5354 = vpack.c.b16 %v4628, %v4627
      %v5355 = vpack.c.b16 %v4630, %v4629
      %v5356 = vpack.c.b16 %v4632, %v4631
      %v5357 = vpack.c.b16 %v4634, %v4633
      %v5358 = vpack.c.b16 %v4636, %v4635
      %v5359 = vpack.c.b16 %v4638, %v4637
      %v5360 = vpack.c.b16 %v4640, %v4639
      %v5361 = vpack.c.b16 %v4642, %v4641
      %v5362 = vpack.c.b16 %v4644, %v4643
      %v5363 = vpack.c.b16 %v4646, %v4645
      %v5364 = vpack.c.b16 %v4648, %v4647
      %v5365 = vpack.c.b16 %v4650, %v4649
      %v5366 = vpack.c.b16 %v4652, %v4651
      %v5367 = vpack.c.b16 %v4654, %v4653
      %v5368 = vpack.c.b16 %v4656, %v4655
      %v5369 = vpack.c.b16 %v4658, %v4657
      %v5370 = vpack.c.b16 %v4660, %v4659
      %v5371 = vpack.c.b16 %v4662, %v4661
      %v5372 = vpack.c.b16 %v4664, %v4663
      %v5373 = vpack.c.b16 %v4666, %v4665
      %v5374 = vpack.c.b16 %v4668, %v4667
      %v5375 = vpack.c.b16 %v4670, %v4669
      %v5376 = vpack.c.b16 %v4672, %v4671
      %v5377 = vpack.c.b16 %v4674, %v4673
      %v5378 = vpack.c.b16 %v4676, %v4675
      %v5379 = vpack.c.b16 %v4678, %v4677
      %v5423 = vunpack.c.l.b16 %v5337
      %v5424 = vunpack.c.l.b16 %v5338
      %v5425 = vunpack.c.l.b16 %v5339
      %v5426 = vunpack.c.l.b16 %v5340
      %v5427 = vunpack.c.l.b16 %v5341
      %v5428 = vunpack.c.l.b16 %v5342
      %v5429 = vunpack.c.l.b16 %v5343
      %v5430 = vunpack.c.l.b16 %v5344
      %v5431 = vunpack.c.l.b16 %v5345
      %v5432 = vunpack.c.l.b16 %v5346
      %v5433 = vunpack.c.l.b16 %v5347
      %v5434 = vunpack.c.l.b16 %v5348
      %v5435 = vunpack.c.l.b16 %v5349
      %v5436 = vunpack.c.l.b16 %v5350
      %v5437 = vunpack.c.l.b16 %v5351
      %v5438 = vunpack.c.l.b16 %v5352
      %v5439 = vpack.c.b16 %v5424, %v5423
      %v5440 = vpack.c.b16 %v5426, %v5425
      %v5441 = vpack.c.b16 %v5428, %v5427
      %v5442 = vpack.c.b16 %v5430, %v5429
      %v5443 = vpack.c.b16 %v5432, %v5431
      %v5444 = vpack.c.b16 %v5434, %v5433
      %v5445 = vpack.c.b16 %v5436, %v5435
      %v5446 = vpack.c.b16 %v5438, %v5437
      %5455 = vmatprep.subr.bf16.mxu0 0
      %5456 = vmatpush1.bf16.msra.mxu0 %v5446
      %5457 = vmatprep.subr.bf16.mxu0 0
      %5458 = vmatpush1.bf16.msra.mxu0 %v5445
      %5459 = vmatprep.subr.bf16.mxu0 0
      %5460 = vmatpush1.bf16.msra.mxu0 %v5444
      %5461 = vmatprep.subr.bf16.mxu0 0
      %5462 = vmatpush1.bf16.msra.mxu0 %v5443
      %5463 = vmatprep.subr.bf16.mxu0 0
      %5464 = vmatpush1.bf16.msra.mxu0 %v5442
      %5465 = vmatprep.subr.bf16.mxu0 0
      %5466 = vmatpush1.bf16.msra.mxu0 %v5441
      %5467 = vmatprep.subr.bf16.mxu0 0
      %5468 = vmatpush1.bf16.msra.mxu0 %v5440
      %5469 = vmatprep.subr.bf16.mxu0 0
      %5470 = vmatpush1.bf16.msra.mxu0 %v5439
      %5471 = vmatprep.subr.bf16.mxu0 0
      %5472 = vmatpush2.bf16.msra.mxu0 0
      %5473 = vmatprep.subr.bf16.mxu0 0
      %5474 = vmatpush2.bf16.msra.mxu0 0
      %5475 = vmatprep.subr.bf16.mxu0 0
      %5476 = vmatpush2.bf16.msra.mxu0 0
      %5477 = vmatprep.subr.bf16.mxu0 0
      %5478 = vmatpush2.bf16.msra.mxu0 0
      %5479 = vmatprep.subr.bf16.mxu0 0
      %5480 = vmatpush2.bf16.msra.mxu0 0
      %5481 = vmatprep.subr.bf16.mxu0 0
      %5482 = vmatpush2.bf16.msra.mxu0 0
      %5483 = vmatprep.subr.bf16.mxu0 0
      %5484 = vmatpush2.bf16.msra.mxu0 0
      %5485 = vmatprep.subr.bf16.mxu0 0
      %5486 = vmatpush2.bf16.msra.mxu0 0
      %5487 = vmatprep.mubr.bf16.mxu0 0
      %5488 = vmatmul.mubr.bf16.gmra.mxu0 %v5353
      %v5489 = vpop.f32.mrf.mxu0
      %v5490 = vadd.f32 0.0, %v5489
      %v5491 = vpop.f32.mrf.mxu0
      %v5492 = vpop.f32.mrf.mxu0
      %v5493 = vadd.f32 0.0, %v5492
      %v5494 = vpop.f32.mrf.mxu0
      %5495 = vmatprep.mubr.bf16.mxu0 0
      %5496 = vmatmul.mubr.bf16.gmra.mxu0 %v5354
      %v5497 = vpop.f32.mrf.mxu0
      %v5498 = vadd.f32 0.0, %v5497
      %v5499 = vpop.f32.mrf.mxu0
      %v5500 = vpop.f32.mrf.mxu0
      %v5501 = vadd.f32 0.0, %v5500
      %v5502 = vpop.f32.mrf.mxu0
      %5503 = vmatprep.mubr.bf16.mxu0 0
      %5504 = vmatmul.mubr.bf16.gmra.mxu0 %v5355
      %v5505 = vpop.f32.mrf.mxu0
      %v5506 = vadd.f32 0.0, %v5505
      %v5507 = vpop.f32.mrf.mxu0
      %v5508 = vpop.f32.mrf.mxu0
      %v5509 = vadd.f32 0.0, %v5508
      %v5510 = vpop.f32.mrf.mxu0
      %5511 = vmatprep.mubr.bf16.mxu0 0
      %5512 = vmatmul.mubr.bf16.gmra.mxu0 %v5356
      %v5513 = vpop.f32.mrf.mxu0
      %v5514 = vadd.f32 0.0, %v5513
      %v5515 = vpop.f32.mrf.mxu0
      %v5516 = vpop.f32.mrf.mxu0
      %v5517 = vadd.f32 0.0, %v5516
      %v5518 = vpop.f32.mrf.mxu0
      %5519 = vmatprep.mubr.bf16.mxu0 0
      %5520 = vmatmul.mubr.bf16.gmra.mxu0 %v5357
      %v5521 = vpop.f32.mrf.mxu0
      %v5522 = vadd.f32 0.0, %v5521
      %v5523 = vpop.f32.mrf.mxu0
      %v5524 = vpop.f32.mrf.mxu0
      %v5525 = vadd.f32 0.0, %v5524
      %v5526 = vpop.f32.mrf.mxu0
      %5527 = vmatprep.mubr.bf16.mxu0 0
      %5528 = vmatmul.mubr.bf16.gmra.mxu0 %v5358
      %v5529 = vpop.f32.mrf.mxu0
      %v5530 = vadd.f32 0.0, %v5529
      %v5531 = vpop.f32.mrf.mxu0
      %v5532 = vpop.f32.mrf.mxu0
      %v5533 = vadd.f32 0.0, %v5532
      %v5534 = vpop.f32.mrf.mxu0
      %5535 = vmatprep.mubr.bf16.mxu0 0
      %5536 = vmatmul.mubr.bf16.gmra.mxu0 %v5359
      %v5537 = vpop.f32.mrf.mxu0
      %v5538 = vadd.f32 0.0, %v5537
      %v5539 = vpop.f32.mrf.mxu0
      %v5540 = vpop.f32.mrf.mxu0
      %v5541 = vadd.f32 0.0, %v5540
      %v5542 = vpop.f32.mrf.mxu0
      %5543 = vmatprep.mubr.bf16.mxu0 0
      %5544 = vmatmul.mubr.bf16.gmra.mxu0 %v5360
      %v5545 = vpop.f32.mrf.mxu0
      %v5546 = vadd.f32 0.0, %v5545
      %v5547 = vpop.f32.mrf.mxu0
      %v5548 = vpop.f32.mrf.mxu0
      %v5549 = vadd.f32 0.0, %v5548
      %v5550 = vpop.f32.mrf.mxu0
      %5551 = vmatprep.mubr.bf16.mxu0 0
      %5552 = vmatmul.mubr.bf16.gmra.mxu0 %v5361
      %v5553 = vpop.f32.mrf.mxu0
      %v5554 = vadd.f32 0.0, %v5553
      %v5555 = vpop.f32.mrf.mxu0
      %v5556 = vpop.f32.mrf.mxu0
      %v5557 = vadd.f32 0.0, %v5556
      %v5558 = vpop.f32.mrf.mxu0
      %5559 = vmatprep.mubr.bf16.mxu0 0
      %5560 = vmatmul.mubr.bf16.gmra.mxu0 %v5362
      %v5561 = vpop.f32.mrf.mxu0
      %v5562 = vadd.f32 0.0, %v5561
      %v5563 = vpop.f32.mrf.mxu0
      %v5564 = vpop.f32.mrf.mxu0
      %v5565 = vadd.f32 0.0, %v5564
      %v5566 = vpop.f32.mrf.mxu0
      %5567 = vmatprep.mubr.bf16.mxu0 0
      %5568 = vmatmul.mubr.bf16.gmra.mxu0 %v5363
      %v5569 = vpop.f32.mrf.mxu0
      %v5570 = vadd.f32 0.0, %v5569
      %v5571 = vpop.f32.mrf.mxu0
      %v5572 = vpop.f32.mrf.mxu0
      %v5573 = vadd.f32 0.0, %v5572
      %v5574 = vpop.f32.mrf.mxu0
      %5575 = vmatprep.mubr.bf16.mxu0 0
      %5576 = vmatmul.mubr.bf16.gmra.mxu0 %v5364
      %v5577 = vpop.f32.mrf.mxu0
      %v5578 = vadd.f32 0.0, %v5577
      %v5579 = vpop.f32.mrf.mxu0
      %v5580 = vpop.f32.mrf.mxu0
      %v5581 = vadd.f32 0.0, %v5580
      %v5582 = vpop.f32.mrf.mxu0
      %5583 = vmatprep.mubr.bf16.mxu0 0
      %5584 = vmatmul.mubr.bf16.gmra.mxu0 %v5365
      %v5585 = vpop.f32.mrf.mxu0
      %v5586 = vadd.f32 0.0, %v5585
      %v5587 = vpop.f32.mrf.mxu0
      %v5588 = vpop.f32.mrf.mxu0
      %v5589 = vadd.f32 0.0, %v5588
      %v5590 = vpop.f32.mrf.mxu0
      %5591 = vmatprep.mubr.bf16.mxu0 0
      %5592 = vmatmul.mubr.bf16.gmra.mxu0 %v5366
      %v5593 = vpop.f32.mrf.mxu0
      %v5594 = vadd.f32 0.0, %v5593
      %v5595 = vpop.f32.mrf.mxu0
      %v5596 = vpop.f32.mrf.mxu0
      %v5597 = vadd.f32 0.0, %v5596
      %v5598 = vpop.f32.mrf.mxu0
      %5599 = vmatprep.mubr.bf16.mxu0 0
      %5600 = vmatmul.mubr.bf16.gmra.mxu0 %v5367
      %v5601 = vpop.f32.mrf.mxu0
      %v5602 = vadd.f32 0.0, %v5601
      %v5603 = vpop.f32.mrf.mxu0
      %v5604 = vpop.f32.mrf.mxu0
      %v5605 = vadd.f32 0.0, %v5604
      %v5606 = vpop.f32.mrf.mxu0
      %5607 = vmatprep.mubr.bf16.mxu0 0
      %5608 = vmatmul.mubr.bf16.gmra.mxu0 %v5368
      %v5609 = vpop.f32.mrf.mxu0
      %v5610 = vadd.f32 0.0, %v5609
      %v5611 = vpop.f32.mrf.mxu0
      %v5612 = vpop.f32.mrf.mxu0
      %v5613 = vadd.f32 0.0, %v5612
      %v5614 = vpop.f32.mrf.mxu0
      %5615 = vmatprep.mubr.bf16.mxu0 0
      %5616 = vmatmul.mubr.bf16.gmra.mxu0 %v5369
      %v5617 = vpop.f32.mrf.mxu0
      %v5618 = vadd.f32 0.0, %v5617
      %v5619 = vpop.f32.mrf.mxu0
      %v5620 = vpop.f32.mrf.mxu0
      %v5621 = vadd.f32 0.0, %v5620
      %v5622 = vpop.f32.mrf.mxu0
      %5623 = vmatprep.mubr.bf16.mxu0 0
      %5624 = vmatmul.mubr.bf16.gmra.mxu0 %v5370
      %v5625 = vpop.f32.mrf.mxu0
      %v5626 = vadd.f32 0.0, %v5625
      %v5627 = vpop.f32.mrf.mxu0
      %v5628 = vpop.f32.mrf.mxu0
      %v5629 = vadd.f32 0.0, %v5628
      %v5630 = vpop.f32.mrf.mxu0
      %5631 = vmatprep.mubr.bf16.mxu0 0
      %5632 = vmatmul.mubr.bf16.gmra.mxu0 %v5371
      %v5633 = vpop.f32.mrf.mxu0
      %v5634 = vadd.f32 0.0, %v5633
      %v5635 = vpop.f32.mrf.mxu0
      %v5636 = vpop.f32.mrf.mxu0
      %v5637 = vadd.f32 0.0, %v5636
      %v5638 = vpop.f32.mrf.mxu0
      %5639 = vmatprep.mubr.bf16.mxu0 0
      %5640 = vmatmul.mubr.bf16.gmra.mxu0 %v5372
      %v5641 = vpop.f32.mrf.mxu0
      %v5642 = vadd.f32 0.0, %v5641
      %v5643 = vpop.f32.mrf.mxu0
      %v5644 = vpop.f32.mrf.mxu0
      %v5645 = vadd.f32 0.0, %v5644
      %v5646 = vpop.f32.mrf.mxu0
      %5647 = vmatprep.mubr.bf16.mxu0 0
      %5648 = vmatmul.mubr.bf16.gmra.mxu0 %v5373
      %v5649 = vpop.f32.mrf.mxu0
      %v5650 = vadd.f32 0.0, %v5649
      %v5651 = vpop.f32.mrf.mxu0
      %v5652 = vpop.f32.mrf.mxu0
      %v5653 = vadd.f32 0.0, %v5652
      %v5654 = vpop.f32.mrf.mxu0
      %5655 = vmatprep.mubr.bf16.mxu0 0
      %5656 = vmatmul.mubr.bf16.gmra.mxu0 %v5374
      %v5657 = vpop.f32.mrf.mxu0
      %v5658 = vadd.f32 0.0, %v5657
      %v5659 = vpop.f32.mrf.mxu0
      %v5660 = vpop.f32.mrf.mxu0
      %v5661 = vadd.f32 0.0, %v5660
      %v5662 = vpop.f32.mrf.mxu0
      %5663 = vmatprep.mubr.bf16.mxu0 0
      %5664 = vmatmul.mubr.bf16.gmra.mxu0 %v5375
      %v5665 = vpop.f32.mrf.mxu0
      %v5666 = vadd.f32 0.0, %v5665
      %v5667 = vpop.f32.mrf.mxu0
      %v5668 = vpop.f32.mrf.mxu0
      %v5669 = vadd.f32 0.0, %v5668
      %v5670 = vpop.f32.mrf.mxu0
      %5671 = vmatprep.mubr.bf16.mxu0 0
      %5672 = vmatmul.mubr.bf16.gmra.mxu0 %v5376
      %v5673 = vpop.f32.mrf.mxu0
      %v5674 = vadd.f32 0.0, %v5673
      %v5675 = vpop.f32.mrf.mxu0
      %v5676 = vpop.f32.mrf.mxu0
      %v5677 = vadd.f32 0.0, %v5676
      %v5678 = vpop.f32.mrf.mxu0
      %5679 = vmatprep.mubr.bf16.mxu0 0
      %5680 = vmatmul.mubr.bf16.gmra.mxu0 %v5377
      %v5681 = vpop.f32.mrf.mxu0
      %v5682 = vadd.f32 0.0, %v5681
      %v5683 = vpop.f32.mrf.mxu0
      %v5684 = vpop.f32.mrf.mxu0
      %v5685 = vadd.f32 0.0, %v5684
      %v5686 = vpop.f32.mrf.mxu0
      %5687 = vmatprep.mubr.bf16.mxu0 0
      %5688 = vmatmul.mubr.bf16.gmra.mxu0 %v5378
      %v5689 = vpop.f32.mrf.mxu0
      %v5690 = vadd.f32 0.0, %v5689
      %v5691 = vpop.f32.mrf.mxu0
      %v5692 = vpop.f32.mrf.mxu0
      %v5693 = vadd.f32 0.0, %v5692
      %v5694 = vpop.f32.mrf.mxu0
      %5695 = vmatprep.mubr.bf16.mxu0 0
      %5696 = vmatmul.mubr.bf16.gmra.mxu0 %v5379
      %v5697 = vpop.f32.mrf.mxu0
      %v5698 = vadd.f32 0.0, %v5697
      %v5699 = vpop.f32.mrf.mxu0
      %v5700 = vpop.f32.mrf.mxu0
      %v5701 = vadd.f32 0.0, %v5700
      %v5702 = vpop.f32.mrf.mxu0
      %5703 = vdwg.mxu0
      %v5704 = vadd.f32 %v5282, %v5490
      %v5705 = vadd.f32 %v5283, %v5493
      %v5706 = vadd.f32 %v5284, %v5498
      %v5707 = vadd.f32 %v5285, %v5501
      %v5708 = vadd.f32 %v5286, %v5506
      %v5709 = vadd.f32 %v5287, %v5509
      %v5710 = vadd.f32 %v5288, %v5514
      %v5711 = vadd.f32 %v5289, %v5517
      %v5712 = vadd.f32 %v5290, %v5522
      %v5713 = vadd.f32 %v5291, %v5525
      %v5714 = vadd.f32 %v5292, %v5530
      %v5715 = vadd.f32 %v5293, %v5533
      %v5716 = vadd.f32 %v5294, %v5538
      %v5717 = vadd.f32 %v5295, %v5541
      %v5718 = vadd.f32 %v5296, %v5546
      %v5719 = vadd.f32 %v5297, %v5549
      %v5720 = vadd.f32 %v5298, %v5554
      %v5721 = vadd.f32 %v5299, %v5557
      %v5722 = vadd.f32 %v5300, %v5562
      %v5723 = vadd.f32 %v5301, %v5565
      %v5724 = vadd.f32 %v5302, %v5570
      %v5725 = vadd.f32 %v5303, %v5573
      %v5726 = vadd.f32 %v5304, %v5578
      %v5727 = vadd.f32 %v5305, %v5581
      %v5728 = vadd.f32 %v5306, %v5586
      %v5729 = vadd.f32 %v5307, %v5589
      %v5730 = vadd.f32 %v5308, %v5594
      %v5731 = vadd.f32 %v5309, %v5597
      %v5732 = vadd.f32 %v5310, %v5602
      %v5733 = vadd.f32 %v5311, %v5605
      %v5734 = vadd.f32 %v5312, %v5610
      %v5735 = vadd.f32 %v5313, %v5613
      %v5736 = vadd.f32 %v5314, %v5618
      %v5737 = vadd.f32 %v5315, %v5621
      %v5738 = vadd.f32 %v5316, %v5626
      %v5739 = vadd.f32 %v5317, %v5629
      %v5740 = vadd.f32 %v5318, %v5634
      %v5741 = vadd.f32 %v5319, %v5637
      %v5742 = vadd.f32 %v5320, %v5642
      %v5743 = vadd.f32 %v5321, %v5645
      %v5744 = vadd.f32 %v5322, %v5650
      %v5745 = vadd.f32 %v5323, %v5653
      %v5746 = vadd.f32 %v5324, %v5658
      %v5747 = vadd.f32 %v5325, %v5661
      %v5748 = vadd.f32 %v5326, %v5666
      %v5749 = vadd.f32 %v5327, %v5669
      %v5750 = vadd.f32 %v5328, %v5674
      %v5751 = vadd.f32 %v5329, %v5677
      %v5752 = vadd.f32 %v5330, %v5682
      %v5753 = vadd.f32 %v5331, %v5685
      %v5754 = vadd.f32 %v5332, %v5690
      %v5755 = vadd.f32 %v5333, %v5693
      %v5756 = vadd.f32 %v5334, %v5698
      %v5757 = vadd.f32 %v5335, %v5701
      %v5758 = vld [vmem:[%s338 + $0x1c] sm:$0xf]
      %v5759 = vld [vmem:[%s338 + $0x20] sm:$0xf]
      %v5760 = vld [vmem:[%s338 + $0x24] sm:$0xf]
      %v5761 = vld [vmem:[%s338 + $0x28] sm:$0xf]
      %v5762 = vld [vmem:[%s338 + $0x2c] sm:$0xf]
      %v5763 = vld [vmem:[%s338 + $0x30] sm:$0xf]
      %v5764 = vld [vmem:[%s338 + $0x34] sm:$0xf]
      %v5765 = vld [vmem:[%s338 + $0x38] sm:$0xf]
      %v5766 = vld [vmem:[%s338 + $0x3c] sm:$0xf]
      %v5767 = vld [vmem:[%s338 + $0x40] sm:$0xf]
      %v5768 = vld [vmem:[%s338 + $0x44] sm:$0xf]
      %v5769 = vld [vmem:[%s338 + $0x48] sm:$0xf]
      %v5770 = vld [vmem:[%s338 + $0x4c] sm:$0xf]
      %v5771 = vld [vmem:[%s338 + $0x50] sm:$0xf]
      %v5772 = vld [vmem:[%s338 + $0x54] sm:$0xf]
      %v5773 = vld [vmem:[%s338 + $0x58] sm:$0xf]
      %v5774 = vld [vmem:[%s338 + $0x5c] sm:$0xf]
      %v5775 = vld [vmem:[%s338 + $0x60] sm:$0xf]
      %v5776 = vld [vmem:[%s338 + $0x64] sm:$0xf]
      %v5777 = vld [vmem:[%s338 + $0x68] sm:$0xf]
      %v5778 = vld [vmem:[%s338 + $0x6c] sm:$0xf]
      %v5779 = vld [vmem:[%s338 + $0x70] sm:$0xf]
      %v5780 = vld [vmem:[%s338 + $0x74] sm:$0xf]
      %v5781 = vld [vmem:[%s338 + $0x78] sm:$0xf]
      %v5782 = vld [vmem:[%s338 + $0x7c] sm:$0xf]
      %v5783 = vld [vmem:[%s338 + $0x80] sm:$0xf]
      %v5784 = vld [vmem:[%s338 + $0x84] sm:$0xf]
      %v5785 = vld [vmem:[%s338 + $0x88] sm:$0xf]
      %v5786 = vld [vmem:[%s338 + $0x8c] sm:$0xf]
      %v5787 = vld [vmem:[%s338 + $0x90] sm:$0xf]
      %v5788 = vld [vmem:[%s338 + $0x94] sm:$0xf]
      %v5789 = vld [vmem:[%s338 + $0x98] sm:$0xf]
      %v5790 = vld [vmem:[%s338 + $0x9c] sm:$0xf]
      %v5791 = vld [vmem:[%s338 + $0xa0] sm:$0xf]
      %v5792 = vld [vmem:[%s338 + $0xa4] sm:$0xf]
      %v5793 = vld [vmem:[%s338 + $0xa8] sm:$0xf]
      %v5794 = vld [vmem:[%s338 + $0xac] sm:$0xf]
      %v5795 = vld [vmem:[%s338 + $0xb0] sm:$0xf]
      %v5796 = vld [vmem:[%s338 + $0xb4] sm:$0xf]
      %v5797 = vld [vmem:[%s338 + $0xb8] sm:$0xf]
      %v5798 = vld [vmem:[%s338 + $0xbc] sm:$0xf]
      %v5799 = vld [vmem:[%s338 + $0xc0] sm:$0xf]
      %v5800 = vld [vmem:[%s338 + $0xc4] sm:$0xf]
      %v5801 = vld [vmem:[%s338 + $0xc8] sm:$0xf]
      %v5802 = vld [vmem:[%s338 + $0xcc] sm:$0xf]
      %v5803 = vld [vmem:[%s338 + $0xd0] sm:$0xf]
      %v5804 = vld [vmem:[%s338 + $0xd4] sm:$0xf]
      %v5805 = vld [vmem:[%s338 + $0xd8] sm:$0xf]
      %v5806 = vld [vmem:[%s338 + $0xdc] sm:$0xf]
      %v5807 = vld [vmem:[%s338 + $0xe0] sm:$0xf]
      %v5808 = vld [vmem:[%s338 + $0xe4] sm:$0xf]
      %v5809 = vld [vmem:[%s338 + $0xe8] sm:$0xf]
      %v5810 = vld [vmem:[%s338 + $0xec] sm:$0xf]
      %v5811 = vld [vmem:[%s338 + $0xf0] sm:$0xf]
      %v5812 = vld [vmem:[%s338 + $0xf4] sm:$0x1]
      %s5813 = scalar_lea.vmem %s1, 512
      %v5814 = vld [vmem:[%s5813] sm:$0xf]
      %v5815 = vld [vmem:[%s5813 + $0x4] sm:$0xf]
      %v5816 = vld [vmem:[%s5813 + $0x8] sm:$0xf]
      %v5817 = vld [vmem:[%s5813 + $0xc] sm:$0xf]
      %v5818 = vld [vmem:[%s5813 + $0x10] sm:$0xf]
      %v5819 = vld [vmem:[%s5813 + $0x14] sm:$0xf]
      %v5820 = vld [vmem:[%s5813 + $0x18] sm:$0xf]
      %v5821 = vld [vmem:[%s5813 + $0x1c] sm:$0xf]
      %v5822 = vld [vmem:[%s5813 + $0x20] sm:$0xf]
      %v5823 = vld [vmem:[%s5813 + $0x24] sm:$0xf]
      %v5824 = vld [vmem:[%s5813 + $0x28] sm:$0xf]
      %v5825 = vld [vmem:[%s5813 + $0x2c] sm:$0xf]
      %v5826 = vld [vmem:[%s5813 + $0x30] sm:$0xf]
      %v5827 = vld [vmem:[%s5813 + $0x34] sm:$0xf]
      %v5828 = vld [vmem:[%s5813 + $0x38] sm:$0xf]
      %v5829 = vld [vmem:[%s5813 + $0x3c] sm:$0xf]
      %v5885 = vunpack.c.l.b16 %v5758
      %v5886 = vunpack.c.l.b16 %v5759
      %v5887 = vunpack.c.l.b16 %v5760
      %v5888 = vunpack.c.l.b16 %v5761
      %v5889 = vunpack.c.l.b16 %v5762
      %v5890 = vunpack.c.l.b16 %v5763
      %v5891 = vunpack.c.l.b16 %v5764
      %v5892 = vunpack.c.l.b16 %v5765
      %v5893 = vunpack.c.l.b16 %v5766
      %v5894 = vunpack.c.l.b16 %v5767
      %v5895 = vunpack.c.l.b16 %v5768
      %v5896 = vunpack.c.l.b16 %v5769
      %v5897 = vunpack.c.l.b16 %v5770
      %v5898 = vunpack.c.l.b16 %v5771
      %v5899 = vunpack.c.l.b16 %v5772
      %v5900 = vunpack.c.l.b16 %v5773
      %v5901 = vunpack.c.l.b16 %v5774
      %v5902 = vunpack.c.l.b16 %v5775
      %v5903 = vunpack.c.l.b16 %v5776
      %v5904 = vunpack.c.l.b16 %v5777
      %v5905 = vunpack.c.l.b16 %v5778
      %v5906 = vunpack.c.l.b16 %v5779
      %v5907 = vunpack.c.l.b16 %v5780
      %v5908 = vunpack.c.l.b16 %v5781
      %v5909 = vunpack.c.l.b16 %v5782
      %v5910 = vunpack.c.l.b16 %v5783
      %v5911 = vunpack.c.l.b16 %v5784
      %v5912 = vunpack.c.l.b16 %v5785
      %v5913 = vunpack.c.l.b16 %v5786
      %v5914 = vunpack.c.l.b16 %v5787
      %v5915 = vunpack.c.l.b16 %v5788
      %v5916 = vunpack.c.l.b16 %v5789
      %v5917 = vunpack.c.l.b16 %v5790
      %v5918 = vunpack.c.l.b16 %v5791
      %v5919 = vunpack.c.l.b16 %v5792
      %v5920 = vunpack.c.l.b16 %v5793
      %v5921 = vunpack.c.l.b16 %v5794
      %v5922 = vunpack.c.l.b16 %v5795
      %v5923 = vunpack.c.l.b16 %v5796
      %v5924 = vunpack.c.l.b16 %v5797
      %v5925 = vunpack.c.l.b16 %v5798
      %v5926 = vunpack.c.l.b16 %v5799
      %v5927 = vunpack.c.l.b16 %v5800
      %v5928 = vunpack.c.l.b16 %v5801
      %v5929 = vunpack.c.l.b16 %v5802
      %v5930 = vunpack.c.l.b16 %v5803
      %v5931 = vunpack.c.l.b16 %v5804
      %v5932 = vunpack.c.l.b16 %v5805
      %v5933 = vunpack.c.l.b16 %v5806
      %v5934 = vunpack.c.l.b16 %v5807
      %v5935 = vunpack.c.l.b16 %v5808
      %v5936 = vunpack.c.l.b16 %v5809
      %v5937 = vunpack.c.l.b16 %v5810
      %v5938 = vunpack.c.l.b16 %v5811
      %v5939 = vunpack.c.l.b16 %v5812
      %v5940 = vpack.c.b16 %v5886, %v5885
      %v5941 = vpack.c.b16 %v5888, %v5887
      %v5942 = vpack.c.b16 %v5890, %v5889
      %v5943 = vpack.c.b16 %v5892, %v5891
      %v5944 = vpack.c.b16 %v5894, %v5893
      %v5945 = vpack.c.b16 %v5896, %v5895
      %v5946 = vpack.c.b16 %v5898, %v5897
      %v5947 = vpack.c.b16 %v5900, %v5899
      %v5948 = vpack.c.b16 %v5902, %v5901
      %v5949 = vpack.c.b16 %v5904, %v5903
      %v5950 = vpack.c.b16 %v5906, %v5905
      %v5951 = vpack.c.b16 %v5908, %v5907
      %v5952 = vpack.c.b16 %v5910, %v5909
      %v5953 = vpack.c.b16 %v5912, %v5911
      %v5954 = vpack.c.b16 %v5914, %v5913
      %v5955 = vpack.c.b16 %v5916, %v5915
      %v5956 = vpack.c.b16 %v5918, %v5917
      %v5957 = vpack.c.b16 %v5920, %v5919
      %v5958 = vpack.c.b16 %v5922, %v5921
      %v5959 = vpack.c.b16 %v5924, %v5923
      %v5960 = vpack.c.b16 %v5926, %v5925
      %v5961 = vpack.c.b16 %v5928, %v5927
      %v5962 = vpack.c.b16 %v5930, %v5929
      %v5963 = vpack.c.b16 %v5932, %v5931
      %v5964 = vpack.c.b16 %v5934, %v5933
      %v5965 = vpack.c.b16 %v5936, %v5935
      %v5966 = vpack.c.b16 %v5938, %v5937
      %v5967 = vpack.c.b16 %v5939, %v5939
      %v5969 = vshrl.u32 %v5940, 16
      %v5971 = vshll.u32 %v5940, 16
      %v5973 = vrot.slane %v5971, 1
      %v5974 = vor.u32 %v5969, %v5973
      %v5976 = vshll.u32 %v5941, 16
      %v5978 = vrot.slane %v5976, 1
      %v5979 = vsel %vm1829, %v5974, %v5978
      %v5980 = vshrl.u32 %v5941, 16
      %v5982 = vor.u32 %v5980, %v5978
      %v5984 = vshll.u32 %v5942, 16
      %v5986 = vrot.slane %v5984, 1
      %v5987 = vsel %vm1829, %v5982, %v5986
      %v5988 = vshrl.u32 %v5942, 16
      %v5990 = vor.u32 %v5988, %v5986
      %v5992 = vshll.u32 %v5943, 16
      %v5994 = vrot.slane %v5992, 1
      %v5995 = vsel %vm1829, %v5990, %v5994
      %v5996 = vshrl.u32 %v5943, 16
      %v5998 = vor.u32 %v5996, %v5994
      %v6000 = vshll.u32 %v5944, 16
      %v6002 = vrot.slane %v6000, 1
      %v6003 = vsel %vm1829, %v5998, %v6002
      %v6004 = vshrl.u32 %v5944, 16
      %v6006 = vor.u32 %v6004, %v6002
      %v6008 = vshll.u32 %v5945, 16
      %v6010 = vrot.slane %v6008, 1
      %v6011 = vsel %vm1829, %v6006, %v6010
      %v6012 = vshrl.u32 %v5945, 16
      %v6014 = vor.u32 %v6012, %v6010
      %v6016 = vshll.u32 %v5946, 16
      %v6018 = vrot.slane %v6016, 1
      %v6019 = vsel %vm1829, %v6014, %v6018
      %v6020 = vshrl.u32 %v5946, 16
      %v6022 = vor.u32 %v6020, %v6018
      %v6024 = vshll.u32 %v5947, 16
      %v6026 = vrot.slane %v6024, 1
      %v6027 = vsel %vm1829, %v6022, %v6026
      %v6028 = vshrl.u32 %v5947, 16
      %v6030 = vor.u32 %v6028, %v6026
      %v6032 = vshll.u32 %v5948, 16
      %v6034 = vrot.slane %v6032, 1
      %v6035 = vsel %vm1829, %v6030, %v6034
      %v6036 = vshrl.u32 %v5948, 16
      %v6038 = vor.u32 %v6036, %v6034
      %v6040 = vshll.u32 %v5949, 16
      %v6042 = vrot.slane %v6040, 1
      %v6043 = vsel %vm1829, %v6038, %v6042
      %v6044 = vshrl.u32 %v5949, 16
      %v6046 = vor.u32 %v6044, %v6042
      %v6048 = vshll.u32 %v5950, 16
      %v6050 = vrot.slane %v6048, 1
      %v6051 = vsel %vm1829, %v6046, %v6050
      %v6052 = vshrl.u32 %v5950, 16
      %v6054 = vor.u32 %v6052, %v6050
      %v6056 = vshll.u32 %v5951, 16
      %v6058 = vrot.slane %v6056, 1
      %v6059 = vsel %vm1829, %v6054, %v6058
      %v6060 = vshrl.u32 %v5951, 16
      %v6062 = vor.u32 %v6060, %v6058
      %v6064 = vshll.u32 %v5952, 16
      %v6066 = vrot.slane %v6064, 1
      %v6067 = vsel %vm1829, %v6062, %v6066
      %v6068 = vshrl.u32 %v5952, 16
      %v6070 = vor.u32 %v6068, %v6066
      %v6072 = vshll.u32 %v5953, 16
      %v6074 = vrot.slane %v6072, 1
      %v6075 = vsel %vm1829, %v6070, %v6074
      %v6076 = vshrl.u32 %v5953, 16
      %v6078 = vor.u32 %v6076, %v6074
      %v6080 = vshll.u32 %v5954, 16
      %v6082 = vrot.slane %v6080, 1
      %v6083 = vsel %vm1829, %v6078, %v6082
      %v6084 = vshrl.u32 %v5954, 16
      %v6086 = vor.u32 %v6084, %v6082
      %v6088 = vshll.u32 %v5955, 16
      %v6090 = vrot.slane %v6088, 1
      %v6091 = vsel %vm1829, %v6086, %v6090
      %v6092 = vshrl.u32 %v5955, 16
      %v6094 = vor.u32 %v6092, %v6090
      %v6096 = vshll.u32 %v5956, 16
      %v6098 = vrot.slane %v6096, 1
      %v6099 = vsel %vm1829, %v6094, %v6098
      %v6100 = vshrl.u32 %v5956, 16
      %v6102 = vor.u32 %v6100, %v6098
      %v6104 = vshll.u32 %v5957, 16
      %v6106 = vrot.slane %v6104, 1
      %v6107 = vsel %vm1829, %v6102, %v6106
      %v6108 = vshrl.u32 %v5957, 16
      %v6110 = vor.u32 %v6108, %v6106
      %v6112 = vshll.u32 %v5958, 16
      %v6114 = vrot.slane %v6112, 1
      %v6115 = vsel %vm1829, %v6110, %v6114
      %v6116 = vshrl.u32 %v5958, 16
      %v6118 = vor.u32 %v6116, %v6114
      %v6120 = vshll.u32 %v5959, 16
      %v6122 = vrot.slane %v6120, 1
      %v6123 = vsel %vm1829, %v6118, %v6122
      %v6124 = vshrl.u32 %v5959, 16
      %v6126 = vor.u32 %v6124, %v6122
      %v6128 = vshll.u32 %v5960, 16
      %v6130 = vrot.slane %v6128, 1
      %v6131 = vsel %vm1829, %v6126, %v6130
      %v6132 = vshrl.u32 %v5960, 16
      %v6134 = vor.u32 %v6132, %v6130
      %v6136 = vshll.u32 %v5961, 16
      %v6138 = vrot.slane %v6136, 1
      %v6139 = vsel %vm1829, %v6134, %v6138
      %v6140 = vshrl.u32 %v5961, 16
      %v6142 = vor.u32 %v6140, %v6138
      %v6144 = vshll.u32 %v5962, 16
      %v6146 = vrot.slane %v6144, 1
      %v6147 = vsel %vm1829, %v6142, %v6146
      %v6148 = vshrl.u32 %v5962, 16
      %v6150 = vor.u32 %v6148, %v6146
      %v6152 = vshll.u32 %v5963, 16
      %v6154 = vrot.slane %v6152, 1
      %v6155 = vsel %vm1829, %v6150, %v6154
      %v6156 = vshrl.u32 %v5963, 16
      %v6158 = vor.u32 %v6156, %v6154
      %v6160 = vshll.u32 %v5964, 16
      %v6162 = vrot.slane %v6160, 1
      %v6163 = vsel %vm1829, %v6158, %v6162
      %v6164 = vshrl.u32 %v5964, 16
      %v6166 = vor.u32 %v6164, %v6162
      %v6168 = vshll.u32 %v5965, 16
      %v6170 = vrot.slane %v6168, 1
      %v6171 = vsel %vm1829, %v6166, %v6170
      %v6172 = vshrl.u32 %v5965, 16
      %v6174 = vor.u32 %v6172, %v6170
      %v6176 = vshll.u32 %v5966, 16
      %v6178 = vrot.slane %v6176, 1
      %v6179 = vsel %vm1829, %v6174, %v6178
      %v6180 = vshrl.u32 %v5966, 16
      %v6182 = vor.u32 %v6180, %v6178
      %v6184 = vshll.u32 %v5967, 16
      %v6186 = vrot.slane %v6184, 1
      %v6187 = vsel %vm1829, %v6182, %v6186
      %v6231 = vunpack.c.l.b16 %v5814
      %v6232 = vunpack.c.l.b16 %v5815
      %v6233 = vunpack.c.l.b16 %v5816
      %v6234 = vunpack.c.l.b16 %v5817
      %v6235 = vunpack.c.l.b16 %v5818
      %v6236 = vunpack.c.l.b16 %v5819
      %v6237 = vunpack.c.l.b16 %v5820
      %v6238 = vunpack.c.l.b16 %v5821
      %v6239 = vunpack.c.l.b16 %v5822
      %v6240 = vunpack.c.l.b16 %v5823
      %v6241 = vunpack.c.l.b16 %v5824
      %v6242 = vunpack.c.l.b16 %v5825
      %v6243 = vunpack.c.l.b16 %v5826
      %v6244 = vunpack.c.l.b16 %v5827
      %v6245 = vunpack.c.l.b16 %v5828
      %v6246 = vunpack.c.l.b16 %v5829
      %v6247 = vpack.c.b16 %v6232, %v6231
      %v6248 = vpack.c.b16 %v6234, %v6233
      %v6249 = vpack.c.b16 %v6236, %v6235
      %v6250 = vpack.c.b16 %v6238, %v6237
      %v6251 = vpack.c.b16 %v6240, %v6239
      %v6252 = vpack.c.b16 %v6242, %v6241
      %v6253 = vpack.c.b16 %v6244, %v6243
      %v6254 = vpack.c.b16 %v6246, %v6245
      %6263 = vmatprep.subr.bf16.mxu0 0
      %6264 = vmatpush1.bf16.msra.mxu0 %v6254
      %6265 = vmatprep.subr.bf16.mxu0 0
      %6266 = vmatpush1.bf16.msra.mxu0 %v6253
      %6267 = vmatprep.subr.bf16.mxu0 0
      %6268 = vmatpush1.bf16.msra.mxu0 %v6252
      %6269 = vmatprep.subr.bf16.mxu0 0
      %6270 = vmatpush1.bf16.msra.mxu0 %v6251
      %6271 = vmatprep.subr.bf16.mxu0 0
      %6272 = vmatpush1.bf16.msra.mxu0 %v6250
      %6273 = vmatprep.subr.bf16.mxu0 0
      %6274 = vmatpush1.bf16.msra.mxu0 %v6249
      %6275 = vmatprep.subr.bf16.mxu0 0
      %6276 = vmatpush1.bf16.msra.mxu0 %v6248
      %6277 = vmatprep.subr.bf16.mxu0 0
      %6278 = vmatpush1.bf16.msra.mxu0 %v6247
      %6279 = vmatprep.subr.bf16.mxu0 0
      %6280 = vmatpush2.bf16.msra.mxu0 0
      %6281 = vmatprep.subr.bf16.mxu0 0
      %6282 = vmatpush2.bf16.msra.mxu0 0
      %6283 = vmatprep.subr.bf16.mxu0 0
      %6284 = vmatpush2.bf16.msra.mxu0 0
      %6285 = vmatprep.subr.bf16.mxu0 0
      %6286 = vmatpush2.bf16.msra.mxu0 0
      %6287 = vmatprep.subr.bf16.mxu0 0
      %6288 = vmatpush2.bf16.msra.mxu0 0
      %6289 = vmatprep.subr.bf16.mxu0 0
      %6290 = vmatpush2.bf16.msra.mxu0 0
      %6291 = vmatprep.subr.bf16.mxu0 0
      %6292 = vmatpush2.bf16.msra.mxu0 0
      %6293 = vmatprep.subr.bf16.mxu0 0
      %6294 = vmatpush2.bf16.msra.mxu0 0
      %6295 = vmatprep.mubr.bf16.mxu0 0
      %6296 = vmatmul.mubr.bf16.gmra.mxu0 %v5979
      %v6297 = vpop.f32.mrf.mxu0
      %v6298 = vadd.f32 0.0, %v6297
      %v6299 = vpop.f32.mrf.mxu0
      %v6300 = vpop.f32.mrf.mxu0
      %v6301 = vadd.f32 0.0, %v6300
      %v6302 = vpop.f32.mrf.mxu0
      %6303 = vmatprep.mubr.bf16.mxu0 0
      %6304 = vmatmul.mubr.bf16.gmra.mxu0 %v5987
      %v6305 = vpop.f32.mrf.mxu0
      %v6306 = vadd.f32 0.0, %v6305
      %v6307 = vpop.f32.mrf.mxu0
      %v6308 = vpop.f32.mrf.mxu0
      %v6309 = vadd.f32 0.0, %v6308
      %v6310 = vpop.f32.mrf.mxu0
      %6311 = vmatprep.mubr.bf16.mxu0 0
      %6312 = vmatmul.mubr.bf16.gmra.mxu0 %v5995
      %v6313 = vpop.f32.mrf.mxu0
      %v6314 = vadd.f32 0.0, %v6313
      %v6315 = vpop.f32.mrf.mxu0
      %v6316 = vpop.f32.mrf.mxu0
      %v6317 = vadd.f32 0.0, %v6316
      %v6318 = vpop.f32.mrf.mxu0
      %6319 = vmatprep.mubr.bf16.mxu0 0
      %6320 = vmatmul.mubr.bf16.gmra.mxu0 %v6003
      %v6321 = vpop.f32.mrf.mxu0
      %v6322 = vadd.f32 0.0, %v6321
      %v6323 = vpop.f32.mrf.mxu0
      %v6324 = vpop.f32.mrf.mxu0
      %v6325 = vadd.f32 0.0, %v6324
      %v6326 = vpop.f32.mrf.mxu0
      %6327 = vmatprep.mubr.bf16.mxu0 0
      %6328 = vmatmul.mubr.bf16.gmra.mxu0 %v6011
      %v6329 = vpop.f32.mrf.mxu0
      %v6330 = vadd.f32 0.0, %v6329
      %v6331 = vpop.f32.mrf.mxu0
      %v6332 = vpop.f32.mrf.mxu0
      %v6333 = vadd.f32 0.0, %v6332
      %v6334 = vpop.f32.mrf.mxu0
      %6335 = vmatprep.mubr.bf16.mxu0 0
      %6336 = vmatmul.mubr.bf16.gmra.mxu0 %v6019
      %v6337 = vpop.f32.mrf.mxu0
      %v6338 = vadd.f32 0.0, %v6337
      %v6339 = vpop.f32.mrf.mxu0
      %v6340 = vpop.f32.mrf.mxu0
      %v6341 = vadd.f32 0.0, %v6340
      %v6342 = vpop.f32.mrf.mxu0
      %6343 = vmatprep.mubr.bf16.mxu0 0
      %6344 = vmatmul.mubr.bf16.gmra.mxu0 %v6027
      %v6345 = vpop.f32.mrf.mxu0
      %v6346 = vadd.f32 0.0, %v6345
      %v6347 = vpop.f32.mrf.mxu0
      %v6348 = vpop.f32.mrf.mxu0
      %v6349 = vadd.f32 0.0, %v6348
      %v6350 = vpop.f32.mrf.mxu0
      %6351 = vmatprep.mubr.bf16.mxu0 0
      %6352 = vmatmul.mubr.bf16.gmra.mxu0 %v6035
      %v6353 = vpop.f32.mrf.mxu0
      %v6354 = vadd.f32 0.0, %v6353
      %v6355 = vpop.f32.mrf.mxu0
      %v6356 = vpop.f32.mrf.mxu0
      %v6357 = vadd.f32 0.0, %v6356
      %v6358 = vpop.f32.mrf.mxu0
      %6359 = vmatprep.mubr.bf16.mxu0 0
      %6360 = vmatmul.mubr.bf16.gmra.mxu0 %v6043
      %v6361 = vpop.f32.mrf.mxu0
      %v6362 = vadd.f32 0.0, %v6361
      %v6363 = vpop.f32.mrf.mxu0
      %v6364 = vpop.f32.mrf.mxu0
      %v6365 = vadd.f32 0.0, %v6364
      %v6366 = vpop.f32.mrf.mxu0
      %6367 = vmatprep.mubr.bf16.mxu0 0
      %6368 = vmatmul.mubr.bf16.gmra.mxu0 %v6051
      %v6369 = vpop.f32.mrf.mxu0
      %v6370 = vadd.f32 0.0, %v6369
      %v6371 = vpop.f32.mrf.mxu0
      %v6372 = vpop.f32.mrf.mxu0
      %v6373 = vadd.f32 0.0, %v6372
      %v6374 = vpop.f32.mrf.mxu0
      %6375 = vmatprep.mubr.bf16.mxu0 0
      %6376 = vmatmul.mubr.bf16.gmra.mxu0 %v6059
      %v6377 = vpop.f32.mrf.mxu0
      %v6378 = vadd.f32 0.0, %v6377
      %v6379 = vpop.f32.mrf.mxu0
      %v6380 = vpop.f32.mrf.mxu0
      %v6381 = vadd.f32 0.0, %v6380
      %v6382 = vpop.f32.mrf.mxu0
      %6383 = vmatprep.mubr.bf16.mxu0 0
      %6384 = vmatmul.mubr.bf16.gmra.mxu0 %v6067
      %v6385 = vpop.f32.mrf.mxu0
      %v6386 = vadd.f32 0.0, %v6385
      %v6387 = vpop.f32.mrf.mxu0
      %v6388 = vpop.f32.mrf.mxu0
      %v6389 = vadd.f32 0.0, %v6388
      %v6390 = vpop.f32.mrf.mxu0
      %6391 = vmatprep.mubr.bf16.mxu0 0
      %6392 = vmatmul.mubr.bf16.gmra.mxu0 %v6075
      %v6393 = vpop.f32.mrf.mxu0
      %v6394 = vadd.f32 0.0, %v6393
      %v6395 = vpop.f32.mrf.mxu0
      %v6396 = vpop.f32.mrf.mxu0
      %v6397 = vadd.f32 0.0, %v6396
      %v6398 = vpop.f32.mrf.mxu0
      %6399 = vmatprep.mubr.bf16.mxu0 0
      %6400 = vmatmul.mubr.bf16.gmra.mxu0 %v6083
      %v6401 = vpop.f32.mrf.mxu0
      %v6402 = vadd.f32 0.0, %v6401
      %v6403 = vpop.f32.mrf.mxu0
      %v6404 = vpop.f32.mrf.mxu0
      %v6405 = vadd.f32 0.0, %v6404
      %v6406 = vpop.f32.mrf.mxu0
      %6407 = vmatprep.mubr.bf16.mxu0 0
      %6408 = vmatmul.mubr.bf16.gmra.mxu0 %v6091
      %v6409 = vpop.f32.mrf.mxu0
      %v6410 = vadd.f32 0.0, %v6409
      %v6411 = vpop.f32.mrf.mxu0
      %v6412 = vpop.f32.mrf.mxu0
      %v6413 = vadd.f32 0.0, %v6412
      %v6414 = vpop.f32.mrf.mxu0
      %6415 = vmatprep.mubr.bf16.mxu0 0
      %6416 = vmatmul.mubr.bf16.gmra.mxu0 %v6099
      %v6417 = vpop.f32.mrf.mxu0
      %v6418 = vadd.f32 0.0, %v6417
      %v6419 = vpop.f32.mrf.mxu0
      %v6420 = vpop.f32.mrf.mxu0
      %v6421 = vadd.f32 0.0, %v6420
      %v6422 = vpop.f32.mrf.mxu0
      %6423 = vmatprep.mubr.bf16.mxu0 0
      %6424 = vmatmul.mubr.bf16.gmra.mxu0 %v6107
      %v6425 = vpop.f32.mrf.mxu0
      %v6426 = vadd.f32 0.0, %v6425
      %v6427 = vpop.f32.mrf.mxu0
      %v6428 = vpop.f32.mrf.mxu0
      %v6429 = vadd.f32 0.0, %v6428
      %v6430 = vpop.f32.mrf.mxu0
      %6431 = vmatprep.mubr.bf16.mxu0 0
      %6432 = vmatmul.mubr.bf16.gmra.mxu0 %v6115
      %v6433 = vpop.f32.mrf.mxu0
      %v6434 = vadd.f32 0.0, %v6433
      %v6435 = vpop.f32.mrf.mxu0
      %v6436 = vpop.f32.mrf.mxu0
      %v6437 = vadd.f32 0.0, %v6436
      %v6438 = vpop.f32.mrf.mxu0
      %6439 = vmatprep.mubr.bf16.mxu0 0
      %6440 = vmatmul.mubr.bf16.gmra.mxu0 %v6123
      %v6441 = vpop.f32.mrf.mxu0
      %v6442 = vadd.f32 0.0, %v6441
      %v6443 = vpop.f32.mrf.mxu0
      %v6444 = vpop.f32.mrf.mxu0
      %v6445 = vadd.f32 0.0, %v6444
      %v6446 = vpop.f32.mrf.mxu0
      %6447 = vmatprep.mubr.bf16.mxu0 0
      %6448 = vmatmul.mubr.bf16.gmra.mxu0 %v6131
      %v6449 = vpop.f32.mrf.mxu0
      %v6450 = vadd.f32 0.0, %v6449
      %v6451 = vpop.f32.mrf.mxu0
      %v6452 = vpop.f32.mrf.mxu0
      %v6453 = vadd.f32 0.0, %v6452
      %v6454 = vpop.f32.mrf.mxu0
      %6455 = vmatprep.mubr.bf16.mxu0 0
      %6456 = vmatmul.mubr.bf16.gmra.mxu0 %v6139
      %v6457 = vpop.f32.mrf.mxu0
      %v6458 = vadd.f32 0.0, %v6457
      %v6459 = vpop.f32.mrf.mxu0
      %v6460 = vpop.f32.mrf.mxu0
      %v6461 = vadd.f32 0.0, %v6460
      %v6462 = vpop.f32.mrf.mxu0
      %6463 = vmatprep.mubr.bf16.mxu0 0
      %6464 = vmatmul.mubr.bf16.gmra.mxu0 %v6147
      %v6465 = vpop.f32.mrf.mxu0
      %v6466 = vadd.f32 0.0, %v6465
      %v6467 = vpop.f32.mrf.mxu0
      %v6468 = vpop.f32.mrf.mxu0
      %v6469 = vadd.f32 0.0, %v6468
      %v6470 = vpop.f32.mrf.mxu0
      %6471 = vmatprep.mubr.bf16.mxu0 0
      %6472 = vmatmul.mubr.bf16.gmra.mxu0 %v6155
      %v6473 = vpop.f32.mrf.mxu0
      %v6474 = vadd.f32 0.0, %v6473
      %v6475 = vpop.f32.mrf.mxu0
      %v6476 = vpop.f32.mrf.mxu0
      %v6477 = vadd.f32 0.0, %v6476
      %v6478 = vpop.f32.mrf.mxu0
      %6479 = vmatprep.mubr.bf16.mxu0 0
      %6480 = vmatmul.mubr.bf16.gmra.mxu0 %v6163
      %v6481 = vpop.f32.mrf.mxu0
      %v6482 = vadd.f32 0.0, %v6481
      %v6483 = vpop.f32.mrf.mxu0
      %v6484 = vpop.f32.mrf.mxu0
      %v6485 = vadd.f32 0.0, %v6484
      %v6486 = vpop.f32.mrf.mxu0
      %6487 = vmatprep.mubr.bf16.mxu0 0
      %6488 = vmatmul.mubr.bf16.gmra.mxu0 %v6171
      %v6489 = vpop.f32.mrf.mxu0
      %v6490 = vadd.f32 0.0, %v6489
      %v6491 = vpop.f32.mrf.mxu0
      %v6492 = vpop.f32.mrf.mxu0
      %v6493 = vadd.f32 0.0, %v6492
      %v6494 = vpop.f32.mrf.mxu0
      %6495 = vmatprep.mubr.bf16.mxu0 0
      %6496 = vmatmul.mubr.bf16.gmra.mxu0 %v6179
      %v6497 = vpop.f32.mrf.mxu0
      %v6498 = vadd.f32 0.0, %v6497
      %v6499 = vpop.f32.mrf.mxu0
      %v6500 = vpop.f32.mrf.mxu0
      %v6501 = vadd.f32 0.0, %v6500
      %v6502 = vpop.f32.mrf.mxu0
      %6503 = vmatprep.mubr.bf16.mxu0 0
      %6504 = vmatmul.mubr.bf16.gmra.mxu0 %v6187
      %v6505 = vpop.f32.mrf.mxu0
      %v6506 = vadd.f32 0.0, %v6505
      %v6507 = vpop.f32.mrf.mxu0
      %v6508 = vpop.f32.mrf.mxu0
      %v6509 = vadd.f32 0.0, %v6508
      %v6510 = vpop.f32.mrf.mxu0
      %6511 = vdwg.mxu0
      %v6512 = vadd.f32 %v5704, %v6298
      %v6513 = vadd.f32 %v5705, %v6301
      %v6514 = vadd.f32 %v5706, %v6306
      %v6515 = vadd.f32 %v5707, %v6309
      %v6516 = vadd.f32 %v5708, %v6314
      %v6517 = vadd.f32 %v5709, %v6317
      %v6518 = vadd.f32 %v5710, %v6322
      %v6519 = vadd.f32 %v5711, %v6325
      %v6520 = vadd.f32 %v5712, %v6330
      %v6521 = vadd.f32 %v5713, %v6333
      %v6522 = vadd.f32 %v5714, %v6338
      %v6523 = vadd.f32 %v5715, %v6341
      %v6524 = vadd.f32 %v5716, %v6346
      %v6525 = vadd.f32 %v5717, %v6349
      %v6526 = vadd.f32 %v5718, %v6354
      %v6527 = vadd.f32 %v5719, %v6357
      %v6528 = vadd.f32 %v5720, %v6362
      %v6529 = vadd.f32 %v5721, %v6365
      %v6530 = vadd.f32 %v5722, %v6370
      %v6531 = vadd.f32 %v5723, %v6373
      %v6532 = vadd.f32 %v5724, %v6378
      %v6533 = vadd.f32 %v5725, %v6381
      %v6534 = vadd.f32 %v5726, %v6386
      %v6535 = vadd.f32 %v5727, %v6389
      %v6536 = vadd.f32 %v5728, %v6394
      %v6537 = vadd.f32 %v5729, %v6397
      %v6538 = vadd.f32 %v5730, %v6402
      %v6539 = vadd.f32 %v5731, %v6405
      %v6540 = vadd.f32 %v5732, %v6410
      %v6541 = vadd.f32 %v5733, %v6413
      %v6542 = vadd.f32 %v5734, %v6418
      %v6543 = vadd.f32 %v5735, %v6421
      %v6544 = vadd.f32 %v5736, %v6426
      %v6545 = vadd.f32 %v5737, %v6429
      %v6546 = vadd.f32 %v5738, %v6434
      %v6547 = vadd.f32 %v5739, %v6437
      %v6548 = vadd.f32 %v5740, %v6442
      %v6549 = vadd.f32 %v5741, %v6445
      %v6550 = vadd.f32 %v5742, %v6450
      %v6551 = vadd.f32 %v5743, %v6453
      %v6552 = vadd.f32 %v5744, %v6458
      %v6553 = vadd.f32 %v5745, %v6461
      %v6554 = vadd.f32 %v5746, %v6466
      %v6555 = vadd.f32 %v5747, %v6469
      %v6556 = vadd.f32 %v5748, %v6474
      %v6557 = vadd.f32 %v5749, %v6477
      %v6558 = vadd.f32 %v5750, %v6482
      %v6559 = vadd.f32 %v5751, %v6485
      %v6560 = vadd.f32 %v5752, %v6490
      %v6561 = vadd.f32 %v5753, %v6493
      %v6562 = vadd.f32 %v5754, %v6498
      %v6563 = vadd.f32 %v5755, %v6501
      %v6564 = vadd.f32 %v5756, %v6506
      %v6565 = vadd.f32 %v5757, %v6509
      %v6566 = vld [vmem:[%s2] sm:$0x1]
      %v6568 = vlaneseq
      %v6569 = vshrl.u32 %v6568, 7
      %v6570 = vsub.s32 0, %v6569
      %v6571 = vrot.slane %v6566, %v6570
      %v6573 = vadd.f32 %v6512, %v6571
      %v6574 = vadd.f32 %v6513, %v6571
      %v6575 = vadd.f32 %v6514, %v6571
      %v6576 = vadd.f32 %v6515, %v6571
      %v6577 = vadd.f32 %v6516, %v6571
      %v6578 = vadd.f32 %v6517, %v6571
      %v6579 = vadd.f32 %v6518, %v6571
      %v6580 = vadd.f32 %v6519, %v6571
      %v6581 = vadd.f32 %v6520, %v6571
      %v6582 = vadd.f32 %v6521, %v6571
      %v6583 = vadd.f32 %v6522, %v6571
      %v6584 = vadd.f32 %v6523, %v6571
      %v6585 = vadd.f32 %v6524, %v6571
      %v6586 = vadd.f32 %v6525, %v6571
      %v6587 = vadd.f32 %v6526, %v6571
      %v6588 = vadd.f32 %v6527, %v6571
      %v6589 = vadd.f32 %v6528, %v6571
      %v6590 = vadd.f32 %v6529, %v6571
      %v6591 = vadd.f32 %v6530, %v6571
      %v6592 = vadd.f32 %v6531, %v6571
      %v6593 = vadd.f32 %v6532, %v6571
      %v6594 = vadd.f32 %v6533, %v6571
      %v6595 = vadd.f32 %v6534, %v6571
      %v6596 = vadd.f32 %v6535, %v6571
      %v6597 = vadd.f32 %v6536, %v6571
      %v6598 = vadd.f32 %v6537, %v6571
      %v6599 = vadd.f32 %v6538, %v6571
      %v6600 = vadd.f32 %v6539, %v6571
      %v6601 = vadd.f32 %v6540, %v6571
      %v6602 = vadd.f32 %v6541, %v6571
      %v6603 = vadd.f32 %v6542, %v6571
      %v6604 = vadd.f32 %v6543, %v6571
      %v6605 = vadd.f32 %v6544, %v6571
      %v6606 = vadd.f32 %v6545, %v6571
      %v6607 = vadd.f32 %v6546, %v6571
      %v6608 = vadd.f32 %v6547, %v6571
      %v6609 = vadd.f32 %v6548, %v6571
      %v6610 = vadd.f32 %v6549, %v6571
      %v6611 = vadd.f32 %v6550, %v6571
      %v6612 = vadd.f32 %v6551, %v6571
      %v6613 = vadd.f32 %v6552, %v6571
      %v6614 = vadd.f32 %v6553, %v6571
      %v6615 = vadd.f32 %v6554, %v6571
      %v6616 = vadd.f32 %v6555, %v6571
      %v6617 = vadd.f32 %v6556, %v6571
      %v6618 = vadd.f32 %v6557, %v6571
      %v6619 = vadd.f32 %v6558, %v6571
      %v6620 = vadd.f32 %v6559, %v6571
      %v6621 = vadd.f32 %v6560, %v6571
      %v6622 = vadd.f32 %v6561, %v6571
      %v6623 = vadd.f32 %v6562, %v6571
      %v6624 = vadd.f32 %v6563, %v6571
      %v6625 = vadd.f32 %v6564, %v6571
      %v6626 = vadd.f32 %v6565, %v6571
      %v6627 = vmax.f32 %v6573, 0.0
      %v6628 = vmax.f32 %v6574, 0.0
      %v6629 = vmax.f32 %v6575, 0.0
      %v6630 = vmax.f32 %v6576, 0.0
      %v6631 = vmax.f32 %v6577, 0.0
      %v6632 = vmax.f32 %v6578, 0.0
      %v6633 = vmax.f32 %v6579, 0.0
      %v6634 = vmax.f32 %v6580, 0.0
      %v6635 = vmax.f32 %v6581, 0.0
      %v6636 = vmax.f32 %v6582, 0.0
      %v6637 = vmax.f32 %v6583, 0.0
      %v6638 = vmax.f32 %v6584, 0.0
      %v6639 = vmax.f32 %v6585, 0.0
      %v6640 = vmax.f32 %v6586, 0.0
      %v6641 = vmax.f32 %v6587, 0.0
      %v6642 = vmax.f32 %v6588, 0.0
      %v6643 = vmax.f32 %v6589, 0.0
      %v6644 = vmax.f32 %v6590, 0.0
      %v6645 = vmax.f32 %v6591, 0.0
      %v6646 = vmax.f32 %v6592, 0.0
      %v6647 = vmax.f32 %v6593, 0.0
      %v6648 = vmax.f32 %v6594, 0.0
      %v6649 = vmax.f32 %v6595, 0.0
      %v6650 = vmax.f32 %v6596, 0.0
      %v6651 = vmax.f32 %v6597, 0.0
      %v6652 = vmax.f32 %v6598, 0.0
      %v6653 = vmax.f32 %v6599, 0.0
      %v6654 = vmax.f32 %v6600, 0.0
      %v6655 = vmax.f32 %v6601, 0.0
      %v6656 = vmax.f32 %v6602, 0.0
      %v6657 = vmax.f32 %v6603, 0.0
      %v6658 = vmax.f32 %v6604, 0.0
      %v6659 = vmax.f32 %v6605, 0.0
      %v6660 = vmax.f32 %v6606, 0.0
      %v6661 = vmax.f32 %v6607, 0.0
      %v6662 = vmax.f32 %v6608, 0.0
      %v6663 = vmax.f32 %v6609, 0.0
      %v6664 = vmax.f32 %v6610, 0.0
      %v6665 = vmax.f32 %v6611, 0.0
      %v6666 = vmax.f32 %v6612, 0.0
      %v6667 = vmax.f32 %v6613, 0.0
      %v6668 = vmax.f32 %v6614, 0.0
      %v6669 = vmax.f32 %v6615, 0.0
      %v6670 = vmax.f32 %v6616, 0.0
      %v6671 = vmax.f32 %v6617, 0.0
      %v6672 = vmax.f32 %v6618, 0.0
      %v6673 = vmax.f32 %v6619, 0.0
      %v6674 = vmax.f32 %v6620, 0.0
      %v6675 = vmax.f32 %v6621, 0.0
      %v6676 = vmax.f32 %v6622, 0.0
      %v6677 = vmax.f32 %v6623, 0.0
      %v6678 = vmax.f32 %v6624, 0.0
      %v6679 = vmax.f32 %v6625, 0.0
      %v6680 = vmax.f32 %v6626, 0.0
      %v6681 = vld [vmem:[%s194] sm:$0xff]
      %v6682 = vld [vmem:[%s194 + $0x8] sm:$0xff]
      %v6683 = vld [vmem:[%s194 + $0x10] sm:$0xff]
      %v6684 = vld [vmem:[%s194 + $0x18] sm:$0xff]
      %v6685 = vld [vmem:[%s194 + $0x20] sm:$0xff]
      %v6686 = vld [vmem:[%s194 + $0x28] sm:$0xff]
      %v6687 = vld [vmem:[%s194 + $0x30] sm:$0xff]
      %v6688 = vld [vmem:[%s194 + $0x38] sm:$0xff]
      %v6689 = vld [vmem:[%s194 + $0x40] sm:$0xff]
      %v6690 = vld [vmem:[%s194 + $0x48] sm:$0xff]
      %v6691 = vld [vmem:[%s194 + $0x50] sm:$0xff]
      %v6692 = vld [vmem:[%s194 + $0x58] sm:$0xff]
      %v6693 = vld [vmem:[%s194 + $0x60] sm:$0xff]
      %v6694 = vld [vmem:[%s194 + $0x68] sm:$0xff]
      %v6695 = vld [vmem:[%s194 + $0x70] sm:$0xff]
      %v6696 = vld [vmem:[%s194 + $0x78] sm:$0xff]
      %v6697 = vld [vmem:[%s194 + $0x80] sm:$0xff]
      %v6698 = vld [vmem:[%s194 + $0x88] sm:$0xff]
      %v6699 = vld [vmem:[%s194 + $0x90] sm:$0xff]
      %v6700 = vld [vmem:[%s194 + $0x98] sm:$0xff]
      %v6701 = vld [vmem:[%s194 + $0xa0] sm:$0xff]
      %v6702 = vld [vmem:[%s194 + $0xa8] sm:$0xff]
      %v6703 = vld [vmem:[%s194 + $0xb0] sm:$0xff]
      %v6704 = vld [vmem:[%s194 + $0xb8] sm:$0xff]
      %v6705 = vld [vmem:[%s194 + $0xc0] sm:$0xff]
      %v6706 = vld [vmem:[%s194 + $0xc8] sm:$0xff]
      %v6707 = vld [vmem:[%s194 + $0xd0] sm:$0xff]
      %v6708 = vld [vmem:[%s194 + $0xd8] sm:$0xff]
      %v6709 = vld [vmem:[%s194 + $0xe0] sm:$0xff]
      %v6710 = vld [vmem:[%s194 + $0xe8] sm:$0xff]
      %v6711 = vld [vmem:[%s194 + $0xf0] sm:$0xff]
      %v6712 = vld [vmem:[%s194 + $0xf8] sm:$0xff]
      %v6713 = vld [vmem:[%s194 + $0x100] sm:$0xff]
      %v6714 = vld [vmem:[%s194 + $0x108] sm:$0xff]
      %v6715 = vld [vmem:[%s194 + $0x110] sm:$0xff]
      %v6716 = vld [vmem:[%s194 + $0x118] sm:$0xff]
      %v6717 = vld [vmem:[%s194 + $0x120] sm:$0xff]
      %v6718 = vld [vmem:[%s194 + $0x128] sm:$0xff]
      %v6719 = vld [vmem:[%s194 + $0x130] sm:$0xff]
      %v6720 = vld [vmem:[%s194 + $0x138] sm:$0xff]
      %v6721 = vld [vmem:[%s194 + $0x140] sm:$0xff]
      %v6722 = vld [vmem:[%s194 + $0x148] sm:$0xff]
      %v6723 = vld [vmem:[%s194 + $0x150] sm:$0xff]
      %v6724 = vld [vmem:[%s194 + $0x158] sm:$0xff]
      %v6725 = vld [vmem:[%s194 + $0x160] sm:$0xff]
      %v6726 = vld [vmem:[%s194 + $0x168] sm:$0xff]
      %v6727 = vld [vmem:[%s194 + $0x170] sm:$0xff]
      %v6728 = vld [vmem:[%s194 + $0x178] sm:$0xff]
      %v6729 = vld [vmem:[%s194 + $0x180] sm:$0xff]
      %v6730 = vld [vmem:[%s194 + $0x188] sm:$0xff]
      %v6731 = vld [vmem:[%s194 + $0x190] sm:$0xff]
      %v6732 = vld [vmem:[%s194 + $0x198] sm:$0xff]
      %v6733 = vld [vmem:[%s194 + $0x1a0] sm:$0xff]
      %v6734 = vld [vmem:[%s194 + $0x1a8] sm:$0xff]
      %vm6735 = vcmp.gt.f32.partialorder %v6681, 0.0
      %vm6736 = vcmp.gt.f32.partialorder %v6682, 0.0
      %vm6737 = vcmp.gt.f32.partialorder %v6683, 0.0
      %vm6738 = vcmp.gt.f32.partialorder %v6684, 0.0
      %vm6739 = vcmp.gt.f32.partialorder %v6685, 0.0
      %vm6740 = vcmp.gt.f32.partialorder %v6686, 0.0
      %vm6741 = vcmp.gt.f32.partialorder %v6687, 0.0
      %vm6742 = vcmp.gt.f32.partialorder %v6688, 0.0
      %vm6743 = vcmp.gt.f32.partialorder %v6689, 0.0
      %vm6744 = vcmp.gt.f32.partialorder %v6690, 0.0
      %vm6745 = vcmp.gt.f32.partialorder %v6691, 0.0
      %vm6746 = vcmp.gt.f32.partialorder %v6692, 0.0
      %vm6747 = vcmp.gt.f32.partialorder %v6693, 0.0
      %vm6748 = vcmp.gt.f32.partialorder %v6694, 0.0
      %vm6749 = vcmp.gt.f32.partialorder %v6695, 0.0
      %vm6750 = vcmp.gt.f32.partialorder %v6696, 0.0
      %vm6751 = vcmp.gt.f32.partialorder %v6697, 0.0
      %vm6752 = vcmp.gt.f32.partialorder %v6698, 0.0
      %vm6753 = vcmp.gt.f32.partialorder %v6699, 0.0
      %vm6754 = vcmp.gt.f32.partialorder %v6700, 0.0
      %vm6755 = vcmp.gt.f32.partialorder %v6701, 0.0
      %vm6756 = vcmp.gt.f32.partialorder %v6702, 0.0
      %vm6757 = vcmp.gt.f32.partialorder %v6703, 0.0
      %vm6758 = vcmp.gt.f32.partialorder %v6704, 0.0
      %vm6759 = vcmp.gt.f32.partialorder %v6705, 0.0
      %vm6760 = vcmp.gt.f32.partialorder %v6706, 0.0
      %vm6761 = vcmp.gt.f32.partialorder %v6707, 0.0
      %vm6762 = vcmp.gt.f32.partialorder %v6708, 0.0
      %vm6763 = vcmp.gt.f32.partialorder %v6709, 0.0
      %vm6764 = vcmp.gt.f32.partialorder %v6710, 0.0
      %vm6765 = vcmp.gt.f32.partialorder %v6711, 0.0
      %vm6766 = vcmp.gt.f32.partialorder %v6712, 0.0
      %vm6767 = vcmp.gt.f32.partialorder %v6713, 0.0
      %vm6768 = vcmp.gt.f32.partialorder %v6714, 0.0
      %vm6769 = vcmp.gt.f32.partialorder %v6715, 0.0
      %vm6770 = vcmp.gt.f32.partialorder %v6716, 0.0
      %vm6771 = vcmp.gt.f32.partialorder %v6717, 0.0
      %vm6772 = vcmp.gt.f32.partialorder %v6718, 0.0
      %vm6773 = vcmp.gt.f32.partialorder %v6719, 0.0
      %vm6774 = vcmp.gt.f32.partialorder %v6720, 0.0
      %vm6775 = vcmp.gt.f32.partialorder %v6721, 0.0
      %vm6776 = vcmp.gt.f32.partialorder %v6722, 0.0
      %vm6777 = vcmp.gt.f32.partialorder %v6723, 0.0
      %vm6778 = vcmp.gt.f32.partialorder %v6724, 0.0
      %vm6779 = vcmp.gt.f32.partialorder %v6725, 0.0
      %vm6780 = vcmp.gt.f32.partialorder %v6726, 0.0
      %vm6781 = vcmp.gt.f32.partialorder %v6727, 0.0
      %vm6782 = vcmp.gt.f32.partialorder %v6728, 0.0
      %vm6783 = vcmp.gt.f32.partialorder %v6729, 0.0
      %vm6784 = vcmp.gt.f32.partialorder %v6730, 0.0
      %vm6785 = vcmp.gt.f32.partialorder %v6731, 0.0
      %vm6786 = vcmp.gt.f32.partialorder %v6732, 0.0
      %vm6787 = vcmp.gt.f32.partialorder %v6733, 0.0
      %vm6788 = vcmp.gt.f32.partialorder %v6734, 0.0
      %v6789 = vsel %vm6735, 1, 0
      %v6790 = vsel %vm6736, 1, 0
      %v6791 = vsel %vm6737, 1, 0
      %v6792 = vsel %vm6738, 1, 0
      %v6793 = vsel %vm6739, 1, 0
      %v6794 = vsel %vm6740, 1, 0
      %v6795 = vsel %vm6741, 1, 0
      %v6796 = vsel %vm6742, 1, 0
      %v6797 = vsel %vm6743, 1, 0
      %v6798 = vsel %vm6744, 1, 0
      %v6799 = vsel %vm6745, 1, 0
      %v6800 = vsel %vm6746, 1, 0
      %v6801 = vsel %vm6747, 1, 0
      %v6802 = vsel %vm6748, 1, 0
      %v6803 = vsel %vm6749, 1, 0
      %v6804 = vsel %vm6750, 1, 0
      %v6805 = vsel %vm6751, 1, 0
      %v6806 = vsel %vm6752, 1, 0
      %v6807 = vsel %vm6753, 1, 0
      %v6808 = vsel %vm6754, 1, 0
      %v6809 = vsel %vm6755, 1, 0
      %v6810 = vsel %vm6756, 1, 0
      %v6811 = vsel %vm6757, 1, 0
      %v6812 = vsel %vm6758, 1, 0
      %v6813 = vsel %vm6759, 1, 0
      %v6814 = vsel %vm6760, 1, 0
      %v6815 = vsel %vm6761, 1, 0
      %v6816 = vsel %vm6762, 1, 0
      %v6817 = vsel %vm6763, 1, 0
      %v6818 = vsel %vm6764, 1, 0
      %v6819 = vsel %vm6765, 1, 0
      %v6820 = vsel %vm6766, 1, 0
      %v6821 = vsel %vm6767, 1, 0
      %v6822 = vsel %vm6768, 1, 0
      %v6823 = vsel %vm6769, 1, 0
      %v6824 = vsel %vm6770, 1, 0
      %v6825 = vsel %vm6771, 1, 0
      %v6826 = vsel %vm6772, 1, 0
      %v6827 = vsel %vm6773, 1, 0
      %v6828 = vsel %vm6774, 1, 0
      %v6829 = vsel %vm6775, 1, 0
      %v6830 = vsel %vm6776, 1, 0
      %v6831 = vsel %vm6777, 1, 0
      %v6832 = vsel %vm6778, 1, 0
      %v6833 = vsel %vm6779, 1, 0
      %v6834 = vsel %vm6780, 1, 0
      %v6835 = vsel %vm6781, 1, 0
      %v6836 = vsel %vm6782, 1, 0
      %v6837 = vsel %vm6783, 1, 0
      %v6838 = vsel %vm6784, 1, 0
      %v6839 = vsel %vm6785, 1, 0
      %v6840 = vsel %vm6786, 1, 0
      %v6841 = vsel %vm6787, 1, 0
      %v6842 = vsel %vm6788, 1, 0
      %6843 = vset.pattern.permute.xlu0 0
      %6844 = vperm.xlu0 %6843, %v6789
      %v6845 = vpop.permute.xlu0 %6844
      %6846 = vset.pattern.permute.xlu0 0
      %6847 = vperm.xlu0 %6846, %v6790
      %v6848 = vpop.permute.xlu0 %6847
      %6849 = vset.pattern.permute.xlu0 0
      %6850 = vperm.xlu0 %6849, %v6791
      %v6851 = vpop.permute.xlu0 %6850
      %6852 = vset.pattern.permute.xlu0 0
      %6853 = vperm.xlu0 %6852, %v6792
      %v6854 = vpop.permute.xlu0 %6853
      %6855 = vset.pattern.permute.xlu0 0
      %6856 = vperm.xlu0 %6855, %v6793
      %v6857 = vpop.permute.xlu0 %6856
      %6858 = vset.pattern.permute.xlu0 0
      %6859 = vperm.xlu0 %6858, %v6794
      %v6860 = vpop.permute.xlu0 %6859
      %6861 = vset.pattern.permute.xlu0 0
      %6862 = vperm.xlu0 %6861, %v6795
      %v6863 = vpop.permute.xlu0 %6862
      %6864 = vset.pattern.permute.xlu0 0
      %6865 = vperm.xlu0 %6864, %v6796
      %v6866 = vpop.permute.xlu0 %6865
      %6867 = vset.pattern.permute.xlu0 0
      %6868 = vperm.xlu0 %6867, %v6797
      %v6869 = vpop.permute.xlu0 %6868
      %6870 = vset.pattern.permute.xlu0 0
      %6871 = vperm.xlu0 %6870, %v6798
      %v6872 = vpop.permute.xlu0 %6871
      %6873 = vset.pattern.permute.xlu0 0
      %6874 = vperm.xlu0 %6873, %v6799
      %v6875 = vpop.permute.xlu0 %6874
      %6876 = vset.pattern.permute.xlu0 0
      %6877 = vperm.xlu0 %6876, %v6800
      %v6878 = vpop.permute.xlu0 %6877
      %6879 = vset.pattern.permute.xlu0 0
      %6880 = vperm.xlu0 %6879, %v6801
      %v6881 = vpop.permute.xlu0 %6880
      %6882 = vset.pattern.permute.xlu0 0
      %6883 = vperm.xlu0 %6882, %v6802
      %v6884 = vpop.permute.xlu0 %6883
      %6885 = vset.pattern.permute.xlu0 0
      %6886 = vperm.xlu0 %6885, %v6803
      %v6887 = vpop.permute.xlu0 %6886
      %6888 = vset.pattern.permute.xlu0 0
      %6889 = vperm.xlu0 %6888, %v6804
      %v6890 = vpop.permute.xlu0 %6889
      %6891 = vset.pattern.permute.xlu0 0
      %6892 = vperm.xlu0 %6891, %v6805
      %v6893 = vpop.permute.xlu0 %6892
      %6894 = vset.pattern.permute.xlu0 0
      %6895 = vperm.xlu0 %6894, %v6806
      %v6896 = vpop.permute.xlu0 %6895
      %6897 = vset.pattern.permute.xlu0 0
      %6898 = vperm.xlu0 %6897, %v6807
      %v6899 = vpop.permute.xlu0 %6898
      %6900 = vset.pattern.permute.xlu0 0
      %6901 = vperm.xlu0 %6900, %v6808
      %v6902 = vpop.permute.xlu0 %6901
      %6903 = vset.pattern.permute.xlu0 0
      %6904 = vperm.xlu0 %6903, %v6809
      %v6905 = vpop.permute.xlu0 %6904
      %6906 = vset.pattern.permute.xlu0 0
      %6907 = vperm.xlu0 %6906, %v6810
      %v6908 = vpop.permute.xlu0 %6907
      %6909 = vset.pattern.permute.xlu0 0
      %6910 = vperm.xlu0 %6909, %v6811
      %v6911 = vpop.permute.xlu0 %6910
      %6912 = vset.pattern.permute.xlu0 0
      %6913 = vperm.xlu0 %6912, %v6812
      %v6914 = vpop.permute.xlu0 %6913
      %6915 = vset.pattern.permute.xlu0 0
      %6916 = vperm.xlu0 %6915, %v6813
      %v6917 = vpop.permute.xlu0 %6916
      %6918 = vset.pattern.permute.xlu0 0
      %6919 = vperm.xlu0 %6918, %v6814
      %v6920 = vpop.permute.xlu0 %6919
      %6921 = vset.pattern.permute.xlu0 0
      %6922 = vperm.xlu0 %6921, %v6815
      %v6923 = vpop.permute.xlu0 %6922
      %6924 = vset.pattern.permute.xlu0 0
      %6925 = vperm.xlu0 %6924, %v6816
      %v6926 = vpop.permute.xlu0 %6925
      %6927 = vset.pattern.permute.xlu0 0
      %6928 = vperm.xlu0 %6927, %v6817
      %v6929 = vpop.permute.xlu0 %6928
      %6930 = vset.pattern.permute.xlu0 0
      %6931 = vperm.xlu0 %6930, %v6818
      %v6932 = vpop.permute.xlu0 %6931
      %6933 = vset.pattern.permute.xlu0 0
      %6934 = vperm.xlu0 %6933, %v6819
      %v6935 = vpop.permute.xlu0 %6934
      %6936 = vset.pattern.permute.xlu0 0
      %6937 = vperm.xlu0 %6936, %v6820
      %v6938 = vpop.permute.xlu0 %6937
      %6939 = vset.pattern.permute.xlu0 0
      %6940 = vperm.xlu0 %6939, %v6821
      %v6941 = vpop.permute.xlu0 %6940
      %6942 = vset.pattern.permute.xlu0 0
      %6943 = vperm.xlu0 %6942, %v6822
      %v6944 = vpop.permute.xlu0 %6943
      %6945 = vset.pattern.permute.xlu0 0
      %6946 = vperm.xlu0 %6945, %v6823
      %v6947 = vpop.permute.xlu0 %6946
      %6948 = vset.pattern.permute.xlu0 0
      %6949 = vperm.xlu0 %6948, %v6824
      %v6950 = vpop.permute.xlu0 %6949
      %6951 = vset.pattern.permute.xlu0 0
      %6952 = vperm.xlu0 %6951, %v6825
      %v6953 = vpop.permute.xlu0 %6952
      %6954 = vset.pattern.permute.xlu0 0
      %6955 = vperm.xlu0 %6954, %v6826
      %v6956 = vpop.permute.xlu0 %6955
      %6957 = vset.pattern.permute.xlu0 0
      %6958 = vperm.xlu0 %6957, %v6827
      %v6959 = vpop.permute.xlu0 %6958
      %6960 = vset.pattern.permute.xlu0 0
      %6961 = vperm.xlu0 %6960, %v6828
      %v6962 = vpop.permute.xlu0 %6961
      %6963 = vset.pattern.permute.xlu0 0
      %6964 = vperm.xlu0 %6963, %v6829
      %v6965 = vpop.permute.xlu0 %6964
      %6966 = vset.pattern.permute.xlu0 0
      %6967 = vperm.xlu0 %6966, %v6830
      %v6968 = vpop.permute.xlu0 %6967
      %6969 = vset.pattern.permute.xlu0 0
      %6970 = vperm.xlu0 %6969, %v6831
      %v6971 = vpop.permute.xlu0 %6970
      %6972 = vset.pattern.permute.xlu0 0
      %6973 = vperm.xlu0 %6972, %v6832
      %v6974 = vpop.permute.xlu0 %6973
      %6975 = vset.pattern.permute.xlu0 0
      %6976 = vperm.xlu0 %6975, %v6833
      %v6977 = vpop.permute.xlu0 %6976
      %6978 = vset.pattern.permute.xlu0 0
      %6979 = vperm.xlu0 %6978, %v6834
      %v6980 = vpop.permute.xlu0 %6979
      %6981 = vset.pattern.permute.xlu0 0
      %6982 = vperm.xlu0 %6981, %v6835
      %v6983 = vpop.permute.xlu0 %6982
      %6984 = vset.pattern.permute.xlu0 0
      %6985 = vperm.xlu0 %6984, %v6836
      %v6986 = vpop.permute.xlu0 %6985
      %6987 = vset.pattern.permute.xlu0 0
      %6988 = vperm.xlu0 %6987, %v6837
      %v6989 = vpop.permute.xlu0 %6988
      %6990 = vset.pattern.permute.xlu0 0
      %6991 = vperm.xlu0 %6990, %v6838
      %v6992 = vpop.permute.xlu0 %6991
      %6993 = vset.pattern.permute.xlu0 0
      %6994 = vperm.xlu0 %6993, %v6839
      %v6995 = vpop.permute.xlu0 %6994
      %6996 = vset.pattern.permute.xlu0 0
      %6997 = vperm.xlu0 %6996, %v6840
      %v6998 = vpop.permute.xlu0 %6997
      %6999 = vset.pattern.permute.xlu0 0
      %7000 = vperm.xlu0 %6999, %v6841
      %v7001 = vpop.permute.xlu0 %7000
      %7002 = vset.pattern.permute.xlu0 0
      %7003 = vperm.xlu0 %7002, %v6842
      %v7004 = vpop.permute.xlu0 %7003
      %vm7005 = vcmp.eq.s32.totalorder %v6845, 1
      %vm7006 = vcmp.eq.s32.totalorder %v6848, 1
      %vm7007 = vcmp.eq.s32.totalorder %v6851, 1
      %vm7008 = vcmp.eq.s32.totalorder %v6854, 1
      %vm7009 = vcmp.eq.s32.totalorder %v6857, 1
      %vm7010 = vcmp.eq.s32.totalorder %v6860, 1
      %vm7011 = vcmp.eq.s32.totalorder %v6863, 1
      %vm7012 = vcmp.eq.s32.totalorder %v6866, 1
      %vm7013 = vcmp.eq.s32.totalorder %v6869, 1
      %vm7014 = vcmp.eq.s32.totalorder %v6872, 1
      %vm7015 = vcmp.eq.s32.totalorder %v6875, 1
      %vm7016 = vcmp.eq.s32.totalorder %v6878, 1
      %vm7017 = vcmp.eq.s32.totalorder %v6881, 1
      %vm7018 = vcmp.eq.s32.totalorder %v6884, 1
      %vm7019 = vcmp.eq.s32.totalorder %v6887, 1
      %vm7020 = vcmp.eq.s32.totalorder %v6890, 1
      %vm7021 = vcmp.eq.s32.totalorder %v6893, 1
      %vm7022 = vcmp.eq.s32.totalorder %v6896, 1
      %vm7023 = vcmp.eq.s32.totalorder %v6899, 1
      %vm7024 = vcmp.eq.s32.totalorder %v6902, 1
      %vm7025 = vcmp.eq.s32.totalorder %v6905, 1
      %vm7026 = vcmp.eq.s32.totalorder %v6908, 1
      %vm7027 = vcmp.eq.s32.totalorder %v6911, 1
      %vm7028 = vcmp.eq.s32.totalorder %v6914, 1
      %vm7029 = vcmp.eq.s32.totalorder %v6917, 1
      %vm7030 = vcmp.eq.s32.totalorder %v6920, 1
      %vm7031 = vcmp.eq.s32.totalorder %v6923, 1
      %vm7032 = vcmp.eq.s32.totalorder %v6926, 1
      %vm7033 = vcmp.eq.s32.totalorder %v6929, 1
      %vm7034 = vcmp.eq.s32.totalorder %v6932, 1
      %vm7035 = vcmp.eq.s32.totalorder %v6935, 1
      %vm7036 = vcmp.eq.s32.totalorder %v6938, 1
      %vm7037 = vcmp.eq.s32.totalorder %v6941, 1
      %vm7038 = vcmp.eq.s32.totalorder %v6944, 1
      %vm7039 = vcmp.eq.s32.totalorder %v6947, 1
      %vm7040 = vcmp.eq.s32.totalorder %v6950, 1
      %vm7041 = vcmp.eq.s32.totalorder %v6953, 1
      %vm7042 = vcmp.eq.s32.totalorder %v6956, 1
      %vm7043 = vcmp.eq.s32.totalorder %v6959, 1
      %vm7044 = vcmp.eq.s32.totalorder %v6962, 1
      %vm7045 = vcmp.eq.s32.totalorder %v6965, 1
      %vm7046 = vcmp.eq.s32.totalorder %v6968, 1
      %vm7047 = vcmp.eq.s32.totalorder %v6971, 1
      %vm7048 = vcmp.eq.s32.totalorder %v6974, 1
      %vm7049 = vcmp.eq.s32.totalorder %v6977, 1
      %vm7050 = vcmp.eq.s32.totalorder %v6980, 1
      %vm7051 = vcmp.eq.s32.totalorder %v6983, 1
      %vm7052 = vcmp.eq.s32.totalorder %v6986, 1
      %vm7053 = vcmp.eq.s32.totalorder %v6989, 1
      %vm7054 = vcmp.eq.s32.totalorder %v6992, 1
      %vm7055 = vcmp.eq.s32.totalorder %v6995, 1
      %vm7056 = vcmp.eq.s32.totalorder %v6998, 1
      %vm7057 = vcmp.eq.s32.totalorder %v7001, 1
      %vm7058 = vcmp.eq.s32.totalorder %v7004, 1
      %v7059 = vsel %vm7005, %v6627, 0.0
      %v7060 = vsel %vm7006, %v6628, 0.0
      %v7061 = vsel %vm7007, %v6629, 0.0
      %v7062 = vsel %vm7008, %v6630, 0.0
      %v7063 = vsel %vm7009, %v6631, 0.0
      %v7064 = vsel %vm7010, %v6632, 0.0
      %v7065 = vsel %vm7011, %v6633, 0.0
      %v7066 = vsel %vm7012, %v6634, 0.0
      %v7067 = vsel %vm7013, %v6635, 0.0
      %v7068 = vsel %vm7014, %v6636, 0.0
      %v7069 = vsel %vm7015, %v6637, 0.0
      %v7070 = vsel %vm7016, %v6638, 0.0
      %v7071 = vsel %vm7017, %v6639, 0.0
      %v7072 = vsel %vm7018, %v6640, 0.0
      %v7073 = vsel %vm7019, %v6641, 0.0
      %v7074 = vsel %vm7020, %v6642, 0.0
      %v7075 = vsel %vm7021, %v6643, 0.0
      %v7076 = vsel %vm7022, %v6644, 0.0
      %v7077 = vsel %vm7023, %v6645, 0.0
      %v7078 = vsel %vm7024, %v6646, 0.0
      %v7079 = vsel %vm7025, %v6647, 0.0
      %v7080 = vsel %vm7026, %v6648, 0.0
      %v7081 = vsel %vm7027, %v6649, 0.0
      %v7082 = vsel %vm7028, %v6650, 0.0
      %v7083 = vsel %vm7029, %v6651, 0.0
      %v7084 = vsel %vm7030, %v6652, 0.0
      %v7085 = vsel %vm7031, %v6653, 0.0
      %v7086 = vsel %vm7032, %v6654, 0.0
      %v7087 = vsel %vm7033, %v6655, 0.0
      %v7088 = vsel %vm7034, %v6656, 0.0
      %v7089 = vsel %vm7035, %v6657, 0.0
      %v7090 = vsel %vm7036, %v6658, 0.0
      %v7091 = vsel %vm7037, %v6659, 0.0
      %v7092 = vsel %vm7038, %v6660, 0.0
      %v7093 = vsel %vm7039, %v6661, 0.0
      %v7094 = vsel %vm7040, %v6662, 0.0
      %v7095 = vsel %vm7041, %v6663, 0.0
      %v7096 = vsel %vm7042, %v6664, 0.0
      %v7097 = vsel %vm7043, %v6665, 0.0
      %v7098 = vsel %vm7044, %v6666, 0.0
      %v7099 = vsel %vm7045, %v6667, 0.0
      %v7100 = vsel %vm7046, %v6668, 0.0
      %v7101 = vsel %vm7047, %v6669, 0.0
      %v7102 = vsel %vm7048, %v6670, 0.0
      %v7103 = vsel %vm7049, %v6671, 0.0
      %v7104 = vsel %vm7050, %v6672, 0.0
      %v7105 = vsel %vm7051, %v6673, 0.0
      %v7106 = vsel %vm7052, %v6674, 0.0
      %v7107 = vsel %vm7053, %v6675, 0.0
      %v7108 = vsel %vm7054, %v6676, 0.0
      %v7109 = vsel %vm7055, %v6677, 0.0
      %v7110 = vsel %vm7056, %v6678, 0.0
      %v7111 = vsel %vm7057, %v6679, 0.0
      %v7112 = vsel %vm7058, %v6680, 0.0
      %v7113 = vpack.c.bf16 %v7060, %v7059
      %v7114 = vpack.c.bf16 %v7062, %v7061
      %v7115 = vpack.c.bf16 %v7064, %v7063
      %v7116 = vpack.c.bf16 %v7066, %v7065
      %v7117 = vpack.c.bf16 %v7068, %v7067
      %v7118 = vpack.c.bf16 %v7070, %v7069
      %v7119 = vpack.c.bf16 %v7072, %v7071
      %v7120 = vpack.c.bf16 %v7074, %v7073
      %v7121 = vpack.c.bf16 %v7076, %v7075
      %v7122 = vpack.c.bf16 %v7078, %v7077
      %v7123 = vpack.c.bf16 %v7080, %v7079
      %v7124 = vpack.c.bf16 %v7082, %v7081
      %v7125 = vpack.c.bf16 %v7084, %v7083
      %v7126 = vpack.c.bf16 %v7086, %v7085
      %v7127 = vpack.c.bf16 %v7088, %v7087
      %v7128 = vpack.c.bf16 %v7090, %v7089
      %v7129 = vpack.c.bf16 %v7092, %v7091
      %v7130 = vpack.c.bf16 %v7094, %v7093
      %v7131 = vpack.c.bf16 %v7096, %v7095
      %v7132 = vpack.c.bf16 %v7098, %v7097
      %v7133 = vpack.c.bf16 %v7100, %v7099
      %v7134 = vpack.c.bf16 %v7102, %v7101
      %v7135 = vpack.c.bf16 %v7104, %v7103
      %v7136 = vpack.c.bf16 %v7106, %v7105
      %v7137 = vpack.c.bf16 %v7108, %v7107
      %v7138 = vpack.c.bf16 %v7110, %v7109
      %v7139 = vpack.c.bf16 %v7112, %v7111
      %v7167 = vunpack.c.l.b16 %v7113
      %v7168 = vunpack.c.h.b16 %v7113
      %v7169 = vunpack.c.l.b16 %v7114
      %v7170 = vunpack.c.h.b16 %v7114
      %v7171 = vunpack.c.l.b16 %v7115
      %v7172 = vunpack.c.h.b16 %v7115
      %v7173 = vunpack.c.l.b16 %v7116
      %v7174 = vunpack.c.h.b16 %v7116
      %v7175 = vunpack.c.l.b16 %v7117
      %v7176 = vunpack.c.h.b16 %v7117
      %v7177 = vunpack.c.l.b16 %v7118
      %v7178 = vunpack.c.h.b16 %v7118
      %v7179 = vunpack.c.l.b16 %v7119
      %v7180 = vunpack.c.h.b16 %v7119
      %v7181 = vunpack.c.l.b16 %v7120
      %v7182 = vunpack.c.h.b16 %v7120
      %v7183 = vunpack.c.l.b16 %v7121
      %v7184 = vunpack.c.h.b16 %v7121
      %v7185 = vunpack.c.l.b16 %v7122
      %v7186 = vunpack.c.h.b16 %v7122
      %v7187 = vunpack.c.l.b16 %v7123
      %v7188 = vunpack.c.h.b16 %v7123
      %v7189 = vunpack.c.l.b16 %v7124
      %v7190 = vunpack.c.h.b16 %v7124
      %v7191 = vunpack.c.l.b16 %v7125
      %v7192 = vunpack.c.h.b16 %v7125
      %v7193 = vunpack.c.l.b16 %v7126
      %v7194 = vunpack.c.h.b16 %v7126
      %v7195 = vunpack.c.l.b16 %v7127
      %v7196 = vunpack.c.h.b16 %v7127
      %v7197 = vunpack.c.l.b16 %v7128
      %v7198 = vunpack.c.h.b16 %v7128
      %v7199 = vunpack.c.l.b16 %v7129
      %v7200 = vunpack.c.h.b16 %v7129
      %v7201 = vunpack.c.l.b16 %v7130
      %v7202 = vunpack.c.h.b16 %v7130
      %v7203 = vunpack.c.l.b16 %v7131
      %v7204 = vunpack.c.h.b16 %v7131
      %v7205 = vunpack.c.l.b16 %v7132
      %v7206 = vunpack.c.h.b16 %v7132
      %v7207 = vunpack.c.l.b16 %v7133
      %v7208 = vunpack.c.h.b16 %v7133
      %v7209 = vunpack.c.l.b16 %v7134
      %v7210 = vunpack.c.h.b16 %v7134
      %v7211 = vunpack.c.l.b16 %v7135
      %v7212 = vunpack.c.h.b16 %v7135
      %v7213 = vunpack.c.l.b16 %v7136
      %v7214 = vunpack.c.h.b16 %v7136
      %v7215 = vunpack.c.l.b16 %v7137
      %v7216 = vunpack.c.h.b16 %v7137
      %v7217 = vunpack.c.l.b16 %v7138
      %v7218 = vunpack.c.h.b16 %v7138
      %v7219 = vunpack.c.l.b16 %v7139
      %v7220 = vunpack.c.h.b16 %v7139
      %v7221 = vpack.c.b16 %v7167, %v7167
      %v7222 = vpack.c.b16 %v7168, %v7168
      %v7223 = vpack.c.b16 %v7169, %v7169
      %v7224 = vpack.c.b16 %v7170, %v7170
      %v7225 = vpack.c.b16 %v7171, %v7171
      %v7226 = vpack.c.b16 %v7172, %v7172
      %v7227 = vpack.c.b16 %v7173, %v7173
      %v7228 = vpack.c.b16 %v7174, %v7174
      %v7229 = vpack.c.b16 %v7175, %v7175
      %v7230 = vpack.c.b16 %v7176, %v7176
      %v7231 = vpack.c.b16 %v7177, %v7177
      %v7232 = vpack.c.b16 %v7178, %v7178
      %v7233 = vpack.c.b16 %v7179, %v7179
      %v7234 = vpack.c.b16 %v7180, %v7180
      %v7235 = vpack.c.b16 %v7181, %v7181
      %v7236 = vpack.c.b16 %v7182, %v7182
      %v7237 = vpack.c.b16 %v7183, %v7183
      %v7238 = vpack.c.b16 %v7184, %v7184
      %v7239 = vpack.c.b16 %v7185, %v7185
      %v7240 = vpack.c.b16 %v7186, %v7186
      %v7241 = vpack.c.b16 %v7187, %v7187
      %v7242 = vpack.c.b16 %v7188, %v7188
      %v7243 = vpack.c.b16 %v7189, %v7189
      %v7244 = vpack.c.b16 %v7190, %v7190
      %v7245 = vpack.c.b16 %v7191, %v7191
      %v7246 = vpack.c.b16 %v7192, %v7192
      %v7247 = vpack.c.b16 %v7193, %v7193
      %v7248 = vpack.c.b16 %v7194, %v7194
      %v7249 = vpack.c.b16 %v7195, %v7195
      %v7250 = vpack.c.b16 %v7196, %v7196
      %v7251 = vpack.c.b16 %v7197, %v7197
      %v7252 = vpack.c.b16 %v7198, %v7198
      %v7253 = vpack.c.b16 %v7199, %v7199
      %v7254 = vpack.c.b16 %v7200, %v7200
      %v7255 = vpack.c.b16 %v7201, %v7201
      %v7256 = vpack.c.b16 %v7202, %v7202
      %v7257 = vpack.c.b16 %v7203, %v7203
      %v7258 = vpack.c.b16 %v7204, %v7204
      %v7259 = vpack.c.b16 %v7205, %v7205
      %v7260 = vpack.c.b16 %v7206, %v7206
      %v7261 = vpack.c.b16 %v7207, %v7207
      %v7262 = vpack.c.b16 %v7208, %v7208
      %v7263 = vpack.c.b16 %v7209, %v7209
      %v7264 = vpack.c.b16 %v7210, %v7210
      %v7265 = vpack.c.b16 %v7211, %v7211
      %v7266 = vpack.c.b16 %v7212, %v7212
      %v7267 = vpack.c.b16 %v7213, %v7213
      %v7268 = vpack.c.b16 %v7214, %v7214
      %v7269 = vpack.c.b16 %v7215, %v7215
      %v7270 = vpack.c.b16 %v7216, %v7216
      %v7271 = vpack.c.b16 %v7217, %v7217
      %v7272 = vpack.c.b16 %v7218, %v7218
      %v7273 = vpack.c.b16 %v7219, %v7219
      %v7274 = vpack.c.b16 %v7220, %v7220
      %7329 = vst [vmem:[%s206] sm:$0xf] %v7221
      %7330 = vst [vmem:[%s206 + $0x4] sm:$0xf] %v7222
      %7331 = vst [vmem:[%s206 + $0x8] sm:$0xf] %v7223
      %7332 = vst [vmem:[%s206 + $0xc] sm:$0xf] %v7224
      %7333 = vst [vmem:[%s206 + $0x10] sm:$0xf] %v7225
      %7334 = vst [vmem:[%s206 + $0x14] sm:$0xf] %v7226
      %7335 = vst [vmem:[%s206 + $0x18] sm:$0xf] %v7227
      %7336 = vst [vmem:[%s206 + $0x1c] sm:$0xf] %v7228
      %7337 = vst [vmem:[%s206 + $0x20] sm:$0xf] %v7229
      %7338 = vst [vmem:[%s206 + $0x24] sm:$0xf] %v7230
      %7339 = vst [vmem:[%s206 + $0x28] sm:$0xf] %v7231
      %7340 = vst [vmem:[%s206 + $0x2c] sm:$0xf] %v7232
      %7341 = vst [vmem:[%s206 + $0x30] sm:$0xf] %v7233
      %7342 = vst [vmem:[%s206 + $0x34] sm:$0xf] %v7234
      %7343 = vst [vmem:[%s206 + $0x38] sm:$0xf] %v7235
      %7344 = vst [vmem:[%s206 + $0x3c] sm:$0xf] %v7236
      %7345 = vst [vmem:[%s206 + $0x40] sm:$0xf] %v7237
      %7346 = vst [vmem:[%s206 + $0x44] sm:$0xf] %v7238
      %7347 = vst [vmem:[%s206 + $0x48] sm:$0xf] %v7239
      %7348 = vst [vmem:[%s206 + $0x4c] sm:$0xf] %v7240
      %7349 = vst [vmem:[%s206 + $0x50] sm:$0xf] %v7241
      %7350 = vst [vmem:[%s206 + $0x54] sm:$0xf] %v7242
      %7351 = vst [vmem:[%s206 + $0x58] sm:$0xf] %v7243
      %7352 = vst [vmem:[%s206 + $0x5c] sm:$0xf] %v7244
      %7353 = vst [vmem:[%s206 + $0x60] sm:$0xf] %v7245
      %7354 = vst [vmem:[%s206 + $0x64] sm:$0xf] %v7246
      %7355 = vst [vmem:[%s206 + $0x68] sm:$0xf] %v7247
      %7356 = vst [vmem:[%s206 + $0x6c] sm:$0xf] %v7248
      %7357 = vst [vmem:[%s206 + $0x70] sm:$0xf] %v7249
      %7358 = vst [vmem:[%s206 + $0x74] sm:$0xf] %v7250
      %7359 = vst [vmem:[%s206 + $0x78] sm:$0xf] %v7251
      %7360 = vst [vmem:[%s206 + $0x7c] sm:$0xf] %v7252
      %7361 = vst [vmem:[%s206 + $0x80] sm:$0xf] %v7253
      %7362 = vst [vmem:[%s206 + $0x84] sm:$0xf] %v7254
      %7363 = vst [vmem:[%s206 + $0x88] sm:$0xf] %v7255
      %7364 = vst [vmem:[%s206 + $0x8c] sm:$0xf] %v7256
      %7365 = vst [vmem:[%s206 + $0x90] sm:$0xf] %v7257
      %7366 = vst [vmem:[%s206 + $0x94] sm:$0xf] %v7258
      %7367 = vst [vmem:[%s206 + $0x98] sm:$0xf] %v7259
      %7368 = vst [vmem:[%s206 + $0x9c] sm:$0xf] %v7260
      %7369 = vst [vmem:[%s206 + $0xa0] sm:$0xf] %v7261
      %7370 = vst [vmem:[%s206 + $0xa4] sm:$0xf] %v7262
      %7371 = vst [vmem:[%s206 + $0xa8] sm:$0xf] %v7263
      %7372 = vst [vmem:[%s206 + $0xac] sm:$0xf] %v7264
      %7373 = vst [vmem:[%s206 + $0xb0] sm:$0xf] %v7265
      %7374 = vst [vmem:[%s206 + $0xb4] sm:$0xf] %v7266
      %7375 = vst [vmem:[%s206 + $0xb8] sm:$0xf] %v7267
      %7376 = vst [vmem:[%s206 + $0xbc] sm:$0xf] %v7268
      %7377 = vst [vmem:[%s206 + $0xc0] sm:$0xf] %v7269
      %7378 = vst [vmem:[%s206 + $0xc4] sm:$0xf] %v7270
      %7379 = vst [vmem:[%s206 + $0xc8] sm:$0xf] %v7271
      %7380 = vst [vmem:[%s206 + $0xcc] sm:$0xf] %v7272
      %7381 = vst [vmem:[%s206 + $0xd0] sm:$0xf] %v7273
      %7382 = vst [vmem:[%s206 + $0xd4] sm:$0xf] %v7274
      %s7383 = sadd.s32 %s20, 1
      %s7384 = smul.u32 54, %s7383
      %p7385 = scmp.lt.s32.totalorder %s19, 1
      %s7386 = scalar_select %p7385, %s19, 1
      %p7387 = scmp.lt.s32.totalorder %s7384, 161
      %s7388 = scalar_select %p7387, %s7384, 161
      %s7389 = smul.addr %s7386, 162
      %s7390 = sadd.s32 %s7388, %s7389
      %s7391 = smul.addr %s7390, 4
      %s7392 = scalar_lea.vmem %s4, %s7391
      // Predicated region
      $region109: #{hgblock_forward.7} parent=31 // pred_check
        %p7393 = pneg %p119
      $region110: #{hgblock_forward.7} parent=31 // pred_check_branch
        %7395 = sbr.rel (%p7393) target = $region112
      $region111: #{hgblock_forward.7} parent=31 // pred_region
        %s7396 = sadd.s32 %s20, 1
        %s7397 = smul.u32 54, %s7396
      $region112: #{hgblock_forward.7} parent=31 // pred_fallthru
        _
    $region32: #{hgblock_forward.7} parent=5 // pred_fallthru
      _
    %p7398 = scmp.le.s32.totalorder 2, %s10
    // Predicated region
    $region113: #{hgblock_forward.7} parent=5 // pred_check
      %p7399 = pneg %p7398
    $region114: #{hgblock_forward.7} parent=5 // pred_check_branch
      %7401 = sbr.rel (%p7399) target = $region116
    $region115: #{hgblock_forward.7} parent=5 // pred_region
      %s7402 = ssub.s32 %s10, 2
      // Predicated region
      $region117: #{hgblock_forward.7} parent=115 // pred_check
        %p7403 = pneg %p125
      $region118: #{hgblock_forward.7} parent=115 // pred_check_branch
        %7405 = sbr.rel (%p7403) target = $region120
      $region119: #{hgblock_forward.7} parent=115 // pred_region
        %s7406 = sadd.s32 %s22, 1
        %s7407 = smul.u32 54, %s7406
        %p7408 = scmp.lt.s32.totalorder %s21, 1
        %s7409 = scalar_select %p7408, %s21, 1
        %p7410 = scmp.lt.s32.totalorder %s7407, 161
        %s7411 = scalar_select %p7410, %s7407, 161
        %s7412 = smul.addr %s7409, 162
        %s7413 = sadd.s32 %s7411, %s7412
        %s7414 = smul.addr %s7413, 4
        %s7415 = scalar_lea.vmem %s4, %s7414
      $region120: #{hgblock_forward.7} parent=115 // pred_fallthru
        _
    $region116: #{hgblock_forward.7} parent=5 // pred_fallthru
      _
  $region6: #{hgblock_forward.7} parent=0 // loop_footer
    %s14 = sadd.s32 1, %s10
  $region7: #{hgblock_forward.7} parent=0 // loop_footer_branch
    %9 = sbr.rel target = $region3
  $region8: #{hgblock_forward.7} parent=0 // loop_exit
    _
  %7416 = vsyncmov [#allocation3]
  %s7417 = vpop.sfrf %7416
  %p7418 = scmp.eq.s32.totalorder %s7417, 0
  %p7419 = pneg %p7418
  %7421 = shalt.err (%p7419)
  %s7422 = scalar_lea.sflag [#allocation3], 1
  %7423 = vsyncmov %s7422
  %s7424 = vpop.sfrf %7423
  %p7425 = scmp.eq.s32.totalorder %s7424, 0
  %p7426 = pneg %p7425
  %7428 = shalt.err (%p7426)

</llo_original>
